<compile_context>
chip_gen: v5e
topology: v5e:2x2
jax: 0.10.0
libtpu: 0.0.40
codegen_flags: <defaults>
</compile_context>

<pallas_src>
import numpy as np
import jax
import jax.numpy as jnp
from jax.experimental import pallas as pl
from jax.experimental.pallas import tpu as pltpu


# ---------------------------------------------------------------------------
# Deterministic DCT weights (exactly mirrors the PyTorch __init__)
# ---------------------------------------------------------------------------
def dct_basis(n, k1, k2):
    x = np.array([range(n)], dtype=np.float64)
    x = 2 * np.cos(np.pi * (2 * x + 1) * k1 / 2.0 / n)
    red1 = 1 / np.sqrt(2) if k1 == 0 else 1
    y = np.array([range(n)], dtype=np.float64)
    y = 2 * np.cos(np.pi * (2 * y + 1) * k2 / 2.0 / n)
    red2 = 1 / np.sqrt(2) if k2 == 0 else 1
    return np.dot(x.T, y) * red1 * red2 / 2 / n


def make_dct_weights(ksize=8):
    """Returns conv weight of shape (k*k, 1, k, k), float32 (PyTorch layout)."""
    ch = ksize ** 2
    indices = [(i % ksize, i // ksize) for i in range(ch)]
    indices.sort(key=lambda e: e[0] + e[1])  # stable sort, same as torch code
    w = np.zeros((ch, 1, ksize, ksize), dtype=np.float32)
    for i, ind in enumerate(indices):
        w[i, 0, :, :] = dct_basis(ksize, ind[0], ind[1]).astype(np.float32)
    return w


def _dct_1d_basis(n):
    """1-D factors D (n, n) with dct_basis(n, k1, k2) == outer(D[k1], D[k2])."""
    t = np.arange(n, dtype=np.float64)
    d = np.zeros((n, n), dtype=np.float64)
    for f in range(n):
        red = 1.0 / np.sqrt(2.0) if f == 0 else 1.0
        d[f] = 2.0 * np.cos(np.pi * (2 * t + 1) * f / (2.0 * n)) * red / np.sqrt(2.0 * n)
    return d


def _sorted_freq_pairs(ksize):
    """Channel -> (height_freq, width_freq) in the module's (sorted) order."""
    ch = ksize ** 2
    indices = [(i % ksize, i // ksize) for i in range(ch)]
    indices.sort(key=lambda e: e[0] + e[1])
    return indices


# ---------------------------------------------------------------------------
# small helpers
# ---------------------------------------------------------------------------
def _cdiv(a, b):
    return (a + b - 1) // b


def _round_up(a, m):
    return _cdiv(a, m) * m


_TWO_TC = None


def _has_two_tensorcores():
    """Best-effort: does one Pallas grid see 2 TensorCores (megacore / v7x)?"""
    global _TWO_TC
    if _TWO_TC is None:
        try:
            kind = jax.devices()[0].device_kind.lower()
        except Exception:
            kind = ""
        _TWO_TC = ("v7" in kind) or ("v4" in kind) or ("v5p" in kind)
    return _TWO_TC


# ---------------------------------------------------------------------------
# Fused separable DCT conv kernel (primary path)
# ---------------------------------------------------------------------------
_FUSED_TARGET_OUT_BYTES = 2 * 1024 * 1024   # ~2 MiB of f32 output per grid step
_FUSED_VMEM_BUDGET = 24 * 1024 * 1024       # conservative: fits v5e/v6e/v7x


def _fused_plan(H, W, ksize, two_tc):
    """Pick (row_tile, num_tiles) for the fused kernel, or None -> fallback."""
    k = ksize
    kk = k * k
    pad = 2 * ksize // 2 - 1
    Ho, Wo = H + pad, W + pad
    Wp = W + 2 * pad

    def vmem_est(tr):
        nt = _cdiv(Ho, tr)
        hp_pad = nt * tr + (k - 1)
        xp_b = hp_pad * Wp * 4              # resident padded input
        out_b = kk * tr * Wo * 4            # one output block
        hps_b = k * tr * Wp * 4             # height-pass VMEM scratch
        live = 12 * tr * max(Wp, Wo) * 4    # register-pressure / spill fudge
        return 2 * xp_b + 2 * out_b + hps_b + live

    if kk * Ho * Wo * 4 <= 2 * _FUSED_TARGET_OUT_BYTES:
        tr = Ho                                          # one exact block
    else:
        tr = _round_up(max(8, _cdiv(_FUSED_TARGET_OUT_BYTES, 4 * kk * Wo)), 8)
        tr = min(tr, _round_up(Ho, 8))
        while tr > 8 and vmem_est(tr) > _FUSED_VMEM_BUDGET:
            tr -= 8
        nt = _cdiv(Ho, tr)
        if two_tc and nt > 1 and nt % 2 == 1:
            # even tile count keeps both v7x TensorCores busy (review item)
            for t2 in (tr + 8, tr - 8, tr + 16, tr - 16):
                if (8 <= t2 <= _round_up(Ho, 8)
                        and _cdiv(Ho, t2) % 2 == 0
                        and vmem_est(t2) <= _FUSED_VMEM_BUDGET):
                    tr = t2
                    break
        if tr >= Ho:
            tr = Ho

    if vmem_est(tr) > _FUSED_VMEM_BUDGET:
        return None
    return tr, _cdiv(Ho, tr)


def _dct_conv_fused(x, ksize, TR, num_tiles):
    H, W = x.shape
    k = ksize
    kk = k * k
    pad = 2 * ksize // 2 - 1                 # == ksize - 1 (as in the module)
    Ho, Wo = H + pad, W + pad
    Hp, Wp = H + 2 * pad, W + 2 * pad
    Hp_pad = num_tiles * TR + (k - 1)        # keep all in-kernel reads in bounds

    # ReflectionPad2d(k-1) — same semantics as jnp 'reflect' (needs H, W >= k).
    xp = jnp.pad(x.astype(jnp.float32), pad, mode="reflect")
    if Hp_pad > Hp:
        xp = jnp.pad(xp, ((0, Hp_pad - Hp), (0, 0)))

    D = _dct_1d_basis(k)                     # (k, k) float64 -> baked constants
    pairs = _sorted_freq_pairs(k)            # channel -> (f_height, f_width)
    groups = {}
    for c, (f1, f2) in enumerate(pairs):
        groups.setdefault(f1, []).append((c, f2))

    def kernel(xp_ref, o_ref, hp_ref):
        r0 = pl.program_id(0) * TR
        if TR % 8 == 0:
            r0 = pl.multiple_of(r0, 8)

        # ---- Stage A: 8-tap vertical DCT pass (fused im2col: no HBM slab) --
        haccs = [None] * k
        for a in range(k):
            rows = xp_ref[pl.ds(r0 + a, TR), :]          # (TR, Wp)
            for f in range(k):
                term = rows * float(D[f, a])
                haccs[f] = term if haccs[f] is None else haccs[f] + term
        for f in range(k):
            hp_ref[f] = haccs[f]

        # ---- Stage B: 8-tap horizontal DCT pass -> 64 output channels ------
        for f1 in range(k):
            hp = hp_ref[f1]                              # (TR, Wp)
            chan = groups[f1]
            accs = [None] * len(chan)
            for b in range(k):
                sh = hp[:, b:b + Wo]                     # (TR, Wo) lane shift
                for ci, (c, f2) in enumerate(chan):
                    term = sh * float(D[f2, b])
                    accs[ci] = term if accs[ci] is None else accs[ci] + term
            for ci, (c, _f2) in enumerate(chan):
                o_ref[c] = accs[ci]

    cost = pl.CostEstimate(
        flops=2 * kk * num_tiles * TR * Wp + 2 * k * kk * num_tiles * TR * Wo,
        transcendentals=0,
        bytes_accessed=Hp_pad * Wp * 4 + kk * Ho * Wo * 4,
    )

    return pl.pallas_call(
        kernel,
        out_shape=jax.ShapeDtypeStruct((kk, Ho, Wo), jnp.float32),
        grid_spec=pltpu.PrefetchScalarGridSpec(
            num_scalar_prefetch=0,
            grid=(num_tiles,),
            in_specs=[pl.BlockSpec((Hp_pad, Wp), lambda i: (0, 0))],   # resident
            out_specs=pl.BlockSpec((kk, TR, Wo), lambda i: (0, i, 0)),
            scratch_shapes=[pltpu.VMEM((k, TR, Wp), jnp.float32)],
        ),
        compiler_params=pltpu.CompilerParams(
            dimension_semantics=("parallel",),
            vmem_limit_bytes=32 * 1024 * 1024,
        ),
        cost_estimate=cost,
    )(xp)


# ---------------------------------------------------------------------------
# im2col + MXU matmul fallback (bf16 slab) for images too large for the
# fused/resident path
# ---------------------------------------------------------------------------
MAX_TN = 8192      # pixels per lane-tile: 64*8192 bf16 in (1 MiB) + f32 out (2 MiB)


def _dct_conv_im2col(x, ksize, two_tc):
    H, W = x.shape
    k = ksize
    kk = k * k
    pad = 2 * ksize // 2 - 1
    Ho, Wo = H + pad, W + pad
    npix = Ho * Wo

    xp = jnp.pad(x.astype(jnp.float32), pad, mode="reflect")
    # im2col in the transposed orientation (pixels on the lane axis), bf16 slab.
    windows = [xp[a:a + Ho, b:b + Wo] for a in range(k) for b in range(k)]
    patches = jnp.stack(windows, axis=0).reshape(kk, npix).astype(jnp.bfloat16)
    wmat = jnp.asarray(make_dct_weights(k)[:, 0, :, :].reshape(kk, kk),
                       dtype=jnp.bfloat16)

    npix128 = _round_up(npix, 128)
    n_tiles = _cdiv(npix128, MAX_TN)
    if two_tc:                              # only split for a 2-TC chip (v7x)
        if n_tiles == 1 and npix >= 2 * 1024:
            n_tiles = 2
        elif n_tiles > 1 and n_tiles % 2 == 1:
            n_tiles += 1                    # even count -> both TCs busy
    tn = npix if n_tiles == 1 else _round_up(_cdiv(npix128, n_tiles), 128)
    num_tiles = _cdiv(npix, tn)

    def kernel(w_ref, p_ref, o_ref):
        o_ref[...] = jnp.dot(w_ref[...], p_ref[...],
                             preferred_element_type=jnp.float32)

    cost = pl.CostEstimate(
        flops=2 * kk * kk * npix,
        transcendentals=0,
        bytes_accessed=kk * npix * 2 + kk * kk * 2 + kk * npix * 4,
    )

    out_flat = pl.pallas_call(
        kernel,
        out_shape=jax.ShapeDtypeStruct((kk, npix), jnp.float32),
        grid_spec=pltpu.PrefetchScalarGridSpec(
            num_scalar_prefetch=0,
            grid=(num_tiles,),
            in_specs=[pl.BlockSpec((kk, kk), lambda i: (0, 0)),   # resident basis
                      pl.BlockSpec((kk, tn), lambda i: (0, i))],
            out_specs=pl.BlockSpec((kk, tn), lambda i: (0, i)),
        ),
        compiler_params=pltpu.CompilerParams(
            dimension_semantics=("parallel",)),
        cost_estimate=cost,
    )(wmat, patches)

    return out_flat.reshape(kk, Ho, Wo)


# ---------------------------------------------------------------------------
# Public entry point
# ---------------------------------------------------------------------------
def _dct_conv_forward_impl(x, ksize, force_path):
    if x.ndim != 2:
        raise ValueError("DCT_CONV.forward expects a single H x W image")
    H, W = x.shape
    if H < ksize or W < ksize:
        raise ValueError(
            f"ReflectionPad2d({ksize - 1}) requires H, W >= ksize={ksize}; "
            f"got ({H}, {W})")
    two_tc = _has_two_tensorcores()
    if force_path != "im2col":
        plan = _fused_plan(H, W, ksize, two_tc)
        if plan is not None:
            tr, num_tiles = plan
            return _dct_conv_fused(x, ksize, tr, num_tiles)
    return _dct_conv_im2col(x, ksize, two_tc)


_dct_conv_jit = jax.jit(_dct_conv_forward_impl, static_argnums=(1, 2))


def dct_conv_forward(x, ksize=8, force_path=None):
    """x: (H, W) float32 image.  Returns (k*k, H+k-1, W+k-1), matching
    DCT_CONV.forward(x) (== out[0])."""
    return _dct_conv_jit(x, ksize, force_path)


# ---------------------------------------------------------------------------
if __name__ == "__main__":
    ksize = 8
    # T = 36 only affects the (unported) analysis helpers, not forward().
    weight = make_dct_weights(ksize)

    def reference(xnp, w, k):
        pad = 2 * k // 2 - 1
        xpad = np.pad(np.asarray(xnp, dtype=np.float64), pad, mode="reflect")
        H, W = xnp.shape
        Ho, Wo = H + pad, W + pad
        ref = np.zeros((k * k, Ho, Wo), dtype=np.float64)
        for c in range(k * k):
            for a in range(k):
                for b in range(k):
                    ref[c] += float(w[c, 0, a, b]) * xpad[a:a + Ho, b:b + Wo]
        return ref

    key = jax.random.PRNGKey(0)

    # 1) small image -> fused separable kernel, single exact block
    x1 = jax.random.uniform(key, (16, 16), dtype=jnp.float32)
    out1 = jax.block_until_ready(dct_conv_forward(x1, ksize))
    assert out1.shape == (ksize * ksize, 23, 23), out1.shape
    np.testing.assert_allclose(np.asarray(out1, dtype=np.float64),
                               reference(np.asarray(x1), weight, ksize),
                               rtol=1e-3, atol=1e-3)

    # 2) same image through the bf16 im2col / MXU fallback path
    out2 = jax.block_until_ready(dct_conv_forward(x1, ksize, force_path="im2col"))
    assert out2.shape == (ksize * ksize, 23, 23), out2.shape
    np.testing.assert_allclose(np.asarray(out2, dtype=np.float64),
                               reference(np.asarray(x1), weight, ksize),
                               rtol=2e-2, atol=2e-2)

    # 3) larger image -> fused kernel with a multi-row-tile grid (ragged tail)
    x3 = jax.random.uniform(jax.random.PRNGKey(0), (250, 120), dtype=jnp.float32)
    out3 = jax.block_until_ready(dct_conv_forward(x3, ksize))
    assert out3.shape == (ksize * ksize, 257, 127), out3.shape
    np.testing.assert_allclose(np.asarray(out3, dtype=np.float64),
                               reference(np.asarray(x3), weight, ksize),
                               rtol=1e-3, atol=1e-3)

    # TODO(synk): analysis helpers (mean_dct/lowfreq_var/highfreq_var/noise_var
    # with torch.quantile/median/masked_select, image_variance_hist, show_net)
    # are not part of forward() and are not ported.
    print("KERNEL_OK")
</pallas_src>

<mosaic_0001>
module attributes {stable_mosaic.version = 11 : i64} {
  func.func @kernel(%arg0: i32, %arg1: memref<30x30xf32, #tpu.memory_space<vmem>>, %arg2: memref<64x23x23xf32, #tpu.memory_space<vmem>>, %arg3: memref<8x23x30xf32, #tpu.memory_space<vmem>>) attributes {dimension_semantics = [#tpu.dimension_semantics<parallel>], iteration_bounds = array<i64: 1>, scalar_prefetch = 0 : i64, scratch_operands = 1 : i64, tpu.core_type = #tpu.core_type<tc>, window_params = [{pipeline_mode = #tpu.pipeline_mode<synchronous>, transform_indices = @transform_0, window_bounds = array<i64: 30, 30>}, {transform_indices = @transform_1, window_bounds = array<i64: 64, 23, 23>}]} {
    %c23_i32 = arith.constant 23 : i32
    %0 = arith.muli %arg0, %c23_i32 : i32
    %c0_i32 = arith.constant 0 : i32
    %1 = arith.addi %0, %c0_i32 : i32
    %2 = arith.index_cast %1 : i32 to index
    %c0 = arith.constant 0 : index
    %3 = vector.load %arg1[%2, %c0] : memref<30x30xf32, #tpu.memory_space<vmem>>, vector<23x30xf32>
    %cst = arith.constant 0.353553385 : f32
    %4 = vector.broadcast %cst : f32 to vector<23x30xf32>
    %5 = arith.mulf %3, %4 : vector<23x30xf32>
    %cst_0 = arith.constant 0.490392625 : f32
    %6 = vector.broadcast %cst_0 : f32 to vector<23x30xf32>
    %7 = arith.mulf %3, %6 : vector<23x30xf32>
    %cst_1 = arith.constant 0.461939752 : f32
    %8 = vector.broadcast %cst_1 : f32 to vector<23x30xf32>
    %9 = arith.mulf %3, %8 : vector<23x30xf32>
    %cst_2 = arith.constant 0.415734798 : f32
    %10 = vector.broadcast %cst_2 : f32 to vector<23x30xf32>
    %11 = arith.mulf %3, %10 : vector<23x30xf32>
    %cst_3 = arith.constant 0.353553385 : f32
    %12 = vector.broadcast %cst_3 : f32 to vector<23x30xf32>
    %13 = arith.mulf %3, %12 : vector<23x30xf32>
    %cst_4 = arith.constant 0.277785122 : f32
    %14 = vector.broadcast %cst_4 : f32 to vector<23x30xf32>
    %15 = arith.mulf %3, %14 : vector<23x30xf32>
    %cst_5 = arith.constant 0.191341713 : f32
    %16 = vector.broadcast %cst_5 : f32 to vector<23x30xf32>
    %17 = arith.mulf %3, %16 : vector<23x30xf32>
    %cst_6 = arith.constant 0.0975451618 : f32
    %18 = vector.broadcast %cst_6 : f32 to vector<23x30xf32>
    %19 = arith.mulf %3, %18 : vector<23x30xf32>
    %c1_i32 = arith.constant 1 : i32
    %20 = arith.addi %0, %c1_i32 : i32
    %21 = arith.index_cast %20 : i32 to index
    %c0_7 = arith.constant 0 : index
    %22 = vector.load %arg1[%21, %c0_7] : memref<30x30xf32, #tpu.memory_space<vmem>>, vector<23x30xf32>
    %cst_8 = arith.constant 0.353553385 : f32
    %23 = vector.broadcast %cst_8 : f32 to vector<23x30xf32>
    %24 = arith.mulf %22, %23 : vector<23x30xf32>
    %25 = arith.addf %5, %24 : vector<23x30xf32>
    %cst_9 = arith.constant 0.415734798 : f32
    %26 = vector.broadcast %cst_9 : f32 to vector<23x30xf32>
    %27 = arith.mulf %22, %26 : vector<23x30xf32>
    %28 = arith.addf %7, %27 : vector<23x30xf32>
    %cst_10 = arith.constant 0.191341713 : f32
    %29 = vector.broadcast %cst_10 : f32 to vector<23x30xf32>
    %30 = arith.mulf %22, %29 : vector<23x30xf32>
    %31 = arith.addf %9, %30 : vector<23x30xf32>
    %cst_11 = arith.constant -0.0975451618 : f32
    %32 = vector.broadcast %cst_11 : f32 to vector<23x30xf32>
    %33 = arith.mulf %22, %32 : vector<23x30xf32>
    %34 = arith.addf %11, %33 : vector<23x30xf32>
    %cst_12 = arith.constant -0.353553385 : f32
    %35 = vector.broadcast %cst_12 : f32 to vector<23x30xf32>
    %36 = arith.mulf %22, %35 : vector<23x30xf32>
    %37 = arith.addf %13, %36 : vector<23x30xf32>
    %cst_13 = arith.constant -0.490392625 : f32
    %38 = vector.broadcast %cst_13 : f32 to vector<23x30xf32>
    %39 = arith.mulf %22, %38 : vector<23x30xf32>
    %40 = arith.addf %15, %39 : vector<23x30xf32>
    %cst_14 = arith.constant -0.461939752 : f32
    %41 = vector.broadcast %cst_14 : f32 to vector<23x30xf32>
    %42 = arith.mulf %22, %41 : vector<23x30xf32>
    %43 = arith.addf %17, %42 : vector<23x30xf32>
    %cst_15 = arith.constant -0.277785122 : f32
    %44 = vector.broadcast %cst_15 : f32 to vector<23x30xf32>
    %45 = arith.mulf %22, %44 : vector<23x30xf32>
    %46 = arith.addf %19, %45 : vector<23x30xf32>
    %c2_i32 = arith.constant 2 : i32
    %47 = arith.addi %0, %c2_i32 : i32
    %48 = arith.index_cast %47 : i32 to index
    %c0_16 = arith.constant 0 : index
    %49 = vector.load %arg1[%48, %c0_16] : memref<30x30xf32, #tpu.memory_space<vmem>>, vector<23x30xf32>
    %cst_17 = arith.constant 0.353553385 : f32
    %50 = vector.broadcast %cst_17 : f32 to vector<23x30xf32>
    %51 = arith.mulf %49, %50 : vector<23x30xf32>
    %52 = arith.addf %25, %51 : vector<23x30xf32>
    %cst_18 = arith.constant 0.277785122 : f32
    %53 = vector.broadcast %cst_18 : f32 to vector<23x30xf32>
    %54 = arith.mulf %49, %53 : vector<23x30xf32>
    %55 = arith.addf %28, %54 : vector<23x30xf32>
    %cst_19 = arith.constant -0.191341713 : f32
    %56 = vector.broadcast %cst_19 : f32 to vector<23x30xf32>
    %57 = arith.mulf %49, %56 : vector<23x30xf32>
    %58 = arith.addf %31, %57 : vector<23x30xf32>
    %cst_20 = arith.constant -0.490392625 : f32
    %59 = vector.broadcast %cst_20 : f32 to vector<23x30xf32>
    %60 = arith.mulf %49, %59 : vector<23x30xf32>
    %61 = arith.addf %34, %60 : vector<23x30xf32>
    %cst_21 = arith.constant -0.353553385 : f32
    %62 = vector.broadcast %cst_21 : f32 to vector<23x30xf32>
    %63 = arith.mulf %49, %62 : vector<23x30xf32>
    %64 = arith.addf %37, %63 : vector<23x30xf32>
    %cst_22 = arith.constant 0.0975451618 : f32
    %65 = vector.broadcast %cst_22 : f32 to vector<23x30xf32>
    %66 = arith.mulf %49, %65 : vector<23x30xf32>
    %67 = arith.addf %40, %66 : vector<23x30xf32>
    %cst_23 = arith.constant 0.461939752 : f32
    %68 = vector.broadcast %cst_23 : f32 to vector<23x30xf32>
    %69 = arith.mulf %49, %68 : vector<23x30xf32>
    %70 = arith.addf %43, %69 : vector<23x30xf32>
    %cst_24 = arith.constant 0.415734798 : f32
    %71 = vector.broadcast %cst_24 : f32 to vector<23x30xf32>
    %72 = arith.mulf %49, %71 : vector<23x30xf32>
    %73 = arith.addf %46, %72 : vector<23x30xf32>
    %c3_i32 = arith.constant 3 : i32
    %74 = arith.addi %0, %c3_i32 : i32
    %75 = arith.index_cast %74 : i32 to index
    %c0_25 = arith.constant 0 : index
    %76 = vector.load %arg1[%75, %c0_25] : memref<30x30xf32, #tpu.memory_space<vmem>>, vector<23x30xf32>
    %cst_26 = arith.constant 0.353553385 : f32
    %77 = vector.broadcast %cst_26 : f32 to vector<23x30xf32>
    %78 = arith.mulf %76, %77 : vector<23x30xf32>
    %79 = arith.addf %52, %78 : vector<23x30xf32>
    %cst_27 = arith.constant 0.0975451618 : f32
    %80 = vector.broadcast %cst_27 : f32 to vector<23x30xf32>
    %81 = arith.mulf %76, %80 : vector<23x30xf32>
    %82 = arith.addf %55, %81 : vector<23x30xf32>
    %cst_28 = arith.constant -0.461939752 : f32
    %83 = vector.broadcast %cst_28 : f32 to vector<23x30xf32>
    %84 = arith.mulf %76, %83 : vector<23x30xf32>
    %85 = arith.addf %58, %84 : vector<23x30xf32>
    %cst_29 = arith.constant -0.277785122 : f32
    %86 = vector.broadcast %cst_29 : f32 to vector<23x30xf32>
    %87 = arith.mulf %76, %86 : vector<23x30xf32>
    %88 = arith.addf %61, %87 : vector<23x30xf32>
    %cst_30 = arith.constant 0.353553385 : f32
    %89 = vector.broadcast %cst_30 : f32 to vector<23x30xf32>
    %90 = arith.mulf %76, %89 : vector<23x30xf32>
    %91 = arith.addf %64, %90 : vector<23x30xf32>
    %cst_31 = arith.constant 0.415734798 : f32
    %92 = vector.broadcast %cst_31 : f32 to vector<23x30xf32>
    %93 = arith.mulf %76, %92 : vector<23x30xf32>
    %94 = arith.addf %67, %93 : vector<23x30xf32>
    %cst_32 = arith.constant -0.191341713 : f32
    %95 = vector.broadcast %cst_32 : f32 to vector<23x30xf32>
    %96 = arith.mulf %76, %95 : vector<23x30xf32>
    %97 = arith.addf %70, %96 : vector<23x30xf32>
    %cst_33 = arith.constant -0.490392625 : f32
    %98 = vector.broadcast %cst_33 : f32 to vector<23x30xf32>
    %99 = arith.mulf %76, %98 : vector<23x30xf32>
    %100 = arith.addf %73, %99 : vector<23x30xf32>
    %c4_i32 = arith.constant 4 : i32
    %101 = arith.addi %0, %c4_i32 : i32
    %102 = arith.index_cast %101 : i32 to index
    %c0_34 = arith.constant 0 : index
    %103 = vector.load %arg1[%102, %c0_34] : memref<30x30xf32, #tpu.memory_space<vmem>>, vector<23x30xf32>
    %cst_35 = arith.constant 0.353553385 : f32
    %104 = vector.broadcast %cst_35 : f32 to vector<23x30xf32>
    %105 = arith.mulf %103, %104 : vector<23x30xf32>
    %106 = arith.addf %79, %105 : vector<23x30xf32>
    %cst_36 = arith.constant -0.0975451618 : f32
    %107 = vector.broadcast %cst_36 : f32 to vector<23x30xf32>
    %108 = arith.mulf %103, %107 : vector<23x30xf32>
    %109 = arith.addf %82, %108 : vector<23x30xf32>
    %cst_37 = arith.constant -0.461939752 : f32
    %110 = vector.broadcast %cst_37 : f32 to vector<23x30xf32>
    %111 = arith.mulf %103, %110 : vector<23x30xf32>
    %112 = arith.addf %85, %111 : vector<23x30xf32>
    %cst_38 = arith.constant 0.277785122 : f32
    %113 = vector.broadcast %cst_38 : f32 to vector<23x30xf32>
    %114 = arith.mulf %103, %113 : vector<23x30xf32>
    %115 = arith.addf %88, %114 : vector<23x30xf32>
    %cst_39 = arith.constant 0.353553385 : f32
    %116 = vector.broadcast %cst_39 : f32 to vector<23x30xf32>
    %117 = arith.mulf %103, %116 : vector<23x30xf32>
    %118 = arith.addf %91, %117 : vector<23x30xf32>
    %cst_40 = arith.constant -0.415734798 : f32
    %119 = vector.broadcast %cst_40 : f32 to vector<23x30xf32>
    %120 = arith.mulf %103, %119 : vector<23x30xf32>
    %121 = arith.addf %94, %120 : vector<23x30xf32>
    %cst_41 = arith.constant -0.191341713 : f32
    %122 = vector.broadcast %cst_41 : f32 to vector<23x30xf32>
    %123 = arith.mulf %103, %122 : vector<23x30xf32>
    %124 = arith.addf %97, %123 : vector<23x30xf32>
    %cst_42 = arith.constant 0.490392625 : f32
    %125 = vector.broadcast %cst_42 : f32 to vector<23x30xf32>
    %126 = arith.mulf %103, %125 : vector<23x30xf32>
    %127 = arith.addf %100, %126 : vector<23x30xf32>
    %c5_i32 = arith.constant 5 : i32
    %128 = arith.addi %0, %c5_i32 : i32
    %129 = arith.index_cast %128 : i32 to index
    %c0_43 = arith.constant 0 : index
    %130 = vector.load %arg1[%129, %c0_43] : memref<30x30xf32, #tpu.memory_space<vmem>>, vector<23x30xf32>
    %cst_44 = arith.constant 0.353553385 : f32
    %131 = vector.broadcast %cst_44 : f32 to vector<23x30xf32>
    %132 = arith.mulf %130, %131 : vector<23x30xf32>
    %133 = arith.addf %106, %132 : vector<23x30xf32>
    %cst_45 = arith.constant -0.277785122 : f32
    %134 = vector.broadcast %cst_45 : f32 to vector<23x30xf32>
    %135 = arith.mulf %130, %134 : vector<23x30xf32>
    %136 = arith.addf %109, %135 : vector<23x30xf32>
    %cst_46 = arith.constant -0.191341713 : f32
    %137 = vector.broadcast %cst_46 : f32 to vector<23x30xf32>
    %138 = arith.mulf %130, %137 : vector<23x30xf32>
    %139 = arith.addf %112, %138 : vector<23x30xf32>
    %cst_47 = arith.constant 0.490392625 : f32
    %140 = vector.broadcast %cst_47 : f32 to vector<23x30xf32>
    %141 = arith.mulf %130, %140 : vector<23x30xf32>
    %142 = arith.addf %115, %141 : vector<23x30xf32>
    %cst_48 = arith.constant -0.353553385 : f32
    %143 = vector.broadcast %cst_48 : f32 to vector<23x30xf32>
    %144 = arith.mulf %130, %143 : vector<23x30xf32>
    %145 = arith.addf %118, %144 : vector<23x30xf32>
    %cst_49 = arith.constant -0.0975451618 : f32
    %146 = vector.broadcast %cst_49 : f32 to vector<23x30xf32>
    %147 = arith.mulf %130, %146 : vector<23x30xf32>
    %148 = arith.addf %121, %147 : vector<23x30xf32>
    %cst_50 = arith.constant 0.461939752 : f32
    %149 = vector.broadcast %cst_50 : f32 to vector<23x30xf32>
    %150 = arith.mulf %130, %149 : vector<23x30xf32>
    %151 = arith.addf %124, %150 : vector<23x30xf32>
    %cst_51 = arith.constant -0.415734798 : f32
    %152 = vector.broadcast %cst_51 : f32 to vector<23x30xf32>
    %153 = arith.mulf %130, %152 : vector<23x30xf32>
    %154 = arith.addf %127, %153 : vector<23x30xf32>
    %c6_i32 = arith.constant 6 : i32
    %155 = arith.addi %0, %c6_i32 : i32
    %156 = arith.index_cast %155 : i32 to index
    %c0_52 = arith.constant 0 : index
    %157 = vector.load %arg1[%156, %c0_52] : memref<30x30xf32, #tpu.memory_space<vmem>>, vector<23x30xf32>
    %cst_53 = arith.constant 0.353553385 : f32
    %158 = vector.broadcast %cst_53 : f32 to vector<23x30xf32>
    %159 = arith.mulf %157, %158 : vector<23x30xf32>
    %160 = arith.addf %133, %159 : vector<23x30xf32>
    %cst_54 = arith.constant -0.415734798 : f32
    %161 = vector.broadcast %cst_54 : f32 to vector<23x30xf32>
    %162 = arith.mulf %157, %161 : vector<23x30xf32>
    %163 = arith.addf %136, %162 : vector<23x30xf32>
    %cst_55 = arith.constant 0.191341713 : f32
    %164 = vector.broadcast %cst_55 : f32 to vector<23x30xf32>
    %165 = arith.mulf %157, %164 : vector<23x30xf32>
    %166 = arith.addf %139, %165 : vector<23x30xf32>
    %cst_56 = arith.constant 0.0975451618 : f32
    %167 = vector.broadcast %cst_56 : f32 to vector<23x30xf32>
    %168 = arith.mulf %157, %167 : vector<23x30xf32>
    %169 = arith.addf %142, %168 : vector<23x30xf32>
    %cst_57 = arith.constant -0.353553385 : f32
    %170 = vector.broadcast %cst_57 : f32 to vector<23x30xf32>
    %171 = arith.mulf %157, %170 : vector<23x30xf32>
    %172 = arith.addf %145, %171 : vector<23x30xf32>
    %cst_58 = arith.constant 0.490392625 : f32
    %173 = vector.broadcast %cst_58 : f32 to vector<23x30xf32>
    %174 = arith.mulf %157, %173 : vector<23x30xf32>
    %175 = arith.addf %148, %174 : vector<23x30xf32>
    %cst_59 = arith.constant -0.461939752 : f32
    %176 = vector.broadcast %cst_59 : f32 to vector<23x30xf32>
    %177 = arith.mulf %157, %176 : vector<23x30xf32>
    %178 = arith.addf %151, %177 : vector<23x30xf32>
    %cst_60 = arith.constant 0.277785122 : f32
    %179 = vector.broadcast %cst_60 : f32 to vector<23x30xf32>
    %180 = arith.mulf %157, %179 : vector<23x30xf32>
    %181 = arith.addf %154, %180 : vector<23x30xf32>
    %c7_i32 = arith.constant 7 : i32
    %182 = arith.addi %0, %c7_i32 : i32
    %183 = arith.index_cast %182 : i32 to index
    %c0_61 = arith.constant 0 : index
    %184 = vector.load %arg1[%183, %c0_61] : memref<30x30xf32, #tpu.memory_space<vmem>>, vector<23x30xf32>
    %cst_62 = arith.constant 0.353553385 : f32
    %185 = vector.broadcast %cst_62 : f32 to vector<23x30xf32>
    %186 = arith.mulf %184, %185 : vector<23x30xf32>
    %187 = arith.addf %160, %186 : vector<23x30xf32>
    %cst_63 = arith.constant -0.490392625 : f32
    %188 = vector.broadcast %cst_63 : f32 to vector<23x30xf32>
    %189 = arith.mulf %184, %188 : vector<23x30xf32>
    %190 = arith.addf %163, %189 : vector<23x30xf32>
    %cst_64 = arith.constant 0.461939752 : f32
    %191 = vector.broadcast %cst_64 : f32 to vector<23x30xf32>
    %192 = arith.mulf %184, %191 : vector<23x30xf32>
    %193 = arith.addf %166, %192 : vector<23x30xf32>
    %cst_65 = arith.constant -0.415734798 : f32
    %194 = vector.broadcast %cst_65 : f32 to vector<23x30xf32>
    %195 = arith.mulf %184, %194 : vector<23x30xf32>
    %196 = arith.addf %169, %195 : vector<23x30xf32>
    %cst_66 = arith.constant 0.353553385 : f32
    %197 = vector.broadcast %cst_66 : f32 to vector<23x30xf32>
    %198 = arith.mulf %184, %197 : vector<23x30xf32>
    %199 = arith.addf %172, %198 : vector<23x30xf32>
    %cst_67 = arith.constant -0.277785122 : f32
    %200 = vector.broadcast %cst_67 : f32 to vector<23x30xf32>
    %201 = arith.mulf %184, %200 : vector<23x30xf32>
    %202 = arith.addf %175, %201 : vector<23x30xf32>
    %cst_68 = arith.constant 0.191341713 : f32
    %203 = vector.broadcast %cst_68 : f32 to vector<23x30xf32>
    %204 = arith.mulf %184, %203 : vector<23x30xf32>
    %205 = arith.addf %178, %204 : vector<23x30xf32>
    %cst_69 = arith.constant -0.0975451618 : f32
    %206 = vector.broadcast %cst_69 : f32 to vector<23x30xf32>
    %207 = arith.mulf %184, %206 : vector<23x30xf32>
    %208 = arith.addf %181, %207 : vector<23x30xf32>
    %c0_70 = arith.constant 0 : index
    %c0_71 = arith.constant 0 : index
    %c0_72 = arith.constant 0 : index
    %209 = vector.load %arg3[%c0_70, %c0_71, %c0_72] : memref<8x23x30xf32, #tpu.memory_space<vmem>>, vector<1x23x30xf32>
    %210 = vector.shape_cast %209 : vector<1x23x30xf32> to vector<23x30xf32>
    %211 = vector.shape_cast %187 : vector<23x30xf32> to vector<1x23x30xf32>
    tpu.vector_store %arg3[%c0_70, %c0_71, %c0_72], %211 {strides = array<i32>} : memref<8x23x30xf32, #tpu.memory_space<vmem>>, vector<1x23x30xf32>,
    %c1 = arith.constant 1 : index
    %c0_73 = arith.constant 0 : index
    %c0_74 = arith.constant 0 : index
    %212 = vector.load %arg3[%c1, %c0_73, %c0_74] : memref<8x23x30xf32, #tpu.memory_space<vmem>>, vector<1x23x30xf32>
    %213 = vector.shape_cast %212 : vector<1x23x30xf32> to vector<23x30xf32>
    %214 = vector.shape_cast %190 : vector<23x30xf32> to vector<1x23x30xf32>
    tpu.vector_store %arg3[%c1, %c0_73, %c0_74], %214 {strides = array<i32>} : memref<8x23x30xf32, #tpu.memory_space<vmem>>, vector<1x23x30xf32>,
    %c2 = arith.constant 2 : index
    %c0_75 = arith.constant 0 : index
    %c0_76 = arith.constant 0 : index
    %215 = vector.load %arg3[%c2, %c0_75, %c0_76] : memref<8x23x30xf32, #tpu.memory_space<vmem>>, vector<1x23x30xf32>
    %216 = vector.shape_cast %215 : vector<1x23x30xf32> to vector<23x30xf32>
    %217 = vector.shape_cast %193 : vector<23x30xf32> to vector<1x23x30xf32>
    tpu.vector_store %arg3[%c2, %c0_75, %c0_76], %217 {strides = array<i32>} : memref<8x23x30xf32, #tpu.memory_space<vmem>>, vector<1x23x30xf32>,
    %c3 = arith.constant 3 : index
    %c0_77 = arith.constant 0 : index
    %c0_78 = arith.constant 0 : index
    %218 = vector.load %arg3[%c3, %c0_77, %c0_78] : memref<8x23x30xf32, #tpu.memory_space<vmem>>, vector<1x23x30xf32>
    %219 = vector.shape_cast %218 : vector<1x23x30xf32> to vector<23x30xf32>
    %220 = vector.shape_cast %196 : vector<23x30xf32> to vector<1x23x30xf32>
    tpu.vector_store %arg3[%c3, %c0_77, %c0_78], %220 {strides = array<i32>} : memref<8x23x30xf32, #tpu.memory_space<vmem>>, vector<1x23x30xf32>,
    %c4 = arith.constant 4 : index
    %c0_79 = arith.constant 0 : index
    %c0_80 = arith.constant 0 : index
    %221 = vector.load %arg3[%c4, %c0_79, %c0_80] : memref<8x23x30xf32, #tpu.memory_space<vmem>>, vector<1x23x30xf32>
    %222 = vector.shape_cast %221 : vector<1x23x30xf32> to vector<23x30xf32>
    %223 = vector.shape_cast %199 : vector<23x30xf32> to vector<1x23x30xf32>
    tpu.vector_store %arg3[%c4, %c0_79, %c0_80], %223 {strides = array<i32>} : memref<8x23x30xf32, #tpu.memory_space<vmem>>, vector<1x23x30xf32>,
    %c5 = arith.constant 5 : index
    %c0_81 = arith.constant 0 : index
    %c0_82 = arith.constant 0 : index
    %224 = vector.load %arg3[%c5, %c0_81, %c0_82] : memref<8x23x30xf32, #tpu.memory_space<vmem>>, vector<1x23x30xf32>
    %225 = vector.shape_cast %224 : vector<1x23x30xf32> to vector<23x30xf32>
    %226 = vector.shape_cast %202 : vector<23x30xf32> to vector<1x23x30xf32>
    tpu.vector_store %arg3[%c5, %c0_81, %c0_82], %226 {strides = array<i32>} : memref<8x23x30xf32, #tpu.memory_space<vmem>>, vector<1x23x30xf32>,
    %c6 = arith.constant 6 : index
    %c0_83 = arith.constant 0 : index
    %c0_84 = arith.constant 0 : index
    %227 = vector.load %arg3[%c6, %c0_83, %c0_84] : memref<8x23x30xf32, #tpu.memory_space<vmem>>, vector<1x23x30xf32>
    %228 = vector.shape_cast %227 : vector<1x23x30xf32> to vector<23x30xf32>
    %229 = vector.shape_cast %205 : vector<23x30xf32> to vector<1x23x30xf32>
    tpu.vector_store %arg3[%c6, %c0_83, %c0_84], %229 {strides = array<i32>} : memref<8x23x30xf32, #tpu.memory_space<vmem>>, vector<1x23x30xf32>,
    %c7 = arith.constant 7 : index
    %c0_85 = arith.constant 0 : index
    %c0_86 = arith.constant 0 : index
    %230 = vector.load %arg3[%c7, %c0_85, %c0_86] : memref<8x23x30xf32, #tpu.memory_space<vmem>>, vector<1x23x30xf32>
    %231 = vector.shape_cast %230 : vector<1x23x30xf32> to vector<23x30xf32>
    %232 = vector.shape_cast %208 : vector<23x30xf32> to vector<1x23x30xf32>
    tpu.vector_store %arg3[%c7, %c0_85, %c0_86], %232 {strides = array<i32>} : memref<8x23x30xf32, #tpu.memory_space<vmem>>, vector<1x23x30xf32>,
    %c0_87 = arith.constant 0 : index
    %c0_88 = arith.constant 0 : index
    %c0_89 = arith.constant 0 : index
    %233 = vector.load %arg3[%c0_87, %c0_88, %c0_89] : memref<8x23x30xf32, #tpu.memory_space<vmem>>, vector<1x23x30xf32>
    %234 = vector.shape_cast %233 : vector<1x23x30xf32> to vector<23x30xf32>
    %235 = vector.extract_strided_slice %234 {offsets = [0, 0], sizes = [23, 23], strides = [1, 1]} : vector<23x30xf32> to vector<23x23xf32>
    %cst_90 = arith.constant 0.353553385 : f32
    %236 = vector.broadcast %cst_90 : f32 to vector<23x23xf32>
    %237 = arith.mulf %235, %236 : vector<23x23xf32>
    %cst_91 = arith.constant 0.490392625 : f32
    %238 = vector.broadcast %cst_91 : f32 to vector<23x23xf32>
    %239 = arith.mulf %235, %238 : vector<23x23xf32>
    %cst_92 = arith.constant 0.461939752 : f32
    %240 = vector.broadcast %cst_92 : f32 to vector<23x23xf32>
    %241 = arith.mulf %235, %240 : vector<23x23xf32>
    %cst_93 = arith.constant 0.415734798 : f32
    %242 = vector.broadcast %cst_93 : f32 to vector<23x23xf32>
    %243 = arith.mulf %235, %242 : vector<23x23xf32>
    %cst_94 = arith.constant 0.353553385 : f32
    %244 = vector.broadcast %cst_94 : f32 to vector<23x23xf32>
    %245 = arith.mulf %235, %244 : vector<23x23xf32>
    %cst_95 = arith.constant 0.277785122 : f32
    %246 = vector.broadcast %cst_95 : f32 to vector<23x23xf32>
    %247 = arith.mulf %235, %246 : vector<23x23xf32>
    %cst_96 = arith.constant 0.191341713 : f32
    %248 = vector.broadcast %cst_96 : f32 to vector<23x23xf32>
    %249 = arith.mulf %235, %248 : vector<23x23xf32>
    %cst_97 = arith.constant 0.0975451618 : f32
    %250 = vector.broadcast %cst_97 : f32 to vector<23x23xf32>
    %251 = arith.mulf %235, %250 : vector<23x23xf32>
    %252 = vector.extract_strided_slice %234 {offsets = [0, 1], sizes = [23, 23], strides = [1, 1]} : vector<23x30xf32> to vector<23x23xf32>
    %cst_98 = arith.constant 0.353553385 : f32
    %253 = vector.broadcast %cst_98 : f32 to vector<23x23xf32>
    %254 = arith.mulf %252, %253 : vector<23x23xf32>
    %255 = arith.addf %237, %254 : vector<23x23xf32>
    %cst_99 = arith.constant 0.415734798 : f32
    %256 = vector.broadcast %cst_99 : f32 to vector<23x23xf32>
    %257 = arith.mulf %252, %256 : vector<23x23xf32>
    %258 = arith.addf %239, %257 : vector<23x23xf32>
    %cst_100 = arith.constant 0.191341713 : f32
    %259 = vector.broadcast %cst_100 : f32 to vector<23x23xf32>
    %260 = arith.mulf %252, %259 : vector<23x23xf32>
    %261 = arith.addf %241, %260 : vector<23x23xf32>
    %cst_101 = arith.constant -0.0975451618 : f32
    %262 = vector.broadcast %cst_101 : f32 to vector<23x23xf32>
    %263 = arith.mulf %252, %262 : vector<23x23xf32>
    %264 = arith.addf %243, %263 : vector<23x23xf32>
    %cst_102 = arith.constant -0.353553385 : f32
    %265 = vector.broadcast %cst_102 : f32 to vector<23x23xf32>
    %266 = arith.mulf %252, %265 : vector<23x23xf32>
    %267 = arith.addf %245, %266 : vector<23x23xf32>
    %cst_103 = arith.constant -0.490392625 : f32
    %268 = vector.broadcast %cst_103 : f32 to vector<23x23xf32>
    %269 = arith.mulf %252, %268 : vector<23x23xf32>
    %270 = arith.addf %247, %269 : vector<23x23xf32>
    %cst_104 = arith.constant -0.461939752 : f32
    %271 = vector.broadcast %cst_104 : f32 to vector<23x23xf32>
    %272 = arith.mulf %252, %271 : vector<23x23xf32>
    %273 = arith.addf %249, %272 : vector<23x23xf32>
    %cst_105 = arith.constant -0.277785122 : f32
    %274 = vector.broadcast %cst_105 : f32 to vector<23x23xf32>
    %275 = arith.mulf %252, %274 : vector<23x23xf32>
    %276 = arith.addf %251, %275 : vector<23x23xf32>
    %277 = vector.extract_strided_slice %234 {offsets = [0, 2], sizes = [23, 23], strides = [1, 1]} : vector<23x30xf32> to vector<23x23xf32>
    %cst_106 = arith.constant 0.353553385 : f32
    %278 = vector.broadcast %cst_106 : f32 to vector<23x23xf32>
    %279 = arith.mulf %277, %278 : vector<23x23xf32>
    %280 = arith.addf %255, %279 : vector<23x23xf32>
    %cst_107 = arith.constant 0.277785122 : f32
    %281 = vector.broadcast %cst_107 : f32 to vector<23x23xf32>
    %282 = arith.mulf %277, %281 : vector<23x23xf32>
    %283 = arith.addf %258, %282 : vector<23x23xf32>
    %cst_108 = arith.constant -0.191341713 : f32
    %284 = vector.broadcast %cst_108 : f32 to vector<23x23xf32>
    %285 = arith.mulf %277, %284 : vector<23x23xf32>
    %286 = arith.addf %261, %285 : vector<23x23xf32>
    %cst_109 = arith.constant -0.490392625 : f32
    %287 = vector.broadcast %cst_109 : f32 to vector<23x23xf32>
    %288 = arith.mulf %277, %287 : vector<23x23xf32>
    %289 = arith.addf %264, %288 : vector<23x23xf32>
    %cst_110 = arith.constant -0.353553385 : f32
    %290 = vector.broadcast %cst_110 : f32 to vector<23x23xf32>
    %291 = arith.mulf %277, %290 : vector<23x23xf32>
    %292 = arith.addf %267, %291 : vector<23x23xf32>
    %cst_111 = arith.constant 0.0975451618 : f32
    %293 = vector.broadcast %cst_111 : f32 to vector<23x23xf32>
    %294 = arith.mulf %277, %293 : vector<23x23xf32>
    %295 = arith.addf %270, %294 : vector<23x23xf32>
    %cst_112 = arith.constant 0.461939752 : f32
    %296 = vector.broadcast %cst_112 : f32 to vector<23x23xf32>
    %297 = arith.mulf %277, %296 : vector<23x23xf32>
    %298 = arith.addf %273, %297 : vector<23x23xf32>
    %cst_113 = arith.constant 0.415734798 : f32
    %299 = vector.broadcast %cst_113 : f32 to vector<23x23xf32>
    %300 = arith.mulf %277, %299 : vector<23x23xf32>
    %301 = arith.addf %276, %300 : vector<23x23xf32>
    %302 = vector.extract_strided_slice %234 {offsets = [0, 3], sizes = [23, 23], strides = [1, 1]} : vector<23x30xf32> to vector<23x23xf32>
    %cst_114 = arith.constant 0.353553385 : f32
    %303 = vector.broadcast %cst_114 : f32 to vector<23x23xf32>
    %304 = arith.mulf %302, %303 : vector<23x23xf32>
    %305 = arith.addf %280, %304 : vector<23x23xf32>
    %cst_115 = arith.constant 0.0975451618 : f32
    %306 = vector.broadcast %cst_115 : f32 to vector<23x23xf32>
    %307 = arith.mulf %302, %306 : vector<23x23xf32>
    %308 = arith.addf %283, %307 : vector<23x23xf32>
    %cst_116 = arith.constant -0.461939752 : f32
    %309 = vector.broadcast %cst_116 : f32 to vector<23x23xf32>
    %310 = arith.mulf %302, %309 : vector<23x23xf32>
    %311 = arith.addf %286, %310 : vector<23x23xf32>
    %cst_117 = arith.constant -0.277785122 : f32
    %312 = vector.broadcast %cst_117 : f32 to vector<23x23xf32>
    %313 = arith.mulf %302, %312 : vector<23x23xf32>
    %314 = arith.addf %289, %313 : vector<23x23xf32>
    %cst_118 = arith.constant 0.353553385 : f32
    %315 = vector.broadcast %cst_118 : f32 to vector<23x23xf32>
    %316 = arith.mulf %302, %315 : vector<23x23xf32>
    %317 = arith.addf %292, %316 : vector<23x23xf32>
    %cst_119 = arith.constant 0.415734798 : f32
    %318 = vector.broadcast %cst_119 : f32 to vector<23x23xf32>
    %319 = arith.mulf %302, %318 : vector<23x23xf32>
    %320 = arith.addf %295, %319 : vector<23x23xf32>
    %cst_120 = arith.constant -0.191341713 : f32
    %321 = vector.broadcast %cst_120 : f32 to vector<23x23xf32>
    %322 = arith.mulf %302, %321 : vector<23x23xf32>
    %323 = arith.addf %298, %322 : vector<23x23xf32>
    %cst_121 = arith.constant -0.490392625 : f32
    %324 = vector.broadcast %cst_121 : f32 to vector<23x23xf32>
    %325 = arith.mulf %302, %324 : vector<23x23xf32>
    %326 = arith.addf %301, %325 : vector<23x23xf32>
    %327 = vector.extract_strided_slice %234 {offsets = [0, 4], sizes = [23, 23], strides = [1, 1]} : vector<23x30xf32> to vector<23x23xf32>
    %cst_122 = arith.constant 0.353553385 : f32
    %328 = vector.broadcast %cst_122 : f32 to vector<23x23xf32>
    %329 = arith.mulf %327, %328 : vector<23x23xf32>
    %330 = arith.addf %305, %329 : vector<23x23xf32>
    %cst_123 = arith.constant -0.0975451618 : f32
    %331 = vector.broadcast %cst_123 : f32 to vector<23x23xf32>
    %332 = arith.mulf %327, %331 : vector<23x23xf32>
    %333 = arith.addf %308, %332 : vector<23x23xf32>
    %cst_124 = arith.constant -0.461939752 : f32
    %334 = vector.broadcast %cst_124 : f32 to vector<23x23xf32>
    %335 = arith.mulf %327, %334 : vector<23x23xf32>
    %336 = arith.addf %311, %335 : vector<23x23xf32>
    %cst_125 = arith.constant 0.277785122 : f32
    %337 = vector.broadcast %cst_125 : f32 to vector<23x23xf32>
    %338 = arith.mulf %327, %337 : vector<23x23xf32>
    %339 = arith.addf %314, %338 : vector<23x23xf32>
    %cst_126 = arith.constant 0.353553385 : f32
    %340 = vector.broadcast %cst_126 : f32 to vector<23x23xf32>
    %341 = arith.mulf %327, %340 : vector<23x23xf32>
    %342 = arith.addf %317, %341 : vector<23x23xf32>
    %cst_127 = arith.constant -0.415734798 : f32
    %343 = vector.broadcast %cst_127 : f32 to vector<23x23xf32>
    %344 = arith.mulf %327, %343 : vector<23x23xf32>
    %345 = arith.addf %320, %344 : vector<23x23xf32>
    %cst_128 = arith.constant -0.191341713 : f32
    %346 = vector.broadcast %cst_128 : f32 to vector<23x23xf32>
    %347 = arith.mulf %327, %346 : vector<23x23xf32>
    %348 = arith.addf %323, %347 : vector<23x23xf32>
    %cst_129 = arith.constant 0.490392625 : f32
    %349 = vector.broadcast %cst_129 : f32 to vector<23x23xf32>
    %350 = arith.mulf %327, %349 : vector<23x23xf32>
    %351 = arith.addf %326, %350 : vector<23x23xf32>
    %352 = vector.extract_strided_slice %234 {offsets = [0, 5], sizes = [23, 23], strides = [1, 1]} : vector<23x30xf32> to vector<23x23xf32>
    %cst_130 = arith.constant 0.353553385 : f32
    %353 = vector.broadcast %cst_130 : f32 to vector<23x23xf32>
    %354 = arith.mulf %352, %353 : vector<23x23xf32>
    %355 = arith.addf %330, %354 : vector<23x23xf32>
    %cst_131 = arith.constant -0.277785122 : f32
    %356 = vector.broadcast %cst_131 : f32 to vector<23x23xf32>
    %357 = arith.mulf %352, %356 : vector<23x23xf32>
    %358 = arith.addf %333, %357 : vector<23x23xf32>
    %cst_132 = arith.constant -0.191341713 : f32
    %359 = vector.broadcast %cst_132 : f32 to vector<23x23xf32>
    %360 = arith.mulf %352, %359 : vector<23x23xf32>
    %361 = arith.addf %336, %360 : vector<23x23xf32>
    %cst_133 = arith.constant 0.490392625 : f32
    %362 = vector.broadcast %cst_133 : f32 to vector<23x23xf32>
    %363 = arith.mulf %352, %362 : vector<23x23xf32>
    %364 = arith.addf %339, %363 : vector<23x23xf32>
    %cst_134 = arith.constant -0.353553385 : f32
    %365 = vector.broadcast %cst_134 : f32 to vector<23x23xf32>
    %366 = arith.mulf %352, %365 : vector<23x23xf32>
    %367 = arith.addf %342, %366 : vector<23x23xf32>
    %cst_135 = arith.constant -0.0975451618 : f32
    %368 = vector.broadcast %cst_135 : f32 to vector<23x23xf32>
    %369 = arith.mulf %352, %368 : vector<23x23xf32>
    %370 = arith.addf %345, %369 : vector<23x23xf32>
    %cst_136 = arith.constant 0.461939752 : f32
    %371 = vector.broadcast %cst_136 : f32 to vector<23x23xf32>
    %372 = arith.mulf %352, %371 : vector<23x23xf32>
    %373 = arith.addf %348, %372 : vector<23x23xf32>
    %cst_137 = arith.constant -0.415734798 : f32
    %374 = vector.broadcast %cst_137 : f32 to vector<23x23xf32>
    %375 = arith.mulf %352, %374 : vector<23x23xf32>
    %376 = arith.addf %351, %375 : vector<23x23xf32>
    %377 = vector.extract_strided_slice %234 {offsets = [0, 6], sizes = [23, 23], strides = [1, 1]} : vector<23x30xf32> to vector<23x23xf32>
    %cst_138 = arith.constant 0.353553385 : f32
    %378 = vector.broadcast %cst_138 : f32 to vector<23x23xf32>
    %379 = arith.mulf %377, %378 : vector<23x23xf32>
    %380 = arith.addf %355, %379 : vector<23x23xf32>
    %cst_139 = arith.constant -0.415734798 : f32
    %381 = vector.broadcast %cst_139 : f32 to vector<23x23xf32>
    %382 = arith.mulf %377, %381 : vector<23x23xf32>
    %383 = arith.addf %358, %382 : vector<23x23xf32>
    %cst_140 = arith.constant 0.191341713 : f32
    %384 = vector.broadcast %cst_140 : f32 to vector<23x23xf32>
    %385 = arith.mulf %377, %384 : vector<23x23xf32>
    %386 = arith.addf %361, %385 : vector<23x23xf32>
    %cst_141 = arith.constant 0.0975451618 : f32
    %387 = vector.broadcast %cst_141 : f32 to vector<23x23xf32>
    %388 = arith.mulf %377, %387 : vector<23x23xf32>
    %389 = arith.addf %364, %388 : vector<23x23xf32>
    %cst_142 = arith.constant -0.353553385 : f32
    %390 = vector.broadcast %cst_142 : f32 to vector<23x23xf32>
    %391 = arith.mulf %377, %390 : vector<23x23xf32>
    %392 = arith.addf %367, %391 : vector<23x23xf32>
    %cst_143 = arith.constant 0.490392625 : f32
    %393 = vector.broadcast %cst_143 : f32 to vector<23x23xf32>
    %394 = arith.mulf %377, %393 : vector<23x23xf32>
    %395 = arith.addf %370, %394 : vector<23x23xf32>
    %cst_144 = arith.constant -0.461939752 : f32
    %396 = vector.broadcast %cst_144 : f32 to vector<23x23xf32>
    %397 = arith.mulf %377, %396 : vector<23x23xf32>
    %398 = arith.addf %373, %397 : vector<23x23xf32>
    %cst_145 = arith.constant 0.277785122 : f32
    %399 = vector.broadcast %cst_145 : f32 to vector<23x23xf32>
    %400 = arith.mulf %377, %399 : vector<23x23xf32>
    %401 = arith.addf %376, %400 : vector<23x23xf32>
    %402 = vector.extract_strided_slice %234 {offsets = [0, 7], sizes = [23, 23], strides = [1, 1]} : vector<23x30xf32> to vector<23x23xf32>
    %cst_146 = arith.constant 0.353553385 : f32
    %403 = vector.broadcast %cst_146 : f32 to vector<23x23xf32>
    %404 = arith.mulf %402, %403 : vector<23x23xf32>
    %405 = arith.addf %380, %404 : vector<23x23xf32>
    %cst_147 = arith.constant -0.490392625 : f32
    %406 = vector.broadcast %cst_147 : f32 to vector<23x23xf32>
    %407 = arith.mulf %402, %406 : vector<23x23xf32>
    %408 = arith.addf %383, %407 : vector<23x23xf32>
    %cst_148 = arith.constant 0.461939752 : f32
    %409 = vector.broadcast %cst_148 : f32 to vector<23x23xf32>
    %410 = arith.mulf %402, %409 : vector<23x23xf32>
    %411 = arith.addf %386, %410 : vector<23x23xf32>
    %cst_149 = arith.constant -0.415734798 : f32
    %412 = vector.broadcast %cst_149 : f32 to vector<23x23xf32>
    %413 = arith.mulf %402, %412 : vector<23x23xf32>
    %414 = arith.addf %389, %413 : vector<23x23xf32>
    %cst_150 = arith.constant 0.353553385 : f32
    %415 = vector.broadcast %cst_150 : f32 to vector<23x23xf32>
    %416 = arith.mulf %402, %415 : vector<23x23xf32>
    %417 = arith.addf %392, %416 : vector<23x23xf32>
    %cst_151 = arith.constant -0.277785122 : f32
    %418 = vector.broadcast %cst_151 : f32 to vector<23x23xf32>
    %419 = arith.mulf %402, %418 : vector<23x23xf32>
    %420 = arith.addf %395, %419 : vector<23x23xf32>
    %cst_152 = arith.constant 0.191341713 : f32
    %421 = vector.broadcast %cst_152 : f32 to vector<23x23xf32>
    %422 = arith.mulf %402, %421 : vector<23x23xf32>
    %423 = arith.addf %398, %422 : vector<23x23xf32>
    %cst_153 = arith.constant -0.0975451618 : f32
    %424 = vector.broadcast %cst_153 : f32 to vector<23x23xf32>
    %425 = arith.mulf %402, %424 : vector<23x23xf32>
    %426 = arith.addf %401, %425 : vector<23x23xf32>
    %c0_154 = arith.constant 0 : index
    %c0_155 = arith.constant 0 : index
    %c0_156 = arith.constant 0 : index
    %427 = vector.load %arg2[%c0_154, %c0_155, %c0_156] : memref<64x23x23xf32, #tpu.memory_space<vmem>>, vector<1x23x23xf32>
    %428 = vector.shape_cast %427 : vector<1x23x23xf32> to vector<23x23xf32>
    %429 = vector.shape_cast %405 : vector<23x23xf32> to vector<1x23x23xf32>
    tpu.vector_store %arg2[%c0_154, %c0_155, %c0_156], %429 {strides = array<i32>} : memref<64x23x23xf32, #tpu.memory_space<vmem>>, vector<1x23x23xf32>,
    %c2_157 = arith.constant 2 : index
    %c0_158 = arith.constant 0 : index
    %c0_159 = arith.constant 0 : index
    %430 = vector.load %arg2[%c2_157, %c0_158, %c0_159] : memref<64x23x23xf32, #tpu.memory_space<vmem>>, vector<1x23x23xf32>
    %431 = vector.shape_cast %430 : vector<1x23x23xf32> to vector<23x23xf32>
    %432 = vector.shape_cast %408 : vector<23x23xf32> to vector<1x23x23xf32>
    tpu.vector_store %arg2[%c2_157, %c0_158, %c0_159], %432 {strides = array<i32>} : memref<64x23x23xf32, #tpu.memory_space<vmem>>, vector<1x23x23xf32>,
    %c5_160 = arith.constant 5 : index
    %c0_161 = arith.constant 0 : index
    %c0_162 = arith.constant 0 : index
    %433 = vector.load %arg2[%c5_160, %c0_161, %c0_162] : memref<64x23x23xf32, #tpu.memory_space<vmem>>, vector<1x23x23xf32>
    %434 = vector.shape_cast %433 : vector<1x23x23xf32> to vector<23x23xf32>
    %435 = vector.shape_cast %411 : vector<23x23xf32> to vector<1x23x23xf32>
    tpu.vector_store %arg2[%c5_160, %c0_161, %c0_162], %435 {strides = array<i32>} : memref<64x23x23xf32, #tpu.memory_space<vmem>>, vector<1x23x23xf32>,
    %c9 = arith.constant 9 : index
    %c0_163 = arith.constant 0 : index
    %c0_164 = arith.constant 0 : index
    %436 = vector.load %arg2[%c9, %c0_163, %c0_164] : memref<64x23x23xf32, #tpu.memory_space<vmem>>, vector<1x23x23xf32>
    %437 = vector.shape_cast %436 : vector<1x23x23xf32> to vector<23x23xf32>
    %438 = vector.shape_cast %414 : vector<23x23xf32> to vector<1x23x23xf32>
    tpu.vector_store %arg2[%c9, %c0_163, %c0_164], %438 {strides = array<i32>} : memref<64x23x23xf32, #tpu.memory_space<vmem>>, vector<1x23x23xf32>,
    %c14 = arith.constant 14 : index
    %c0_165 = arith.constant 0 : index
    %c0_166 = arith.constant 0 : index
    %439 = vector.load %arg2[%c14, %c0_165, %c0_166] : memref<64x23x23xf32, #tpu.memory_space<vmem>>, vector<1x23x23xf32>
    %440 = vector.shape_cast %439 : vector<1x23x23xf32> to vector<23x23xf32>
    %441 = vector.shape_cast %417 : vector<23x23xf32> to vector<1x23x23xf32>
    tpu.vector_store %arg2[%c14, %c0_165, %c0_166], %441 {strides = array<i32>} : memref<64x23x23xf32, #tpu.memory_space<vmem>>, vector<1x23x23xf32>,
    %c20 = arith.constant 20 : index
    %c0_167 = arith.constant 0 : index
    %c0_168 = arith.constant 0 : index
    %442 = vector.load %arg2[%c20, %c0_167, %c0_168] : memref<64x23x23xf32, #tpu.memory_space<vmem>>, vector<1x23x23xf32>
    %443 = vector.shape_cast %442 : vector<1x23x23xf32> to vector<23x23xf32>
    %444 = vector.shape_cast %420 : vector<23x23xf32> to vector<1x23x23xf32>
    tpu.vector_store %arg2[%c20, %c0_167, %c0_168], %444 {strides = array<i32>} : memref<64x23x23xf32, #tpu.memory_space<vmem>>, vector<1x23x23xf32>,
    %c27 = arith.constant 27 : index
    %c0_169 = arith.constant 0 : index
    %c0_170 = arith.constant 0 : index
    %445 = vector.load %arg2[%c27, %c0_169, %c0_170] : memref<64x23x23xf32, #tpu.memory_space<vmem>>, vector<1x23x23xf32>
    %446 = vector.shape_cast %445 : vector<1x23x23xf32> to vector<23x23xf32>
    %447 = vector.shape_cast %423 : vector<23x23xf32> to vector<1x23x23xf32>
    tpu.vector_store %arg2[%c27, %c0_169, %c0_170], %447 {strides = array<i32>} : memref<64x23x23xf32, #tpu.memory_space<vmem>>, vector<1x23x23xf32>,
    %c35 = arith.constant 35 : index
    %c0_171 = arith.constant 0 : index
    %c0_172 = arith.constant 0 : index
    %448 = vector.load %arg2[%c35, %c0_171, %c0_172] : memref<64x23x23xf32, #tpu.memory_space<vmem>>, vector<1x23x23xf32>
    %449 = vector.shape_cast %448 : vector<1x23x23xf32> to vector<23x23xf32>
    %450 = vector.shape_cast %426 : vector<23x23xf32> to vector<1x23x23xf32>
    tpu.vector_store %arg2[%c35, %c0_171, %c0_172], %450 {strides = array<i32>} : memref<64x23x23xf32, #tpu.memory_space<vmem>>, vector<1x23x23xf32>,
    %c1_173 = arith.constant 1 : index
    %c0_174 = arith.constant 0 : index
    %c0_175 = arith.constant 0 : index
    %451 = vector.load %arg3[%c1_173, %c0_174, %c0_175] : memref<8x23x30xf32, #tpu.memory_space<vmem>>, vector<1x23x30xf32>
    %452 = vector.shape_cast %451 : vector<1x23x30xf32> to vector<23x30xf32>
    %453 = vector.extract_strided_slice %452 {offsets = [0, 0], sizes = [23, 23], strides = [1, 1]} : vector<23x30xf32> to vector<23x23xf32>
    %cst_176 = arith.constant 0.353553385 : f32
    %454 = vector.broadcast %cst_176 : f32 to vector<23x23xf32>
    %455 = arith.mulf %453, %454 : vector<23x23xf32>
    %cst_177 = arith.constant 0.490392625 : f32
    %456 = vector.broadcast %cst_177 : f32 to vector<23x23xf32>
    %457 = arith.mulf %453, %456 : vector<23x23xf32>
    %cst_178 = arith.constant 0.461939752 : f32
    %458 = vector.broadcast %cst_178 : f32 to vector<23x23xf32>
    %459 = arith.mulf %453, %458 : vector<23x23xf32>
    %cst_179 = arith.constant 0.415734798 : f32
    %460 = vector.broadcast %cst_179 : f32 to vector<23x23xf32>
    %461 = arith.mulf %453, %460 : vector<23x23xf32>
    %cst_180 = arith.constant 0.353553385 : f32
    %462 = vector.broadcast %cst_180 : f32 to vector<23x23xf32>
    %463 = arith.mulf %453, %462 : vector<23x23xf32>
    %cst_181 = arith.constant 0.277785122 : f32
    %464 = vector.broadcast %cst_181 : f32 to vector<23x23xf32>
    %465 = arith.mulf %453, %464 : vector<23x23xf32>
    %cst_182 = arith.constant 0.191341713 : f32
    %466 = vector.broadcast %cst_182 : f32 to vector<23x23xf32>
    %467 = arith.mulf %453, %466 : vector<23x23xf32>
    %cst_183 = arith.constant 0.0975451618 : f32
    %468 = vector.broadcast %cst_183 : f32 to vector<23x23xf32>
    %469 = arith.mulf %453, %468 : vector<23x23xf32>
    %470 = vector.extract_strided_slice %452 {offsets = [0, 1], sizes = [23, 23], strides = [1, 1]} : vector<23x30xf32> to vector<23x23xf32>
    %cst_184 = arith.constant 0.353553385 : f32
    %471 = vector.broadcast %cst_184 : f32 to vector<23x23xf32>
    %472 = arith.mulf %470, %471 : vector<23x23xf32>
    %473 = arith.addf %455, %472 : vector<23x23xf32>
    %cst_185 = arith.constant 0.415734798 : f32
    %474 = vector.broadcast %cst_185 : f32 to vector<23x23xf32>
    %475 = arith.mulf %470, %474 : vector<23x23xf32>
    %476 = arith.addf %457, %475 : vector<23x23xf32>
    %cst_186 = arith.constant 0.191341713 : f32
    %477 = vector.broadcast %cst_186 : f32 to vector<23x23xf32>
    %478 = arith.mulf %470, %477 : vector<23x23xf32>
    %479 = arith.addf %459, %478 : vector<23x23xf32>
    %cst_187 = arith.constant -0.0975451618 : f32
    %480 = vector.broadcast %cst_187 : f32 to vector<23x23xf32>
    %481 = arith.mulf %470, %480 : vector<23x23xf32>
    %482 = arith.addf %461, %481 : vector<23x23xf32>
    %cst_188 = arith.constant -0.353553385 : f32
    %483 = vector.broadcast %cst_188 : f32 to vector<23x23xf32>
    %484 = arith.mulf %470, %483 : vector<23x23xf32>
    %485 = arith.addf %463, %484 : vector<23x23xf32>
    %cst_189 = arith.constant -0.490392625 : f32
    %486 = vector.broadcast %cst_189 : f32 to vector<23x23xf32>
    %487 = arith.mulf %470, %486 : vector<23x23xf32>
    %488 = arith.addf %465, %487 : vector<23x23xf32>
    %cst_190 = arith.constant -0.461939752 : f32
    %489 = vector.broadcast %cst_190 : f32 to vector<23x23xf32>
    %490 = arith.mulf %470, %489 : vector<23x23xf32>
    %491 = arith.addf %467, %490 : vector<23x23xf32>
    %cst_191 = arith.constant -0.277785122 : f32
    %492 = vector.broadcast %cst_191 : f32 to vector<23x23xf32>
    %493 = arith.mulf %470, %492 : vector<23x23xf32>
    %494 = arith.addf %469, %493 : vector<23x23xf32>
    %495 = vector.extract_strided_slice %452 {offsets = [0, 2], sizes = [23, 23], strides = [1, 1]} : vector<23x30xf32> to vector<23x23xf32>
    %cst_192 = arith.constant 0.353553385 : f32
    %496 = vector.broadcast %cst_192 : f32 to vector<23x23xf32>
    %497 = arith.mulf %495, %496 : vector<23x23xf32>
    %498 = arith.addf %473, %497 : vector<23x23xf32>
    %cst_193 = arith.constant 0.277785122 : f32
    %499 = vector.broadcast %cst_193 : f32 to vector<23x23xf32>
    %500 = arith.mulf %495, %499 : vector<23x23xf32>
    %501 = arith.addf %476, %500 : vector<23x23xf32>
    %cst_194 = arith.constant -0.191341713 : f32
    %502 = vector.broadcast %cst_194 : f32 to vector<23x23xf32>
    %503 = arith.mulf %495, %502 : vector<23x23xf32>
    %504 = arith.addf %479, %503 : vector<23x23xf32>
    %cst_195 = arith.constant -0.490392625 : f32
    %505 = vector.broadcast %cst_195 : f32 to vector<23x23xf32>
    %506 = arith.mulf %495, %505 : vector<23x23xf32>
    %507 = arith.addf %482, %506 : vector<23x23xf32>
    %cst_196 = arith.constant -0.353553385 : f32
    %508 = vector.broadcast %cst_196 : f32 to vector<23x23xf32>
    %509 = arith.mulf %495, %508 : vector<23x23xf32>
    %510 = arith.addf %485, %509 : vector<23x23xf32>
    %cst_197 = arith.constant 0.0975451618 : f32
    %511 = vector.broadcast %cst_197 : f32 to vector<23x23xf32>
    %512 = arith.mulf %495, %511 : vector<23x23xf32>
    %513 = arith.addf %488, %512 : vector<23x23xf32>
    %cst_198 = arith.constant 0.461939752 : f32
    %514 = vector.broadcast %cst_198 : f32 to vector<23x23xf32>
    %515 = arith.mulf %495, %514 : vector<23x23xf32>
    %516 = arith.addf %491, %515 : vector<23x23xf32>
    %cst_199 = arith.constant 0.415734798 : f32
    %517 = vector.broadcast %cst_199 : f32 to vector<23x23xf32>
    %518 = arith.mulf %495, %517 : vector<23x23xf32>
    %519 = arith.addf %494, %518 : vector<23x23xf32>
    %520 = vector.extract_strided_slice %452 {offsets = [0, 3], sizes = [23, 23], strides = [1, 1]} : vector<23x30xf32> to vector<23x23xf32>
    %cst_200 = arith.constant 0.353553385 : f32
    %521 = vector.broadcast %cst_200 : f32 to vector<23x23xf32>
    %522 = arith.mulf %520, %521 : vector<23x23xf32>
    %523 = arith.addf %498, %522 : vector<23x23xf32>
    %cst_201 = arith.constant 0.0975451618 : f32
    %524 = vector.broadcast %cst_201 : f32 to vector<23x23xf32>
    %525 = arith.mulf %520, %524 : vector<23x23xf32>
    %526 = arith.addf %501, %525 : vector<23x23xf32>
    %cst_202 = arith.constant -0.461939752 : f32
    %527 = vector.broadcast %cst_202 : f32 to vector<23x23xf32>
    %528 = arith.mulf %520, %527 : vector<23x23xf32>
    %529 = arith.addf %504, %528 : vector<23x23xf32>
    %cst_203 = arith.constant -0.277785122 : f32
    %530 = vector.broadcast %cst_203 : f32 to vector<23x23xf32>
    %531 = arith.mulf %520, %530 : vector<23x23xf32>
    %532 = arith.addf %507, %531 : vector<23x23xf32>
    %cst_204 = arith.constant 0.353553385 : f32
    %533 = vector.broadcast %cst_204 : f32 to vector<23x23xf32>
    %534 = arith.mulf %520, %533 : vector<23x23xf32>
    %535 = arith.addf %510, %534 : vector<23x23xf32>
    %cst_205 = arith.constant 0.415734798 : f32
    %536 = vector.broadcast %cst_205 : f32 to vector<23x23xf32>
    %537 = arith.mulf %520, %536 : vector<23x23xf32>
    %538 = arith.addf %513, %537 : vector<23x23xf32>
    %cst_206 = arith.constant -0.191341713 : f32
    %539 = vector.broadcast %cst_206 : f32 to vector<23x23xf32>
    %540 = arith.mulf %520, %539 : vector<23x23xf32>
    %541 = arith.addf %516, %540 : vector<23x23xf32>
    %cst_207 = arith.constant -0.490392625 : f32
    %542 = vector.broadcast %cst_207 : f32 to vector<23x23xf32>
    %543 = arith.mulf %520, %542 : vector<23x23xf32>
    %544 = arith.addf %519, %543 : vector<23x23xf32>
    %545 = vector.extract_strided_slice %452 {offsets = [0, 4], sizes = [23, 23], strides = [1, 1]} : vector<23x30xf32> to vector<23x23xf32>
    %cst_208 = arith.constant 0.353553385 : f32
    %546 = vector.broadcast %cst_208 : f32 to vector<23x23xf32>
    %547 = arith.mulf %545, %546 : vector<23x23xf32>
    %548 = arith.addf %523, %547 : vector<23x23xf32>
    %cst_209 = arith.constant -0.0975451618 : f32
    %549 = vector.broadcast %cst_209 : f32 to vector<23x23xf32>
    %550 = arith.mulf %545, %549 : vector<23x23xf32>
    %551 = arith.addf %526, %550 : vector<23x23xf32>
    %cst_210 = arith.constant -0.461939752 : f32
    %552 = vector.broadcast %cst_210 : f32 to vector<23x23xf32>
    %553 = arith.mulf %545, %552 : vector<23x23xf32>
    %554 = arith.addf %529, %553 : vector<23x23xf32>
    %cst_211 = arith.constant 0.277785122 : f32
    %555 = vector.broadcast %cst_211 : f32 to vector<23x23xf32>
    %556 = arith.mulf %545, %555 : vector<23x23xf32>
    %557 = arith.addf %532, %556 : vector<23x23xf32>
    %cst_212 = arith.constant 0.353553385 : f32
    %558 = vector.broadcast %cst_212 : f32 to vector<23x23xf32>
    %559 = arith.mulf %545, %558 : vector<23x23xf32>
    %560 = arith.addf %535, %559 : vector<23x23xf32>
    %cst_213 = arith.constant -0.415734798 : f32
    %561 = vector.broadcast %cst_213 : f32 to vector<23x23xf32>
    %562 = arith.mulf %545, %561 : vector<23x23xf32>
    %563 = arith.addf %538, %562 : vector<23x23xf32>
    %cst_214 = arith.constant -0.191341713 : f32
    %564 = vector.broadcast %cst_214 : f32 to vector<23x23xf32>
    %565 = arith.mulf %545, %564 : vector<23x23xf32>
    %566 = arith.addf %541, %565 : vector<23x23xf32>
    %cst_215 = arith.constant 0.490392625 : f32
    %567 = vector.broadcast %cst_215 : f32 to vector<23x23xf32>
    %568 = arith.mulf %545, %567 : vector<23x23xf32>
    %569 = arith.addf %544, %568 : vector<23x23xf32>
    %570 = vector.extract_strided_slice %452 {offsets = [0, 5], sizes = [23, 23], strides = [1, 1]} : vector<23x30xf32> to vector<23x23xf32>
    %cst_216 = arith.constant 0.353553385 : f32
    %571 = vector.broadcast %cst_216 : f32 to vector<23x23xf32>
    %572 = arith.mulf %570, %571 : vector<23x23xf32>
    %573 = arith.addf %548, %572 : vector<23x23xf32>
    %cst_217 = arith.constant -0.277785122 : f32
    %574 = vector.broadcast %cst_217 : f32 to vector<23x23xf32>
    %575 = arith.mulf %570, %574 : vector<23x23xf32>
    %576 = arith.addf %551, %575 : vector<23x23xf32>
    %cst_218 = arith.constant -0.191341713 : f32
    %577 = vector.broadcast %cst_218 : f32 to vector<23x23xf32>
    %578 = arith.mulf %570, %577 : vector<23x23xf32>
    %579 = arith.addf %554, %578 : vector<23x23xf32>
    %cst_219 = arith.constant 0.490392625 : f32
    %580 = vector.broadcast %cst_219 : f32 to vector<23x23xf32>
    %581 = arith.mulf %570, %580 : vector<23x23xf32>
    %582 = arith.addf %557, %581 : vector<23x23xf32>
    %cst_220 = arith.constant -0.353553385 : f32
    %583 = vector.broadcast %cst_220 : f32 to vector<23x23xf32>
    %584 = arith.mulf %570, %583 : vector<23x23xf32>
    %585 = arith.addf %560, %584 : vector<23x23xf32>
    %cst_221 = arith.constant -0.0975451618 : f32
    %586 = vector.broadcast %cst_221 : f32 to vector<23x23xf32>
    %587 = arith.mulf %570, %586 : vector<23x23xf32>
    %588 = arith.addf %563, %587 : vector<23x23xf32>
    %cst_222 = arith.constant 0.461939752 : f32
    %589 = vector.broadcast %cst_222 : f32 to vector<23x23xf32>
    %590 = arith.mulf %570, %589 : vector<23x23xf32>
    %591 = arith.addf %566, %590 : vector<23x23xf32>
    %cst_223 = arith.constant -0.415734798 : f32
    %592 = vector.broadcast %cst_223 : f32 to vector<23x23xf32>
    %593 = arith.mulf %570, %592 : vector<23x23xf32>
    %594 = arith.addf %569, %593 : vector<23x23xf32>
    %595 = vector.extract_strided_slice %452 {offsets = [0, 6], sizes = [23, 23], strides = [1, 1]} : vector<23x30xf32> to vector<23x23xf32>
    %cst_224 = arith.constant 0.353553385 : f32
    %596 = vector.broadcast %cst_224 : f32 to vector<23x23xf32>
    %597 = arith.mulf %595, %596 : vector<23x23xf32>
    %598 = arith.addf %573, %597 : vector<23x23xf32>
    %cst_225 = arith.constant -0.415734798 : f32
    %599 = vector.broadcast %cst_225 : f32 to vector<23x23xf32>
    %600 = arith.mulf %595, %599 : vector<23x23xf32>
    %601 = arith.addf %576, %600 : vector<23x23xf32>
    %cst_226 = arith.constant 0.191341713 : f32
    %602 = vector.broadcast %cst_226 : f32 to vector<23x23xf32>
    %603 = arith.mulf %595, %602 : vector<23x23xf32>
    %604 = arith.addf %579, %603 : vector<23x23xf32>
    %cst_227 = arith.constant 0.0975451618 : f32
    %605 = vector.broadcast %cst_227 : f32 to vector<23x23xf32>
    %606 = arith.mulf %595, %605 : vector<23x23xf32>
    %607 = arith.addf %582, %606 : vector<23x23xf32>
    %cst_228 = arith.constant -0.353553385 : f32
    %608 = vector.broadcast %cst_228 : f32 to vector<23x23xf32>
    %609 = arith.mulf %595, %608 : vector<23x23xf32>
    %610 = arith.addf %585, %609 : vector<23x23xf32>
    %cst_229 = arith.constant 0.490392625 : f32
    %611 = vector.broadcast %cst_229 : f32 to vector<23x23xf32>
    %612 = arith.mulf %595, %611 : vector<23x23xf32>
    %613 = arith.addf %588, %612 : vector<23x23xf32>
    %cst_230 = arith.constant -0.461939752 : f32
    %614 = vector.broadcast %cst_230 : f32 to vector<23x23xf32>
    %615 = arith.mulf %595, %614 : vector<23x23xf32>
    %616 = arith.addf %591, %615 : vector<23x23xf32>
    %cst_231 = arith.constant 0.277785122 : f32
    %617 = vector.broadcast %cst_231 : f32 to vector<23x23xf32>
    %618 = arith.mulf %595, %617 : vector<23x23xf32>
    %619 = arith.addf %594, %618 : vector<23x23xf32>
    %620 = vector.extract_strided_slice %452 {offsets = [0, 7], sizes = [23, 23], strides = [1, 1]} : vector<23x30xf32> to vector<23x23xf32>
    %cst_232 = arith.constant 0.353553385 : f32
    %621 = vector.broadcast %cst_232 : f32 to vector<23x23xf32>
    %622 = arith.mulf %620, %621 : vector<23x23xf32>
    %623 = arith.addf %598, %622 : vector<23x23xf32>
    %cst_233 = arith.constant -0.490392625 : f32
    %624 = vector.broadcast %cst_233 : f32 to vector<23x23xf32>
    %625 = arith.mulf %620, %624 : vector<23x23xf32>
    %626 = arith.addf %601, %625 : vector<23x23xf32>
    %cst_234 = arith.constant 0.461939752 : f32
    %627 = vector.broadcast %cst_234 : f32 to vector<23x23xf32>
    %628 = arith.mulf %620, %627 : vector<23x23xf32>
    %629 = arith.addf %604, %628 : vector<23x23xf32>
    %cst_235 = arith.constant -0.415734798 : f32
    %630 = vector.broadcast %cst_235 : f32 to vector<23x23xf32>
    %631 = arith.mulf %620, %630 : vector<23x23xf32>
    %632 = arith.addf %607, %631 : vector<23x23xf32>
    %cst_236 = arith.constant 0.353553385 : f32
    %633 = vector.broadcast %cst_236 : f32 to vector<23x23xf32>
    %634 = arith.mulf %620, %633 : vector<23x23xf32>
    %635 = arith.addf %610, %634 : vector<23x23xf32>
    %cst_237 = arith.constant -0.277785122 : f32
    %636 = vector.broadcast %cst_237 : f32 to vector<23x23xf32>
    %637 = arith.mulf %620, %636 : vector<23x23xf32>
    %638 = arith.addf %613, %637 : vector<23x23xf32>
    %cst_238 = arith.constant 0.191341713 : f32
    %639 = vector.broadcast %cst_238 : f32 to vector<23x23xf32>
    %640 = arith.mulf %620, %639 : vector<23x23xf32>
    %641 = arith.addf %616, %640 : vector<23x23xf32>
    %cst_239 = arith.constant -0.0975451618 : f32
    %642 = vector.broadcast %cst_239 : f32 to vector<23x23xf32>
    %643 = arith.mulf %620, %642 : vector<23x23xf32>
    %644 = arith.addf %619, %643 : vector<23x23xf32>
    %c1_240 = arith.constant 1 : index
    %c0_241 = arith.constant 0 : index
    %c0_242 = arith.constant 0 : index
    %645 = vector.load %arg2[%c1_240, %c0_241, %c0_242] : memref<64x23x23xf32, #tpu.memory_space<vmem>>, vector<1x23x23xf32>
    %646 = vector.shape_cast %645 : vector<1x23x23xf32> to vector<23x23xf32>
    %647 = vector.shape_cast %623 : vector<23x23xf32> to vector<1x23x23xf32>
    tpu.vector_store %arg2[%c1_240, %c0_241, %c0_242], %647 {strides = array<i32>} : memref<64x23x23xf32, #tpu.memory_space<vmem>>, vector<1x23x23xf32>,
    %c4_243 = arith.constant 4 : index
    %c0_244 = arith.constant 0 : index
    %c0_245 = arith.constant 0 : index
    %648 = vector.load %arg2[%c4_243, %c0_244, %c0_245] : memref<64x23x23xf32, #tpu.memory_space<vmem>>, vector<1x23x23xf32>
    %649 = vector.shape_cast %648 : vector<1x23x23xf32> to vector<23x23xf32>
    %650 = vector.shape_cast %626 : vector<23x23xf32> to vector<1x23x23xf32>
    tpu.vector_store %arg2[%c4_243, %c0_244, %c0_245], %650 {strides = array<i32>} : memref<64x23x23xf32, #tpu.memory_space<vmem>>, vector<1x23x23xf32>,
    %c8 = arith.constant 8 : index
    %c0_246 = arith.constant 0 : index
    %c0_247 = arith.constant 0 : index
    %651 = vector.load %arg2[%c8, %c0_246, %c0_247] : memref<64x23x23xf32, #tpu.memory_space<vmem>>, vector<1x23x23xf32>
    %652 = vector.shape_cast %651 : vector<1x23x23xf32> to vector<23x23xf32>
    %653 = vector.shape_cast %629 : vector<23x23xf32> to vector<1x23x23xf32>
    tpu.vector_store %arg2[%c8, %c0_246, %c0_247], %653 {strides = array<i32>} : memref<64x23x23xf32, #tpu.memory_space<vmem>>, vector<1x23x23xf32>,
    %c13 = arith.constant 13 : index
    %c0_248 = arith.constant 0 : index
    %c0_249 = arith.constant 0 : index
    %654 = vector.load %arg2[%c13, %c0_248, %c0_249] : memref<64x23x23xf32, #tpu.memory_space<vmem>>, vector<1x23x23xf32>
    %655 = vector.shape_cast %654 : vector<1x23x23xf32> to vector<23x23xf32>
    %656 = vector.shape_cast %632 : vector<23x23xf32> to vector<1x23x23xf32>
    tpu.vector_store %arg2[%c13, %c0_248, %c0_249], %656 {strides = array<i32>} : memref<64x23x23xf32, #tpu.memory_space<vmem>>, vector<1x23x23xf32>,
    %c19 = arith.constant 19 : index
    %c0_250 = arith.constant 0 : index
    %c0_251 = arith.constant 0 : index
    %657 = vector.load %arg2[%c19, %c0_250, %c0_251] : memref<64x23x23xf32, #tpu.memory_space<vmem>>, vector<1x23x23xf32>
    %658 = vector.shape_cast %657 : vector<1x23x23xf32> to vector<23x23xf32>
    %659 = vector.shape_cast %635 : vector<23x23xf32> to vector<1x23x23xf32>
    tpu.vector_store %arg2[%c19, %c0_250, %c0_251], %659 {strides = array<i32>} : memref<64x23x23xf32, #tpu.memory_space<vmem>>, vector<1x23x23xf32>,
    %c26 = arith.constant 26 : index
    %c0_252 = arith.constant 0 : index
    %c0_253 = arith.constant 0 : index
    %660 = vector.load %arg2[%c26, %c0_252, %c0_253] : memref<64x23x23xf32, #tpu.memory_space<vmem>>, vector<1x23x23xf32>
    %661 = vector.shape_cast %660 : vector<1x23x23xf32> to vector<23x23xf32>
    %662 = vector.shape_cast %638 : vector<23x23xf32> to vector<1x23x23xf32>
    tpu.vector_store %arg2[%c26, %c0_252, %c0_253], %662 {strides = array<i32>} : memref<64x23x23xf32, #tpu.memory_space<vmem>>, vector<1x23x23xf32>,
    %c34 = arith.constant 34 : index
    %c0_254 = arith.constant 0 : index
    %c0_255 = arith.constant 0 : index
    %663 = vector.load %arg2[%c34, %c0_254, %c0_255] : memref<64x23x23xf32, #tpu.memory_space<vmem>>, vector<1x23x23xf32>
    %664 = vector.shape_cast %663 : vector<1x23x23xf32> to vector<23x23xf32>
    %665 = vector.shape_cast %641 : vector<23x23xf32> to vector<1x23x23xf32>
    tpu.vector_store %arg2[%c34, %c0_254, %c0_255], %665 {strides = array<i32>} : memref<64x23x23xf32, #tpu.memory_space<vmem>>, vector<1x23x23xf32>,
    %c42 = arith.constant 42 : index
    %c0_256 = arith.constant 0 : index
    %c0_257 = arith.constant 0 : index
    %666 = vector.load %arg2[%c42, %c0_256, %c0_257] : memref<64x23x23xf32, #tpu.memory_space<vmem>>, vector<1x23x23xf32>
    %667 = vector.shape_cast %666 : vector<1x23x23xf32> to vector<23x23xf32>
    %668 = vector.shape_cast %644 : vector<23x23xf32> to vector<1x23x23xf32>
    tpu.vector_store %arg2[%c42, %c0_256, %c0_257], %668 {strides = array<i32>} : memref<64x23x23xf32, #tpu.memory_space<vmem>>, vector<1x23x23xf32>,
    %c2_258 = arith.constant 2 : index
    %c0_259 = arith.constant 0 : index
    %c0_260 = arith.constant 0 : index
    %669 = vector.load %arg3[%c2_258, %c0_259, %c0_260] : memref<8x23x30xf32, #tpu.memory_space<vmem>>, vector<1x23x30xf32>
    %670 = vector.shape_cast %669 : vector<1x23x30xf32> to vector<23x30xf32>
    %671 = vector.extract_strided_slice %670 {offsets = [0, 0], sizes = [23, 23], strides = [1, 1]} : vector<23x30xf32> to vector<23x23xf32>
    %cst_261 = arith.constant 0.353553385 : f32
    %672 = vector.broadcast %cst_261 : f32 to vector<23x23xf32>
    %673 = arith.mulf %671, %672 : vector<23x23xf32>
    %cst_262 = arith.constant 0.490392625 : f32
    %674 = vector.broadcast %cst_262 : f32 to vector<23x23xf32>
    %675 = arith.mulf %671, %674 : vector<23x23xf32>
    %cst_263 = arith.constant 0.461939752 : f32
    %676 = vector.broadcast %cst_263 : f32 to vector<23x23xf32>
    %677 = arith.mulf %671, %676 : vector<23x23xf32>
    %cst_264 = arith.constant 0.415734798 : f32
    %678 = vector.broadcast %cst_264 : f32 to vector<23x23xf32>
    %679 = arith.mulf %671, %678 : vector<23x23xf32>
    %cst_265 = arith.constant 0.353553385 : f32
    %680 = vector.broadcast %cst_265 : f32 to vector<23x23xf32>
    %681 = arith.mulf %671, %680 : vector<23x23xf32>
    %cst_266 = arith.constant 0.277785122 : f32
    %682 = vector.broadcast %cst_266 : f32 to vector<23x23xf32>
    %683 = arith.mulf %671, %682 : vector<23x23xf32>
    %cst_267 = arith.constant 0.191341713 : f32
    %684 = vector.broadcast %cst_267 : f32 to vector<23x23xf32>
    %685 = arith.mulf %671, %684 : vector<23x23xf32>
    %cst_268 = arith.constant 0.0975451618 : f32
    %686 = vector.broadcast %cst_268 : f32 to vector<23x23xf32>
    %687 = arith.mulf %671, %686 : vector<23x23xf32>
    %688 = vector.extract_strided_slice %670 {offsets = [0, 1], sizes = [23, 23], strides = [1, 1]} : vector<23x30xf32> to vector<23x23xf32>
    %cst_269 = arith.constant 0.353553385 : f32
    %689 = vector.broadcast %cst_269 : f32 to vector<23x23xf32>
    %690 = arith.mulf %688, %689 : vector<23x23xf32>
    %691 = arith.addf %673, %690 : vector<23x23xf32>
    %cst_270 = arith.constant 0.415734798 : f32
    %692 = vector.broadcast %cst_270 : f32 to vector<23x23xf32>
    %693 = arith.mulf %688, %692 : vector<23x23xf32>
    %694 = arith.addf %675, %693 : vector<23x23xf32>
    %cst_271 = arith.constant 0.191341713 : f32
    %695 = vector.broadcast %cst_271 : f32 to vector<23x23xf32>
    %696 = arith.mulf %688, %695 : vector<23x23xf32>
    %697 = arith.addf %677, %696 : vector<23x23xf32>
    %cst_272 = arith.constant -0.0975451618 : f32
    %698 = vector.broadcast %cst_272 : f32 to vector<23x23xf32>
    %699 = arith.mulf %688, %698 : vector<23x23xf32>
    %700 = arith.addf %679, %699 : vector<23x23xf32>
    %cst_273 = arith.constant -0.353553385 : f32
    %701 = vector.broadcast %cst_273 : f32 to vector<23x23xf32>
    %702 = arith.mulf %688, %701 : vector<23x23xf32>
    %703 = arith.addf %681, %702 : vector<23x23xf32>
    %cst_274 = arith.constant -0.490392625 : f32
    %704 = vector.broadcast %cst_274 : f32 to vector<23x23xf32>
    %705 = arith.mulf %688, %704 : vector<23x23xf32>
    %706 = arith.addf %683, %705 : vector<23x23xf32>
    %cst_275 = arith.constant -0.461939752 : f32
    %707 = vector.broadcast %cst_275 : f32 to vector<23x23xf32>
    %708 = arith.mulf %688, %707 : vector<23x23xf32>
    %709 = arith.addf %685, %708 : vector<23x23xf32>
    %cst_276 = arith.constant -0.277785122 : f32
    %710 = vector.broadcast %cst_276 : f32 to vector<23x23xf32>
    %711 = arith.mulf %688, %710 : vector<23x23xf32>
    %712 = arith.addf %687, %711 : vector<23x23xf32>
    %713 = vector.extract_strided_slice %670 {offsets = [0, 2], sizes = [23, 23], strides = [1, 1]} : vector<23x30xf32> to vector<23x23xf32>
    %cst_277 = arith.constant 0.353553385 : f32
    %714 = vector.broadcast %cst_277 : f32 to vector<23x23xf32>
    %715 = arith.mulf %713, %714 : vector<23x23xf32>
    %716 = arith.addf %691, %715 : vector<23x23xf32>
    %cst_278 = arith.constant 0.277785122 : f32
    %717 = vector.broadcast %cst_278 : f32 to vector<23x23xf32>
    %718 = arith.mulf %713, %717 : vector<23x23xf32>
    %719 = arith.addf %694, %718 : vector<23x23xf32>
    %cst_279 = arith.constant -0.191341713 : f32
    %720 = vector.broadcast %cst_279 : f32 to vector<23x23xf32>
    %721 = arith.mulf %713, %720 : vector<23x23xf32>
    %722 = arith.addf %697, %721 : vector<23x23xf32>
    %cst_280 = arith.constant -0.490392625 : f32
    %723 = vector.broadcast %cst_280 : f32 to vector<23x23xf32>
    %724 = arith.mulf %713, %723 : vector<23x23xf32>
    %725 = arith.addf %700, %724 : vector<23x23xf32>
    %cst_281 = arith.constant -0.353553385 : f32
    %726 = vector.broadcast %cst_281 : f32 to vector<23x23xf32>
    %727 = arith.mulf %713, %726 : vector<23x23xf32>
    %728 = arith.addf %703, %727 : vector<23x23xf32>
    %cst_282 = arith.constant 0.0975451618 : f32
    %729 = vector.broadcast %cst_282 : f32 to vector<23x23xf32>
    %730 = arith.mulf %713, %729 : vector<23x23xf32>
    %731 = arith.addf %706, %730 : vector<23x23xf32>
    %cst_283 = arith.constant 0.461939752 : f32
    %732 = vector.broadcast %cst_283 : f32 to vector<23x23xf32>
    %733 = arith.mulf %713, %732 : vector<23x23xf32>
    %734 = arith.addf %709, %733 : vector<23x23xf32>
    %cst_284 = arith.constant 0.415734798 : f32
    %735 = vector.broadcast %cst_284 : f32 to vector<23x23xf32>
    %736 = arith.mulf %713, %735 : vector<23x23xf32>
    %737 = arith.addf %712, %736 : vector<23x23xf32>
    %738 = vector.extract_strided_slice %670 {offsets = [0, 3], sizes = [23, 23], strides = [1, 1]} : vector<23x30xf32> to vector<23x23xf32>
    %cst_285 = arith.constant 0.353553385 : f32
    %739 = vector.broadcast %cst_285 : f32 to vector<23x23xf32>
    %740 = arith.mulf %738, %739 : vector<23x23xf32>
    %741 = arith.addf %716, %740 : vector<23x23xf32>
    %cst_286 = arith.constant 0.0975451618 : f32
    %742 = vector.broadcast %cst_286 : f32 to vector<23x23xf32>
    %743 = arith.mulf %738, %742 : vector<23x23xf32>
    %744 = arith.addf %719, %743 : vector<23x23xf32>
    %cst_287 = arith.constant -0.461939752 : f32
    %745 = vector.broadcast %cst_287 : f32 to vector<23x23xf32>
    %746 = arith.mulf %738, %745 : vector<23x23xf32>
    %747 = arith.addf %722, %746 : vector<23x23xf32>
    %cst_288 = arith.constant -0.277785122 : f32
    %748 = vector.broadcast %cst_288 : f32 to vector<23x23xf32>
    %749 = arith.mulf %738, %748 : vector<23x23xf32>
    %750 = arith.addf %725, %749 : vector<23x23xf32>
    %cst_289 = arith.constant 0.353553385 : f32
    %751 = vector.broadcast %cst_289 : f32 to vector<23x23xf32>
    %752 = arith.mulf %738, %751 : vector<23x23xf32>
    %753 = arith.addf %728, %752 : vector<23x23xf32>
    %cst_290 = arith.constant 0.415734798 : f32
    %754 = vector.broadcast %cst_290 : f32 to vector<23x23xf32>
    %755 = arith.mulf %738, %754 : vector<23x23xf32>
    %756 = arith.addf %731, %755 : vector<23x23xf32>
    %cst_291 = arith.constant -0.191341713 : f32
    %757 = vector.broadcast %cst_291 : f32 to vector<23x23xf32>
    %758 = arith.mulf %738, %757 : vector<23x23xf32>
    %759 = arith.addf %734, %758 : vector<23x23xf32>
    %cst_292 = arith.constant -0.490392625 : f32
    %760 = vector.broadcast %cst_292 : f32 to vector<23x23xf32>
    %761 = arith.mulf %738, %760 : vector<23x23xf32>
    %762 = arith.addf %737, %761 : vector<23x23xf32>
    %763 = vector.extract_strided_slice %670 {offsets = [0, 4], sizes = [23, 23], strides = [1, 1]} : vector<23x30xf32> to vector<23x23xf32>
    %cst_293 = arith.constant 0.353553385 : f32
    %764 = vector.broadcast %cst_293 : f32 to vector<23x23xf32>
    %765 = arith.mulf %763, %764 : vector<23x23xf32>
    %766 = arith.addf %741, %765 : vector<23x23xf32>
    %cst_294 = arith.constant -0.0975451618 : f32
    %767 = vector.broadcast %cst_294 : f32 to vector<23x23xf32>
    %768 = arith.mulf %763, %767 : vector<23x23xf32>
    %769 = arith.addf %744, %768 : vector<23x23xf32>
    %cst_295 = arith.constant -0.461939752 : f32
    %770 = vector.broadcast %cst_295 : f32 to vector<23x23xf32>
    %771 = arith.mulf %763, %770 : vector<23x23xf32>
    %772 = arith.addf %747, %771 : vector<23x23xf32>
    %cst_296 = arith.constant 0.277785122 : f32
    %773 = vector.broadcast %cst_296 : f32 to vector<23x23xf32>
    %774 = arith.mulf %763, %773 : vector<23x23xf32>
    %775 = arith.addf %750, %774 : vector<23x23xf32>
    %cst_297 = arith.constant 0.353553385 : f32
    %776 = vector.broadcast %cst_297 : f32 to vector<23x23xf32>
    %777 = arith.mulf %763, %776 : vector<23x23xf32>
    %778 = arith.addf %753, %777 : vector<23x23xf32>
    %cst_298 = arith.constant -0.415734798 : f32
    %779 = vector.broadcast %cst_298 : f32 to vector<23x23xf32>
    %780 = arith.mulf %763, %779 : vector<23x23xf32>
    %781 = arith.addf %756, %780 : vector<23x23xf32>
    %cst_299 = arith.constant -0.191341713 : f32
    %782 = vector.broadcast %cst_299 : f32 to vector<23x23xf32>
    %783 = arith.mulf %763, %782 : vector<23x23xf32>
    %784 = arith.addf %759, %783 : vector<23x23xf32>
    %cst_300 = arith.constant 0.490392625 : f32
    %785 = vector.broadcast %cst_300 : f32 to vector<23x23xf32>
    %786 = arith.mulf %763, %785 : vector<23x23xf32>
    %787 = arith.addf %762, %786 : vector<23x23xf32>
    %788 = vector.extract_strided_slice %670 {offsets = [0, 5], sizes = [23, 23], strides = [1, 1]} : vector<23x30xf32> to vector<23x23xf32>
    %cst_301 = arith.constant 0.353553385 : f32
    %789 = vector.broadcast %cst_301 : f32 to vector<23x23xf32>
    %790 = arith.mulf %788, %789 : vector<23x23xf32>
    %791 = arith.addf %766, %790 : vector<23x23xf32>
    %cst_302 = arith.constant -0.277785122 : f32
    %792 = vector.broadcast %cst_302 : f32 to vector<23x23xf32>
    %793 = arith.mulf %788, %792 : vector<23x23xf32>
    %794 = arith.addf %769, %793 : vector<23x23xf32>
    %cst_303 = arith.constant -0.191341713 : f32
    %795 = vector.broadcast %cst_303 : f32 to vector<23x23xf32>
    %796 = arith.mulf %788, %795 : vector<23x23xf32>
    %797 = arith.addf %772, %796 : vector<23x23xf32>
    %cst_304 = arith.constant 0.490392625 : f32
    %798 = vector.broadcast %cst_304 : f32 to vector<23x23xf32>
    %799 = arith.mulf %788, %798 : vector<23x23xf32>
    %800 = arith.addf %775, %799 : vector<23x23xf32>
    %cst_305 = arith.constant -0.353553385 : f32
    %801 = vector.broadcast %cst_305 : f32 to vector<23x23xf32>
    %802 = arith.mulf %788, %801 : vector<23x23xf32>
    %803 = arith.addf %778, %802 : vector<23x23xf32>
    %cst_306 = arith.constant -0.0975451618 : f32
    %804 = vector.broadcast %cst_306 : f32 to vector<23x23xf32>
    %805 = arith.mulf %788, %804 : vector<23x23xf32>
    %806 = arith.addf %781, %805 : vector<23x23xf32>
    %cst_307 = arith.constant 0.461939752 : f32
    %807 = vector.broadcast %cst_307 : f32 to vector<23x23xf32>
    %808 = arith.mulf %788, %807 : vector<23x23xf32>
    %809 = arith.addf %784, %808 : vector<23x23xf32>
    %cst_308 = arith.constant -0.415734798 : f32
    %810 = vector.broadcast %cst_308 : f32 to vector<23x23xf32>
    %811 = arith.mulf %788, %810 : vector<23x23xf32>
    %812 = arith.addf %787, %811 : vector<23x23xf32>
    %813 = vector.extract_strided_slice %670 {offsets = [0, 6], sizes = [23, 23], strides = [1, 1]} : vector<23x30xf32> to vector<23x23xf32>
    %cst_309 = arith.constant 0.353553385 : f32
    %814 = vector.broadcast %cst_309 : f32 to vector<23x23xf32>
    %815 = arith.mulf %813, %814 : vector<23x23xf32>
    %816 = arith.addf %791, %815 : vector<23x23xf32>
    %cst_310 = arith.constant -0.415734798 : f32
    %817 = vector.broadcast %cst_310 : f32 to vector<23x23xf32>
    %818 = arith.mulf %813, %817 : vector<23x23xf32>
    %819 = arith.addf %794, %818 : vector<23x23xf32>
    %cst_311 = arith.constant 0.191341713 : f32
    %820 = vector.broadcast %cst_311 : f32 to vector<23x23xf32>
    %821 = arith.mulf %813, %820 : vector<23x23xf32>
    %822 = arith.addf %797, %821 : vector<23x23xf32>
    %cst_312 = arith.constant 0.0975451618 : f32
    %823 = vector.broadcast %cst_312 : f32 to vector<23x23xf32>
    %824 = arith.mulf %813, %823 : vector<23x23xf32>
    %825 = arith.addf %800, %824 : vector<23x23xf32>
    %cst_313 = arith.constant -0.353553385 : f32
    %826 = vector.broadcast %cst_313 : f32 to vector<23x23xf32>
    %827 = arith.mulf %813, %826 : vector<23x23xf32>
    %828 = arith.addf %803, %827 : vector<23x23xf32>
    %cst_314 = arith.constant 0.490392625 : f32
    %829 = vector.broadcast %cst_314 : f32 to vector<23x23xf32>
    %830 = arith.mulf %813, %829 : vector<23x23xf32>
    %831 = arith.addf %806, %830 : vector<23x23xf32>
    %cst_315 = arith.constant -0.461939752 : f32
    %832 = vector.broadcast %cst_315 : f32 to vector<23x23xf32>
    %833 = arith.mulf %813, %832 : vector<23x23xf32>
    %834 = arith.addf %809, %833 : vector<23x23xf32>
    %cst_316 = arith.constant 0.277785122 : f32
    %835 = vector.broadcast %cst_316 : f32 to vector<23x23xf32>
    %836 = arith.mulf %813, %835 : vector<23x23xf32>
    %837 = arith.addf %812, %836 : vector<23x23xf32>
    %838 = vector.extract_strided_slice %670 {offsets = [0, 7], sizes = [23, 23], strides = [1, 1]} : vector<23x30xf32> to vector<23x23xf32>
    %cst_317 = arith.constant 0.353553385 : f32
    %839 = vector.broadcast %cst_317 : f32 to vector<23x23xf32>
    %840 = arith.mulf %838, %839 : vector<23x23xf32>
    %841 = arith.addf %816, %840 : vector<23x23xf32>
    %cst_318 = arith.constant -0.490392625 : f32
    %842 = vector.broadcast %cst_318 : f32 to vector<23x23xf32>
    %843 = arith.mulf %838, %842 : vector<23x23xf32>
    %844 = arith.addf %819, %843 : vector<23x23xf32>
    %cst_319 = arith.constant 0.461939752 : f32
    %845 = vector.broadcast %cst_319 : f32 to vector<23x23xf32>
    %846 = arith.mulf %838, %845 : vector<23x23xf32>
    %847 = arith.addf %822, %846 : vector<23x23xf32>
    %cst_320 = arith.constant -0.415734798 : f32
    %848 = vector.broadcast %cst_320 : f32 to vector<23x23xf32>
    %849 = arith.mulf %838, %848 : vector<23x23xf32>
    %850 = arith.addf %825, %849 : vector<23x23xf32>
    %cst_321 = arith.constant 0.353553385 : f32
    %851 = vector.broadcast %cst_321 : f32 to vector<23x23xf32>
    %852 = arith.mulf %838, %851 : vector<23x23xf32>
    %853 = arith.addf %828, %852 : vector<23x23xf32>
    %cst_322 = arith.constant -0.277785122 : f32
    %854 = vector.broadcast %cst_322 : f32 to vector<23x23xf32>
    %855 = arith.mulf %838, %854 : vector<23x23xf32>
    %856 = arith.addf %831, %855 : vector<23x23xf32>
    %cst_323 = arith.constant 0.191341713 : f32
    %857 = vector.broadcast %cst_323 : f32 to vector<23x23xf32>
    %858 = arith.mulf %838, %857 : vector<23x23xf32>
    %859 = arith.addf %834, %858 : vector<23x23xf32>
    %cst_324 = arith.constant -0.0975451618 : f32
    %860 = vector.broadcast %cst_324 : f32 to vector<23x23xf32>
    %861 = arith.mulf %838, %860 : vector<23x23xf32>
    %862 = arith.addf %837, %861 : vector<23x23xf32>
    %c3_325 = arith.constant 3 : index
    %c0_326 = arith.constant 0 : index
    %c0_327 = arith.constant 0 : index
    %863 = vector.load %arg2[%c3_325, %c0_326, %c0_327] : memref<64x23x23xf32, #tpu.memory_space<vmem>>, vector<1x23x23xf32>
    %864 = vector.shape_cast %863 : vector<1x23x23xf32> to vector<23x23xf32>
    %865 = vector.shape_cast %841 : vector<23x23xf32> to vector<1x23x23xf32>
    tpu.vector_store %arg2[%c3_325, %c0_326, %c0_327], %865 {strides = array<i32>} : memref<64x23x23xf32, #tpu.memory_space<vmem>>, vector<1x23x23xf32>,
    %c7_328 = arith.constant 7 : index
    %c0_329 = arith.constant 0 : index
    %c0_330 = arith.constant 0 : index
    %866 = vector.load %arg2[%c7_328, %c0_329, %c0_330] : memref<64x23x23xf32, #tpu.memory_space<vmem>>, vector<1x23x23xf32>
    %867 = vector.shape_cast %866 : vector<1x23x23xf32> to vector<23x23xf32>
    %868 = vector.shape_cast %844 : vector<23x23xf32> to vector<1x23x23xf32>
    tpu.vector_store %arg2[%c7_328, %c0_329, %c0_330], %868 {strides = array<i32>} : memref<64x23x23xf32, #tpu.memory_space<vmem>>, vector<1x23x23xf32>,
    %c12 = arith.constant 12 : index
    %c0_331 = arith.constant 0 : index
    %c0_332 = arith.constant 0 : index
    %869 = vector.load %arg2[%c12, %c0_331, %c0_332] : memref<64x23x23xf32, #tpu.memory_space<vmem>>, vector<1x23x23xf32>
    %870 = vector.shape_cast %869 : vector<1x23x23xf32> to vector<23x23xf32>
    %871 = vector.shape_cast %847 : vector<23x23xf32> to vector<1x23x23xf32>
    tpu.vector_store %arg2[%c12, %c0_331, %c0_332], %871 {strides = array<i32>} : memref<64x23x23xf32, #tpu.memory_space<vmem>>, vector<1x23x23xf32>,
    %c18 = arith.constant 18 : index
    %c0_333 = arith.constant 0 : index
    %c0_334 = arith.constant 0 : index
    %872 = vector.load %arg2[%c18, %c0_333, %c0_334] : memref<64x23x23xf32, #tpu.memory_space<vmem>>, vector<1x23x23xf32>
    %873 = vector.shape_cast %872 : vector<1x23x23xf32> to vector<23x23xf32>
    %874 = vector.shape_cast %850 : vector<23x23xf32> to vector<1x23x23xf32>
    tpu.vector_store %arg2[%c18, %c0_333, %c0_334], %874 {strides = array<i32>} : memref<64x23x23xf32, #tpu.memory_space<vmem>>, vector<1x23x23xf32>,
    %c25 = arith.constant 25 : index
    %c0_335 = arith.constant 0 : index
    %c0_336 = arith.constant 0 : index
    %875 = vector.load %arg2[%c25, %c0_335, %c0_336] : memref<64x23x23xf32, #tpu.memory_space<vmem>>, vector<1x23x23xf32>
    %876 = vector.shape_cast %875 : vector<1x23x23xf32> to vector<23x23xf32>
    %877 = vector.shape_cast %853 : vector<23x23xf32> to vector<1x23x23xf32>
    tpu.vector_store %arg2[%c25, %c0_335, %c0_336], %877 {strides = array<i32>} : memref<64x23x23xf32, #tpu.memory_space<vmem>>, vector<1x23x23xf32>,
    %c33 = arith.constant 33 : index
    %c0_337 = arith.constant 0 : index
    %c0_338 = arith.constant 0 : index
    %878 = vector.load %arg2[%c33, %c0_337, %c0_338] : memref<64x23x23xf32, #tpu.memory_space<vmem>>, vector<1x23x23xf32>
    %879 = vector.shape_cast %878 : vector<1x23x23xf32> to vector<23x23xf32>
    %880 = vector.shape_cast %856 : vector<23x23xf32> to vector<1x23x23xf32>
    tpu.vector_store %arg2[%c33, %c0_337, %c0_338], %880 {strides = array<i32>} : memref<64x23x23xf32, #tpu.memory_space<vmem>>, vector<1x23x23xf32>,
    %c41 = arith.constant 41 : index
    %c0_339 = arith.constant 0 : index
    %c0_340 = arith.constant 0 : index
    %881 = vector.load %arg2[%c41, %c0_339, %c0_340] : memref<64x23x23xf32, #tpu.memory_space<vmem>>, vector<1x23x23xf32>
    %882 = vector.shape_cast %881 : vector<1x23x23xf32> to vector<23x23xf32>
    %883 = vector.shape_cast %859 : vector<23x23xf32> to vector<1x23x23xf32>
    tpu.vector_store %arg2[%c41, %c0_339, %c0_340], %883 {strides = array<i32>} : memref<64x23x23xf32, #tpu.memory_space<vmem>>, vector<1x23x23xf32>,
    %c48 = arith.constant 48 : index
    %c0_341 = arith.constant 0 : index
    %c0_342 = arith.constant 0 : index
    %884 = vector.load %arg2[%c48, %c0_341, %c0_342] : memref<64x23x23xf32, #tpu.memory_space<vmem>>, vector<1x23x23xf32>
    %885 = vector.shape_cast %884 : vector<1x23x23xf32> to vector<23x23xf32>
    %886 = vector.shape_cast %862 : vector<23x23xf32> to vector<1x23x23xf32>
    tpu.vector_store %arg2[%c48, %c0_341, %c0_342], %886 {strides = array<i32>} : memref<64x23x23xf32, #tpu.memory_space<vmem>>, vector<1x23x23xf32>,
    %c3_343 = arith.constant 3 : index
    %c0_344 = arith.constant 0 : index
    %c0_345 = arith.constant 0 : index
    %887 = vector.load %arg3[%c3_343, %c0_344, %c0_345] : memref<8x23x30xf32, #tpu.memory_space<vmem>>, vector<1x23x30xf32>
    %888 = vector.shape_cast %887 : vector<1x23x30xf32> to vector<23x30xf32>
    %889 = vector.extract_strided_slice %888 {offsets = [0, 0], sizes = [23, 23], strides = [1, 1]} : vector<23x30xf32> to vector<23x23xf32>
    %cst_346 = arith.constant 0.353553385 : f32
    %890 = vector.broadcast %cst_346 : f32 to vector<23x23xf32>
    %891 = arith.mulf %889, %890 : vector<23x23xf32>
    %cst_347 = arith.constant 0.490392625 : f32
    %892 = vector.broadcast %cst_347 : f32 to vector<23x23xf32>
    %893 = arith.mulf %889, %892 : vector<23x23xf32>
    %cst_348 = arith.constant 0.461939752 : f32
    %894 = vector.broadcast %cst_348 : f32 to vector<23x23xf32>
    %895 = arith.mulf %889, %894 : vector<23x23xf32>
    %cst_349 = arith.constant 0.415734798 : f32
    %896 = vector.broadcast %cst_349 : f32 to vector<23x23xf32>
    %897 = arith.mulf %889, %896 : vector<23x23xf32>
    %cst_350 = arith.constant 0.353553385 : f32
    %898 = vector.broadcast %cst_350 : f32 to vector<23x23xf32>
    %899 = arith.mulf %889, %898 : vector<23x23xf32>
    %cst_351 = arith.constant 0.277785122 : f32
    %900 = vector.broadcast %cst_351 : f32 to vector<23x23xf32>
    %901 = arith.mulf %889, %900 : vector<23x23xf32>
    %cst_352 = arith.constant 0.191341713 : f32
    %902 = vector.broadcast %cst_352 : f32 to vector<23x23xf32>
    %903 = arith.mulf %889, %902 : vector<23x23xf32>
    %cst_353 = arith.constant 0.0975451618 : f32
    %904 = vector.broadcast %cst_353 : f32 to vector<23x23xf32>
    %905 = arith.mulf %889, %904 : vector<23x23xf32>
    %906 = vector.extract_strided_slice %888 {offsets = [0, 1], sizes = [23, 23], strides = [1, 1]} : vector<23x30xf32> to vector<23x23xf32>
    %cst_354 = arith.constant 0.353553385 : f32
    %907 = vector.broadcast %cst_354 : f32 to vector<23x23xf32>
    %908 = arith.mulf %906, %907 : vector<23x23xf32>
    %909 = arith.addf %891, %908 : vector<23x23xf32>
    %cst_355 = arith.constant 0.415734798 : f32
    %910 = vector.broadcast %cst_355 : f32 to vector<23x23xf32>
    %911 = arith.mulf %906, %910 : vector<23x23xf32>
    %912 = arith.addf %893, %911 : vector<23x23xf32>
    %cst_356 = arith.constant 0.191341713 : f32
    %913 = vector.broadcast %cst_356 : f32 to vector<23x23xf32>
    %914 = arith.mulf %906, %913 : vector<23x23xf32>
    %915 = arith.addf %895, %914 : vector<23x23xf32>
    %cst_357 = arith.constant -0.0975451618 : f32
    %916 = vector.broadcast %cst_357 : f32 to vector<23x23xf32>
    %917 = arith.mulf %906, %916 : vector<23x23xf32>
    %918 = arith.addf %897, %917 : vector<23x23xf32>
    %cst_358 = arith.constant -0.353553385 : f32
    %919 = vector.broadcast %cst_358 : f32 to vector<23x23xf32>
    %920 = arith.mulf %906, %919 : vector<23x23xf32>
    %921 = arith.addf %899, %920 : vector<23x23xf32>
    %cst_359 = arith.constant -0.490392625 : f32
    %922 = vector.broadcast %cst_359 : f32 to vector<23x23xf32>
    %923 = arith.mulf %906, %922 : vector<23x23xf32>
    %924 = arith.addf %901, %923 : vector<23x23xf32>
    %cst_360 = arith.constant -0.461939752 : f32
    %925 = vector.broadcast %cst_360 : f32 to vector<23x23xf32>
    %926 = arith.mulf %906, %925 : vector<23x23xf32>
    %927 = arith.addf %903, %926 : vector<23x23xf32>
    %cst_361 = arith.constant -0.277785122 : f32
    %928 = vector.broadcast %cst_361 : f32 to vector<23x23xf32>
    %929 = arith.mulf %906, %928 : vector<23x23xf32>
    %930 = arith.addf %905, %929 : vector<23x23xf32>
    %931 = vector.extract_strided_slice %888 {offsets = [0, 2], sizes = [23, 23], strides = [1, 1]} : vector<23x30xf32> to vector<23x23xf32>
    %cst_362 = arith.constant 0.353553385 : f32
    %932 = vector.broadcast %cst_362 : f32 to vector<23x23xf32>
    %933 = arith.mulf %931, %932 : vector<23x23xf32>
    %934 = arith.addf %909, %933 : vector<23x23xf32>
    %cst_363 = arith.constant 0.277785122 : f32
    %935 = vector.broadcast %cst_363 : f32 to vector<23x23xf32>
    %936 = arith.mulf %931, %935 : vector<23x23xf32>
    %937 = arith.addf %912, %936 : vector<23x23xf32>
    %cst_364 = arith.constant -0.191341713 : f32
    %938 = vector.broadcast %cst_364 : f32 to vector<23x23xf32>
    %939 = arith.mulf %931, %938 : vector<23x23xf32>
    %940 = arith.addf %915, %939 : vector<23x23xf32>
    %cst_365 = arith.constant -0.490392625 : f32
    %941 = vector.broadcast %cst_365 : f32 to vector<23x23xf32>
    %942 = arith.mulf %931, %941 : vector<23x23xf32>
    %943 = arith.addf %918, %942 : vector<23x23xf32>
    %cst_366 = arith.constant -0.353553385 : f32
    %944 = vector.broadcast %cst_366 : f32 to vector<23x23xf32>
    %945 = arith.mulf %931, %944 : vector<23x23xf32>
    %946 = arith.addf %921, %945 : vector<23x23xf32>
    %cst_367 = arith.constant 0.0975451618 : f32
    %947 = vector.broadcast %cst_367 : f32 to vector<23x23xf32>
    %948 = arith.mulf %931, %947 : vector<23x23xf32>
    %949 = arith.addf %924, %948 : vector<23x23xf32>
    %cst_368 = arith.constant 0.461939752 : f32
    %950 = vector.broadcast %cst_368 : f32 to vector<23x23xf32>
    %951 = arith.mulf %931, %950 : vector<23x23xf32>
    %952 = arith.addf %927, %951 : vector<23x23xf32>
    %cst_369 = arith.constant 0.415734798 : f32
    %953 = vector.broadcast %cst_369 : f32 to vector<23x23xf32>
    %954 = arith.mulf %931, %953 : vector<23x23xf32>
    %955 = arith.addf %930, %954 : vector<23x23xf32>
    %956 = vector.extract_strided_slice %888 {offsets = [0, 3], sizes = [23, 23], strides = [1, 1]} : vector<23x30xf32> to vector<23x23xf32>
    %cst_370 = arith.constant 0.353553385 : f32
    %957 = vector.broadcast %cst_370 : f32 to vector<23x23xf32>
    %958 = arith.mulf %956, %957 : vector<23x23xf32>
    %959 = arith.addf %934, %958 : vector<23x23xf32>
    %cst_371 = arith.constant 0.0975451618 : f32
    %960 = vector.broadcast %cst_371 : f32 to vector<23x23xf32>
    %961 = arith.mulf %956, %960 : vector<23x23xf32>
    %962 = arith.addf %937, %961 : vector<23x23xf32>
    %cst_372 = arith.constant -0.461939752 : f32
    %963 = vector.broadcast %cst_372 : f32 to vector<23x23xf32>
    %964 = arith.mulf %956, %963 : vector<23x23xf32>
    %965 = arith.addf %940, %964 : vector<23x23xf32>
    %cst_373 = arith.constant -0.277785122 : f32
    %966 = vector.broadcast %cst_373 : f32 to vector<23x23xf32>
    %967 = arith.mulf %956, %966 : vector<23x23xf32>
    %968 = arith.addf %943, %967 : vector<23x23xf32>
    %cst_374 = arith.constant 0.353553385 : f32
    %969 = vector.broadcast %cst_374 : f32 to vector<23x23xf32>
    %970 = arith.mulf %956, %969 : vector<23x23xf32>
    %971 = arith.addf %946, %970 : vector<23x23xf32>
    %cst_375 = arith.constant 0.415734798 : f32
    %972 = vector.broadcast %cst_375 : f32 to vector<23x23xf32>
    %973 = arith.mulf %956, %972 : vector<23x23xf32>
    %974 = arith.addf %949, %973 : vector<23x23xf32>
    %cst_376 = arith.constant -0.191341713 : f32
    %975 = vector.broadcast %cst_376 : f32 to vector<23x23xf32>
    %976 = arith.mulf %956, %975 : vector<23x23xf32>
    %977 = arith.addf %952, %976 : vector<23x23xf32>
    %cst_377 = arith.constant -0.490392625 : f32
    %978 = vector.broadcast %cst_377 : f32 to vector<23x23xf32>
    %979 = arith.mulf %956, %978 : vector<23x23xf32>
    %980 = arith.addf %955, %979 : vector<23x23xf32>
    %981 = vector.extract_strided_slice %888 {offsets = [0, 4], sizes = [23, 23], strides = [1, 1]} : vector<23x30xf32> to vector<23x23xf32>
    %cst_378 = arith.constant 0.353553385 : f32
    %982 = vector.broadcast %cst_378 : f32 to vector<23x23xf32>
    %983 = arith.mulf %981, %982 : vector<23x23xf32>
    %984 = arith.addf %959, %983 : vector<23x23xf32>
    %cst_379 = arith.constant -0.0975451618 : f32
    %985 = vector.broadcast %cst_379 : f32 to vector<23x23xf32>
    %986 = arith.mulf %981, %985 : vector<23x23xf32>
    %987 = arith.addf %962, %986 : vector<23x23xf32>
    %cst_380 = arith.constant -0.461939752 : f32
    %988 = vector.broadcast %cst_380 : f32 to vector<23x23xf32>
    %989 = arith.mulf %981, %988 : vector<23x23xf32>
    %990 = arith.addf %965, %989 : vector<23x23xf32>
    %cst_381 = arith.constant 0.277785122 : f32
    %991 = vector.broadcast %cst_381 : f32 to vector<23x23xf32>
    %992 = arith.mulf %981, %991 : vector<23x23xf32>
    %993 = arith.addf %968, %992 : vector<23x23xf32>
    %cst_382 = arith.constant 0.353553385 : f32
    %994 = vector.broadcast %cst_382 : f32 to vector<23x23xf32>
    %995 = arith.mulf %981, %994 : vector<23x23xf32>
    %996 = arith.addf %971, %995 : vector<23x23xf32>
    %cst_383 = arith.constant -0.415734798 : f32
    %997 = vector.broadcast %cst_383 : f32 to vector<23x23xf32>
    %998 = arith.mulf %981, %997 : vector<23x23xf32>
    %999 = arith.addf %974, %998 : vector<23x23xf32>
    %cst_384 = arith.constant -0.191341713 : f32
    %1000 = vector.broadcast %cst_384 : f32 to vector<23x23xf32>
    %1001 = arith.mulf %981, %1000 : vector<23x23xf32>
    %1002 = arith.addf %977, %1001 : vector<23x23xf32>
    %cst_385 = arith.constant 0.490392625 : f32
    %1003 = vector.broadcast %cst_385 : f32 to vector<23x23xf32>
    %1004 = arith.mulf %981, %1003 : vector<23x23xf32>
    %1005 = arith.addf %980, %1004 : vector<23x23xf32>
    %1006 = vector.extract_strided_slice %888 {offsets = [0, 5], sizes = [23, 23], strides = [1, 1]} : vector<23x30xf32> to vector<23x23xf32>
    %cst_386 = arith.constant 0.353553385 : f32
    %1007 = vector.broadcast %cst_386 : f32 to vector<23x23xf32>
    %1008 = arith.mulf %1006, %1007 : vector<23x23xf32>
    %1009 = arith.addf %984, %1008 : vector<23x23xf32>
    %cst_387 = arith.constant -0.277785122 : f32
    %1010 = vector.broadcast %cst_387 : f32 to vector<23x23xf32>
    %1011 = arith.mulf %1006, %1010 : vector<23x23xf32>
    %1012 = arith.addf %987, %1011 : vector<23x23xf32>
    %cst_388 = arith.constant -0.191341713 : f32
    %1013 = vector.broadcast %cst_388 : f32 to vector<23x23xf32>
    %1014 = arith.mulf %1006, %1013 : vector<23x23xf32>
    %1015 = arith.addf %990, %1014 : vector<23x23xf32>
    %cst_389 = arith.constant 0.490392625 : f32
    %1016 = vector.broadcast %cst_389 : f32 to vector<23x23xf32>
    %1017 = arith.mulf %1006, %1016 : vector<23x23xf32>
    %1018 = arith.addf %993, %1017 : vector<23x23xf32>
    %cst_390 = arith.constant -0.353553385 : f32
    %1019 = vector.broadcast %cst_390 : f32 to vector<23x23xf32>
    %1020 = arith.mulf %1006, %1019 : vector<23x23xf32>
    %1021 = arith.addf %996, %1020 : vector<23x23xf32>
    %cst_391 = arith.constant -0.0975451618 : f32
    %1022 = vector.broadcast %cst_391 : f32 to vector<23x23xf32>
    %1023 = arith.mulf %1006, %1022 : vector<23x23xf32>
    %1024 = arith.addf %999, %1023 : vector<23x23xf32>
    %cst_392 = arith.constant 0.461939752 : f32
    %1025 = vector.broadcast %cst_392 : f32 to vector<23x23xf32>
    %1026 = arith.mulf %1006, %1025 : vector<23x23xf32>
    %1027 = arith.addf %1002, %1026 : vector<23x23xf32>
    %cst_393 = arith.constant -0.415734798 : f32
    %1028 = vector.broadcast %cst_393 : f32 to vector<23x23xf32>
    %1029 = arith.mulf %1006, %1028 : vector<23x23xf32>
    %1030 = arith.addf %1005, %1029 : vector<23x23xf32>
    %1031 = vector.extract_strided_slice %888 {offsets = [0, 6], sizes = [23, 23], strides = [1, 1]} : vector<23x30xf32> to vector<23x23xf32>
    %cst_394 = arith.constant 0.353553385 : f32
    %1032 = vector.broadcast %cst_394 : f32 to vector<23x23xf32>
    %1033 = arith.mulf %1031, %1032 : vector<23x23xf32>
    %1034 = arith.addf %1009, %1033 : vector<23x23xf32>
    %cst_395 = arith.constant -0.415734798 : f32
    %1035 = vector.broadcast %cst_395 : f32 to vector<23x23xf32>
    %1036 = arith.mulf %1031, %1035 : vector<23x23xf32>
    %1037 = arith.addf %1012, %1036 : vector<23x23xf32>
    %cst_396 = arith.constant 0.191341713 : f32
    %1038 = vector.broadcast %cst_396 : f32 to vector<23x23xf32>
    %1039 = arith.mulf %1031, %1038 : vector<23x23xf32>
    %1040 = arith.addf %1015, %1039 : vector<23x23xf32>
    %cst_397 = arith.constant 0.0975451618 : f32
    %1041 = vector.broadcast %cst_397 : f32 to vector<23x23xf32>
    %1042 = arith.mulf %1031, %1041 : vector<23x23xf32>
    %1043 = arith.addf %1018, %1042 : vector<23x23xf32>
    %cst_398 = arith.constant -0.353553385 : f32
    %1044 = vector.broadcast %cst_398 : f32 to vector<23x23xf32>
    %1045 = arith.mulf %1031, %1044 : vector<23x23xf32>
    %1046 = arith.addf %1021, %1045 : vector<23x23xf32>
    %cst_399 = arith.constant 0.490392625 : f32
    %1047 = vector.broadcast %cst_399 : f32 to vector<23x23xf32>
    %1048 = arith.mulf %1031, %1047 : vector<23x23xf32>
    %1049 = arith.addf %1024, %1048 : vector<23x23xf32>
    %cst_400 = arith.constant -0.461939752 : f32
    %1050 = vector.broadcast %cst_400 : f32 to vector<23x23xf32>
    %1051 = arith.mulf %1031, %1050 : vector<23x23xf32>
    %1052 = arith.addf %1027, %1051 : vector<23x23xf32>
    %cst_401 = arith.constant 0.277785122 : f32
    %1053 = vector.broadcast %cst_401 : f32 to vector<23x23xf32>
    %1054 = arith.mulf %1031, %1053 : vector<23x23xf32>
    %1055 = arith.addf %1030, %1054 : vector<23x23xf32>
    %1056 = vector.extract_strided_slice %888 {offsets = [0, 7], sizes = [23, 23], strides = [1, 1]} : vector<23x30xf32> to vector<23x23xf32>
    %cst_402 = arith.constant 0.353553385 : f32
    %1057 = vector.broadcast %cst_402 : f32 to vector<23x23xf32>
    %1058 = arith.mulf %1056, %1057 : vector<23x23xf32>
    %1059 = arith.addf %1034, %1058 : vector<23x23xf32>
    %cst_403 = arith.constant -0.490392625 : f32
    %1060 = vector.broadcast %cst_403 : f32 to vector<23x23xf32>
    %1061 = arith.mulf %1056, %1060 : vector<23x23xf32>
    %1062 = arith.addf %1037, %1061 : vector<23x23xf32>
    %cst_404 = arith.constant 0.461939752 : f32
    %1063 = vector.broadcast %cst_404 : f32 to vector<23x23xf32>
    %1064 = arith.mulf %1056, %1063 : vector<23x23xf32>
    %1065 = arith.addf %1040, %1064 : vector<23x23xf32>
    %cst_405 = arith.constant -0.415734798 : f32
    %1066 = vector.broadcast %cst_405 : f32 to vector<23x23xf32>
    %1067 = arith.mulf %1056, %1066 : vector<23x23xf32>
    %1068 = arith.addf %1043, %1067 : vector<23x23xf32>
    %cst_406 = arith.constant 0.353553385 : f32
    %1069 = vector.broadcast %cst_406 : f32 to vector<23x23xf32>
    %1070 = arith.mulf %1056, %1069 : vector<23x23xf32>
    %1071 = arith.addf %1046, %1070 : vector<23x23xf32>
    %cst_407 = arith.constant -0.277785122 : f32
    %1072 = vector.broadcast %cst_407 : f32 to vector<23x23xf32>
    %1073 = arith.mulf %1056, %1072 : vector<23x23xf32>
    %1074 = arith.addf %1049, %1073 : vector<23x23xf32>
    %cst_408 = arith.constant 0.191341713 : f32
    %1075 = vector.broadcast %cst_408 : f32 to vector<23x23xf32>
    %1076 = arith.mulf %1056, %1075 : vector<23x23xf32>
    %1077 = arith.addf %1052, %1076 : vector<23x23xf32>
    %cst_409 = arith.constant -0.0975451618 : f32
    %1078 = vector.broadcast %cst_409 : f32 to vector<23x23xf32>
    %1079 = arith.mulf %1056, %1078 : vector<23x23xf32>
    %1080 = arith.addf %1055, %1079 : vector<23x23xf32>
    %c6_410 = arith.constant 6 : index
    %c0_411 = arith.constant 0 : index
    %c0_412 = arith.constant 0 : index
    %1081 = vector.load %arg2[%c6_410, %c0_411, %c0_412] : memref<64x23x23xf32, #tpu.memory_space<vmem>>, vector<1x23x23xf32>
    %1082 = vector.shape_cast %1081 : vector<1x23x23xf32> to vector<23x23xf32>
    %1083 = vector.shape_cast %1059 : vector<23x23xf32> to vector<1x23x23xf32>
    tpu.vector_store %arg2[%c6_410, %c0_411, %c0_412], %1083 {strides = array<i32>} : memref<64x23x23xf32, #tpu.memory_space<vmem>>, vector<1x23x23xf32>,
    %c11 = arith.constant 11 : index
    %c0_413 = arith.constant 0 : index
    %c0_414 = arith.constant 0 : index
    %1084 = vector.load %arg2[%c11, %c0_413, %c0_414] : memref<64x23x23xf32, #tpu.memory_space<vmem>>, vector<1x23x23xf32>
    %1085 = vector.shape_cast %1084 : vector<1x23x23xf32> to vector<23x23xf32>
    %1086 = vector.shape_cast %1062 : vector<23x23xf32> to vector<1x23x23xf32>
    tpu.vector_store %arg2[%c11, %c0_413, %c0_414], %1086 {strides = array<i32>} : memref<64x23x23xf32, #tpu.memory_space<vmem>>, vector<1x23x23xf32>,
    %c17 = arith.constant 17 : index
    %c0_415 = arith.constant 0 : index
    %c0_416 = arith.constant 0 : index
    %1087 = vector.load %arg2[%c17, %c0_415, %c0_416] : memref<64x23x23xf32, #tpu.memory_space<vmem>>, vector<1x23x23xf32>
    %1088 = vector.shape_cast %1087 : vector<1x23x23xf32> to vector<23x23xf32>
    %1089 = vector.shape_cast %1065 : vector<23x23xf32> to vector<1x23x23xf32>
    tpu.vector_store %arg2[%c17, %c0_415, %c0_416], %1089 {strides = array<i32>} : memref<64x23x23xf32, #tpu.memory_space<vmem>>, vector<1x23x23xf32>,
    %c24 = arith.constant 24 : index
    %c0_417 = arith.constant 0 : index
    %c0_418 = arith.constant 0 : index
    %1090 = vector.load %arg2[%c24, %c0_417, %c0_418] : memref<64x23x23xf32, #tpu.memory_space<vmem>>, vector<1x23x23xf32>
    %1091 = vector.shape_cast %1090 : vector<1x23x23xf32> to vector<23x23xf32>
    %1092 = vector.shape_cast %1068 : vector<23x23xf32> to vector<1x23x23xf32>
    tpu.vector_store %arg2[%c24, %c0_417, %c0_418], %1092 {strides = array<i32>} : memref<64x23x23xf32, #tpu.memory_space<vmem>>, vector<1x23x23xf32>,
    %c32 = arith.constant 32 : index
    %c0_419 = arith.constant 0 : index
    %c0_420 = arith.constant 0 : index
    %1093 = vector.load %arg2[%c32, %c0_419, %c0_420] : memref<64x23x23xf32, #tpu.memory_space<vmem>>, vector<1x23x23xf32>
    %1094 = vector.shape_cast %1093 : vector<1x23x23xf32> to vector<23x23xf32>
    %1095 = vector.shape_cast %1071 : vector<23x23xf32> to vector<1x23x23xf32>
    tpu.vector_store %arg2[%c32, %c0_419, %c0_420], %1095 {strides = array<i32>} : memref<64x23x23xf32, #tpu.memory_space<vmem>>, vector<1x23x23xf32>,
    %c40 = arith.constant 40 : index
    %c0_421 = arith.constant 0 : index
    %c0_422 = arith.constant 0 : index
    %1096 = vector.load %arg2[%c40, %c0_421, %c0_422] : memref<64x23x23xf32, #tpu.memory_space<vmem>>, vector<1x23x23xf32>
    %1097 = vector.shape_cast %1096 : vector<1x23x23xf32> to vector<23x23xf32>
    %1098 = vector.shape_cast %1074 : vector<23x23xf32> to vector<1x23x23xf32>
    tpu.vector_store %arg2[%c40, %c0_421, %c0_422], %1098 {strides = array<i32>} : memref<64x23x23xf32, #tpu.memory_space<vmem>>, vector<1x23x23xf32>,
    %c47 = arith.constant 47 : index
    %c0_423 = arith.constant 0 : index
    %c0_424 = arith.constant 0 : index
    %1099 = vector.load %arg2[%c47, %c0_423, %c0_424] : memref<64x23x23xf32, #tpu.memory_space<vmem>>, vector<1x23x23xf32>
    %1100 = vector.shape_cast %1099 : vector<1x23x23xf32> to vector<23x23xf32>
    %1101 = vector.shape_cast %1077 : vector<23x23xf32> to vector<1x23x23xf32>
    tpu.vector_store %arg2[%c47, %c0_423, %c0_424], %1101 {strides = array<i32>} : memref<64x23x23xf32, #tpu.memory_space<vmem>>, vector<1x23x23xf32>,
    %c53 = arith.constant 53 : index
    %c0_425 = arith.constant 0 : index
    %c0_426 = arith.constant 0 : index
    %1102 = vector.load %arg2[%c53, %c0_425, %c0_426] : memref<64x23x23xf32, #tpu.memory_space<vmem>>, vector<1x23x23xf32>
    %1103 = vector.shape_cast %1102 : vector<1x23x23xf32> to vector<23x23xf32>
    %1104 = vector.shape_cast %1080 : vector<23x23xf32> to vector<1x23x23xf32>
    tpu.vector_store %arg2[%c53, %c0_425, %c0_426], %1104 {strides = array<i32>} : memref<64x23x23xf32, #tpu.memory_space<vmem>>, vector<1x23x23xf32>,
    %c4_427 = arith.constant 4 : index
    %c0_428 = arith.constant 0 : index
    %c0_429 = arith.constant 0 : index
    %1105 = vector.load %arg3[%c4_427, %c0_428, %c0_429] : memref<8x23x30xf32, #tpu.memory_space<vmem>>, vector<1x23x30xf32>
    %1106 = vector.shape_cast %1105 : vector<1x23x30xf32> to vector<23x30xf32>
    %1107 = vector.extract_strided_slice %1106 {offsets = [0, 0], sizes = [23, 23], strides = [1, 1]} : vector<23x30xf32> to vector<23x23xf32>
    %cst_430 = arith.constant 0.353553385 : f32
    %1108 = vector.broadcast %cst_430 : f32 to vector<23x23xf32>
    %1109 = arith.mulf %1107, %1108 : vector<23x23xf32>
    %cst_431 = arith.constant 0.490392625 : f32
    %1110 = vector.broadcast %cst_431 : f32 to vector<23x23xf32>
    %1111 = arith.mulf %1107, %1110 : vector<23x23xf32>
    %cst_432 = arith.constant 0.461939752 : f32
    %1112 = vector.broadcast %cst_432 : f32 to vector<23x23xf32>
    %1113 = arith.mulf %1107, %1112 : vector<23x23xf32>
    %cst_433 = arith.constant 0.415734798 : f32
    %1114 = vector.broadcast %cst_433 : f32 to vector<23x23xf32>
    %1115 = arith.mulf %1107, %1114 : vector<23x23xf32>
    %cst_434 = arith.constant 0.353553385 : f32
    %1116 = vector.broadcast %cst_434 : f32 to vector<23x23xf32>
    %1117 = arith.mulf %1107, %1116 : vector<23x23xf32>
    %cst_435 = arith.constant 0.277785122 : f32
    %1118 = vector.broadcast %cst_435 : f32 to vector<23x23xf32>
    %1119 = arith.mulf %1107, %1118 : vector<23x23xf32>
    %cst_436 = arith.constant 0.191341713 : f32
    %1120 = vector.broadcast %cst_436 : f32 to vector<23x23xf32>
    %1121 = arith.mulf %1107, %1120 : vector<23x23xf32>
    %cst_437 = arith.constant 0.0975451618 : f32
    %1122 = vector.broadcast %cst_437 : f32 to vector<23x23xf32>
    %1123 = arith.mulf %1107, %1122 : vector<23x23xf32>
    %1124 = vector.extract_strided_slice %1106 {offsets = [0, 1], sizes = [23, 23], strides = [1, 1]} : vector<23x30xf32> to vector<23x23xf32>
    %cst_438 = arith.constant 0.353553385 : f32
    %1125 = vector.broadcast %cst_438 : f32 to vector<23x23xf32>
    %1126 = arith.mulf %1124, %1125 : vector<23x23xf32>
    %1127 = arith.addf %1109, %1126 : vector<23x23xf32>
    %cst_439 = arith.constant 0.415734798 : f32
    %1128 = vector.broadcast %cst_439 : f32 to vector<23x23xf32>
    %1129 = arith.mulf %1124, %1128 : vector<23x23xf32>
    %1130 = arith.addf %1111, %1129 : vector<23x23xf32>
    %cst_440 = arith.constant 0.191341713 : f32
    %1131 = vector.broadcast %cst_440 : f32 to vector<23x23xf32>
    %1132 = arith.mulf %1124, %1131 : vector<23x23xf32>
    %1133 = arith.addf %1113, %1132 : vector<23x23xf32>
    %cst_441 = arith.constant -0.0975451618 : f32
    %1134 = vector.broadcast %cst_441 : f32 to vector<23x23xf32>
    %1135 = arith.mulf %1124, %1134 : vector<23x23xf32>
    %1136 = arith.addf %1115, %1135 : vector<23x23xf32>
    %cst_442 = arith.constant -0.353553385 : f32
    %1137 = vector.broadcast %cst_442 : f32 to vector<23x23xf32>
    %1138 = arith.mulf %1124, %1137 : vector<23x23xf32>
    %1139 = arith.addf %1117, %1138 : vector<23x23xf32>
    %cst_443 = arith.constant -0.490392625 : f32
    %1140 = vector.broadcast %cst_443 : f32 to vector<23x23xf32>
    %1141 = arith.mulf %1124, %1140 : vector<23x23xf32>
    %1142 = arith.addf %1119, %1141 : vector<23x23xf32>
    %cst_444 = arith.constant -0.461939752 : f32
    %1143 = vector.broadcast %cst_444 : f32 to vector<23x23xf32>
    %1144 = arith.mulf %1124, %1143 : vector<23x23xf32>
    %1145 = arith.addf %1121, %1144 : vector<23x23xf32>
    %cst_445 = arith.constant -0.277785122 : f32
    %1146 = vector.broadcast %cst_445 : f32 to vector<23x23xf32>
    %1147 = arith.mulf %1124, %1146 : vector<23x23xf32>
    %1148 = arith.addf %1123, %1147 : vector<23x23xf32>
    %1149 = vector.extract_strided_slice %1106 {offsets = [0, 2], sizes = [23, 23], strides = [1, 1]} : vector<23x30xf32> to vector<23x23xf32>
    %cst_446 = arith.constant 0.353553385 : f32
    %1150 = vector.broadcast %cst_446 : f32 to vector<23x23xf32>
    %1151 = arith.mulf %1149, %1150 : vector<23x23xf32>
    %1152 = arith.addf %1127, %1151 : vector<23x23xf32>
    %cst_447 = arith.constant 0.277785122 : f32
    %1153 = vector.broadcast %cst_447 : f32 to vector<23x23xf32>
    %1154 = arith.mulf %1149, %1153 : vector<23x23xf32>
    %1155 = arith.addf %1130, %1154 : vector<23x23xf32>
    %cst_448 = arith.constant -0.191341713 : f32
    %1156 = vector.broadcast %cst_448 : f32 to vector<23x23xf32>
    %1157 = arith.mulf %1149, %1156 : vector<23x23xf32>
    %1158 = arith.addf %1133, %1157 : vector<23x23xf32>
    %cst_449 = arith.constant -0.490392625 : f32
    %1159 = vector.broadcast %cst_449 : f32 to vector<23x23xf32>
    %1160 = arith.mulf %1149, %1159 : vector<23x23xf32>
    %1161 = arith.addf %1136, %1160 : vector<23x23xf32>
    %cst_450 = arith.constant -0.353553385 : f32
    %1162 = vector.broadcast %cst_450 : f32 to vector<23x23xf32>
    %1163 = arith.mulf %1149, %1162 : vector<23x23xf32>
    %1164 = arith.addf %1139, %1163 : vector<23x23xf32>
    %cst_451 = arith.constant 0.0975451618 : f32
    %1165 = vector.broadcast %cst_451 : f32 to vector<23x23xf32>
    %1166 = arith.mulf %1149, %1165 : vector<23x23xf32>
    %1167 = arith.addf %1142, %1166 : vector<23x23xf32>
    %cst_452 = arith.constant 0.461939752 : f32
    %1168 = vector.broadcast %cst_452 : f32 to vector<23x23xf32>
    %1169 = arith.mulf %1149, %1168 : vector<23x23xf32>
    %1170 = arith.addf %1145, %1169 : vector<23x23xf32>
    %cst_453 = arith.constant 0.415734798 : f32
    %1171 = vector.broadcast %cst_453 : f32 to vector<23x23xf32>
    %1172 = arith.mulf %1149, %1171 : vector<23x23xf32>
    %1173 = arith.addf %1148, %1172 : vector<23x23xf32>
    %1174 = vector.extract_strided_slice %1106 {offsets = [0, 3], sizes = [23, 23], strides = [1, 1]} : vector<23x30xf32> to vector<23x23xf32>
    %cst_454 = arith.constant 0.353553385 : f32
    %1175 = vector.broadcast %cst_454 : f32 to vector<23x23xf32>
    %1176 = arith.mulf %1174, %1175 : vector<23x23xf32>
    %1177 = arith.addf %1152, %1176 : vector<23x23xf32>
    %cst_455 = arith.constant 0.0975451618 : f32
    %1178 = vector.broadcast %cst_455 : f32 to vector<23x23xf32>
    %1179 = arith.mulf %1174, %1178 : vector<23x23xf32>
    %1180 = arith.addf %1155, %1179 : vector<23x23xf32>
    %cst_456 = arith.constant -0.461939752 : f32
    %1181 = vector.broadcast %cst_456 : f32 to vector<23x23xf32>
    %1182 = arith.mulf %1174, %1181 : vector<23x23xf32>
    %1183 = arith.addf %1158, %1182 : vector<23x23xf32>
    %cst_457 = arith.constant -0.277785122 : f32
    %1184 = vector.broadcast %cst_457 : f32 to vector<23x23xf32>
    %1185 = arith.mulf %1174, %1184 : vector<23x23xf32>
    %1186 = arith.addf %1161, %1185 : vector<23x23xf32>
    %cst_458 = arith.constant 0.353553385 : f32
    %1187 = vector.broadcast %cst_458 : f32 to vector<23x23xf32>
    %1188 = arith.mulf %1174, %1187 : vector<23x23xf32>
    %1189 = arith.addf %1164, %1188 : vector<23x23xf32>
    %cst_459 = arith.constant 0.415734798 : f32
    %1190 = vector.broadcast %cst_459 : f32 to vector<23x23xf32>
    %1191 = arith.mulf %1174, %1190 : vector<23x23xf32>
    %1192 = arith.addf %1167, %1191 : vector<23x23xf32>
    %cst_460 = arith.constant -0.191341713 : f32
    %1193 = vector.broadcast %cst_460 : f32 to vector<23x23xf32>
    %1194 = arith.mulf %1174, %1193 : vector<23x23xf32>
    %1195 = arith.addf %1170, %1194 : vector<23x23xf32>
    %cst_461 = arith.constant -0.490392625 : f32
    %1196 = vector.broadcast %cst_461 : f32 to vector<23x23xf32>
    %1197 = arith.mulf %1174, %1196 : vector<23x23xf32>
    %1198 = arith.addf %1173, %1197 : vector<23x23xf32>
    %1199 = vector.extract_strided_slice %1106 {offsets = [0, 4], sizes = [23, 23], strides = [1, 1]} : vector<23x30xf32> to vector<23x23xf32>
    %cst_462 = arith.constant 0.353553385 : f32
    %1200 = vector.broadcast %cst_462 : f32 to vector<23x23xf32>
    %1201 = arith.mulf %1199, %1200 : vector<23x23xf32>
    %1202 = arith.addf %1177, %1201 : vector<23x23xf32>
    %cst_463 = arith.constant -0.0975451618 : f32
    %1203 = vector.broadcast %cst_463 : f32 to vector<23x23xf32>
    %1204 = arith.mulf %1199, %1203 : vector<23x23xf32>
    %1205 = arith.addf %1180, %1204 : vector<23x23xf32>
    %cst_464 = arith.constant -0.461939752 : f32
    %1206 = vector.broadcast %cst_464 : f32 to vector<23x23xf32>
    %1207 = arith.mulf %1199, %1206 : vector<23x23xf32>
    %1208 = arith.addf %1183, %1207 : vector<23x23xf32>
    %cst_465 = arith.constant 0.277785122 : f32
    %1209 = vector.broadcast %cst_465 : f32 to vector<23x23xf32>
    %1210 = arith.mulf %1199, %1209 : vector<23x23xf32>
    %1211 = arith.addf %1186, %1210 : vector<23x23xf32>
    %cst_466 = arith.constant 0.353553385 : f32
    %1212 = vector.broadcast %cst_466 : f32 to vector<23x23xf32>
    %1213 = arith.mulf %1199, %1212 : vector<23x23xf32>
    %1214 = arith.addf %1189, %1213 : vector<23x23xf32>
    %cst_467 = arith.constant -0.415734798 : f32
    %1215 = vector.broadcast %cst_467 : f32 to vector<23x23xf32>
    %1216 = arith.mulf %1199, %1215 : vector<23x23xf32>
    %1217 = arith.addf %1192, %1216 : vector<23x23xf32>
    %cst_468 = arith.constant -0.191341713 : f32
    %1218 = vector.broadcast %cst_468 : f32 to vector<23x23xf32>
    %1219 = arith.mulf %1199, %1218 : vector<23x23xf32>
    %1220 = arith.addf %1195, %1219 : vector<23x23xf32>
    %cst_469 = arith.constant 0.490392625 : f32
    %1221 = vector.broadcast %cst_469 : f32 to vector<23x23xf32>
    %1222 = arith.mulf %1199, %1221 : vector<23x23xf32>
    %1223 = arith.addf %1198, %1222 : vector<23x23xf32>
    %1224 = vector.extract_strided_slice %1106 {offsets = [0, 5], sizes = [23, 23], strides = [1, 1]} : vector<23x30xf32> to vector<23x23xf32>
    %cst_470 = arith.constant 0.353553385 : f32
    %1225 = vector.broadcast %cst_470 : f32 to vector<23x23xf32>
    %1226 = arith.mulf %1224, %1225 : vector<23x23xf32>
    %1227 = arith.addf %1202, %1226 : vector<23x23xf32>
    %cst_471 = arith.constant -0.277785122 : f32
    %1228 = vector.broadcast %cst_471 : f32 to vector<23x23xf32>
    %1229 = arith.mulf %1224, %1228 : vector<23x23xf32>
    %1230 = arith.addf %1205, %1229 : vector<23x23xf32>
    %cst_472 = arith.constant -0.191341713 : f32
    %1231 = vector.broadcast %cst_472 : f32 to vector<23x23xf32>
    %1232 = arith.mulf %1224, %1231 : vector<23x23xf32>
    %1233 = arith.addf %1208, %1232 : vector<23x23xf32>
    %cst_473 = arith.constant 0.490392625 : f32
    %1234 = vector.broadcast %cst_473 : f32 to vector<23x23xf32>
    %1235 = arith.mulf %1224, %1234 : vector<23x23xf32>
    %1236 = arith.addf %1211, %1235 : vector<23x23xf32>
    %cst_474 = arith.constant -0.353553385 : f32
    %1237 = vector.broadcast %cst_474 : f32 to vector<23x23xf32>
    %1238 = arith.mulf %1224, %1237 : vector<23x23xf32>
    %1239 = arith.addf %1214, %1238 : vector<23x23xf32>
    %cst_475 = arith.constant -0.0975451618 : f32
    %1240 = vector.broadcast %cst_475 : f32 to vector<23x23xf32>
    %1241 = arith.mulf %1224, %1240 : vector<23x23xf32>
    %1242 = arith.addf %1217, %1241 : vector<23x23xf32>
    %cst_476 = arith.constant 0.461939752 : f32
    %1243 = vector.broadcast %cst_476 : f32 to vector<23x23xf32>
    %1244 = arith.mulf %1224, %1243 : vector<23x23xf32>
    %1245 = arith.addf %1220, %1244 : vector<23x23xf32>
    %cst_477 = arith.constant -0.415734798 : f32
    %1246 = vector.broadcast %cst_477 : f32 to vector<23x23xf32>
    %1247 = arith.mulf %1224, %1246 : vector<23x23xf32>
    %1248 = arith.addf %1223, %1247 : vector<23x23xf32>
    %1249 = vector.extract_strided_slice %1106 {offsets = [0, 6], sizes = [23, 23], strides = [1, 1]} : vector<23x30xf32> to vector<23x23xf32>
    %cst_478 = arith.constant 0.353553385 : f32
    %1250 = vector.broadcast %cst_478 : f32 to vector<23x23xf32>
    %1251 = arith.mulf %1249, %1250 : vector<23x23xf32>
    %1252 = arith.addf %1227, %1251 : vector<23x23xf32>
    %cst_479 = arith.constant -0.415734798 : f32
    %1253 = vector.broadcast %cst_479 : f32 to vector<23x23xf32>
    %1254 = arith.mulf %1249, %1253 : vector<23x23xf32>
    %1255 = arith.addf %1230, %1254 : vector<23x23xf32>
    %cst_480 = arith.constant 0.191341713 : f32
    %1256 = vector.broadcast %cst_480 : f32 to vector<23x23xf32>
    %1257 = arith.mulf %1249, %1256 : vector<23x23xf32>
    %1258 = arith.addf %1233, %1257 : vector<23x23xf32>
    %cst_481 = arith.constant 0.0975451618 : f32
    %1259 = vector.broadcast %cst_481 : f32 to vector<23x23xf32>
    %1260 = arith.mulf %1249, %1259 : vector<23x23xf32>
    %1261 = arith.addf %1236, %1260 : vector<23x23xf32>
    %cst_482 = arith.constant -0.353553385 : f32
    %1262 = vector.broadcast %cst_482 : f32 to vector<23x23xf32>
    %1263 = arith.mulf %1249, %1262 : vector<23x23xf32>
    %1264 = arith.addf %1239, %1263 : vector<23x23xf32>
    %cst_483 = arith.constant 0.490392625 : f32
    %1265 = vector.broadcast %cst_483 : f32 to vector<23x23xf32>
    %1266 = arith.mulf %1249, %1265 : vector<23x23xf32>
    %1267 = arith.addf %1242, %1266 : vector<23x23xf32>
    %cst_484 = arith.constant -0.461939752 : f32
    %1268 = vector.broadcast %cst_484 : f32 to vector<23x23xf32>
    %1269 = arith.mulf %1249, %1268 : vector<23x23xf32>
    %1270 = arith.addf %1245, %1269 : vector<23x23xf32>
    %cst_485 = arith.constant 0.277785122 : f32
    %1271 = vector.broadcast %cst_485 : f32 to vector<23x23xf32>
    %1272 = arith.mulf %1249, %1271 : vector<23x23xf32>
    %1273 = arith.addf %1248, %1272 : vector<23x23xf32>
    %1274 = vector.extract_strided_slice %1106 {offsets = [0, 7], sizes = [23, 23], strides = [1, 1]} : vector<23x30xf32> to vector<23x23xf32>
    %cst_486 = arith.constant 0.353553385 : f32
    %1275 = vector.broadcast %cst_486 : f32 to vector<23x23xf32>
    %1276 = arith.mulf %1274, %1275 : vector<23x23xf32>
    %1277 = arith.addf %1252, %1276 : vector<23x23xf32>
    %cst_487 = arith.constant -0.490392625 : f32
    %1278 = vector.broadcast %cst_487 : f32 to vector<23x23xf32>
    %1279 = arith.mulf %1274, %1278 : vector<23x23xf32>
    %1280 = arith.addf %1255, %1279 : vector<23x23xf32>
    %cst_488 = arith.constant 0.461939752 : f32
    %1281 = vector.broadcast %cst_488 : f32 to vector<23x23xf32>
    %1282 = arith.mulf %1274, %1281 : vector<23x23xf32>
    %1283 = arith.addf %1258, %1282 : vector<23x23xf32>
    %cst_489 = arith.constant -0.415734798 : f32
    %1284 = vector.broadcast %cst_489 : f32 to vector<23x23xf32>
    %1285 = arith.mulf %1274, %1284 : vector<23x23xf32>
    %1286 = arith.addf %1261, %1285 : vector<23x23xf32>
    %cst_490 = arith.constant 0.353553385 : f32
    %1287 = vector.broadcast %cst_490 : f32 to vector<23x23xf32>
    %1288 = arith.mulf %1274, %1287 : vector<23x23xf32>
    %1289 = arith.addf %1264, %1288 : vector<23x23xf32>
    %cst_491 = arith.constant -0.277785122 : f32
    %1290 = vector.broadcast %cst_491 : f32 to vector<23x23xf32>
    %1291 = arith.mulf %1274, %1290 : vector<23x23xf32>
    %1292 = arith.addf %1267, %1291 : vector<23x23xf32>
    %cst_492 = arith.constant 0.191341713 : f32
    %1293 = vector.broadcast %cst_492 : f32 to vector<23x23xf32>
    %1294 = arith.mulf %1274, %1293 : vector<23x23xf32>
    %1295 = arith.addf %1270, %1294 : vector<23x23xf32>
    %cst_493 = arith.constant -0.0975451618 : f32
    %1296 = vector.broadcast %cst_493 : f32 to vector<23x23xf32>
    %1297 = arith.mulf %1274, %1296 : vector<23x23xf32>
    %1298 = arith.addf %1273, %1297 : vector<23x23xf32>
    %c10 = arith.constant 10 : index
    %c0_494 = arith.constant 0 : index
    %c0_495 = arith.constant 0 : index
    %1299 = vector.load %arg2[%c10, %c0_494, %c0_495] : memref<64x23x23xf32, #tpu.memory_space<vmem>>, vector<1x23x23xf32>
    %1300 = vector.shape_cast %1299 : vector<1x23x23xf32> to vector<23x23xf32>
    %1301 = vector.shape_cast %1277 : vector<23x23xf32> to vector<1x23x23xf32>
    tpu.vector_store %arg2[%c10, %c0_494, %c0_495], %1301 {strides = array<i32>} : memref<64x23x23xf32, #tpu.memory_space<vmem>>, vector<1x23x23xf32>,
    %c16 = arith.constant 16 : index
    %c0_496 = arith.constant 0 : index
    %c0_497 = arith.constant 0 : index
    %1302 = vector.load %arg2[%c16, %c0_496, %c0_497] : memref<64x23x23xf32, #tpu.memory_space<vmem>>, vector<1x23x23xf32>
    %1303 = vector.shape_cast %1302 : vector<1x23x23xf32> to vector<23x23xf32>
    %1304 = vector.shape_cast %1280 : vector<23x23xf32> to vector<1x23x23xf32>
    tpu.vector_store %arg2[%c16, %c0_496, %c0_497], %1304 {strides = array<i32>} : memref<64x23x23xf32, #tpu.memory_space<vmem>>, vector<1x23x23xf32>,
    %c23 = arith.constant 23 : index
    %c0_498 = arith.constant 0 : index
    %c0_499 = arith.constant 0 : index
    %1305 = vector.load %arg2[%c23, %c0_498, %c0_499] : memref<64x23x23xf32, #tpu.memory_space<vmem>>, vector<1x23x23xf32>
    %1306 = vector.shape_cast %1305 : vector<1x23x23xf32> to vector<23x23xf32>
    %1307 = vector.shape_cast %1283 : vector<23x23xf32> to vector<1x23x23xf32>
    tpu.vector_store %arg2[%c23, %c0_498, %c0_499], %1307 {strides = array<i32>} : memref<64x23x23xf32, #tpu.memory_space<vmem>>, vector<1x23x23xf32>,
    %c31 = arith.constant 31 : index
    %c0_500 = arith.constant 0 : index
    %c0_501 = arith.constant 0 : index
    %1308 = vector.load %arg2[%c31, %c0_500, %c0_501] : memref<64x23x23xf32, #tpu.memory_space<vmem>>, vector<1x23x23xf32>
    %1309 = vector.shape_cast %1308 : vector<1x23x23xf32> to vector<23x23xf32>
    %1310 = vector.shape_cast %1286 : vector<23x23xf32> to vector<1x23x23xf32>
    tpu.vector_store %arg2[%c31, %c0_500, %c0_501], %1310 {strides = array<i32>} : memref<64x23x23xf32, #tpu.memory_space<vmem>>, vector<1x23x23xf32>,
    %c39 = arith.constant 39 : index
    %c0_502 = arith.constant 0 : index
    %c0_503 = arith.constant 0 : index
    %1311 = vector.load %arg2[%c39, %c0_502, %c0_503] : memref<64x23x23xf32, #tpu.memory_space<vmem>>, vector<1x23x23xf32>
    %1312 = vector.shape_cast %1311 : vector<1x23x23xf32> to vector<23x23xf32>
    %1313 = vector.shape_cast %1289 : vector<23x23xf32> to vector<1x23x23xf32>
    tpu.vector_store %arg2[%c39, %c0_502, %c0_503], %1313 {strides = array<i32>} : memref<64x23x23xf32, #tpu.memory_space<vmem>>, vector<1x23x23xf32>,
    %c46 = arith.constant 46 : index
    %c0_504 = arith.constant 0 : index
    %c0_505 = arith.constant 0 : index
    %1314 = vector.load %arg2[%c46, %c0_504, %c0_505] : memref<64x23x23xf32, #tpu.memory_space<vmem>>, vector<1x23x23xf32>
    %1315 = vector.shape_cast %1314 : vector<1x23x23xf32> to vector<23x23xf32>
    %1316 = vector.shape_cast %1292 : vector<23x23xf32> to vector<1x23x23xf32>
    tpu.vector_store %arg2[%c46, %c0_504, %c0_505], %1316 {strides = array<i32>} : memref<64x23x23xf32, #tpu.memory_space<vmem>>, vector<1x23x23xf32>,
    %c52 = arith.constant 52 : index
    %c0_506 = arith.constant 0 : index
    %c0_507 = arith.constant 0 : index
    %1317 = vector.load %arg2[%c52, %c0_506, %c0_507] : memref<64x23x23xf32, #tpu.memory_space<vmem>>, vector<1x23x23xf32>
    %1318 = vector.shape_cast %1317 : vector<1x23x23xf32> to vector<23x23xf32>
    %1319 = vector.shape_cast %1295 : vector<23x23xf32> to vector<1x23x23xf32>
    tpu.vector_store %arg2[%c52, %c0_506, %c0_507], %1319 {strides = array<i32>} : memref<64x23x23xf32, #tpu.memory_space<vmem>>, vector<1x23x23xf32>,
    %c57 = arith.constant 57 : index
    %c0_508 = arith.constant 0 : index
    %c0_509 = arith.constant 0 : index
    %1320 = vector.load %arg2[%c57, %c0_508, %c0_509] : memref<64x23x23xf32, #tpu.memory_space<vmem>>, vector<1x23x23xf32>
    %1321 = vector.shape_cast %1320 : vector<1x23x23xf32> to vector<23x23xf32>
    %1322 = vector.shape_cast %1298 : vector<23x23xf32> to vector<1x23x23xf32>
    tpu.vector_store %arg2[%c57, %c0_508, %c0_509], %1322 {strides = array<i32>} : memref<64x23x23xf32, #tpu.memory_space<vmem>>, vector<1x23x23xf32>,
    %c5_510 = arith.constant 5 : index
    %c0_511 = arith.constant 0 : index
    %c0_512 = arith.constant 0 : index
    %1323 = vector.load %arg3[%c5_510, %c0_511, %c0_512] : memref<8x23x30xf32, #tpu.memory_space<vmem>>, vector<1x23x30xf32>
    %1324 = vector.shape_cast %1323 : vector<1x23x30xf32> to vector<23x30xf32>
    %1325 = vector.extract_strided_slice %1324 {offsets = [0, 0], sizes = [23, 23], strides = [1, 1]} : vector<23x30xf32> to vector<23x23xf32>
    %cst_513 = arith.constant 0.353553385 : f32
    %1326 = vector.broadcast %cst_513 : f32 to vector<23x23xf32>
    %1327 = arith.mulf %1325, %1326 : vector<23x23xf32>
    %cst_514 = arith.constant 0.490392625 : f32
    %1328 = vector.broadcast %cst_514 : f32 to vector<23x23xf32>
    %1329 = arith.mulf %1325, %1328 : vector<23x23xf32>
    %cst_515 = arith.constant 0.461939752 : f32
    %1330 = vector.broadcast %cst_515 : f32 to vector<23x23xf32>
    %1331 = arith.mulf %1325, %1330 : vector<23x23xf32>
    %cst_516 = arith.constant 0.415734798 : f32
    %1332 = vector.broadcast %cst_516 : f32 to vector<23x23xf32>
    %1333 = arith.mulf %1325, %1332 : vector<23x23xf32>
    %cst_517 = arith.constant 0.353553385 : f32
    %1334 = vector.broadcast %cst_517 : f32 to vector<23x23xf32>
    %1335 = arith.mulf %1325, %1334 : vector<23x23xf32>
    %cst_518 = arith.constant 0.277785122 : f32
    %1336 = vector.broadcast %cst_518 : f32 to vector<23x23xf32>
    %1337 = arith.mulf %1325, %1336 : vector<23x23xf32>
    %cst_519 = arith.constant 0.191341713 : f32
    %1338 = vector.broadcast %cst_519 : f32 to vector<23x23xf32>
    %1339 = arith.mulf %1325, %1338 : vector<23x23xf32>
    %cst_520 = arith.constant 0.0975451618 : f32
    %1340 = vector.broadcast %cst_520 : f32 to vector<23x23xf32>
    %1341 = arith.mulf %1325, %1340 : vector<23x23xf32>
    %1342 = vector.extract_strided_slice %1324 {offsets = [0, 1], sizes = [23, 23], strides = [1, 1]} : vector<23x30xf32> to vector<23x23xf32>
    %cst_521 = arith.constant 0.353553385 : f32
    %1343 = vector.broadcast %cst_521 : f32 to vector<23x23xf32>
    %1344 = arith.mulf %1342, %1343 : vector<23x23xf32>
    %1345 = arith.addf %1327, %1344 : vector<23x23xf32>
    %cst_522 = arith.constant 0.415734798 : f32
    %1346 = vector.broadcast %cst_522 : f32 to vector<23x23xf32>
    %1347 = arith.mulf %1342, %1346 : vector<23x23xf32>
    %1348 = arith.addf %1329, %1347 : vector<23x23xf32>
    %cst_523 = arith.constant 0.191341713 : f32
    %1349 = vector.broadcast %cst_523 : f32 to vector<23x23xf32>
    %1350 = arith.mulf %1342, %1349 : vector<23x23xf32>
    %1351 = arith.addf %1331, %1350 : vector<23x23xf32>
    %cst_524 = arith.constant -0.0975451618 : f32
    %1352 = vector.broadcast %cst_524 : f32 to vector<23x23xf32>
    %1353 = arith.mulf %1342, %1352 : vector<23x23xf32>
    %1354 = arith.addf %1333, %1353 : vector<23x23xf32>
    %cst_525 = arith.constant -0.353553385 : f32
    %1355 = vector.broadcast %cst_525 : f32 to vector<23x23xf32>
    %1356 = arith.mulf %1342, %1355 : vector<23x23xf32>
    %1357 = arith.addf %1335, %1356 : vector<23x23xf32>
    %cst_526 = arith.constant -0.490392625 : f32
    %1358 = vector.broadcast %cst_526 : f32 to vector<23x23xf32>
    %1359 = arith.mulf %1342, %1358 : vector<23x23xf32>
    %1360 = arith.addf %1337, %1359 : vector<23x23xf32>
    %cst_527 = arith.constant -0.461939752 : f32
    %1361 = vector.broadcast %cst_527 : f32 to vector<23x23xf32>
    %1362 = arith.mulf %1342, %1361 : vector<23x23xf32>
    %1363 = arith.addf %1339, %1362 : vector<23x23xf32>
    %cst_528 = arith.constant -0.277785122 : f32
    %1364 = vector.broadcast %cst_528 : f32 to vector<23x23xf32>
    %1365 = arith.mulf %1342, %1364 : vector<23x23xf32>
    %1366 = arith.addf %1341, %1365 : vector<23x23xf32>
    %1367 = vector.extract_strided_slice %1324 {offsets = [0, 2], sizes = [23, 23], strides = [1, 1]} : vector<23x30xf32> to vector<23x23xf32>
    %cst_529 = arith.constant 0.353553385 : f32
    %1368 = vector.broadcast %cst_529 : f32 to vector<23x23xf32>
    %1369 = arith.mulf %1367, %1368 : vector<23x23xf32>
    %1370 = arith.addf %1345, %1369 : vector<23x23xf32>
    %cst_530 = arith.constant 0.277785122 : f32
    %1371 = vector.broadcast %cst_530 : f32 to vector<23x23xf32>
    %1372 = arith.mulf %1367, %1371 : vector<23x23xf32>
    %1373 = arith.addf %1348, %1372 : vector<23x23xf32>
    %cst_531 = arith.constant -0.191341713 : f32
    %1374 = vector.broadcast %cst_531 : f32 to vector<23x23xf32>
    %1375 = arith.mulf %1367, %1374 : vector<23x23xf32>
    %1376 = arith.addf %1351, %1375 : vector<23x23xf32>
    %cst_532 = arith.constant -0.490392625 : f32
    %1377 = vector.broadcast %cst_532 : f32 to vector<23x23xf32>
    %1378 = arith.mulf %1367, %1377 : vector<23x23xf32>
    %1379 = arith.addf %1354, %1378 : vector<23x23xf32>
    %cst_533 = arith.constant -0.353553385 : f32
    %1380 = vector.broadcast %cst_533 : f32 to vector<23x23xf32>
    %1381 = arith.mulf %1367, %1380 : vector<23x23xf32>
    %1382 = arith.addf %1357, %1381 : vector<23x23xf32>
    %cst_534 = arith.constant 0.0975451618 : f32
    %1383 = vector.broadcast %cst_534 : f32 to vector<23x23xf32>
    %1384 = arith.mulf %1367, %1383 : vector<23x23xf32>
    %1385 = arith.addf %1360, %1384 : vector<23x23xf32>
    %cst_535 = arith.constant 0.461939752 : f32
    %1386 = vector.broadcast %cst_535 : f32 to vector<23x23xf32>
    %1387 = arith.mulf %1367, %1386 : vector<23x23xf32>
    %1388 = arith.addf %1363, %1387 : vector<23x23xf32>
    %cst_536 = arith.constant 0.415734798 : f32
    %1389 = vector.broadcast %cst_536 : f32 to vector<23x23xf32>
    %1390 = arith.mulf %1367, %1389 : vector<23x23xf32>
    %1391 = arith.addf %1366, %1390 : vector<23x23xf32>
    %1392 = vector.extract_strided_slice %1324 {offsets = [0, 3], sizes = [23, 23], strides = [1, 1]} : vector<23x30xf32> to vector<23x23xf32>
    %cst_537 = arith.constant 0.353553385 : f32
    %1393 = vector.broadcast %cst_537 : f32 to vector<23x23xf32>
    %1394 = arith.mulf %1392, %1393 : vector<23x23xf32>
    %1395 = arith.addf %1370, %1394 : vector<23x23xf32>
    %cst_538 = arith.constant 0.0975451618 : f32
    %1396 = vector.broadcast %cst_538 : f32 to vector<23x23xf32>
    %1397 = arith.mulf %1392, %1396 : vector<23x23xf32>
    %1398 = arith.addf %1373, %1397 : vector<23x23xf32>
    %cst_539 = arith.constant -0.461939752 : f32
    %1399 = vector.broadcast %cst_539 : f32 to vector<23x23xf32>
    %1400 = arith.mulf %1392, %1399 : vector<23x23xf32>
    %1401 = arith.addf %1376, %1400 : vector<23x23xf32>
    %cst_540 = arith.constant -0.277785122 : f32
    %1402 = vector.broadcast %cst_540 : f32 to vector<23x23xf32>
    %1403 = arith.mulf %1392, %1402 : vector<23x23xf32>
    %1404 = arith.addf %1379, %1403 : vector<23x23xf32>
    %cst_541 = arith.constant 0.353553385 : f32
    %1405 = vector.broadcast %cst_541 : f32 to vector<23x23xf32>
    %1406 = arith.mulf %1392, %1405 : vector<23x23xf32>
    %1407 = arith.addf %1382, %1406 : vector<23x23xf32>
    %cst_542 = arith.constant 0.415734798 : f32
    %1408 = vector.broadcast %cst_542 : f32 to vector<23x23xf32>
    %1409 = arith.mulf %1392, %1408 : vector<23x23xf32>
    %1410 = arith.addf %1385, %1409 : vector<23x23xf32>
    %cst_543 = arith.constant -0.191341713 : f32
    %1411 = vector.broadcast %cst_543 : f32 to vector<23x23xf32>
    %1412 = arith.mulf %1392, %1411 : vector<23x23xf32>
    %1413 = arith.addf %1388, %1412 : vector<23x23xf32>
    %cst_544 = arith.constant -0.490392625 : f32
    %1414 = vector.broadcast %cst_544 : f32 to vector<23x23xf32>
    %1415 = arith.mulf %1392, %1414 : vector<23x23xf32>
    %1416 = arith.addf %1391, %1415 : vector<23x23xf32>
    %1417 = vector.extract_strided_slice %1324 {offsets = [0, 4], sizes = [23, 23], strides = [1, 1]} : vector<23x30xf32> to vector<23x23xf32>
    %cst_545 = arith.constant 0.353553385 : f32
    %1418 = vector.broadcast %cst_545 : f32 to vector<23x23xf32>
    %1419 = arith.mulf %1417, %1418 : vector<23x23xf32>
    %1420 = arith.addf %1395, %1419 : vector<23x23xf32>
    %cst_546 = arith.constant -0.0975451618 : f32
    %1421 = vector.broadcast %cst_546 : f32 to vector<23x23xf32>
    %1422 = arith.mulf %1417, %1421 : vector<23x23xf32>
    %1423 = arith.addf %1398, %1422 : vector<23x23xf32>
    %cst_547 = arith.constant -0.461939752 : f32
    %1424 = vector.broadcast %cst_547 : f32 to vector<23x23xf32>
    %1425 = arith.mulf %1417, %1424 : vector<23x23xf32>
    %1426 = arith.addf %1401, %1425 : vector<23x23xf32>
    %cst_548 = arith.constant 0.277785122 : f32
    %1427 = vector.broadcast %cst_548 : f32 to vector<23x23xf32>
    %1428 = arith.mulf %1417, %1427 : vector<23x23xf32>
    %1429 = arith.addf %1404, %1428 : vector<23x23xf32>
    %cst_549 = arith.constant 0.353553385 : f32
    %1430 = vector.broadcast %cst_549 : f32 to vector<23x23xf32>
    %1431 = arith.mulf %1417, %1430 : vector<23x23xf32>
    %1432 = arith.addf %1407, %1431 : vector<23x23xf32>
    %cst_550 = arith.constant -0.415734798 : f32
    %1433 = vector.broadcast %cst_550 : f32 to vector<23x23xf32>
    %1434 = arith.mulf %1417, %1433 : vector<23x23xf32>
    %1435 = arith.addf %1410, %1434 : vector<23x23xf32>
    %cst_551 = arith.constant -0.191341713 : f32
    %1436 = vector.broadcast %cst_551 : f32 to vector<23x23xf32>
    %1437 = arith.mulf %1417, %1436 : vector<23x23xf32>
    %1438 = arith.addf %1413, %1437 : vector<23x23xf32>
    %cst_552 = arith.constant 0.490392625 : f32
    %1439 = vector.broadcast %cst_552 : f32 to vector<23x23xf32>
    %1440 = arith.mulf %1417, %1439 : vector<23x23xf32>
    %1441 = arith.addf %1416, %1440 : vector<23x23xf32>
    %1442 = vector.extract_strided_slice %1324 {offsets = [0, 5], sizes = [23, 23], strides = [1, 1]} : vector<23x30xf32> to vector<23x23xf32>
    %cst_553 = arith.constant 0.353553385 : f32
    %1443 = vector.broadcast %cst_553 : f32 to vector<23x23xf32>
    %1444 = arith.mulf %1442, %1443 : vector<23x23xf32>
    %1445 = arith.addf %1420, %1444 : vector<23x23xf32>
    %cst_554 = arith.constant -0.277785122 : f32
    %1446 = vector.broadcast %cst_554 : f32 to vector<23x23xf32>
    %1447 = arith.mulf %1442, %1446 : vector<23x23xf32>
    %1448 = arith.addf %1423, %1447 : vector<23x23xf32>
    %cst_555 = arith.constant -0.191341713 : f32
    %1449 = vector.broadcast %cst_555 : f32 to vector<23x23xf32>
    %1450 = arith.mulf %1442, %1449 : vector<23x23xf32>
    %1451 = arith.addf %1426, %1450 : vector<23x23xf32>
    %cst_556 = arith.constant 0.490392625 : f32
    %1452 = vector.broadcast %cst_556 : f32 to vector<23x23xf32>
    %1453 = arith.mulf %1442, %1452 : vector<23x23xf32>
    %1454 = arith.addf %1429, %1453 : vector<23x23xf32>
    %cst_557 = arith.constant -0.353553385 : f32
    %1455 = vector.broadcast %cst_557 : f32 to vector<23x23xf32>
    %1456 = arith.mulf %1442, %1455 : vector<23x23xf32>
    %1457 = arith.addf %1432, %1456 : vector<23x23xf32>
    %cst_558 = arith.constant -0.0975451618 : f32
    %1458 = vector.broadcast %cst_558 : f32 to vector<23x23xf32>
    %1459 = arith.mulf %1442, %1458 : vector<23x23xf32>
    %1460 = arith.addf %1435, %1459 : vector<23x23xf32>
    %cst_559 = arith.constant 0.461939752 : f32
    %1461 = vector.broadcast %cst_559 : f32 to vector<23x23xf32>
    %1462 = arith.mulf %1442, %1461 : vector<23x23xf32>
    %1463 = arith.addf %1438, %1462 : vector<23x23xf32>
    %cst_560 = arith.constant -0.415734798 : f32
    %1464 = vector.broadcast %cst_560 : f32 to vector<23x23xf32>
    %1465 = arith.mulf %1442, %1464 : vector<23x23xf32>
    %1466 = arith.addf %1441, %1465 : vector<23x23xf32>
    %1467 = vector.extract_strided_slice %1324 {offsets = [0, 6], sizes = [23, 23], strides = [1, 1]} : vector<23x30xf32> to vector<23x23xf32>
    %cst_561 = arith.constant 0.353553385 : f32
    %1468 = vector.broadcast %cst_561 : f32 to vector<23x23xf32>
    %1469 = arith.mulf %1467, %1468 : vector<23x23xf32>
    %1470 = arith.addf %1445, %1469 : vector<23x23xf32>
    %cst_562 = arith.constant -0.415734798 : f32
    %1471 = vector.broadcast %cst_562 : f32 to vector<23x23xf32>
    %1472 = arith.mulf %1467, %1471 : vector<23x23xf32>
    %1473 = arith.addf %1448, %1472 : vector<23x23xf32>
    %cst_563 = arith.constant 0.191341713 : f32
    %1474 = vector.broadcast %cst_563 : f32 to vector<23x23xf32>
    %1475 = arith.mulf %1467, %1474 : vector<23x23xf32>
    %1476 = arith.addf %1451, %1475 : vector<23x23xf32>
    %cst_564 = arith.constant 0.0975451618 : f32
    %1477 = vector.broadcast %cst_564 : f32 to vector<23x23xf32>
    %1478 = arith.mulf %1467, %1477 : vector<23x23xf32>
    %1479 = arith.addf %1454, %1478 : vector<23x23xf32>
    %cst_565 = arith.constant -0.353553385 : f32
    %1480 = vector.broadcast %cst_565 : f32 to vector<23x23xf32>
    %1481 = arith.mulf %1467, %1480 : vector<23x23xf32>
    %1482 = arith.addf %1457, %1481 : vector<23x23xf32>
    %cst_566 = arith.constant 0.490392625 : f32
    %1483 = vector.broadcast %cst_566 : f32 to vector<23x23xf32>
    %1484 = arith.mulf %1467, %1483 : vector<23x23xf32>
    %1485 = arith.addf %1460, %1484 : vector<23x23xf32>
    %cst_567 = arith.constant -0.461939752 : f32
    %1486 = vector.broadcast %cst_567 : f32 to vector<23x23xf32>
    %1487 = arith.mulf %1467, %1486 : vector<23x23xf32>
    %1488 = arith.addf %1463, %1487 : vector<23x23xf32>
    %cst_568 = arith.constant 0.277785122 : f32
    %1489 = vector.broadcast %cst_568 : f32 to vector<23x23xf32>
    %1490 = arith.mulf %1467, %1489 : vector<23x23xf32>
    %1491 = arith.addf %1466, %1490 : vector<23x23xf32>
    %1492 = vector.extract_strided_slice %1324 {offsets = [0, 7], sizes = [23, 23], strides = [1, 1]} : vector<23x30xf32> to vector<23x23xf32>
    %cst_569 = arith.constant 0.353553385 : f32
    %1493 = vector.broadcast %cst_569 : f32 to vector<23x23xf32>
    %1494 = arith.mulf %1492, %1493 : vector<23x23xf32>
    %1495 = arith.addf %1470, %1494 : vector<23x23xf32>
    %cst_570 = arith.constant -0.490392625 : f32
    %1496 = vector.broadcast %cst_570 : f32 to vector<23x23xf32>
    %1497 = arith.mulf %1492, %1496 : vector<23x23xf32>
    %1498 = arith.addf %1473, %1497 : vector<23x23xf32>
    %cst_571 = arith.constant 0.461939752 : f32
    %1499 = vector.broadcast %cst_571 : f32 to vector<23x23xf32>
    %1500 = arith.mulf %1492, %1499 : vector<23x23xf32>
    %1501 = arith.addf %1476, %1500 : vector<23x23xf32>
    %cst_572 = arith.constant -0.415734798 : f32
    %1502 = vector.broadcast %cst_572 : f32 to vector<23x23xf32>
    %1503 = arith.mulf %1492, %1502 : vector<23x23xf32>
    %1504 = arith.addf %1479, %1503 : vector<23x23xf32>
    %cst_573 = arith.constant 0.353553385 : f32
    %1505 = vector.broadcast %cst_573 : f32 to vector<23x23xf32>
    %1506 = arith.mulf %1492, %1505 : vector<23x23xf32>
    %1507 = arith.addf %1482, %1506 : vector<23x23xf32>
    %cst_574 = arith.constant -0.277785122 : f32
    %1508 = vector.broadcast %cst_574 : f32 to vector<23x23xf32>
    %1509 = arith.mulf %1492, %1508 : vector<23x23xf32>
    %1510 = arith.addf %1485, %1509 : vector<23x23xf32>
    %cst_575 = arith.constant 0.191341713 : f32
    %1511 = vector.broadcast %cst_575 : f32 to vector<23x23xf32>
    %1512 = arith.mulf %1492, %1511 : vector<23x23xf32>
    %1513 = arith.addf %1488, %1512 : vector<23x23xf32>
    %cst_576 = arith.constant -0.0975451618 : f32
    %1514 = vector.broadcast %cst_576 : f32 to vector<23x23xf32>
    %1515 = arith.mulf %1492, %1514 : vector<23x23xf32>
    %1516 = arith.addf %1491, %1515 : vector<23x23xf32>
    %c15 = arith.constant 15 : index
    %c0_577 = arith.constant 0 : index
    %c0_578 = arith.constant 0 : index
    %1517 = vector.load %arg2[%c15, %c0_577, %c0_578] : memref<64x23x23xf32, #tpu.memory_space<vmem>>, vector<1x23x23xf32>
    %1518 = vector.shape_cast %1517 : vector<1x23x23xf32> to vector<23x23xf32>
    %1519 = vector.shape_cast %1495 : vector<23x23xf32> to vector<1x23x23xf32>
    tpu.vector_store %arg2[%c15, %c0_577, %c0_578], %1519 {strides = array<i32>} : memref<64x23x23xf32, #tpu.memory_space<vmem>>, vector<1x23x23xf32>,
    %c22 = arith.constant 22 : index
    %c0_579 = arith.constant 0 : index
    %c0_580 = arith.constant 0 : index
    %1520 = vector.load %arg2[%c22, %c0_579, %c0_580] : memref<64x23x23xf32, #tpu.memory_space<vmem>>, vector<1x23x23xf32>
    %1521 = vector.shape_cast %1520 : vector<1x23x23xf32> to vector<23x23xf32>
    %1522 = vector.shape_cast %1498 : vector<23x23xf32> to vector<1x23x23xf32>
    tpu.vector_store %arg2[%c22, %c0_579, %c0_580], %1522 {strides = array<i32>} : memref<64x23x23xf32, #tpu.memory_space<vmem>>, vector<1x23x23xf32>,
    %c30 = arith.constant 30 : index
    %c0_581 = arith.constant 0 : index
    %c0_582 = arith.constant 0 : index
    %1523 = vector.load %arg2[%c30, %c0_581, %c0_582] : memref<64x23x23xf32, #tpu.memory_space<vmem>>, vector<1x23x23xf32>
    %1524 = vector.shape_cast %1523 : vector<1x23x23xf32> to vector<23x23xf32>
    %1525 = vector.shape_cast %1501 : vector<23x23xf32> to vector<1x23x23xf32>
    tpu.vector_store %arg2[%c30, %c0_581, %c0_582], %1525 {strides = array<i32>} : memref<64x23x23xf32, #tpu.memory_space<vmem>>, vector<1x23x23xf32>,
    %c38 = arith.constant 38 : index
    %c0_583 = arith.constant 0 : index
    %c0_584 = arith.constant 0 : index
    %1526 = vector.load %arg2[%c38, %c0_583, %c0_584] : memref<64x23x23xf32, #tpu.memory_space<vmem>>, vector<1x23x23xf32>
    %1527 = vector.shape_cast %1526 : vector<1x23x23xf32> to vector<23x23xf32>
    %1528 = vector.shape_cast %1504 : vector<23x23xf32> to vector<1x23x23xf32>
    tpu.vector_store %arg2[%c38, %c0_583, %c0_584], %1528 {strides = array<i32>} : memref<64x23x23xf32, #tpu.memory_space<vmem>>, vector<1x23x23xf32>,
    %c45 = arith.constant 45 : index
    %c0_585 = arith.constant 0 : index
    %c0_586 = arith.constant 0 : index
    %1529 = vector.load %arg2[%c45, %c0_585, %c0_586] : memref<64x23x23xf32, #tpu.memory_space<vmem>>, vector<1x23x23xf32>
    %1530 = vector.shape_cast %1529 : vector<1x23x23xf32> to vector<23x23xf32>
    %1531 = vector.shape_cast %1507 : vector<23x23xf32> to vector<1x23x23xf32>
    tpu.vector_store %arg2[%c45, %c0_585, %c0_586], %1531 {strides = array<i32>} : memref<64x23x23xf32, #tpu.memory_space<vmem>>, vector<1x23x23xf32>,
    %c51 = arith.constant 51 : index
    %c0_587 = arith.constant 0 : index
    %c0_588 = arith.constant 0 : index
    %1532 = vector.load %arg2[%c51, %c0_587, %c0_588] : memref<64x23x23xf32, #tpu.memory_space<vmem>>, vector<1x23x23xf32>
    %1533 = vector.shape_cast %1532 : vector<1x23x23xf32> to vector<23x23xf32>
    %1534 = vector.shape_cast %1510 : vector<23x23xf32> to vector<1x23x23xf32>
    tpu.vector_store %arg2[%c51, %c0_587, %c0_588], %1534 {strides = array<i32>} : memref<64x23x23xf32, #tpu.memory_space<vmem>>, vector<1x23x23xf32>,
    %c56 = arith.constant 56 : index
    %c0_589 = arith.constant 0 : index
    %c0_590 = arith.constant 0 : index
    %1535 = vector.load %arg2[%c56, %c0_589, %c0_590] : memref<64x23x23xf32, #tpu.memory_space<vmem>>, vector<1x23x23xf32>
    %1536 = vector.shape_cast %1535 : vector<1x23x23xf32> to vector<23x23xf32>
    %1537 = vector.shape_cast %1513 : vector<23x23xf32> to vector<1x23x23xf32>
    tpu.vector_store %arg2[%c56, %c0_589, %c0_590], %1537 {strides = array<i32>} : memref<64x23x23xf32, #tpu.memory_space<vmem>>, vector<1x23x23xf32>,
    %c60 = arith.constant 60 : index
    %c0_591 = arith.constant 0 : index
    %c0_592 = arith.constant 0 : index
    %1538 = vector.load %arg2[%c60, %c0_591, %c0_592] : memref<64x23x23xf32, #tpu.memory_space<vmem>>, vector<1x23x23xf32>
    %1539 = vector.shape_cast %1538 : vector<1x23x23xf32> to vector<23x23xf32>
    %1540 = vector.shape_cast %1516 : vector<23x23xf32> to vector<1x23x23xf32>
    tpu.vector_store %arg2[%c60, %c0_591, %c0_592], %1540 {strides = array<i32>} : memref<64x23x23xf32, #tpu.memory_space<vmem>>, vector<1x23x23xf32>,
    %c6_593 = arith.constant 6 : index
    %c0_594 = arith.constant 0 : index
    %c0_595 = arith.constant 0 : index
    %1541 = vector.load %arg3[%c6_593, %c0_594, %c0_595] : memref<8x23x30xf32, #tpu.memory_space<vmem>>, vector<1x23x30xf32>
    %1542 = vector.shape_cast %1541 : vector<1x23x30xf32> to vector<23x30xf32>
    %1543 = vector.extract_strided_slice %1542 {offsets = [0, 0], sizes = [23, 23], strides = [1, 1]} : vector<23x30xf32> to vector<23x23xf32>
    %cst_596 = arith.constant 0.353553385 : f32
    %1544 = vector.broadcast %cst_596 : f32 to vector<23x23xf32>
    %1545 = arith.mulf %1543, %1544 : vector<23x23xf32>
    %cst_597 = arith.constant 0.490392625 : f32
    %1546 = vector.broadcast %cst_597 : f32 to vector<23x23xf32>
    %1547 = arith.mulf %1543, %1546 : vector<23x23xf32>
    %cst_598 = arith.constant 0.461939752 : f32
    %1548 = vector.broadcast %cst_598 : f32 to vector<23x23xf32>
    %1549 = arith.mulf %1543, %1548 : vector<23x23xf32>
    %cst_599 = arith.constant 0.415734798 : f32
    %1550 = vector.broadcast %cst_599 : f32 to vector<23x23xf32>
    %1551 = arith.mulf %1543, %1550 : vector<23x23xf32>
    %cst_600 = arith.constant 0.353553385 : f32
    %1552 = vector.broadcast %cst_600 : f32 to vector<23x23xf32>
    %1553 = arith.mulf %1543, %1552 : vector<23x23xf32>
    %cst_601 = arith.constant 0.277785122 : f32
    %1554 = vector.broadcast %cst_601 : f32 to vector<23x23xf32>
    %1555 = arith.mulf %1543, %1554 : vector<23x23xf32>
    %cst_602 = arith.constant 0.191341713 : f32
    %1556 = vector.broadcast %cst_602 : f32 to vector<23x23xf32>
    %1557 = arith.mulf %1543, %1556 : vector<23x23xf32>
    %cst_603 = arith.constant 0.0975451618 : f32
    %1558 = vector.broadcast %cst_603 : f32 to vector<23x23xf32>
    %1559 = arith.mulf %1543, %1558 : vector<23x23xf32>
    %1560 = vector.extract_strided_slice %1542 {offsets = [0, 1], sizes = [23, 23], strides = [1, 1]} : vector<23x30xf32> to vector<23x23xf32>
    %cst_604 = arith.constant 0.353553385 : f32
    %1561 = vector.broadcast %cst_604 : f32 to vector<23x23xf32>
    %1562 = arith.mulf %1560, %1561 : vector<23x23xf32>
    %1563 = arith.addf %1545, %1562 : vector<23x23xf32>
    %cst_605 = arith.constant 0.415734798 : f32
    %1564 = vector.broadcast %cst_605 : f32 to vector<23x23xf32>
    %1565 = arith.mulf %1560, %1564 : vector<23x23xf32>
    %1566 = arith.addf %1547, %1565 : vector<23x23xf32>
    %cst_606 = arith.constant 0.191341713 : f32
    %1567 = vector.broadcast %cst_606 : f32 to vector<23x23xf32>
    %1568 = arith.mulf %1560, %1567 : vector<23x23xf32>
    %1569 = arith.addf %1549, %1568 : vector<23x23xf32>
    %cst_607 = arith.constant -0.0975451618 : f32
    %1570 = vector.broadcast %cst_607 : f32 to vector<23x23xf32>
    %1571 = arith.mulf %1560, %1570 : vector<23x23xf32>
    %1572 = arith.addf %1551, %1571 : vector<23x23xf32>
    %cst_608 = arith.constant -0.353553385 : f32
    %1573 = vector.broadcast %cst_608 : f32 to vector<23x23xf32>
    %1574 = arith.mulf %1560, %1573 : vector<23x23xf32>
    %1575 = arith.addf %1553, %1574 : vector<23x23xf32>
    %cst_609 = arith.constant -0.490392625 : f32
    %1576 = vector.broadcast %cst_609 : f32 to vector<23x23xf32>
    %1577 = arith.mulf %1560, %1576 : vector<23x23xf32>
    %1578 = arith.addf %1555, %1577 : vector<23x23xf32>
    %cst_610 = arith.constant -0.461939752 : f32
    %1579 = vector.broadcast %cst_610 : f32 to vector<23x23xf32>
    %1580 = arith.mulf %1560, %1579 : vector<23x23xf32>
    %1581 = arith.addf %1557, %1580 : vector<23x23xf32>
    %cst_611 = arith.constant -0.277785122 : f32
    %1582 = vector.broadcast %cst_611 : f32 to vector<23x23xf32>
    %1583 = arith.mulf %1560, %1582 : vector<23x23xf32>
    %1584 = arith.addf %1559, %1583 : vector<23x23xf32>
    %1585 = vector.extract_strided_slice %1542 {offsets = [0, 2], sizes = [23, 23], strides = [1, 1]} : vector<23x30xf32> to vector<23x23xf32>
    %cst_612 = arith.constant 0.353553385 : f32
    %1586 = vector.broadcast %cst_612 : f32 to vector<23x23xf32>
    %1587 = arith.mulf %1585, %1586 : vector<23x23xf32>
    %1588 = arith.addf %1563, %1587 : vector<23x23xf32>
    %cst_613 = arith.constant 0.277785122 : f32
    %1589 = vector.broadcast %cst_613 : f32 to vector<23x23xf32>
    %1590 = arith.mulf %1585, %1589 : vector<23x23xf32>
    %1591 = arith.addf %1566, %1590 : vector<23x23xf32>
    %cst_614 = arith.constant -0.191341713 : f32
    %1592 = vector.broadcast %cst_614 : f32 to vector<23x23xf32>
    %1593 = arith.mulf %1585, %1592 : vector<23x23xf32>
    %1594 = arith.addf %1569, %1593 : vector<23x23xf32>
    %cst_615 = arith.constant -0.490392625 : f32
    %1595 = vector.broadcast %cst_615 : f32 to vector<23x23xf32>
    %1596 = arith.mulf %1585, %1595 : vector<23x23xf32>
    %1597 = arith.addf %1572, %1596 : vector<23x23xf32>
    %cst_616 = arith.constant -0.353553385 : f32
    %1598 = vector.broadcast %cst_616 : f32 to vector<23x23xf32>
    %1599 = arith.mulf %1585, %1598 : vector<23x23xf32>
    %1600 = arith.addf %1575, %1599 : vector<23x23xf32>
    %cst_617 = arith.constant 0.0975451618 : f32
    %1601 = vector.broadcast %cst_617 : f32 to vector<23x23xf32>
    %1602 = arith.mulf %1585, %1601 : vector<23x23xf32>
    %1603 = arith.addf %1578, %1602 : vector<23x23xf32>
    %cst_618 = arith.constant 0.461939752 : f32
    %1604 = vector.broadcast %cst_618 : f32 to vector<23x23xf32>
    %1605 = arith.mulf %1585, %1604 : vector<23x23xf32>
    %1606 = arith.addf %1581, %1605 : vector<23x23xf32>
    %cst_619 = arith.constant 0.415734798 : f32
    %1607 = vector.broadcast %cst_619 : f32 to vector<23x23xf32>
    %1608 = arith.mulf %1585, %1607 : vector<23x23xf32>
    %1609 = arith.addf %1584, %1608 : vector<23x23xf32>
    %1610 = vector.extract_strided_slice %1542 {offsets = [0, 3], sizes = [23, 23], strides = [1, 1]} : vector<23x30xf32> to vector<23x23xf32>
    %cst_620 = arith.constant 0.353553385 : f32
    %1611 = vector.broadcast %cst_620 : f32 to vector<23x23xf32>
    %1612 = arith.mulf %1610, %1611 : vector<23x23xf32>
    %1613 = arith.addf %1588, %1612 : vector<23x23xf32>
    %cst_621 = arith.constant 0.0975451618 : f32
    %1614 = vector.broadcast %cst_621 : f32 to vector<23x23xf32>
    %1615 = arith.mulf %1610, %1614 : vector<23x23xf32>
    %1616 = arith.addf %1591, %1615 : vector<23x23xf32>
    %cst_622 = arith.constant -0.461939752 : f32
    %1617 = vector.broadcast %cst_622 : f32 to vector<23x23xf32>
    %1618 = arith.mulf %1610, %1617 : vector<23x23xf32>
    %1619 = arith.addf %1594, %1618 : vector<23x23xf32>
    %cst_623 = arith.constant -0.277785122 : f32
    %1620 = vector.broadcast %cst_623 : f32 to vector<23x23xf32>
    %1621 = arith.mulf %1610, %1620 : vector<23x23xf32>
    %1622 = arith.addf %1597, %1621 : vector<23x23xf32>
    %cst_624 = arith.constant 0.353553385 : f32
    %1623 = vector.broadcast %cst_624 : f32 to vector<23x23xf32>
    %1624 = arith.mulf %1610, %1623 : vector<23x23xf32>
    %1625 = arith.addf %1600, %1624 : vector<23x23xf32>
    %cst_625 = arith.constant 0.415734798 : f32
    %1626 = vector.broadcast %cst_625 : f32 to vector<23x23xf32>
    %1627 = arith.mulf %1610, %1626 : vector<23x23xf32>
    %1628 = arith.addf %1603, %1627 : vector<23x23xf32>
    %cst_626 = arith.constant -0.191341713 : f32
    %1629 = vector.broadcast %cst_626 : f32 to vector<23x23xf32>
    %1630 = arith.mulf %1610, %1629 : vector<23x23xf32>
    %1631 = arith.addf %1606, %1630 : vector<23x23xf32>
    %cst_627 = arith.constant -0.490392625 : f32
    %1632 = vector.broadcast %cst_627 : f32 to vector<23x23xf32>
    %1633 = arith.mulf %1610, %1632 : vector<23x23xf32>
    %1634 = arith.addf %1609, %1633 : vector<23x23xf32>
    %1635 = vector.extract_strided_slice %1542 {offsets = [0, 4], sizes = [23, 23], strides = [1, 1]} : vector<23x30xf32> to vector<23x23xf32>
    %cst_628 = arith.constant 0.353553385 : f32
    %1636 = vector.broadcast %cst_628 : f32 to vector<23x23xf32>
    %1637 = arith.mulf %1635, %1636 : vector<23x23xf32>
    %1638 = arith.addf %1613, %1637 : vector<23x23xf32>
    %cst_629 = arith.constant -0.0975451618 : f32
    %1639 = vector.broadcast %cst_629 : f32 to vector<23x23xf32>
    %1640 = arith.mulf %1635, %1639 : vector<23x23xf32>
    %1641 = arith.addf %1616, %1640 : vector<23x23xf32>
    %cst_630 = arith.constant -0.461939752 : f32
    %1642 = vector.broadcast %cst_630 : f32 to vector<23x23xf32>
    %1643 = arith.mulf %1635, %1642 : vector<23x23xf32>
    %1644 = arith.addf %1619, %1643 : vector<23x23xf32>
    %cst_631 = arith.constant 0.277785122 : f32
    %1645 = vector.broadcast %cst_631 : f32 to vector<23x23xf32>
    %1646 = arith.mulf %1635, %1645 : vector<23x23xf32>
    %1647 = arith.addf %1622, %1646 : vector<23x23xf32>
    %cst_632 = arith.constant 0.353553385 : f32
    %1648 = vector.broadcast %cst_632 : f32 to vector<23x23xf32>
    %1649 = arith.mulf %1635, %1648 : vector<23x23xf32>
    %1650 = arith.addf %1625, %1649 : vector<23x23xf32>
    %cst_633 = arith.constant -0.415734798 : f32
    %1651 = vector.broadcast %cst_633 : f32 to vector<23x23xf32>
    %1652 = arith.mulf %1635, %1651 : vector<23x23xf32>
    %1653 = arith.addf %1628, %1652 : vector<23x23xf32>
    %cst_634 = arith.constant -0.191341713 : f32
    %1654 = vector.broadcast %cst_634 : f32 to vector<23x23xf32>
    %1655 = arith.mulf %1635, %1654 : vector<23x23xf32>
    %1656 = arith.addf %1631, %1655 : vector<23x23xf32>
    %cst_635 = arith.constant 0.490392625 : f32
    %1657 = vector.broadcast %cst_635 : f32 to vector<23x23xf32>
    %1658 = arith.mulf %1635, %1657 : vector<23x23xf32>
    %1659 = arith.addf %1634, %1658 : vector<23x23xf32>
    %1660 = vector.extract_strided_slice %1542 {offsets = [0, 5], sizes = [23, 23], strides = [1, 1]} : vector<23x30xf32> to vector<23x23xf32>
    %cst_636 = arith.constant 0.353553385 : f32
    %1661 = vector.broadcast %cst_636 : f32 to vector<23x23xf32>
    %1662 = arith.mulf %1660, %1661 : vector<23x23xf32>
    %1663 = arith.addf %1638, %1662 : vector<23x23xf32>
    %cst_637 = arith.constant -0.277785122 : f32
    %1664 = vector.broadcast %cst_637 : f32 to vector<23x23xf32>
    %1665 = arith.mulf %1660, %1664 : vector<23x23xf32>
    %1666 = arith.addf %1641, %1665 : vector<23x23xf32>
    %cst_638 = arith.constant -0.191341713 : f32
    %1667 = vector.broadcast %cst_638 : f32 to vector<23x23xf32>
    %1668 = arith.mulf %1660, %1667 : vector<23x23xf32>
    %1669 = arith.addf %1644, %1668 : vector<23x23xf32>
    %cst_639 = arith.constant 0.490392625 : f32
    %1670 = vector.broadcast %cst_639 : f32 to vector<23x23xf32>
    %1671 = arith.mulf %1660, %1670 : vector<23x23xf32>
    %1672 = arith.addf %1647, %1671 : vector<23x23xf32>
    %cst_640 = arith.constant -0.353553385 : f32
    %1673 = vector.broadcast %cst_640 : f32 to vector<23x23xf32>
    %1674 = arith.mulf %1660, %1673 : vector<23x23xf32>
    %1675 = arith.addf %1650, %1674 : vector<23x23xf32>
    %cst_641 = arith.constant -0.0975451618 : f32
    %1676 = vector.broadcast %cst_641 : f32 to vector<23x23xf32>
    %1677 = arith.mulf %1660, %1676 : vector<23x23xf32>
    %1678 = arith.addf %1653, %1677 : vector<23x23xf32>
    %cst_642 = arith.constant 0.461939752 : f32
    %1679 = vector.broadcast %cst_642 : f32 to vector<23x23xf32>
    %1680 = arith.mulf %1660, %1679 : vector<23x23xf32>
    %1681 = arith.addf %1656, %1680 : vector<23x23xf32>
    %cst_643 = arith.constant -0.415734798 : f32
    %1682 = vector.broadcast %cst_643 : f32 to vector<23x23xf32>
    %1683 = arith.mulf %1660, %1682 : vector<23x23xf32>
    %1684 = arith.addf %1659, %1683 : vector<23x23xf32>
    %1685 = vector.extract_strided_slice %1542 {offsets = [0, 6], sizes = [23, 23], strides = [1, 1]} : vector<23x30xf32> to vector<23x23xf32>
    %cst_644 = arith.constant 0.353553385 : f32
    %1686 = vector.broadcast %cst_644 : f32 to vector<23x23xf32>
    %1687 = arith.mulf %1685, %1686 : vector<23x23xf32>
    %1688 = arith.addf %1663, %1687 : vector<23x23xf32>
    %cst_645 = arith.constant -0.415734798 : f32
    %1689 = vector.broadcast %cst_645 : f32 to vector<23x23xf32>
    %1690 = arith.mulf %1685, %1689 : vector<23x23xf32>
    %1691 = arith.addf %1666, %1690 : vector<23x23xf32>
    %cst_646 = arith.constant 0.191341713 : f32
    %1692 = vector.broadcast %cst_646 : f32 to vector<23x23xf32>
    %1693 = arith.mulf %1685, %1692 : vector<23x23xf32>
    %1694 = arith.addf %1669, %1693 : vector<23x23xf32>
    %cst_647 = arith.constant 0.0975451618 : f32
    %1695 = vector.broadcast %cst_647 : f32 to vector<23x23xf32>
    %1696 = arith.mulf %1685, %1695 : vector<23x23xf32>
    %1697 = arith.addf %1672, %1696 : vector<23x23xf32>
    %cst_648 = arith.constant -0.353553385 : f32
    %1698 = vector.broadcast %cst_648 : f32 to vector<23x23xf32>
    %1699 = arith.mulf %1685, %1698 : vector<23x23xf32>
    %1700 = arith.addf %1675, %1699 : vector<23x23xf32>
    %cst_649 = arith.constant 0.490392625 : f32
    %1701 = vector.broadcast %cst_649 : f32 to vector<23x23xf32>
    %1702 = arith.mulf %1685, %1701 : vector<23x23xf32>
    %1703 = arith.addf %1678, %1702 : vector<23x23xf32>
    %cst_650 = arith.constant -0.461939752 : f32
    %1704 = vector.broadcast %cst_650 : f32 to vector<23x23xf32>
    %1705 = arith.mulf %1685, %1704 : vector<23x23xf32>
    %1706 = arith.addf %1681, %1705 : vector<23x23xf32>
    %cst_651 = arith.constant 0.277785122 : f32
    %1707 = vector.broadcast %cst_651 : f32 to vector<23x23xf32>
    %1708 = arith.mulf %1685, %1707 : vector<23x23xf32>
    %1709 = arith.addf %1684, %1708 : vector<23x23xf32>
    %1710 = vector.extract_strided_slice %1542 {offsets = [0, 7], sizes = [23, 23], strides = [1, 1]} : vector<23x30xf32> to vector<23x23xf32>
    %cst_652 = arith.constant 0.353553385 : f32
    %1711 = vector.broadcast %cst_652 : f32 to vector<23x23xf32>
    %1712 = arith.mulf %1710, %1711 : vector<23x23xf32>
    %1713 = arith.addf %1688, %1712 : vector<23x23xf32>
    %cst_653 = arith.constant -0.490392625 : f32
    %1714 = vector.broadcast %cst_653 : f32 to vector<23x23xf32>
    %1715 = arith.mulf %1710, %1714 : vector<23x23xf32>
    %1716 = arith.addf %1691, %1715 : vector<23x23xf32>
    %cst_654 = arith.constant 0.461939752 : f32
    %1717 = vector.broadcast %cst_654 : f32 to vector<23x23xf32>
    %1718 = arith.mulf %1710, %1717 : vector<23x23xf32>
    %1719 = arith.addf %1694, %1718 : vector<23x23xf32>
    %cst_655 = arith.constant -0.415734798 : f32
    %1720 = vector.broadcast %cst_655 : f32 to vector<23x23xf32>
    %1721 = arith.mulf %1710, %1720 : vector<23x23xf32>
    %1722 = arith.addf %1697, %1721 : vector<23x23xf32>
    %cst_656 = arith.constant 0.353553385 : f32
    %1723 = vector.broadcast %cst_656 : f32 to vector<23x23xf32>
    %1724 = arith.mulf %1710, %1723 : vector<23x23xf32>
    %1725 = arith.addf %1700, %1724 : vector<23x23xf32>
    %cst_657 = arith.constant -0.277785122 : f32
    %1726 = vector.broadcast %cst_657 : f32 to vector<23x23xf32>
    %1727 = arith.mulf %1710, %1726 : vector<23x23xf32>
    %1728 = arith.addf %1703, %1727 : vector<23x23xf32>
    %cst_658 = arith.constant 0.191341713 : f32
    %1729 = vector.broadcast %cst_658 : f32 to vector<23x23xf32>
    %1730 = arith.mulf %1710, %1729 : vector<23x23xf32>
    %1731 = arith.addf %1706, %1730 : vector<23x23xf32>
    %cst_659 = arith.constant -0.0975451618 : f32
    %1732 = vector.broadcast %cst_659 : f32 to vector<23x23xf32>
    %1733 = arith.mulf %1710, %1732 : vector<23x23xf32>
    %1734 = arith.addf %1709, %1733 : vector<23x23xf32>
    %c21 = arith.constant 21 : index
    %c0_660 = arith.constant 0 : index
    %c0_661 = arith.constant 0 : index
    %1735 = vector.load %arg2[%c21, %c0_660, %c0_661] : memref<64x23x23xf32, #tpu.memory_space<vmem>>, vector<1x23x23xf32>
    %1736 = vector.shape_cast %1735 : vector<1x23x23xf32> to vector<23x23xf32>
    %1737 = vector.shape_cast %1713 : vector<23x23xf32> to vector<1x23x23xf32>
    tpu.vector_store %arg2[%c21, %c0_660, %c0_661], %1737 {strides = array<i32>} : memref<64x23x23xf32, #tpu.memory_space<vmem>>, vector<1x23x23xf32>,
    %c29 = arith.constant 29 : index
    %c0_662 = arith.constant 0 : index
    %c0_663 = arith.constant 0 : index
    %1738 = vector.load %arg2[%c29, %c0_662, %c0_663] : memref<64x23x23xf32, #tpu.memory_space<vmem>>, vector<1x23x23xf32>
    %1739 = vector.shape_cast %1738 : vector<1x23x23xf32> to vector<23x23xf32>
    %1740 = vector.shape_cast %1716 : vector<23x23xf32> to vector<1x23x23xf32>
    tpu.vector_store %arg2[%c29, %c0_662, %c0_663], %1740 {strides = array<i32>} : memref<64x23x23xf32, #tpu.memory_space<vmem>>, vector<1x23x23xf32>,
    %c37 = arith.constant 37 : index
    %c0_664 = arith.constant 0 : index
    %c0_665 = arith.constant 0 : index
    %1741 = vector.load %arg2[%c37, %c0_664, %c0_665] : memref<64x23x23xf32, #tpu.memory_space<vmem>>, vector<1x23x23xf32>
    %1742 = vector.shape_cast %1741 : vector<1x23x23xf32> to vector<23x23xf32>
    %1743 = vector.shape_cast %1719 : vector<23x23xf32> to vector<1x23x23xf32>
    tpu.vector_store %arg2[%c37, %c0_664, %c0_665], %1743 {strides = array<i32>} : memref<64x23x23xf32, #tpu.memory_space<vmem>>, vector<1x23x23xf32>,
    %c44 = arith.constant 44 : index
    %c0_666 = arith.constant 0 : index
    %c0_667 = arith.constant 0 : index
    %1744 = vector.load %arg2[%c44, %c0_666, %c0_667] : memref<64x23x23xf32, #tpu.memory_space<vmem>>, vector<1x23x23xf32>
    %1745 = vector.shape_cast %1744 : vector<1x23x23xf32> to vector<23x23xf32>
    %1746 = vector.shape_cast %1722 : vector<23x23xf32> to vector<1x23x23xf32>
    tpu.vector_store %arg2[%c44, %c0_666, %c0_667], %1746 {strides = array<i32>} : memref<64x23x23xf32, #tpu.memory_space<vmem>>, vector<1x23x23xf32>,
    %c50 = arith.constant 50 : index
    %c0_668 = arith.constant 0 : index
    %c0_669 = arith.constant 0 : index
    %1747 = vector.load %arg2[%c50, %c0_668, %c0_669] : memref<64x23x23xf32, #tpu.memory_space<vmem>>, vector<1x23x23xf32>
    %1748 = vector.shape_cast %1747 : vector<1x23x23xf32> to vector<23x23xf32>
    %1749 = vector.shape_cast %1725 : vector<23x23xf32> to vector<1x23x23xf32>
    tpu.vector_store %arg2[%c50, %c0_668, %c0_669], %1749 {strides = array<i32>} : memref<64x23x23xf32, #tpu.memory_space<vmem>>, vector<1x23x23xf32>,
    %c55 = arith.constant 55 : index
    %c0_670 = arith.constant 0 : index
    %c0_671 = arith.constant 0 : index
    %1750 = vector.load %arg2[%c55, %c0_670, %c0_671] : memref<64x23x23xf32, #tpu.memory_space<vmem>>, vector<1x23x23xf32>
    %1751 = vector.shape_cast %1750 : vector<1x23x23xf32> to vector<23x23xf32>
    %1752 = vector.shape_cast %1728 : vector<23x23xf32> to vector<1x23x23xf32>
    tpu.vector_store %arg2[%c55, %c0_670, %c0_671], %1752 {strides = array<i32>} : memref<64x23x23xf32, #tpu.memory_space<vmem>>, vector<1x23x23xf32>,
    %c59 = arith.constant 59 : index
    %c0_672 = arith.constant 0 : index
    %c0_673 = arith.constant 0 : index
    %1753 = vector.load %arg2[%c59, %c0_672, %c0_673] : memref<64x23x23xf32, #tpu.memory_space<vmem>>, vector<1x23x23xf32>
    %1754 = vector.shape_cast %1753 : vector<1x23x23xf32> to vector<23x23xf32>
    %1755 = vector.shape_cast %1731 : vector<23x23xf32> to vector<1x23x23xf32>
    tpu.vector_store %arg2[%c59, %c0_672, %c0_673], %1755 {strides = array<i32>} : memref<64x23x23xf32, #tpu.memory_space<vmem>>, vector<1x23x23xf32>,
    %c62 = arith.constant 62 : index
    %c0_674 = arith.constant 0 : index
    %c0_675 = arith.constant 0 : index
    %1756 = vector.load %arg2[%c62, %c0_674, %c0_675] : memref<64x23x23xf32, #tpu.memory_space<vmem>>, vector<1x23x23xf32>
    %1757 = vector.shape_cast %1756 : vector<1x23x23xf32> to vector<23x23xf32>
    %1758 = vector.shape_cast %1734 : vector<23x23xf32> to vector<1x23x23xf32>
    tpu.vector_store %arg2[%c62, %c0_674, %c0_675], %1758 {strides = array<i32>} : memref<64x23x23xf32, #tpu.memory_space<vmem>>, vector<1x23x23xf32>,
    %c7_676 = arith.constant 7 : index
    %c0_677 = arith.constant 0 : index
    %c0_678 = arith.constant 0 : index
    %1759 = vector.load %arg3[%c7_676, %c0_677, %c0_678] : memref<8x23x30xf32, #tpu.memory_space<vmem>>, vector<1x23x30xf32>
    %1760 = vector.shape_cast %1759 : vector<1x23x30xf32> to vector<23x30xf32>
    %1761 = vector.extract_strided_slice %1760 {offsets = [0, 0], sizes = [23, 23], strides = [1, 1]} : vector<23x30xf32> to vector<23x23xf32>
    %cst_679 = arith.constant 0.353553385 : f32
    %1762 = vector.broadcast %cst_679 : f32 to vector<23x23xf32>
    %1763 = arith.mulf %1761, %1762 : vector<23x23xf32>
    %cst_680 = arith.constant 0.490392625 : f32
    %1764 = vector.broadcast %cst_680 : f32 to vector<23x23xf32>
    %1765 = arith.mulf %1761, %1764 : vector<23x23xf32>
    %cst_681 = arith.constant 0.461939752 : f32
    %1766 = vector.broadcast %cst_681 : f32 to vector<23x23xf32>
    %1767 = arith.mulf %1761, %1766 : vector<23x23xf32>
    %cst_682 = arith.constant 0.415734798 : f32
    %1768 = vector.broadcast %cst_682 : f32 to vector<23x23xf32>
    %1769 = arith.mulf %1761, %1768 : vector<23x23xf32>
    %cst_683 = arith.constant 0.353553385 : f32
    %1770 = vector.broadcast %cst_683 : f32 to vector<23x23xf32>
    %1771 = arith.mulf %1761, %1770 : vector<23x23xf32>
    %cst_684 = arith.constant 0.277785122 : f32
    %1772 = vector.broadcast %cst_684 : f32 to vector<23x23xf32>
    %1773 = arith.mulf %1761, %1772 : vector<23x23xf32>
    %cst_685 = arith.constant 0.191341713 : f32
    %1774 = vector.broadcast %cst_685 : f32 to vector<23x23xf32>
    %1775 = arith.mulf %1761, %1774 : vector<23x23xf32>
    %cst_686 = arith.constant 0.0975451618 : f32
    %1776 = vector.broadcast %cst_686 : f32 to vector<23x23xf32>
    %1777 = arith.mulf %1761, %1776 : vector<23x23xf32>
    %1778 = vector.extract_strided_slice %1760 {offsets = [0, 1], sizes = [23, 23], strides = [1, 1]} : vector<23x30xf32> to vector<23x23xf32>
    %cst_687 = arith.constant 0.353553385 : f32
    %1779 = vector.broadcast %cst_687 : f32 to vector<23x23xf32>
    %1780 = arith.mulf %1778, %1779 : vector<23x23xf32>
    %1781 = arith.addf %1763, %1780 : vector<23x23xf32>
    %cst_688 = arith.constant 0.415734798 : f32
    %1782 = vector.broadcast %cst_688 : f32 to vector<23x23xf32>
    %1783 = arith.mulf %1778, %1782 : vector<23x23xf32>
    %1784 = arith.addf %1765, %1783 : vector<23x23xf32>
    %cst_689 = arith.constant 0.191341713 : f32
    %1785 = vector.broadcast %cst_689 : f32 to vector<23x23xf32>
    %1786 = arith.mulf %1778, %1785 : vector<23x23xf32>
    %1787 = arith.addf %1767, %1786 : vector<23x23xf32>
    %cst_690 = arith.constant -0.0975451618 : f32
    %1788 = vector.broadcast %cst_690 : f32 to vector<23x23xf32>
    %1789 = arith.mulf %1778, %1788 : vector<23x23xf32>
    %1790 = arith.addf %1769, %1789 : vector<23x23xf32>
    %cst_691 = arith.constant -0.353553385 : f32
    %1791 = vector.broadcast %cst_691 : f32 to vector<23x23xf32>
    %1792 = arith.mulf %1778, %1791 : vector<23x23xf32>
    %1793 = arith.addf %1771, %1792 : vector<23x23xf32>
    %cst_692 = arith.constant -0.490392625 : f32
    %1794 = vector.broadcast %cst_692 : f32 to vector<23x23xf32>
    %1795 = arith.mulf %1778, %1794 : vector<23x23xf32>
    %1796 = arith.addf %1773, %1795 : vector<23x23xf32>
    %cst_693 = arith.constant -0.461939752 : f32
    %1797 = vector.broadcast %cst_693 : f32 to vector<23x23xf32>
    %1798 = arith.mulf %1778, %1797 : vector<23x23xf32>
    %1799 = arith.addf %1775, %1798 : vector<23x23xf32>
    %cst_694 = arith.constant -0.277785122 : f32
    %1800 = vector.broadcast %cst_694 : f32 to vector<23x23xf32>
    %1801 = arith.mulf %1778, %1800 : vector<23x23xf32>
    %1802 = arith.addf %1777, %1801 : vector<23x23xf32>
    %1803 = vector.extract_strided_slice %1760 {offsets = [0, 2], sizes = [23, 23], strides = [1, 1]} : vector<23x30xf32> to vector<23x23xf32>
    %cst_695 = arith.constant 0.353553385 : f32
    %1804 = vector.broadcast %cst_695 : f32 to vector<23x23xf32>
    %1805 = arith.mulf %1803, %1804 : vector<23x23xf32>
    %1806 = arith.addf %1781, %1805 : vector<23x23xf32>
    %cst_696 = arith.constant 0.277785122 : f32
    %1807 = vector.broadcast %cst_696 : f32 to vector<23x23xf32>
    %1808 = arith.mulf %1803, %1807 : vector<23x23xf32>
    %1809 = arith.addf %1784, %1808 : vector<23x23xf32>
    %cst_697 = arith.constant -0.191341713 : f32
    %1810 = vector.broadcast %cst_697 : f32 to vector<23x23xf32>
    %1811 = arith.mulf %1803, %1810 : vector<23x23xf32>
    %1812 = arith.addf %1787, %1811 : vector<23x23xf32>
    %cst_698 = arith.constant -0.490392625 : f32
    %1813 = vector.broadcast %cst_698 : f32 to vector<23x23xf32>
    %1814 = arith.mulf %1803, %1813 : vector<23x23xf32>
    %1815 = arith.addf %1790, %1814 : vector<23x23xf32>
    %cst_699 = arith.constant -0.353553385 : f32
    %1816 = vector.broadcast %cst_699 : f32 to vector<23x23xf32>
    %1817 = arith.mulf %1803, %1816 : vector<23x23xf32>
    %1818 = arith.addf %1793, %1817 : vector<23x23xf32>
    %cst_700 = arith.constant 0.0975451618 : f32
    %1819 = vector.broadcast %cst_700 : f32 to vector<23x23xf32>
    %1820 = arith.mulf %1803, %1819 : vector<23x23xf32>
    %1821 = arith.addf %1796, %1820 : vector<23x23xf32>
    %cst_701 = arith.constant 0.461939752 : f32
    %1822 = vector.broadcast %cst_701 : f32 to vector<23x23xf32>
    %1823 = arith.mulf %1803, %1822 : vector<23x23xf32>
    %1824 = arith.addf %1799, %1823 : vector<23x23xf32>
    %cst_702 = arith.constant 0.415734798 : f32
    %1825 = vector.broadcast %cst_702 : f32 to vector<23x23xf32>
    %1826 = arith.mulf %1803, %1825 : vector<23x23xf32>
    %1827 = arith.addf %1802, %1826 : vector<23x23xf32>
    %1828 = vector.extract_strided_slice %1760 {offsets = [0, 3], sizes = [23, 23], strides = [1, 1]} : vector<23x30xf32> to vector<23x23xf32>
    %cst_703 = arith.constant 0.353553385 : f32
    %1829 = vector.broadcast %cst_703 : f32 to vector<23x23xf32>
    %1830 = arith.mulf %1828, %1829 : vector<23x23xf32>
    %1831 = arith.addf %1806, %1830 : vector<23x23xf32>
    %cst_704 = arith.constant 0.0975451618 : f32
    %1832 = vector.broadcast %cst_704 : f32 to vector<23x23xf32>
    %1833 = arith.mulf %1828, %1832 : vector<23x23xf32>
    %1834 = arith.addf %1809, %1833 : vector<23x23xf32>
    %cst_705 = arith.constant -0.461939752 : f32
    %1835 = vector.broadcast %cst_705 : f32 to vector<23x23xf32>
    %1836 = arith.mulf %1828, %1835 : vector<23x23xf32>
    %1837 = arith.addf %1812, %1836 : vector<23x23xf32>
    %cst_706 = arith.constant -0.277785122 : f32
    %1838 = vector.broadcast %cst_706 : f32 to vector<23x23xf32>
    %1839 = arith.mulf %1828, %1838 : vector<23x23xf32>
    %1840 = arith.addf %1815, %1839 : vector<23x23xf32>
    %cst_707 = arith.constant 0.353553385 : f32
    %1841 = vector.broadcast %cst_707 : f32 to vector<23x23xf32>
    %1842 = arith.mulf %1828, %1841 : vector<23x23xf32>
    %1843 = arith.addf %1818, %1842 : vector<23x23xf32>
    %cst_708 = arith.constant 0.415734798 : f32
    %1844 = vector.broadcast %cst_708 : f32 to vector<23x23xf32>
    %1845 = arith.mulf %1828, %1844 : vector<23x23xf32>
    %1846 = arith.addf %1821, %1845 : vector<23x23xf32>
    %cst_709 = arith.constant -0.191341713 : f32
    %1847 = vector.broadcast %cst_709 : f32 to vector<23x23xf32>
    %1848 = arith.mulf %1828, %1847 : vector<23x23xf32>
    %1849 = arith.addf %1824, %1848 : vector<23x23xf32>
    %cst_710 = arith.constant -0.490392625 : f32
    %1850 = vector.broadcast %cst_710 : f32 to vector<23x23xf32>
    %1851 = arith.mulf %1828, %1850 : vector<23x23xf32>
    %1852 = arith.addf %1827, %1851 : vector<23x23xf32>
    %1853 = vector.extract_strided_slice %1760 {offsets = [0, 4], sizes = [23, 23], strides = [1, 1]} : vector<23x30xf32> to vector<23x23xf32>
    %cst_711 = arith.constant 0.353553385 : f32
    %1854 = vector.broadcast %cst_711 : f32 to vector<23x23xf32>
    %1855 = arith.mulf %1853, %1854 : vector<23x23xf32>
    %1856 = arith.addf %1831, %1855 : vector<23x23xf32>
    %cst_712 = arith.constant -0.0975451618 : f32
    %1857 = vector.broadcast %cst_712 : f32 to vector<23x23xf32>
    %1858 = arith.mulf %1853, %1857 : vector<23x23xf32>
    %1859 = arith.addf %1834, %1858 : vector<23x23xf32>
    %cst_713 = arith.constant -0.461939752 : f32
    %1860 = vector.broadcast %cst_713 : f32 to vector<23x23xf32>
    %1861 = arith.mulf %1853, %1860 : vector<23x23xf32>
    %1862 = arith.addf %1837, %1861 : vector<23x23xf32>
    %cst_714 = arith.constant 0.277785122 : f32
    %1863 = vector.broadcast %cst_714 : f32 to vector<23x23xf32>
    %1864 = arith.mulf %1853, %1863 : vector<23x23xf32>
    %1865 = arith.addf %1840, %1864 : vector<23x23xf32>
    %cst_715 = arith.constant 0.353553385 : f32
    %1866 = vector.broadcast %cst_715 : f32 to vector<23x23xf32>
    %1867 = arith.mulf %1853, %1866 : vector<23x23xf32>
    %1868 = arith.addf %1843, %1867 : vector<23x23xf32>
    %cst_716 = arith.constant -0.415734798 : f32
    %1869 = vector.broadcast %cst_716 : f32 to vector<23x23xf32>
    %1870 = arith.mulf %1853, %1869 : vector<23x23xf32>
    %1871 = arith.addf %1846, %1870 : vector<23x23xf32>
    %cst_717 = arith.constant -0.191341713 : f32
    %1872 = vector.broadcast %cst_717 : f32 to vector<23x23xf32>
    %1873 = arith.mulf %1853, %1872 : vector<23x23xf32>
    %1874 = arith.addf %1849, %1873 : vector<23x23xf32>
    %cst_718 = arith.constant 0.490392625 : f32
    %1875 = vector.broadcast %cst_718 : f32 to vector<23x23xf32>
    %1876 = arith.mulf %1853, %1875 : vector<23x23xf32>
    %1877 = arith.addf %1852, %1876 : vector<23x23xf32>
    %1878 = vector.extract_strided_slice %1760 {offsets = [0, 5], sizes = [23, 23], strides = [1, 1]} : vector<23x30xf32> to vector<23x23xf32>
    %cst_719 = arith.constant 0.353553385 : f32
    %1879 = vector.broadcast %cst_719 : f32 to vector<23x23xf32>
    %1880 = arith.mulf %1878, %1879 : vector<23x23xf32>
    %1881 = arith.addf %1856, %1880 : vector<23x23xf32>
    %cst_720 = arith.constant -0.277785122 : f32
    %1882 = vector.broadcast %cst_720 : f32 to vector<23x23xf32>
    %1883 = arith.mulf %1878, %1882 : vector<23x23xf32>
    %1884 = arith.addf %1859, %1883 : vector<23x23xf32>
    %cst_721 = arith.constant -0.191341713 : f32
    %1885 = vector.broadcast %cst_721 : f32 to vector<23x23xf32>
    %1886 = arith.mulf %1878, %1885 : vector<23x23xf32>
    %1887 = arith.addf %1862, %1886 : vector<23x23xf32>
    %cst_722 = arith.constant 0.490392625 : f32
    %1888 = vector.broadcast %cst_722 : f32 to vector<23x23xf32>
    %1889 = arith.mulf %1878, %1888 : vector<23x23xf32>
    %1890 = arith.addf %1865, %1889 : vector<23x23xf32>
    %cst_723 = arith.constant -0.353553385 : f32
    %1891 = vector.broadcast %cst_723 : f32 to vector<23x23xf32>
    %1892 = arith.mulf %1878, %1891 : vector<23x23xf32>
    %1893 = arith.addf %1868, %1892 : vector<23x23xf32>
    %cst_724 = arith.constant -0.0975451618 : f32
    %1894 = vector.broadcast %cst_724 : f32 to vector<23x23xf32>
    %1895 = arith.mulf %1878, %1894 : vector<23x23xf32>
    %1896 = arith.addf %1871, %1895 : vector<23x23xf32>
    %cst_725 = arith.constant 0.461939752 : f32
    %1897 = vector.broadcast %cst_725 : f32 to vector<23x23xf32>
    %1898 = arith.mulf %1878, %1897 : vector<23x23xf32>
    %1899 = arith.addf %1874, %1898 : vector<23x23xf32>
    %cst_726 = arith.constant -0.415734798 : f32
    %1900 = vector.broadcast %cst_726 : f32 to vector<23x23xf32>
    %1901 = arith.mulf %1878, %1900 : vector<23x23xf32>
    %1902 = arith.addf %1877, %1901 : vector<23x23xf32>
    %1903 = vector.extract_strided_slice %1760 {offsets = [0, 6], sizes = [23, 23], strides = [1, 1]} : vector<23x30xf32> to vector<23x23xf32>
    %cst_727 = arith.constant 0.353553385 : f32
    %1904 = vector.broadcast %cst_727 : f32 to vector<23x23xf32>
    %1905 = arith.mulf %1903, %1904 : vector<23x23xf32>
    %1906 = arith.addf %1881, %1905 : vector<23x23xf32>
    %cst_728 = arith.constant -0.415734798 : f32
    %1907 = vector.broadcast %cst_728 : f32 to vector<23x23xf32>
    %1908 = arith.mulf %1903, %1907 : vector<23x23xf32>
    %1909 = arith.addf %1884, %1908 : vector<23x23xf32>
    %cst_729 = arith.constant 0.191341713 : f32
    %1910 = vector.broadcast %cst_729 : f32 to vector<23x23xf32>
    %1911 = arith.mulf %1903, %1910 : vector<23x23xf32>
    %1912 = arith.addf %1887, %1911 : vector<23x23xf32>
    %cst_730 = arith.constant 0.0975451618 : f32
    %1913 = vector.broadcast %cst_730 : f32 to vector<23x23xf32>
    %1914 = arith.mulf %1903, %1913 : vector<23x23xf32>
    %1915 = arith.addf %1890, %1914 : vector<23x23xf32>
    %cst_731 = arith.constant -0.353553385 : f32
    %1916 = vector.broadcast %cst_731 : f32 to vector<23x23xf32>
    %1917 = arith.mulf %1903, %1916 : vector<23x23xf32>
    %1918 = arith.addf %1893, %1917 : vector<23x23xf32>
    %cst_732 = arith.constant 0.490392625 : f32
    %1919 = vector.broadcast %cst_732 : f32 to vector<23x23xf32>
    %1920 = arith.mulf %1903, %1919 : vector<23x23xf32>
    %1921 = arith.addf %1896, %1920 : vector<23x23xf32>
    %cst_733 = arith.constant -0.461939752 : f32
    %1922 = vector.broadcast %cst_733 : f32 to vector<23x23xf32>
    %1923 = arith.mulf %1903, %1922 : vector<23x23xf32>
    %1924 = arith.addf %1899, %1923 : vector<23x23xf32>
    %cst_734 = arith.constant 0.277785122 : f32
    %1925 = vector.broadcast %cst_734 : f32 to vector<23x23xf32>
    %1926 = arith.mulf %1903, %1925 : vector<23x23xf32>
    %1927 = arith.addf %1902, %1926 : vector<23x23xf32>
    %1928 = vector.extract_strided_slice %1760 {offsets = [0, 7], sizes = [23, 23], strides = [1, 1]} : vector<23x30xf32> to vector<23x23xf32>
    %cst_735 = arith.constant 0.353553385 : f32
    %1929 = vector.broadcast %cst_735 : f32 to vector<23x23xf32>
    %1930 = arith.mulf %1928, %1929 : vector<23x23xf32>
    %1931 = arith.addf %1906, %1930 : vector<23x23xf32>
    %cst_736 = arith.constant -0.490392625 : f32
    %1932 = vector.broadcast %cst_736 : f32 to vector<23x23xf32>
    %1933 = arith.mulf %1928, %1932 : vector<23x23xf32>
    %1934 = arith.addf %1909, %1933 : vector<23x23xf32>
    %cst_737 = arith.constant 0.461939752 : f32
    %1935 = vector.broadcast %cst_737 : f32 to vector<23x23xf32>
    %1936 = arith.mulf %1928, %1935 : vector<23x23xf32>
    %1937 = arith.addf %1912, %1936 : vector<23x23xf32>
    %cst_738 = arith.constant -0.415734798 : f32
    %1938 = vector.broadcast %cst_738 : f32 to vector<23x23xf32>
    %1939 = arith.mulf %1928, %1938 : vector<23x23xf32>
    %1940 = arith.addf %1915, %1939 : vector<23x23xf32>
    %cst_739 = arith.constant 0.353553385 : f32
    %1941 = vector.broadcast %cst_739 : f32 to vector<23x23xf32>
    %1942 = arith.mulf %1928, %1941 : vector<23x23xf32>
    %1943 = arith.addf %1918, %1942 : vector<23x23xf32>
    %cst_740 = arith.constant -0.277785122 : f32
    %1944 = vector.broadcast %cst_740 : f32 to vector<23x23xf32>
    %1945 = arith.mulf %1928, %1944 : vector<23x23xf32>
    %1946 = arith.addf %1921, %1945 : vector<23x23xf32>
    %cst_741 = arith.constant 0.191341713 : f32
    %1947 = vector.broadcast %cst_741 : f32 to vector<23x23xf32>
    %1948 = arith.mulf %1928, %1947 : vector<23x23xf32>
    %1949 = arith.addf %1924, %1948 : vector<23x23xf32>
    %cst_742 = arith.constant -0.0975451618 : f32
    %1950 = vector.broadcast %cst_742 : f32 to vector<23x23xf32>
    %1951 = arith.mulf %1928, %1950 : vector<23x23xf32>
    %1952 = arith.addf %1927, %1951 : vector<23x23xf32>
    %c28 = arith.constant 28 : index
    %c0_743 = arith.constant 0 : index
    %c0_744 = arith.constant 0 : index
    %1953 = vector.load %arg2[%c28, %c0_743, %c0_744] : memref<64x23x23xf32, #tpu.memory_space<vmem>>, vector<1x23x23xf32>
    %1954 = vector.shape_cast %1953 : vector<1x23x23xf32> to vector<23x23xf32>
    %1955 = vector.shape_cast %1931 : vector<23x23xf32> to vector<1x23x23xf32>
    tpu.vector_store %arg2[%c28, %c0_743, %c0_744], %1955 {strides = array<i32>} : memref<64x23x23xf32, #tpu.memory_space<vmem>>, vector<1x23x23xf32>,
    %c36 = arith.constant 36 : index
    %c0_745 = arith.constant 0 : index
    %c0_746 = arith.constant 0 : index
    %1956 = vector.load %arg2[%c36, %c0_745, %c0_746] : memref<64x23x23xf32, #tpu.memory_space<vmem>>, vector<1x23x23xf32>
    %1957 = vector.shape_cast %1956 : vector<1x23x23xf32> to vector<23x23xf32>
    %1958 = vector.shape_cast %1934 : vector<23x23xf32> to vector<1x23x23xf32>
    tpu.vector_store %arg2[%c36, %c0_745, %c0_746], %1958 {strides = array<i32>} : memref<64x23x23xf32, #tpu.memory_space<vmem>>, vector<1x23x23xf32>,
    %c43 = arith.constant 43 : index
    %c0_747 = arith.constant 0 : index
    %c0_748 = arith.constant 0 : index
    %1959 = vector.load %arg2[%c43, %c0_747, %c0_748] : memref<64x23x23xf32, #tpu.memory_space<vmem>>, vector<1x23x23xf32>
    %1960 = vector.shape_cast %1959 : vector<1x23x23xf32> to vector<23x23xf32>
    %1961 = vector.shape_cast %1937 : vector<23x23xf32> to vector<1x23x23xf32>
    tpu.vector_store %arg2[%c43, %c0_747, %c0_748], %1961 {strides = array<i32>} : memref<64x23x23xf32, #tpu.memory_space<vmem>>, vector<1x23x23xf32>,
    %c49 = arith.constant 49 : index
    %c0_749 = arith.constant 0 : index
    %c0_750 = arith.constant 0 : index
    %1962 = vector.load %arg2[%c49, %c0_749, %c0_750] : memref<64x23x23xf32, #tpu.memory_space<vmem>>, vector<1x23x23xf32>
    %1963 = vector.shape_cast %1962 : vector<1x23x23xf32> to vector<23x23xf32>
    %1964 = vector.shape_cast %1940 : vector<23x23xf32> to vector<1x23x23xf32>
    tpu.vector_store %arg2[%c49, %c0_749, %c0_750], %1964 {strides = array<i32>} : memref<64x23x23xf32, #tpu.memory_space<vmem>>, vector<1x23x23xf32>,
    %c54 = arith.constant 54 : index
    %c0_751 = arith.constant 0 : index
    %c0_752 = arith.constant 0 : index
    %1965 = vector.load %arg2[%c54, %c0_751, %c0_752] : memref<64x23x23xf32, #tpu.memory_space<vmem>>, vector<1x23x23xf32>
    %1966 = vector.shape_cast %1965 : vector<1x23x23xf32> to vector<23x23xf32>
    %1967 = vector.shape_cast %1943 : vector<23x23xf32> to vector<1x23x23xf32>
    tpu.vector_store %arg2[%c54, %c0_751, %c0_752], %1967 {strides = array<i32>} : memref<64x23x23xf32, #tpu.memory_space<vmem>>, vector<1x23x23xf32>,
    %c58 = arith.constant 58 : index
    %c0_753 = arith.constant 0 : index
    %c0_754 = arith.constant 0 : index
    %1968 = vector.load %arg2[%c58, %c0_753, %c0_754] : memref<64x23x23xf32, #tpu.memory_space<vmem>>, vector<1x23x23xf32>
    %1969 = vector.shape_cast %1968 : vector<1x23x23xf32> to vector<23x23xf32>
    %1970 = vector.shape_cast %1946 : vector<23x23xf32> to vector<1x23x23xf32>
    tpu.vector_store %arg2[%c58, %c0_753, %c0_754], %1970 {strides = array<i32>} : memref<64x23x23xf32, #tpu.memory_space<vmem>>, vector<1x23x23xf32>,
    %c61 = arith.constant 61 : index
    %c0_755 = arith.constant 0 : index
    %c0_756 = arith.constant 0 : index
    %1971 = vector.load %arg2[%c61, %c0_755, %c0_756] : memref<64x23x23xf32, #tpu.memory_space<vmem>>, vector<1x23x23xf32>
    %1972 = vector.shape_cast %1971 : vector<1x23x23xf32> to vector<23x23xf32>
    %1973 = vector.shape_cast %1949 : vector<23x23xf32> to vector<1x23x23xf32>
    tpu.vector_store %arg2[%c61, %c0_755, %c0_756], %1973 {strides = array<i32>} : memref<64x23x23xf32, #tpu.memory_space<vmem>>, vector<1x23x23xf32>,
    %c63 = arith.constant 63 : index
    %c0_757 = arith.constant 0 : index
    %c0_758 = arith.constant 0 : index
    %1974 = vector.load %arg2[%c63, %c0_757, %c0_758] : memref<64x23x23xf32, #tpu.memory_space<vmem>>, vector<1x23x23xf32>
    %1975 = vector.shape_cast %1974 : vector<1x23x23xf32> to vector<23x23xf32>
    %1976 = vector.shape_cast %1952 : vector<23x23xf32> to vector<1x23x23xf32>
    tpu.vector_store %arg2[%c63, %c0_757, %c0_758], %1976 {strides = array<i32>} : memref<64x23x23xf32, #tpu.memory_space<vmem>>, vector<1x23x23xf32>,
    return
  }
  func.func @transform_0(%arg0: i32) -> (i32, i32) {
    %c0_i32 = arith.constant 0 : i32
    %c0_i32_0 = arith.constant 0 : i32
    %c0_i32_1 = arith.constant 0 : i32
    return %c0_i32, %c0_i32_0 : i32, i32
  }
  func.func @transform_1(%arg0: i32) -> (i32, i32, i32) {
    %c0_i32 = arith.constant 0 : i32
    %c0_i32_0 = arith.constant 0 : i32
    %c0_i32_1 = arith.constant 0 : i32
    return %c0_i32, %arg0, %c0_i32_0 : i32, i32, i32
  }
}

</mosaic_0001>

<llo_original>
// kernel: _dct_conv_forward_impl.1
$region0: #{_dct_conv_forward_impl.1}
  #allocation0 [shape = 'u32[]', space=smem, size = 0x4, offset = 0x4, fixed_abs, tag = 'smem constant byte address 0x4 - core index']
  #allocation1 [shape = 'u32[72,128]{1,0:T(1,128)}', space=vmem, size = 0x9000, scoped, tag = 'internal scratch']
  #allocation2 [shape = 'f32[8,23,30]{2,1,0:T(8,128)}', space=vmem, size = 0x18000, scoped, tag = 'scratch operand']
  %s0 = inlined_call_operand.vmem [shape: f32[30,30], index: 0, kind: input, shape index: {}]
  %s1 = inlined_call_operand.vmem [shape: f32[64,23,23], index: 1, kind: output, shape index: {}]
  %s2 = sld [smem:[#allocation0]]
  $region14: #{_dct_conv_forward_impl.1} parent=0
    _
  %s4 = ssub.s32 1, %s2
  %s5 = scalar_select 0, %s4, %s2
  // Predicated region
  $region2: #{_dct_conv_forward_impl.1} parent=0 // pred_check
    _
  $region3: #{_dct_conv_forward_impl.1} parent=0 // pred_check_branch
    %7 = sbr.rel (0) target = $region5
  $region4: #{_dct_conv_forward_impl.1} parent=0 // pred_region
    _
  $region5: #{_dct_conv_forward_impl.1} parent=0 // pred_fallthru
    _
  %s8 = smul.u32 0, 23
  %s9 = scalar_lea.vmem %s0, %s8
  %v10 = vld [vmem:[%s9] sm:$0xff]
  %v11 = vld [vmem:[%s9 + $0x8] sm:$0xff]
  %v12 = vld [vmem:[%s9 + $0x10] sm:$0x7f]
  %v13 = vmul.f32 %v10, 0.35355338
  %v14 = vmul.f32 %v11, 0.35355338
  %v15 = vmul.f32 %v12, 0.35355338
  %v16 = vmul.f32 %v10, 0.49039263
  %v17 = vmul.f32 %v11, 0.49039263
  %v18 = vmul.f32 %v12, 0.49039263
  %v19 = vmul.f32 %v10, 0.46193975
  %v20 = vmul.f32 %v11, 0.46193975
  %v21 = vmul.f32 %v12, 0.46193975
  %v22 = vmul.f32 %v10, 0.4157348
  %v23 = vmul.f32 %v11, 0.4157348
  %v24 = vmul.f32 %v12, 0.4157348
  %v25 = vmul.f32 %v10, 0.27778512
  %v26 = vmul.f32 %v11, 0.27778512
  %v27 = vmul.f32 %v12, 0.27778512
  %v28 = vmul.f32 %v10, 0.19134171
  %v29 = vmul.f32 %v11, 0.19134171
  %v30 = vmul.f32 %v12, 0.19134171
  %v31 = vmul.f32 %v10, 0.09754516
  %v32 = vmul.f32 %v11, 0.09754516
  %v33 = vmul.f32 %v12, 0.09754516
  %s34 = sadd.s32 %s8, 1
  %s35 = scalar_lea.vmem %s0, %s34
  %v36 = vld [vmem:[%s35] sm:$0xff]
  %v37 = vld [vmem:[%s35 + $0x8] sm:$0xff]
  %v38 = vld [vmem:[%s35 + $0x10] sm:$0x7f]
  %v39 = vmul.f32 %v36, 0.35355338
  %v40 = vmul.f32 %v37, 0.35355338
  %v41 = vmul.f32 %v38, 0.35355338
  %v42 = vadd.f32 %v13, %v39
  %v43 = vadd.f32 %v14, %v40
  %v44 = vadd.f32 %v15, %v41
  %v45 = vmul.f32 %v36, 0.4157348
  %v46 = vmul.f32 %v37, 0.4157348
  %v47 = vmul.f32 %v38, 0.4157348
  %v48 = vadd.f32 %v16, %v45
  %v49 = vadd.f32 %v17, %v46
  %v50 = vadd.f32 %v18, %v47
  %v51 = vmul.f32 %v36, 0.19134171
  %v52 = vmul.f32 %v37, 0.19134171
  %v53 = vmul.f32 %v38, 0.19134171
  %v54 = vadd.f32 %v19, %v51
  %v55 = vadd.f32 %v20, %v52
  %v56 = vadd.f32 %v21, %v53
  %v57 = vmul.f32 %v36, -0.09754516
  %v58 = vmul.f32 %v37, -0.09754516
  %v59 = vmul.f32 %v38, -0.09754516
  %v60 = vadd.f32 %v22, %v57
  %v61 = vadd.f32 %v23, %v58
  %v62 = vadd.f32 %v24, %v59
  %v63 = vmul.f32 %v36, -0.35355338
  %v64 = vmul.f32 %v37, -0.35355338
  %v65 = vmul.f32 %v38, -0.35355338
  %v66 = vadd.f32 %v13, %v63
  %v67 = vadd.f32 %v14, %v64
  %v68 = vadd.f32 %v15, %v65
  %v69 = vmul.f32 %v36, -0.49039263
  %v70 = vmul.f32 %v37, -0.49039263
  %v71 = vmul.f32 %v38, -0.49039263
  %v72 = vadd.f32 %v25, %v69
  %v73 = vadd.f32 %v26, %v70
  %v74 = vadd.f32 %v27, %v71
  %v75 = vmul.f32 %v36, -0.46193975
  %v76 = vmul.f32 %v37, -0.46193975
  %v77 = vmul.f32 %v38, -0.46193975
  %v78 = vadd.f32 %v28, %v75
  %v79 = vadd.f32 %v29, %v76
  %v80 = vadd.f32 %v30, %v77
  %v81 = vmul.f32 %v36, -0.27778512
  %v82 = vmul.f32 %v37, -0.27778512
  %v83 = vmul.f32 %v38, -0.27778512
  %v84 = vadd.f32 %v31, %v81
  %v85 = vadd.f32 %v32, %v82
  %v86 = vadd.f32 %v33, %v83
  %s87 = sadd.s32 %s8, 2
  %s88 = scalar_lea.vmem %s0, %s87
  %v89 = vld [vmem:[%s88] sm:$0xff]
  %v90 = vld [vmem:[%s88 + $0x8] sm:$0xff]
  %v91 = vld [vmem:[%s88 + $0x10] sm:$0x7f]
  %v92 = vmul.f32 %v89, 0.35355338
  %v93 = vmul.f32 %v90, 0.35355338
  %v94 = vmul.f32 %v91, 0.35355338
  %v95 = vadd.f32 %v42, %v92
  %v96 = vadd.f32 %v43, %v93
  %v97 = vadd.f32 %v44, %v94
  %v98 = vmul.f32 %v89, 0.27778512
  %v99 = vmul.f32 %v90, 0.27778512
  %v100 = vmul.f32 %v91, 0.27778512
  %v101 = vadd.f32 %v48, %v98
  %v102 = vadd.f32 %v49, %v99
  %v103 = vadd.f32 %v50, %v100
  %v104 = vmul.f32 %v89, -0.19134171
  %v105 = vmul.f32 %v90, -0.19134171
  %v106 = vmul.f32 %v91, -0.19134171
  %v107 = vadd.f32 %v54, %v104
  %v108 = vadd.f32 %v55, %v105
  %v109 = vadd.f32 %v56, %v106
  %v110 = vmul.f32 %v89, -0.49039263
  %v111 = vmul.f32 %v90, -0.49039263
  %v112 = vmul.f32 %v91, -0.49039263
  %v113 = vadd.f32 %v60, %v110
  %v114 = vadd.f32 %v61, %v111
  %v115 = vadd.f32 %v62, %v112
  %v116 = vmul.f32 %v89, -0.35355338
  %v117 = vmul.f32 %v90, -0.35355338
  %v118 = vmul.f32 %v91, -0.35355338
  %v119 = vadd.f32 %v66, %v116
  %v120 = vadd.f32 %v67, %v117
  %v121 = vadd.f32 %v68, %v118
  %v122 = vmul.f32 %v89, 0.09754516
  %v123 = vmul.f32 %v90, 0.09754516
  %v124 = vmul.f32 %v91, 0.09754516
  %v125 = vadd.f32 %v72, %v122
  %v126 = vadd.f32 %v73, %v123
  %v127 = vadd.f32 %v74, %v124
  %v128 = vmul.f32 %v89, 0.46193975
  %v129 = vmul.f32 %v90, 0.46193975
  %v130 = vmul.f32 %v91, 0.46193975
  %v131 = vadd.f32 %v78, %v128
  %v132 = vadd.f32 %v79, %v129
  %v133 = vadd.f32 %v80, %v130
  %v134 = vmul.f32 %v89, 0.4157348
  %v135 = vmul.f32 %v90, 0.4157348
  %v136 = vmul.f32 %v91, 0.4157348
  %v137 = vadd.f32 %v84, %v134
  %v138 = vadd.f32 %v85, %v135
  %v139 = vadd.f32 %v86, %v136
  %s140 = sadd.s32 %s8, 3
  %s141 = scalar_lea.vmem %s0, %s140
  %v142 = vld [vmem:[%s141] sm:$0xff]
  %v143 = vld [vmem:[%s141 + $0x8] sm:$0xff]
  %v144 = vld [vmem:[%s141 + $0x10] sm:$0x7f]
  %v145 = vmul.f32 %v142, 0.35355338
  %v146 = vmul.f32 %v143, 0.35355338
  %v147 = vmul.f32 %v144, 0.35355338
  %v148 = vadd.f32 %v95, %v145
  %v149 = vadd.f32 %v96, %v146
  %v150 = vadd.f32 %v97, %v147
  %v151 = vmul.f32 %v142, 0.09754516
  %v152 = vmul.f32 %v143, 0.09754516
  %v153 = vmul.f32 %v144, 0.09754516
  %v154 = vadd.f32 %v101, %v151
  %v155 = vadd.f32 %v102, %v152
  %v156 = vadd.f32 %v103, %v153
  %v157 = vmul.f32 %v142, -0.46193975
  %v158 = vmul.f32 %v143, -0.46193975
  %v159 = vmul.f32 %v144, -0.46193975
  %v160 = vadd.f32 %v107, %v157
  %v161 = vadd.f32 %v108, %v158
  %v162 = vadd.f32 %v109, %v159
  %v163 = vmul.f32 %v142, -0.27778512
  %v164 = vmul.f32 %v143, -0.27778512
  %v165 = vmul.f32 %v144, -0.27778512
  %v166 = vadd.f32 %v113, %v163
  %v167 = vadd.f32 %v114, %v164
  %v168 = vadd.f32 %v115, %v165
  %v169 = vadd.f32 %v119, %v145
  %v170 = vadd.f32 %v120, %v146
  %v171 = vadd.f32 %v121, %v147
  %v172 = vmul.f32 %v142, 0.4157348
  %v173 = vmul.f32 %v143, 0.4157348
  %v174 = vmul.f32 %v144, 0.4157348
  %v175 = vadd.f32 %v125, %v172
  %v176 = vadd.f32 %v126, %v173
  %v177 = vadd.f32 %v127, %v174
  %v178 = vmul.f32 %v142, -0.19134171
  %v179 = vmul.f32 %v143, -0.19134171
  %v180 = vmul.f32 %v144, -0.19134171
  %v181 = vadd.f32 %v131, %v178
  %v182 = vadd.f32 %v132, %v179
  %v183 = vadd.f32 %v133, %v180
  %v184 = vmul.f32 %v142, -0.49039263
  %v185 = vmul.f32 %v143, -0.49039263
  %v186 = vmul.f32 %v144, -0.49039263
  %v187 = vadd.f32 %v137, %v184
  %v188 = vadd.f32 %v138, %v185
  %v189 = vadd.f32 %v139, %v186
  %s190 = sadd.s32 %s8, 4
  %s191 = scalar_lea.vmem %s0, %s190
  %v192 = vld [vmem:[%s191] sm:$0xff]
  %v193 = vld [vmem:[%s191 + $0x8] sm:$0xff]
  %v194 = vld [vmem:[%s191 + $0x10] sm:$0x7f]
  %v195 = vmul.f32 %v192, 0.35355338
  %v196 = vmul.f32 %v193, 0.35355338
  %v197 = vmul.f32 %v194, 0.35355338
  %v198 = vadd.f32 %v148, %v195
  %v199 = vadd.f32 %v149, %v196
  %v200 = vadd.f32 %v150, %v197
  %v201 = vmul.f32 %v192, -0.09754516
  %v202 = vmul.f32 %v193, -0.09754516
  %v203 = vmul.f32 %v194, -0.09754516
  %v204 = vadd.f32 %v154, %v201
  %v205 = vadd.f32 %v155, %v202
  %v206 = vadd.f32 %v156, %v203
  %v207 = vmul.f32 %v192, -0.46193975
  %v208 = vmul.f32 %v193, -0.46193975
  %v209 = vmul.f32 %v194, -0.46193975
  %v210 = vadd.f32 %v160, %v207
  %v211 = vadd.f32 %v161, %v208
  %v212 = vadd.f32 %v162, %v209
  %v213 = vmul.f32 %v192, 0.27778512
  %v214 = vmul.f32 %v193, 0.27778512
  %v215 = vmul.f32 %v194, 0.27778512
  %v216 = vadd.f32 %v166, %v213
  %v217 = vadd.f32 %v167, %v214
  %v218 = vadd.f32 %v168, %v215
  %v219 = vadd.f32 %v169, %v195
  %v220 = vadd.f32 %v170, %v196
  %v221 = vadd.f32 %v171, %v197
  %v222 = vmul.f32 %v192, -0.4157348
  %v223 = vmul.f32 %v193, -0.4157348
  %v224 = vmul.f32 %v194, -0.4157348
  %v225 = vadd.f32 %v175, %v222
  %v226 = vadd.f32 %v176, %v223
  %v227 = vadd.f32 %v177, %v224
  %v228 = vmul.f32 %v192, -0.19134171
  %v229 = vmul.f32 %v193, -0.19134171
  %v230 = vmul.f32 %v194, -0.19134171
  %v231 = vadd.f32 %v181, %v228
  %v232 = vadd.f32 %v182, %v229
  %v233 = vadd.f32 %v183, %v230
  %v234 = vmul.f32 %v192, 0.49039263
  %v235 = vmul.f32 %v193, 0.49039263
  %v236 = vmul.f32 %v194, 0.49039263
  %v237 = vadd.f32 %v187, %v234
  %v238 = vadd.f32 %v188, %v235
  %v239 = vadd.f32 %v189, %v236
  %s240 = sadd.s32 %s8, 5
  %s241 = scalar_lea.vmem %s0, %s240
  %v242 = vld [vmem:[%s241] sm:$0xff]
  %v243 = vld [vmem:[%s241 + $0x8] sm:$0xff]
  %v244 = vld [vmem:[%s241 + $0x10] sm:$0x7f]
  %v245 = vmul.f32 %v242, 0.35355338
  %v246 = vmul.f32 %v243, 0.35355338
  %v247 = vmul.f32 %v244, 0.35355338
  %v248 = vadd.f32 %v198, %v245
  %v249 = vadd.f32 %v199, %v246
  %v250 = vadd.f32 %v200, %v247
  %v251 = vmul.f32 %v242, -0.27778512
  %v252 = vmul.f32 %v243, -0.27778512
  %v253 = vmul.f32 %v244, -0.27778512
  %v254 = vadd.f32 %v204, %v251
  %v255 = vadd.f32 %v205, %v252
  %v256 = vadd.f32 %v206, %v253
  %v257 = vmul.f32 %v242, -0.19134171
  %v258 = vmul.f32 %v243, -0.19134171
  %v259 = vmul.f32 %v244, -0.19134171
  %v260 = vadd.f32 %v210, %v257
  %v261 = vadd.f32 %v211, %v258
  %v262 = vadd.f32 %v212, %v259
  %v263 = vmul.f32 %v242, 0.49039263
  %v264 = vmul.f32 %v243, 0.49039263
  %v265 = vmul.f32 %v244, 0.49039263
  %v266 = vadd.f32 %v216, %v263
  %v267 = vadd.f32 %v217, %v264
  %v268 = vadd.f32 %v218, %v265
  %v269 = vmul.f32 %v242, -0.35355338
  %v270 = vmul.f32 %v243, -0.35355338
  %v271 = vmul.f32 %v244, -0.35355338
  %v272 = vadd.f32 %v219, %v269
  %v273 = vadd.f32 %v220, %v270
  %v274 = vadd.f32 %v221, %v271
  %v275 = vmul.f32 %v242, -0.09754516
  %v276 = vmul.f32 %v243, -0.09754516
  %v277 = vmul.f32 %v244, -0.09754516
  %v278 = vadd.f32 %v225, %v275
  %v279 = vadd.f32 %v226, %v276
  %v280 = vadd.f32 %v227, %v277
  %v281 = vmul.f32 %v242, 0.46193975
  %v282 = vmul.f32 %v243, 0.46193975
  %v283 = vmul.f32 %v244, 0.46193975
  %v284 = vadd.f32 %v231, %v281
  %v285 = vadd.f32 %v232, %v282
  %v286 = vadd.f32 %v233, %v283
  %v287 = vmul.f32 %v242, -0.4157348
  %v288 = vmul.f32 %v243, -0.4157348
  %v289 = vmul.f32 %v244, -0.4157348
  %v290 = vadd.f32 %v237, %v287
  %v291 = vadd.f32 %v238, %v288
  %v292 = vadd.f32 %v239, %v289
  %s293 = sadd.s32 %s8, 6
  %s294 = scalar_lea.vmem %s0, %s293
  %v295 = vld [vmem:[%s294] sm:$0xff]
  %v296 = vld [vmem:[%s294 + $0x8] sm:$0xff]
  %v297 = vld [vmem:[%s294 + $0x10] sm:$0x7f]
  %v298 = vmul.f32 %v295, 0.35355338
  %v299 = vmul.f32 %v296, 0.35355338
  %v300 = vmul.f32 %v297, 0.35355338
  %v301 = vadd.f32 %v248, %v298
  %v302 = vadd.f32 %v249, %v299
  %v303 = vadd.f32 %v250, %v300
  %v304 = vmul.f32 %v295, -0.4157348
  %v305 = vmul.f32 %v296, -0.4157348
  %v306 = vmul.f32 %v297, -0.4157348
  %v307 = vadd.f32 %v254, %v304
  %v308 = vadd.f32 %v255, %v305
  %v309 = vadd.f32 %v256, %v306
  %v310 = vmul.f32 %v295, 0.19134171
  %v311 = vmul.f32 %v296, 0.19134171
  %v312 = vmul.f32 %v297, 0.19134171
  %v313 = vadd.f32 %v260, %v310
  %v314 = vadd.f32 %v261, %v311
  %v315 = vadd.f32 %v262, %v312
  %v316 = vmul.f32 %v295, 0.09754516
  %v317 = vmul.f32 %v296, 0.09754516
  %v318 = vmul.f32 %v297, 0.09754516
  %v319 = vadd.f32 %v266, %v316
  %v320 = vadd.f32 %v267, %v317
  %v321 = vadd.f32 %v268, %v318
  %v322 = vmul.f32 %v295, -0.35355338
  %v323 = vmul.f32 %v296, -0.35355338
  %v324 = vmul.f32 %v297, -0.35355338
  %v325 = vadd.f32 %v272, %v322
  %v326 = vadd.f32 %v273, %v323
  %v327 = vadd.f32 %v274, %v324
  %v328 = vmul.f32 %v295, 0.49039263
  %v329 = vmul.f32 %v296, 0.49039263
  %v330 = vmul.f32 %v297, 0.49039263
  %v331 = vadd.f32 %v278, %v328
  %v332 = vadd.f32 %v279, %v329
  %v333 = vadd.f32 %v280, %v330
  %v334 = vmul.f32 %v295, -0.46193975
  %v335 = vmul.f32 %v296, -0.46193975
  %v336 = vmul.f32 %v297, -0.46193975
  %v337 = vadd.f32 %v284, %v334
  %v338 = vadd.f32 %v285, %v335
  %v339 = vadd.f32 %v286, %v336
  %v340 = vmul.f32 %v295, 0.27778512
  %v341 = vmul.f32 %v296, 0.27778512
  %v342 = vmul.f32 %v297, 0.27778512
  %v343 = vadd.f32 %v290, %v340
  %v344 = vadd.f32 %v291, %v341
  %v345 = vadd.f32 %v292, %v342
  %s346 = sadd.s32 %s8, 7
  %s347 = scalar_lea.vmem %s0, %s346
  %v348 = vld [vmem:[%s347] sm:$0xff]
  %v349 = vld [vmem:[%s347 + $0x8] sm:$0xff]
  %v350 = vld [vmem:[%s347 + $0x10] sm:$0x7f]
  %v351 = vmul.f32 %v348, 0.35355338
  %v352 = vmul.f32 %v349, 0.35355338
  %v353 = vmul.f32 %v350, 0.35355338
  %v354 = vadd.f32 %v301, %v351
  %v355 = vadd.f32 %v302, %v352
  %v356 = vadd.f32 %v303, %v353
  %v357 = vmul.f32 %v348, -0.49039263
  %v358 = vmul.f32 %v349, -0.49039263
  %v359 = vmul.f32 %v350, -0.49039263
  %v360 = vadd.f32 %v307, %v357
  %v361 = vadd.f32 %v308, %v358
  %v362 = vadd.f32 %v309, %v359
  %v363 = vmul.f32 %v348, 0.46193975
  %v364 = vmul.f32 %v349, 0.46193975
  %v365 = vmul.f32 %v350, 0.46193975
  %v366 = vadd.f32 %v313, %v363
  %v367 = vadd.f32 %v314, %v364
  %v368 = vadd.f32 %v315, %v365
  %v369 = vmul.f32 %v348, -0.4157348
  %v370 = vmul.f32 %v349, -0.4157348
  %v371 = vmul.f32 %v350, -0.4157348
  %v372 = vadd.f32 %v319, %v369
  %v373 = vadd.f32 %v320, %v370
  %v374 = vadd.f32 %v321, %v371
  %v375 = vadd.f32 %v325, %v351
  %v376 = vadd.f32 %v326, %v352
  %v377 = vadd.f32 %v327, %v353
  %v378 = vmul.f32 %v348, -0.27778512
  %v379 = vmul.f32 %v349, -0.27778512
  %v380 = vmul.f32 %v350, -0.27778512
  %v381 = vadd.f32 %v331, %v378
  %v382 = vadd.f32 %v332, %v379
  %v383 = vadd.f32 %v333, %v380
  %v384 = vmul.f32 %v348, 0.19134171
  %v385 = vmul.f32 %v349, 0.19134171
  %v386 = vmul.f32 %v350, 0.19134171
  %v387 = vadd.f32 %v337, %v384
  %v388 = vadd.f32 %v338, %v385
  %v389 = vadd.f32 %v339, %v386
  %v390 = vmul.f32 %v348, -0.09754516
  %v391 = vmul.f32 %v349, -0.09754516
  %v392 = vmul.f32 %v350, -0.09754516
  %v393 = vadd.f32 %v343, %v390
  %v394 = vadd.f32 %v344, %v391
  %v395 = vadd.f32 %v345, %v392
  %vm396 = vcmask 244736
  %397 = vst.msk [vmem:[#allocation2] sm:$0xff] %vm396, %v354
  %398 = vst.msk [vmem:[#allocation2 + $0x8] sm:$0xff] %vm396, %v355
  %vm399 = vcmask 243712
  %400 = vst.msk [vmem:[#allocation2 + $0x10] sm:$0x7f] %vm399, %v356
  %s401 = scalar_lea.vmem [#allocation2], 24
  %402 = vst.msk [vmem:[%s401] sm:$0xff] %vm396, %v360
  %403 = vst.msk [vmem:[%s401 + $0x8] sm:$0xff] %vm396, %v361
  %404 = vst.msk [vmem:[%s401 + $0x10] sm:$0x7f] %vm399, %v362
  %s405 = scalar_lea.vmem [#allocation2], 48
  %406 = vst.msk [vmem:[%s405] sm:$0xff] %vm396, %v366
  %407 = vst.msk [vmem:[%s405 + $0x8] sm:$0xff] %vm396, %v367
  %408 = vst.msk [vmem:[%s405 + $0x10] sm:$0x7f] %vm399, %v368
  %s409 = scalar_lea.vmem [#allocation2], 72
  %410 = vst.msk [vmem:[%s409] sm:$0xff] %vm396, %v372
  %411 = vst.msk [vmem:[%s409 + $0x8] sm:$0xff] %vm396, %v373
  %412 = vst.msk [vmem:[%s409 + $0x10] sm:$0x7f] %vm399, %v374
  %s413 = scalar_lea.vmem [#allocation2], 96
  %414 = vst.msk [vmem:[%s413] sm:$0xff] %vm396, %v375
  %415 = vst.msk [vmem:[%s413 + $0x8] sm:$0xff] %vm396, %v376
  %416 = vst.msk [vmem:[%s413 + $0x10] sm:$0x7f] %vm399, %v377
  %s417 = scalar_lea.vmem [#allocation2], 120
  %418 = vst.msk [vmem:[%s417] sm:$0xff] %vm396, %v381
  %419 = vst.msk [vmem:[%s417 + $0x8] sm:$0xff] %vm396, %v382
  %420 = vst.msk [vmem:[%s417 + $0x10] sm:$0x7f] %vm399, %v383
  %s421 = scalar_lea.vmem [#allocation2], 144
  %422 = vst.msk [vmem:[%s421] sm:$0xff] %vm396, %v387
  %423 = vst.msk [vmem:[%s421 + $0x8] sm:$0xff] %vm396, %v388
  %424 = vst.msk [vmem:[%s421 + $0x10] sm:$0x7f] %vm399, %v389
  %s425 = scalar_lea.vmem [#allocation2], 168
  %426 = vst.msk [vmem:[%s425] sm:$0xff] %vm396, %v393
  %427 = vst.msk [vmem:[%s425 + $0x8] sm:$0xff] %vm396, %v394
  %428 = vst.msk [vmem:[%s425 + $0x10] sm:$0x7f] %vm399, %v395
  %v429 = vld [vmem:[#allocation2] sm:$0xff]
  %v430 = vld [vmem:[#allocation2 + $0x8] sm:$0xff]
  %v431 = vld [vmem:[#allocation2 + $0x10] sm:$0x7f]
  %v432 = vmul.f32 %v429, 0.35355338
  %v433 = vmul.f32 %v430, 0.35355338
  %v434 = vmul.f32 %v431, 0.35355338
  %v435 = vmul.f32 %v429, 0.49039263
  %v436 = vmul.f32 %v430, 0.49039263
  %v437 = vmul.f32 %v431, 0.49039263
  %v438 = vmul.f32 %v429, 0.46193975
  %v439 = vmul.f32 %v430, 0.46193975
  %v440 = vmul.f32 %v431, 0.46193975
  %v441 = vmul.f32 %v429, 0.4157348
  %v442 = vmul.f32 %v430, 0.4157348
  %v443 = vmul.f32 %v431, 0.4157348
  %v444 = vmul.f32 %v429, 0.27778512
  %v445 = vmul.f32 %v430, 0.27778512
  %v446 = vmul.f32 %v431, 0.27778512
  %v447 = vmul.f32 %v429, 0.19134171
  %v448 = vmul.f32 %v430, 0.19134171
  %v449 = vmul.f32 %v431, 0.19134171
  %v450 = vmul.f32 %v429, 0.09754516
  %v451 = vmul.f32 %v430, 0.09754516
  %v452 = vmul.f32 %v431, 0.09754516
  %456 = vrot.lane.b32.xlu0 %v432, 127
  %v457 = vpop.permute.xlu0 %456
  %458 = vrot.lane.b32.xlu0 %v433, 127
  %v459 = vpop.permute.xlu0 %458
  %460 = vrot.lane.b32.xlu0 %v434, 127
  %v461 = vpop.permute.xlu0 %460
  %v465 = vadd.f32 %v432, %v457
  %v466 = vadd.f32 %v433, %v459
  %v467 = vadd.f32 %v434, %v461
  %471 = vrot.lane.b32.xlu0 %v441, 127
  %v472 = vpop.permute.xlu0 %471
  %473 = vrot.lane.b32.xlu0 %v442, 127
  %v474 = vpop.permute.xlu0 %473
  %475 = vrot.lane.b32.xlu0 %v443, 127
  %v476 = vpop.permute.xlu0 %475
  %v480 = vadd.f32 %v435, %v472
  %v481 = vadd.f32 %v436, %v474
  %v482 = vadd.f32 %v437, %v476
  %486 = vrot.lane.b32.xlu0 %v447, 127
  %v487 = vpop.permute.xlu0 %486
  %488 = vrot.lane.b32.xlu0 %v448, 127
  %v489 = vpop.permute.xlu0 %488
  %490 = vrot.lane.b32.xlu0 %v449, 127
  %v491 = vpop.permute.xlu0 %490
  %v495 = vadd.f32 %v438, %v487
  %v496 = vadd.f32 %v439, %v489
  %v497 = vadd.f32 %v440, %v491
  %v498 = vmul.f32 %v429, -0.09754516
  %v499 = vmul.f32 %v430, -0.09754516
  %v500 = vmul.f32 %v431, -0.09754516
  %504 = vrot.lane.b32.xlu0 %v498, 127
  %v505 = vpop.permute.xlu0 %504
  %506 = vrot.lane.b32.xlu0 %v499, 127
  %v507 = vpop.permute.xlu0 %506
  %508 = vrot.lane.b32.xlu0 %v500, 127
  %v509 = vpop.permute.xlu0 %508
  %v513 = vadd.f32 %v441, %v505
  %v514 = vadd.f32 %v442, %v507
  %v515 = vadd.f32 %v443, %v509
  %v516 = vmul.f32 %v429, -0.35355338
  %v517 = vmul.f32 %v430, -0.35355338
  %v518 = vmul.f32 %v431, -0.35355338
  %522 = vrot.lane.b32.xlu0 %v516, 127
  %v523 = vpop.permute.xlu0 %522
  %524 = vrot.lane.b32.xlu0 %v517, 127
  %v525 = vpop.permute.xlu0 %524
  %526 = vrot.lane.b32.xlu0 %v518, 127
  %v527 = vpop.permute.xlu0 %526
  %v531 = vadd.f32 %v432, %v523
  %v532 = vadd.f32 %v433, %v525
  %v533 = vadd.f32 %v434, %v527
  %v534 = vmul.f32 %v429, -0.49039263
  %v535 = vmul.f32 %v430, -0.49039263
  %v536 = vmul.f32 %v431, -0.49039263
  %540 = vrot.lane.b32.xlu0 %v534, 127
  %v541 = vpop.permute.xlu0 %540
  %542 = vrot.lane.b32.xlu0 %v535, 127
  %v543 = vpop.permute.xlu0 %542
  %544 = vrot.lane.b32.xlu0 %v536, 127
  %v545 = vpop.permute.xlu0 %544
  %v549 = vadd.f32 %v444, %v541
  %v550 = vadd.f32 %v445, %v543
  %v551 = vadd.f32 %v446, %v545
  %v552 = vmul.f32 %v429, -0.46193975
  %v553 = vmul.f32 %v430, -0.46193975
  %v554 = vmul.f32 %v431, -0.46193975
  %558 = vrot.lane.b32.xlu0 %v552, 127
  %v559 = vpop.permute.xlu0 %558
  %560 = vrot.lane.b32.xlu0 %v553, 127
  %v561 = vpop.permute.xlu0 %560
  %562 = vrot.lane.b32.xlu0 %v554, 127
  %v563 = vpop.permute.xlu0 %562
  %v567 = vadd.f32 %v447, %v559
  %v568 = vadd.f32 %v448, %v561
  %v569 = vadd.f32 %v449, %v563
  %v570 = vmul.f32 %v429, -0.27778512
  %v571 = vmul.f32 %v430, -0.27778512
  %v572 = vmul.f32 %v431, -0.27778512
  %576 = vrot.lane.b32.xlu0 %v570, 127
  %v577 = vpop.permute.xlu0 %576
  %578 = vrot.lane.b32.xlu0 %v571, 127
  %v579 = vpop.permute.xlu0 %578
  %580 = vrot.lane.b32.xlu0 %v572, 127
  %v581 = vpop.permute.xlu0 %580
  %v585 = vadd.f32 %v450, %v577
  %v586 = vadd.f32 %v451, %v579
  %v587 = vadd.f32 %v452, %v581
  %588 = vrot.lane.b32.xlu0 %v432, 126
  %v589 = vpop.permute.xlu0 %588
  %590 = vrot.lane.b32.xlu0 %v433, 126
  %v591 = vpop.permute.xlu0 %590
  %592 = vrot.lane.b32.xlu0 %v434, 126
  %v593 = vpop.permute.xlu0 %592
  %v597 = vadd.f32 %v465, %v589
  %v598 = vadd.f32 %v466, %v591
  %v599 = vadd.f32 %v467, %v593
  %603 = vrot.lane.b32.xlu0 %v444, 126
  %v604 = vpop.permute.xlu0 %603
  %605 = vrot.lane.b32.xlu0 %v445, 126
  %v606 = vpop.permute.xlu0 %605
  %607 = vrot.lane.b32.xlu0 %v446, 126
  %v608 = vpop.permute.xlu0 %607
  %v612 = vadd.f32 %v480, %v604
  %v613 = vadd.f32 %v481, %v606
  %v614 = vadd.f32 %v482, %v608
  %v615 = vmul.f32 %v429, -0.19134171
  %v616 = vmul.f32 %v430, -0.19134171
  %v617 = vmul.f32 %v431, -0.19134171
  %621 = vrot.lane.b32.xlu0 %v615, 126
  %v622 = vpop.permute.xlu0 %621
  %623 = vrot.lane.b32.xlu0 %v616, 126
  %v624 = vpop.permute.xlu0 %623
  %625 = vrot.lane.b32.xlu0 %v617, 126
  %v626 = vpop.permute.xlu0 %625
  %v630 = vadd.f32 %v495, %v622
  %v631 = vadd.f32 %v496, %v624
  %v632 = vadd.f32 %v497, %v626
  %633 = vrot.lane.b32.xlu0 %v534, 126
  %v634 = vpop.permute.xlu0 %633
  %635 = vrot.lane.b32.xlu0 %v535, 126
  %v636 = vpop.permute.xlu0 %635
  %637 = vrot.lane.b32.xlu0 %v536, 126
  %v638 = vpop.permute.xlu0 %637
  %v642 = vadd.f32 %v513, %v634
  %v643 = vadd.f32 %v514, %v636
  %v644 = vadd.f32 %v515, %v638
  %645 = vrot.lane.b32.xlu0 %v516, 126
  %v646 = vpop.permute.xlu0 %645
  %647 = vrot.lane.b32.xlu0 %v517, 126
  %v648 = vpop.permute.xlu0 %647
  %649 = vrot.lane.b32.xlu0 %v518, 126
  %v650 = vpop.permute.xlu0 %649
  %v654 = vadd.f32 %v531, %v646
  %v655 = vadd.f32 %v532, %v648
  %v656 = vadd.f32 %v533, %v650
  %660 = vrot.lane.b32.xlu0 %v450, 126
  %v661 = vpop.permute.xlu0 %660
  %662 = vrot.lane.b32.xlu0 %v451, 126
  %v663 = vpop.permute.xlu0 %662
  %664 = vrot.lane.b32.xlu0 %v452, 126
  %v665 = vpop.permute.xlu0 %664
  %v669 = vadd.f32 %v549, %v661
  %v670 = vadd.f32 %v550, %v663
  %v671 = vadd.f32 %v551, %v665
  %675 = vrot.lane.b32.xlu0 %v438, 126
  %v676 = vpop.permute.xlu0 %675
  %677 = vrot.lane.b32.xlu0 %v439, 126
  %v678 = vpop.permute.xlu0 %677
  %679 = vrot.lane.b32.xlu0 %v440, 126
  %v680 = vpop.permute.xlu0 %679
  %v684 = vadd.f32 %v567, %v676
  %v685 = vadd.f32 %v568, %v678
  %v686 = vadd.f32 %v569, %v680
  %687 = vrot.lane.b32.xlu0 %v441, 126
  %v688 = vpop.permute.xlu0 %687
  %689 = vrot.lane.b32.xlu0 %v442, 126
  %v690 = vpop.permute.xlu0 %689
  %691 = vrot.lane.b32.xlu0 %v443, 126
  %v692 = vpop.permute.xlu0 %691
  %v696 = vadd.f32 %v585, %v688
  %v697 = vadd.f32 %v586, %v690
  %v698 = vadd.f32 %v587, %v692
  %699 = vrot.lane.b32.xlu0 %v432, 125
  %v700 = vpop.permute.xlu0 %699
  %701 = vrot.lane.b32.xlu0 %v433, 125
  %v702 = vpop.permute.xlu0 %701
  %703 = vrot.lane.b32.xlu0 %v434, 125
  %v704 = vpop.permute.xlu0 %703
  %v708 = vadd.f32 %v597, %v700
  %v709 = vadd.f32 %v598, %v702
  %v710 = vadd.f32 %v599, %v704
  %711 = vrot.lane.b32.xlu0 %v450, 125
  %v712 = vpop.permute.xlu0 %711
  %713 = vrot.lane.b32.xlu0 %v451, 125
  %v714 = vpop.permute.xlu0 %713
  %715 = vrot.lane.b32.xlu0 %v452, 125
  %v716 = vpop.permute.xlu0 %715
  %v720 = vadd.f32 %v612, %v712
  %v721 = vadd.f32 %v613, %v714
  %v722 = vadd.f32 %v614, %v716
  %723 = vrot.lane.b32.xlu0 %v552, 125
  %v724 = vpop.permute.xlu0 %723
  %725 = vrot.lane.b32.xlu0 %v553, 125
  %v726 = vpop.permute.xlu0 %725
  %727 = vrot.lane.b32.xlu0 %v554, 125
  %v728 = vpop.permute.xlu0 %727
  %v732 = vadd.f32 %v630, %v724
  %v733 = vadd.f32 %v631, %v726
  %v734 = vadd.f32 %v632, %v728
  %735 = vrot.lane.b32.xlu0 %v570, 125
  %v736 = vpop.permute.xlu0 %735
  %737 = vrot.lane.b32.xlu0 %v571, 125
  %v738 = vpop.permute.xlu0 %737
  %739 = vrot.lane.b32.xlu0 %v572, 125
  %v740 = vpop.permute.xlu0 %739
  %v744 = vadd.f32 %v642, %v736
  %v745 = vadd.f32 %v643, %v738
  %v746 = vadd.f32 %v644, %v740
  %v747 = vadd.f32 %v654, %v700
  %v748 = vadd.f32 %v655, %v702
  %v749 = vadd.f32 %v656, %v704
  %750 = vrot.lane.b32.xlu0 %v441, 125
  %v751 = vpop.permute.xlu0 %750
  %752 = vrot.lane.b32.xlu0 %v442, 125
  %v753 = vpop.permute.xlu0 %752
  %754 = vrot.lane.b32.xlu0 %v443, 125
  %v755 = vpop.permute.xlu0 %754
  %v759 = vadd.f32 %v669, %v751
  %v760 = vadd.f32 %v670, %v753
  %v761 = vadd.f32 %v671, %v755
  %762 = vrot.lane.b32.xlu0 %v615, 125
  %v763 = vpop.permute.xlu0 %762
  %764 = vrot.lane.b32.xlu0 %v616, 125
  %v765 = vpop.permute.xlu0 %764
  %766 = vrot.lane.b32.xlu0 %v617, 125
  %v767 = vpop.permute.xlu0 %766
  %v771 = vadd.f32 %v684, %v763
  %v772 = vadd.f32 %v685, %v765
  %v773 = vadd.f32 %v686, %v767
  %774 = vrot.lane.b32.xlu0 %v534, 125
  %v775 = vpop.permute.xlu0 %774
  %776 = vrot.lane.b32.xlu0 %v535, 125
  %v777 = vpop.permute.xlu0 %776
  %778 = vrot.lane.b32.xlu0 %v536, 125
  %v779 = vpop.permute.xlu0 %778
  %v783 = vadd.f32 %v696, %v775
  %v784 = vadd.f32 %v697, %v777
  %v785 = vadd.f32 %v698, %v779
  %786 = vrot.lane.b32.xlu0 %v432, 124
  %v787 = vpop.permute.xlu0 %786
  %788 = vrot.lane.b32.xlu0 %v433, 124
  %v789 = vpop.permute.xlu0 %788
  %790 = vrot.lane.b32.xlu0 %v434, 124
  %v791 = vpop.permute.xlu0 %790
  %v795 = vadd.f32 %v708, %v787
  %v796 = vadd.f32 %v709, %v789
  %v797 = vadd.f32 %v710, %v791
  %798 = vrot.lane.b32.xlu0 %v498, 124
  %v799 = vpop.permute.xlu0 %798
  %800 = vrot.lane.b32.xlu0 %v499, 124
  %v801 = vpop.permute.xlu0 %800
  %802 = vrot.lane.b32.xlu0 %v500, 124
  %v803 = vpop.permute.xlu0 %802
  %v807 = vadd.f32 %v720, %v799
  %v808 = vadd.f32 %v721, %v801
  %v809 = vadd.f32 %v722, %v803
  %810 = vrot.lane.b32.xlu0 %v552, 124
  %v811 = vpop.permute.xlu0 %810
  %812 = vrot.lane.b32.xlu0 %v553, 124
  %v813 = vpop.permute.xlu0 %812
  %814 = vrot.lane.b32.xlu0 %v554, 124
  %v815 = vpop.permute.xlu0 %814
  %v819 = vadd.f32 %v732, %v811
  %v820 = vadd.f32 %v733, %v813
  %v821 = vadd.f32 %v734, %v815
  %822 = vrot.lane.b32.xlu0 %v444, 124
  %v823 = vpop.permute.xlu0 %822
  %824 = vrot.lane.b32.xlu0 %v445, 124
  %v825 = vpop.permute.xlu0 %824
  %826 = vrot.lane.b32.xlu0 %v446, 124
  %v827 = vpop.permute.xlu0 %826
  %v831 = vadd.f32 %v744, %v823
  %v832 = vadd.f32 %v745, %v825
  %v833 = vadd.f32 %v746, %v827
  %v834 = vadd.f32 %v747, %v787
  %v835 = vadd.f32 %v748, %v789
  %v836 = vadd.f32 %v749, %v791
  %v837 = vmul.f32 %v429, -0.4157348
  %v838 = vmul.f32 %v430, -0.4157348
  %v839 = vmul.f32 %v431, -0.4157348
  %843 = vrot.lane.b32.xlu0 %v837, 124
  %v844 = vpop.permute.xlu0 %843
  %845 = vrot.lane.b32.xlu0 %v838, 124
  %v846 = vpop.permute.xlu0 %845
  %847 = vrot.lane.b32.xlu0 %v839, 124
  %v848 = vpop.permute.xlu0 %847
  %v852 = vadd.f32 %v759, %v844
  %v853 = vadd.f32 %v760, %v846
  %v854 = vadd.f32 %v761, %v848
  %855 = vrot.lane.b32.xlu0 %v615, 124
  %v856 = vpop.permute.xlu0 %855
  %857 = vrot.lane.b32.xlu0 %v616, 124
  %v858 = vpop.permute.xlu0 %857
  %859 = vrot.lane.b32.xlu0 %v617, 124
  %v860 = vpop.permute.xlu0 %859
  %v864 = vadd.f32 %v771, %v856
  %v865 = vadd.f32 %v772, %v858
  %v866 = vadd.f32 %v773, %v860
  %870 = vrot.lane.b32.xlu0 %v435, 124
  %v871 = vpop.permute.xlu0 %870
  %872 = vrot.lane.b32.xlu0 %v436, 124
  %v873 = vpop.permute.xlu0 %872
  %874 = vrot.lane.b32.xlu0 %v437, 124
  %v875 = vpop.permute.xlu0 %874
  %v879 = vadd.f32 %v783, %v871
  %v880 = vadd.f32 %v784, %v873
  %v881 = vadd.f32 %v785, %v875
  %882 = vrot.lane.b32.xlu0 %v432, 123
  %v883 = vpop.permute.xlu0 %882
  %884 = vrot.lane.b32.xlu0 %v433, 123
  %v885 = vpop.permute.xlu0 %884
  %886 = vrot.lane.b32.xlu0 %v434, 123
  %v887 = vpop.permute.xlu0 %886
  %v891 = vadd.f32 %v795, %v883
  %v892 = vadd.f32 %v796, %v885
  %v893 = vadd.f32 %v797, %v887
  %894 = vrot.lane.b32.xlu0 %v570, 123
  %v895 = vpop.permute.xlu0 %894
  %896 = vrot.lane.b32.xlu0 %v571, 123
  %v897 = vpop.permute.xlu0 %896
  %898 = vrot.lane.b32.xlu0 %v572, 123
  %v899 = vpop.permute.xlu0 %898
  %v903 = vadd.f32 %v807, %v895
  %v904 = vadd.f32 %v808, %v897
  %v905 = vadd.f32 %v809, %v899
  %906 = vrot.lane.b32.xlu0 %v615, 123
  %v907 = vpop.permute.xlu0 %906
  %908 = vrot.lane.b32.xlu0 %v616, 123
  %v909 = vpop.permute.xlu0 %908
  %910 = vrot.lane.b32.xlu0 %v617, 123
  %v911 = vpop.permute.xlu0 %910
  %v915 = vadd.f32 %v819, %v907
  %v916 = vadd.f32 %v820, %v909
  %v917 = vadd.f32 %v821, %v911
  %918 = vrot.lane.b32.xlu0 %v435, 123
  %v919 = vpop.permute.xlu0 %918
  %920 = vrot.lane.b32.xlu0 %v436, 123
  %v921 = vpop.permute.xlu0 %920
  %922 = vrot.lane.b32.xlu0 %v437, 123
  %v923 = vpop.permute.xlu0 %922
  %v927 = vadd.f32 %v831, %v919
  %v928 = vadd.f32 %v832, %v921
  %v929 = vadd.f32 %v833, %v923
  %930 = vrot.lane.b32.xlu0 %v516, 123
  %v931 = vpop.permute.xlu0 %930
  %932 = vrot.lane.b32.xlu0 %v517, 123
  %v933 = vpop.permute.xlu0 %932
  %934 = vrot.lane.b32.xlu0 %v518, 123
  %v935 = vpop.permute.xlu0 %934
  %v939 = vadd.f32 %v834, %v931
  %v940 = vadd.f32 %v835, %v933
  %v941 = vadd.f32 %v836, %v935
  %942 = vrot.lane.b32.xlu0 %v498, 123
  %v943 = vpop.permute.xlu0 %942
  %944 = vrot.lane.b32.xlu0 %v499, 123
  %v945 = vpop.permute.xlu0 %944
  %946 = vrot.lane.b32.xlu0 %v500, 123
  %v947 = vpop.permute.xlu0 %946
  %v951 = vadd.f32 %v852, %v943
  %v952 = vadd.f32 %v853, %v945
  %v953 = vadd.f32 %v854, %v947
  %954 = vrot.lane.b32.xlu0 %v438, 123
  %v955 = vpop.permute.xlu0 %954
  %956 = vrot.lane.b32.xlu0 %v439, 123
  %v957 = vpop.permute.xlu0 %956
  %958 = vrot.lane.b32.xlu0 %v440, 123
  %v959 = vpop.permute.xlu0 %958
  %v963 = vadd.f32 %v864, %v955
  %v964 = vadd.f32 %v865, %v957
  %v965 = vadd.f32 %v866, %v959
  %966 = vrot.lane.b32.xlu0 %v837, 123
  %v967 = vpop.permute.xlu0 %966
  %968 = vrot.lane.b32.xlu0 %v838, 123
  %v969 = vpop.permute.xlu0 %968
  %970 = vrot.lane.b32.xlu0 %v839, 123
  %v971 = vpop.permute.xlu0 %970
  %v975 = vadd.f32 %v879, %v967
  %v976 = vadd.f32 %v880, %v969
  %v977 = vadd.f32 %v881, %v971
  %978 = vrot.lane.b32.xlu0 %v432, 122
  %v979 = vpop.permute.xlu0 %978
  %980 = vrot.lane.b32.xlu0 %v433, 122
  %v981 = vpop.permute.xlu0 %980
  %982 = vrot.lane.b32.xlu0 %v434, 122
  %v983 = vpop.permute.xlu0 %982
  %v987 = vadd.f32 %v891, %v979
  %v988 = vadd.f32 %v892, %v981
  %v989 = vadd.f32 %v893, %v983
  %990 = vrot.lane.b32.xlu0 %v837, 122
  %v991 = vpop.permute.xlu0 %990
  %992 = vrot.lane.b32.xlu0 %v838, 122
  %v993 = vpop.permute.xlu0 %992
  %994 = vrot.lane.b32.xlu0 %v839, 122
  %v995 = vpop.permute.xlu0 %994
  %v999 = vadd.f32 %v903, %v991
  %v1000 = vadd.f32 %v904, %v993
  %v1001 = vadd.f32 %v905, %v995
  %1002 = vrot.lane.b32.xlu0 %v447, 122
  %v1003 = vpop.permute.xlu0 %1002
  %1004 = vrot.lane.b32.xlu0 %v448, 122
  %v1005 = vpop.permute.xlu0 %1004
  %1006 = vrot.lane.b32.xlu0 %v449, 122
  %v1007 = vpop.permute.xlu0 %1006
  %v1011 = vadd.f32 %v915, %v1003
  %v1012 = vadd.f32 %v916, %v1005
  %v1013 = vadd.f32 %v917, %v1007
  %1014 = vrot.lane.b32.xlu0 %v450, 122
  %v1015 = vpop.permute.xlu0 %1014
  %1016 = vrot.lane.b32.xlu0 %v451, 122
  %v1017 = vpop.permute.xlu0 %1016
  %1018 = vrot.lane.b32.xlu0 %v452, 122
  %v1019 = vpop.permute.xlu0 %1018
  %v1023 = vadd.f32 %v927, %v1015
  %v1024 = vadd.f32 %v928, %v1017
  %v1025 = vadd.f32 %v929, %v1019
  %1026 = vrot.lane.b32.xlu0 %v516, 122
  %v1027 = vpop.permute.xlu0 %1026
  %1028 = vrot.lane.b32.xlu0 %v517, 122
  %v1029 = vpop.permute.xlu0 %1028
  %1030 = vrot.lane.b32.xlu0 %v518, 122
  %v1031 = vpop.permute.xlu0 %1030
  %v1035 = vadd.f32 %v939, %v1027
  %v1036 = vadd.f32 %v940, %v1029
  %v1037 = vadd.f32 %v941, %v1031
  %1038 = vrot.lane.b32.xlu0 %v435, 122
  %v1039 = vpop.permute.xlu0 %1038
  %1040 = vrot.lane.b32.xlu0 %v436, 122
  %v1041 = vpop.permute.xlu0 %1040
  %1042 = vrot.lane.b32.xlu0 %v437, 122
  %v1043 = vpop.permute.xlu0 %1042
  %v1047 = vadd.f32 %v951, %v1039
  %v1048 = vadd.f32 %v952, %v1041
  %v1049 = vadd.f32 %v953, %v1043
  %1050 = vrot.lane.b32.xlu0 %v552, 122
  %v1051 = vpop.permute.xlu0 %1050
  %1052 = vrot.lane.b32.xlu0 %v553, 122
  %v1053 = vpop.permute.xlu0 %1052
  %1054 = vrot.lane.b32.xlu0 %v554, 122
  %v1055 = vpop.permute.xlu0 %1054
  %v1059 = vadd.f32 %v963, %v1051
  %v1060 = vadd.f32 %v964, %v1053
  %v1061 = vadd.f32 %v965, %v1055
  %1062 = vrot.lane.b32.xlu0 %v444, 122
  %v1063 = vpop.permute.xlu0 %1062
  %1064 = vrot.lane.b32.xlu0 %v445, 122
  %v1065 = vpop.permute.xlu0 %1064
  %1066 = vrot.lane.b32.xlu0 %v446, 122
  %v1067 = vpop.permute.xlu0 %1066
  %v1071 = vadd.f32 %v975, %v1063
  %v1072 = vadd.f32 %v976, %v1065
  %v1073 = vadd.f32 %v977, %v1067
  %1074 = vrot.lane.b32.xlu0 %v432, 121
  %v1075 = vpop.permute.xlu0 %1074
  %1076 = vrot.lane.b32.xlu0 %v433, 121
  %v1077 = vpop.permute.xlu0 %1076
  %1078 = vrot.lane.b32.xlu0 %v434, 121
  %v1079 = vpop.permute.xlu0 %1078
  %v1083 = vadd.f32 %v987, %v1075
  %v1084 = vadd.f32 %v988, %v1077
  %v1085 = vadd.f32 %v989, %v1079
  %1086 = vrot.lane.b32.xlu0 %v534, 121
  %v1087 = vpop.permute.xlu0 %1086
  %1088 = vrot.lane.b32.xlu0 %v535, 121
  %v1089 = vpop.permute.xlu0 %1088
  %1090 = vrot.lane.b32.xlu0 %v536, 121
  %v1091 = vpop.permute.xlu0 %1090
  %v1095 = vadd.f32 %v999, %v1087
  %v1096 = vadd.f32 %v1000, %v1089
  %v1097 = vadd.f32 %v1001, %v1091
  %1098 = vrot.lane.b32.xlu0 %v438, 121
  %v1099 = vpop.permute.xlu0 %1098
  %1100 = vrot.lane.b32.xlu0 %v439, 121
  %v1101 = vpop.permute.xlu0 %1100
  %1102 = vrot.lane.b32.xlu0 %v440, 121
  %v1103 = vpop.permute.xlu0 %1102
  %v1107 = vadd.f32 %v1011, %v1099
  %v1108 = vadd.f32 %v1012, %v1101
  %v1109 = vadd.f32 %v1013, %v1103
  %1110 = vrot.lane.b32.xlu0 %v837, 121
  %v1111 = vpop.permute.xlu0 %1110
  %1112 = vrot.lane.b32.xlu0 %v838, 121
  %v1113 = vpop.permute.xlu0 %1112
  %1114 = vrot.lane.b32.xlu0 %v839, 121
  %v1115 = vpop.permute.xlu0 %1114
  %v1119 = vadd.f32 %v1023, %v1111
  %v1120 = vadd.f32 %v1024, %v1113
  %v1121 = vadd.f32 %v1025, %v1115
  %v1122 = vadd.f32 %v1035, %v1075
  %v1123 = vadd.f32 %v1036, %v1077
  %v1124 = vadd.f32 %v1037, %v1079
  %1125 = vrot.lane.b32.xlu0 %v570, 121
  %v1126 = vpop.permute.xlu0 %1125
  %1127 = vrot.lane.b32.xlu0 %v571, 121
  %v1128 = vpop.permute.xlu0 %1127
  %1129 = vrot.lane.b32.xlu0 %v572, 121
  %v1130 = vpop.permute.xlu0 %1129
  %v1134 = vadd.f32 %v1047, %v1126
  %v1135 = vadd.f32 %v1048, %v1128
  %v1136 = vadd.f32 %v1049, %v1130
  %1137 = vrot.lane.b32.xlu0 %v447, 121
  %v1138 = vpop.permute.xlu0 %1137
  %1139 = vrot.lane.b32.xlu0 %v448, 121
  %v1140 = vpop.permute.xlu0 %1139
  %1141 = vrot.lane.b32.xlu0 %v449, 121
  %v1142 = vpop.permute.xlu0 %1141
  %v1146 = vadd.f32 %v1059, %v1138
  %v1147 = vadd.f32 %v1060, %v1140
  %v1148 = vadd.f32 %v1061, %v1142
  %1149 = vrot.lane.b32.xlu0 %v498, 121
  %v1150 = vpop.permute.xlu0 %1149
  %1151 = vrot.lane.b32.xlu0 %v499, 121
  %v1152 = vpop.permute.xlu0 %1151
  %1153 = vrot.lane.b32.xlu0 %v500, 121
  %v1154 = vpop.permute.xlu0 %1153
  %v1158 = vadd.f32 %v1071, %v1150
  %v1159 = vadd.f32 %v1072, %v1152
  %v1160 = vadd.f32 %v1073, %v1154
  %vm1161 = vcmask 187392
  %1162 = vst.msk [vmem:[%s1] sm:$0xff] %vm1161, %v1083
  %1163 = vst.msk [vmem:[%s1 + $0x8] sm:$0xff] %vm1161, %v1084
  %vm1164 = vcmask 186368
  %1165 = vst.msk [vmem:[%s1 + $0x10] sm:$0x7f] %vm1164, %v1085
  %s1166 = scalar_lea.vmem %s1, 48
  %1167 = vst.msk [vmem:[%s1166] sm:$0xff] %vm1161, %v1095
  %1168 = vst.msk [vmem:[%s1166 + $0x8] sm:$0xff] %vm1161, %v1096
  %1169 = vst.msk [vmem:[%s1166 + $0x10] sm:$0x7f] %vm1164, %v1097
  %s1170 = scalar_lea.vmem %s1, 120
  %1171 = vst.msk [vmem:[%s1170] sm:$0xff] %vm1161, %v1107
  %1172 = vst.msk [vmem:[%s1170 + $0x8] sm:$0xff] %vm1161, %v1108
  %1173 = vst.msk [vmem:[%s1170 + $0x10] sm:$0x7f] %vm1164, %v1109
  %s1174 = scalar_lea.vmem %s1, 216
  %1175 = vst.msk [vmem:[%s1174] sm:$0xff] %vm1161, %v1119
  %1176 = vst.msk [vmem:[%s1174 + $0x8] sm:$0xff] %vm1161, %v1120
  %1177 = vst.msk [vmem:[%s1174 + $0x10] sm:$0x7f] %vm1164, %v1121
  %s1178 = scalar_lea.vmem %s1, 336
  %1179 = vst.msk [vmem:[%s1178] sm:$0xff] %vm1161, %v1122
  %1180 = vst.msk [vmem:[%s1178 + $0x8] sm:$0xff] %vm1161, %v1123
  %1181 = vst.msk [vmem:[%s1178 + $0x10] sm:$0x7f] %vm1164, %v1124
  %s1182 = scalar_lea.vmem %s1, 480
  %1183 = vst.msk [vmem:[%s1182] sm:$0xff] %vm1161, %v1134
  %1184 = vst.msk [vmem:[%s1182 + $0x8] sm:$0xff] %vm1161, %v1135
  %1185 = vst.msk [vmem:[%s1182 + $0x10] sm:$0x7f] %vm1164, %v1136
  %s1186 = scalar_lea.vmem %s1, 648
  %1187 = vst.msk [vmem:[%s1186] sm:$0xff] %vm1161, %v1146
  %1188 = vst.msk [vmem:[%s1186 + $0x8] sm:$0xff] %vm1161, %v1147
  %1189 = vst.msk [vmem:[%s1186 + $0x10] sm:$0x7f] %vm1164, %v1148
  %s1190 = scalar_lea.vmem %s1, 840
  %1191 = vst.msk [vmem:[%s1190] sm:$0xff] %vm1161, %v1158
  %1192 = vst.msk [vmem:[%s1190 + $0x8] sm:$0xff] %vm1161, %v1159
  %1193 = vst.msk [vmem:[%s1190 + $0x10] sm:$0x7f] %vm1164, %v1160
  %v1194 = vld [vmem:[%s401] sm:$0xff]
  %v1195 = vld [vmem:[%s401 + $0x8] sm:$0xff]
  %v1196 = vld [vmem:[%s401 + $0x10] sm:$0x7f]
  %v1197 = vmul.f32 %v1194, 0.35355338
  %v1198 = vmul.f32 %v1195, 0.35355338
  %v1199 = vmul.f32 %v1196, 0.35355338
  %v1200 = vmul.f32 %v1194, 0.49039263
  %v1201 = vmul.f32 %v1195, 0.49039263
  %v1202 = vmul.f32 %v1196, 0.49039263
  %v1203 = vmul.f32 %v1194, 0.46193975
  %v1204 = vmul.f32 %v1195, 0.46193975
  %v1205 = vmul.f32 %v1196, 0.46193975
  %v1206 = vmul.f32 %v1194, 0.4157348
  %v1207 = vmul.f32 %v1195, 0.4157348
  %v1208 = vmul.f32 %v1196, 0.4157348
  %v1209 = vmul.f32 %v1194, 0.27778512
  %v1210 = vmul.f32 %v1195, 0.27778512
  %v1211 = vmul.f32 %v1196, 0.27778512
  %v1212 = vmul.f32 %v1194, 0.19134171
  %v1213 = vmul.f32 %v1195, 0.19134171
  %v1214 = vmul.f32 %v1196, 0.19134171
  %v1215 = vmul.f32 %v1194, 0.09754516
  %v1216 = vmul.f32 %v1195, 0.09754516
  %v1217 = vmul.f32 %v1196, 0.09754516
  %1221 = vrot.lane.b32.xlu0 %v1197, 127
  %v1222 = vpop.permute.xlu0 %1221
  %1223 = vrot.lane.b32.xlu0 %v1198, 127
  %v1224 = vpop.permute.xlu0 %1223
  %1225 = vrot.lane.b32.xlu0 %v1199, 127
  %v1226 = vpop.permute.xlu0 %1225
  %v1230 = vadd.f32 %v1197, %v1222
  %v1231 = vadd.f32 %v1198, %v1224
  %v1232 = vadd.f32 %v1199, %v1226
  %1236 = vrot.lane.b32.xlu0 %v1206, 127
  %v1237 = vpop.permute.xlu0 %1236
  %1238 = vrot.lane.b32.xlu0 %v1207, 127
  %v1239 = vpop.permute.xlu0 %1238
  %1240 = vrot.lane.b32.xlu0 %v1208, 127
  %v1241 = vpop.permute.xlu0 %1240
  %v1245 = vadd.f32 %v1200, %v1237
  %v1246 = vadd.f32 %v1201, %v1239
  %v1247 = vadd.f32 %v1202, %v1241
  %1251 = vrot.lane.b32.xlu0 %v1212, 127
  %v1252 = vpop.permute.xlu0 %1251
  %1253 = vrot.lane.b32.xlu0 %v1213, 127
  %v1254 = vpop.permute.xlu0 %1253
  %1255 = vrot.lane.b32.xlu0 %v1214, 127
  %v1256 = vpop.permute.xlu0 %1255
  %v1260 = vadd.f32 %v1203, %v1252
  %v1261 = vadd.f32 %v1204, %v1254
  %v1262 = vadd.f32 %v1205, %v1256
  %v1263 = vmul.f32 %v1194, -0.09754516
  %v1264 = vmul.f32 %v1195, -0.09754516
  %v1265 = vmul.f32 %v1196, -0.09754516
  %1269 = vrot.lane.b32.xlu0 %v1263, 127
  %v1270 = vpop.permute.xlu0 %1269
  %1271 = vrot.lane.b32.xlu0 %v1264, 127
  %v1272 = vpop.permute.xlu0 %1271
  %1273 = vrot.lane.b32.xlu0 %v1265, 127
  %v1274 = vpop.permute.xlu0 %1273
  %v1278 = vadd.f32 %v1206, %v1270
  %v1279 = vadd.f32 %v1207, %v1272
  %v1280 = vadd.f32 %v1208, %v1274
  %v1281 = vmul.f32 %v1194, -0.35355338
  %v1282 = vmul.f32 %v1195, -0.35355338
  %v1283 = vmul.f32 %v1196, -0.35355338
  %1287 = vrot.lane.b32.xlu0 %v1281, 127
  %v1288 = vpop.permute.xlu0 %1287
  %1289 = vrot.lane.b32.xlu0 %v1282, 127
  %v1290 = vpop.permute.xlu0 %1289
  %1291 = vrot.lane.b32.xlu0 %v1283, 127
  %v1292 = vpop.permute.xlu0 %1291
  %v1296 = vadd.f32 %v1197, %v1288
  %v1297 = vadd.f32 %v1198, %v1290
  %v1298 = vadd.f32 %v1199, %v1292
  %v1299 = vmul.f32 %v1194, -0.49039263
  %v1300 = vmul.f32 %v1195, -0.49039263
  %v1301 = vmul.f32 %v1196, -0.49039263
  %1305 = vrot.lane.b32.xlu0 %v1299, 127
  %v1306 = vpop.permute.xlu0 %1305
  %1307 = vrot.lane.b32.xlu0 %v1300, 127
  %v1308 = vpop.permute.xlu0 %1307
  %1309 = vrot.lane.b32.xlu0 %v1301, 127
  %v1310 = vpop.permute.xlu0 %1309
  %v1314 = vadd.f32 %v1209, %v1306
  %v1315 = vadd.f32 %v1210, %v1308
  %v1316 = vadd.f32 %v1211, %v1310
  %v1317 = vmul.f32 %v1194, -0.46193975
  %v1318 = vmul.f32 %v1195, -0.46193975
  %v1319 = vmul.f32 %v1196, -0.46193975
  %1323 = vrot.lane.b32.xlu0 %v1317, 127
  %v1324 = vpop.permute.xlu0 %1323
  %1325 = vrot.lane.b32.xlu0 %v1318, 127
  %v1326 = vpop.permute.xlu0 %1325
  %1327 = vrot.lane.b32.xlu0 %v1319, 127
  %v1328 = vpop.permute.xlu0 %1327
  %v1332 = vadd.f32 %v1212, %v1324
  %v1333 = vadd.f32 %v1213, %v1326
  %v1334 = vadd.f32 %v1214, %v1328
  %v1335 = vmul.f32 %v1194, -0.27778512
  %v1336 = vmul.f32 %v1195, -0.27778512
  %v1337 = vmul.f32 %v1196, -0.27778512
  %1341 = vrot.lane.b32.xlu0 %v1335, 127
  %v1342 = vpop.permute.xlu0 %1341
  %1343 = vrot.lane.b32.xlu0 %v1336, 127
  %v1344 = vpop.permute.xlu0 %1343
  %1345 = vrot.lane.b32.xlu0 %v1337, 127
  %v1346 = vpop.permute.xlu0 %1345
  %v1350 = vadd.f32 %v1215, %v1342
  %v1351 = vadd.f32 %v1216, %v1344
  %v1352 = vadd.f32 %v1217, %v1346
  %1353 = vrot.lane.b32.xlu0 %v1197, 126
  %v1354 = vpop.permute.xlu0 %1353
  %1355 = vrot.lane.b32.xlu0 %v1198, 126
  %v1356 = vpop.permute.xlu0 %1355
  %1357 = vrot.lane.b32.xlu0 %v1199, 126
  %v1358 = vpop.permute.xlu0 %1357
  %v1362 = vadd.f32 %v1230, %v1354
  %v1363 = vadd.f32 %v1231, %v1356
  %v1364 = vadd.f32 %v1232, %v1358
  %1368 = vrot.lane.b32.xlu0 %v1209, 126
  %v1369 = vpop.permute.xlu0 %1368
  %1370 = vrot.lane.b32.xlu0 %v1210, 126
  %v1371 = vpop.permute.xlu0 %1370
  %1372 = vrot.lane.b32.xlu0 %v1211, 126
  %v1373 = vpop.permute.xlu0 %1372
  %v1377 = vadd.f32 %v1245, %v1369
  %v1378 = vadd.f32 %v1246, %v1371
  %v1379 = vadd.f32 %v1247, %v1373
  %v1380 = vmul.f32 %v1194, -0.19134171
  %v1381 = vmul.f32 %v1195, -0.19134171
  %v1382 = vmul.f32 %v1196, -0.19134171
  %1386 = vrot.lane.b32.xlu0 %v1380, 126
  %v1387 = vpop.permute.xlu0 %1386
  %1388 = vrot.lane.b32.xlu0 %v1381, 126
  %v1389 = vpop.permute.xlu0 %1388
  %1390 = vrot.lane.b32.xlu0 %v1382, 126
  %v1391 = vpop.permute.xlu0 %1390
  %v1395 = vadd.f32 %v1260, %v1387
  %v1396 = vadd.f32 %v1261, %v1389
  %v1397 = vadd.f32 %v1262, %v1391
  %1398 = vrot.lane.b32.xlu0 %v1299, 126
  %v1399 = vpop.permute.xlu0 %1398
  %1400 = vrot.lane.b32.xlu0 %v1300, 126
  %v1401 = vpop.permute.xlu0 %1400
  %1402 = vrot.lane.b32.xlu0 %v1301, 126
  %v1403 = vpop.permute.xlu0 %1402
  %v1407 = vadd.f32 %v1278, %v1399
  %v1408 = vadd.f32 %v1279, %v1401
  %v1409 = vadd.f32 %v1280, %v1403
  %1410 = vrot.lane.b32.xlu0 %v1281, 126
  %v1411 = vpop.permute.xlu0 %1410
  %1412 = vrot.lane.b32.xlu0 %v1282, 126
  %v1413 = vpop.permute.xlu0 %1412
  %1414 = vrot.lane.b32.xlu0 %v1283, 126
  %v1415 = vpop.permute.xlu0 %1414
  %v1419 = vadd.f32 %v1296, %v1411
  %v1420 = vadd.f32 %v1297, %v1413
  %v1421 = vadd.f32 %v1298, %v1415
  %1425 = vrot.lane.b32.xlu0 %v1215, 126
  %v1426 = vpop.permute.xlu0 %1425
  %1427 = vrot.lane.b32.xlu0 %v1216, 126
  %v1428 = vpop.permute.xlu0 %1427
  %1429 = vrot.lane.b32.xlu0 %v1217, 126
  %v1430 = vpop.permute.xlu0 %1429
  %v1434 = vadd.f32 %v1314, %v1426
  %v1435 = vadd.f32 %v1315, %v1428
  %v1436 = vadd.f32 %v1316, %v1430
  %1440 = vrot.lane.b32.xlu0 %v1203, 126
  %v1441 = vpop.permute.xlu0 %1440
  %1442 = vrot.lane.b32.xlu0 %v1204, 126
  %v1443 = vpop.permute.xlu0 %1442
  %1444 = vrot.lane.b32.xlu0 %v1205, 126
  %v1445 = vpop.permute.xlu0 %1444
  %v1449 = vadd.f32 %v1332, %v1441
  %v1450 = vadd.f32 %v1333, %v1443
  %v1451 = vadd.f32 %v1334, %v1445
  %1452 = vrot.lane.b32.xlu0 %v1206, 126
  %v1453 = vpop.permute.xlu0 %1452
  %1454 = vrot.lane.b32.xlu0 %v1207, 126
  %v1455 = vpop.permute.xlu0 %1454
  %1456 = vrot.lane.b32.xlu0 %v1208, 126
  %v1457 = vpop.permute.xlu0 %1456
  %v1461 = vadd.f32 %v1350, %v1453
  %v1462 = vadd.f32 %v1351, %v1455
  %v1463 = vadd.f32 %v1352, %v1457
  %1464 = vrot.lane.b32.xlu0 %v1197, 125
  %v1465 = vpop.permute.xlu0 %1464
  %1466 = vrot.lane.b32.xlu0 %v1198, 125
  %v1467 = vpop.permute.xlu0 %1466
  %1468 = vrot.lane.b32.xlu0 %v1199, 125
  %v1469 = vpop.permute.xlu0 %1468
  %v1473 = vadd.f32 %v1362, %v1465
  %v1474 = vadd.f32 %v1363, %v1467
  %v1475 = vadd.f32 %v1364, %v1469
  %1476 = vrot.lane.b32.xlu0 %v1215, 125
  %v1477 = vpop.permute.xlu0 %1476
  %1478 = vrot.lane.b32.xlu0 %v1216, 125
  %v1479 = vpop.permute.xlu0 %1478
  %1480 = vrot.lane.b32.xlu0 %v1217, 125
  %v1481 = vpop.permute.xlu0 %1480
  %v1485 = vadd.f32 %v1377, %v1477
  %v1486 = vadd.f32 %v1378, %v1479
  %v1487 = vadd.f32 %v1379, %v1481
  %1488 = vrot.lane.b32.xlu0 %v1317, 125
  %v1489 = vpop.permute.xlu0 %1488
  %1490 = vrot.lane.b32.xlu0 %v1318, 125
  %v1491 = vpop.permute.xlu0 %1490
  %1492 = vrot.lane.b32.xlu0 %v1319, 125
  %v1493 = vpop.permute.xlu0 %1492
  %v1497 = vadd.f32 %v1395, %v1489
  %v1498 = vadd.f32 %v1396, %v1491
  %v1499 = vadd.f32 %v1397, %v1493
  %1500 = vrot.lane.b32.xlu0 %v1335, 125
  %v1501 = vpop.permute.xlu0 %1500
  %1502 = vrot.lane.b32.xlu0 %v1336, 125
  %v1503 = vpop.permute.xlu0 %1502
  %1504 = vrot.lane.b32.xlu0 %v1337, 125
  %v1505 = vpop.permute.xlu0 %1504
  %v1509 = vadd.f32 %v1407, %v1501
  %v1510 = vadd.f32 %v1408, %v1503
  %v1511 = vadd.f32 %v1409, %v1505
  %v1512 = vadd.f32 %v1419, %v1465
  %v1513 = vadd.f32 %v1420, %v1467
  %v1514 = vadd.f32 %v1421, %v1469
  %1515 = vrot.lane.b32.xlu0 %v1206, 125
  %v1516 = vpop.permute.xlu0 %1515
  %1517 = vrot.lane.b32.xlu0 %v1207, 125
  %v1518 = vpop.permute.xlu0 %1517
  %1519 = vrot.lane.b32.xlu0 %v1208, 125
  %v1520 = vpop.permute.xlu0 %1519
  %v1524 = vadd.f32 %v1434, %v1516
  %v1525 = vadd.f32 %v1435, %v1518
  %v1526 = vadd.f32 %v1436, %v1520
  %1527 = vrot.lane.b32.xlu0 %v1380, 125
  %v1528 = vpop.permute.xlu0 %1527
  %1529 = vrot.lane.b32.xlu0 %v1381, 125
  %v1530 = vpop.permute.xlu0 %1529
  %1531 = vrot.lane.b32.xlu0 %v1382, 125
  %v1532 = vpop.permute.xlu0 %1531
  %v1536 = vadd.f32 %v1449, %v1528
  %v1537 = vadd.f32 %v1450, %v1530
  %v1538 = vadd.f32 %v1451, %v1532
  %1539 = vrot.lane.b32.xlu0 %v1299, 125
  %v1540 = vpop.permute.xlu0 %1539
  %1541 = vrot.lane.b32.xlu0 %v1300, 125
  %v1542 = vpop.permute.xlu0 %1541
  %1543 = vrot.lane.b32.xlu0 %v1301, 125
  %v1544 = vpop.permute.xlu0 %1543
  %v1548 = vadd.f32 %v1461, %v1540
  %v1549 = vadd.f32 %v1462, %v1542
  %v1550 = vadd.f32 %v1463, %v1544
  %1551 = vrot.lane.b32.xlu0 %v1197, 124
  %v1552 = vpop.permute.xlu0 %1551
  %1553 = vrot.lane.b32.xlu0 %v1198, 124
  %v1554 = vpop.permute.xlu0 %1553
  %1555 = vrot.lane.b32.xlu0 %v1199, 124
  %v1556 = vpop.permute.xlu0 %1555
  %v1560 = vadd.f32 %v1473, %v1552
  %v1561 = vadd.f32 %v1474, %v1554
  %v1562 = vadd.f32 %v1475, %v1556
  %1563 = vrot.lane.b32.xlu0 %v1263, 124
  %v1564 = vpop.permute.xlu0 %1563
  %1565 = vrot.lane.b32.xlu0 %v1264, 124
  %v1566 = vpop.permute.xlu0 %1565
  %1567 = vrot.lane.b32.xlu0 %v1265, 124
  %v1568 = vpop.permute.xlu0 %1567
  %v1572 = vadd.f32 %v1485, %v1564
  %v1573 = vadd.f32 %v1486, %v1566
  %v1574 = vadd.f32 %v1487, %v1568
  %1575 = vrot.lane.b32.xlu0 %v1317, 124
  %v1576 = vpop.permute.xlu0 %1575
  %1577 = vrot.lane.b32.xlu0 %v1318, 124
  %v1578 = vpop.permute.xlu0 %1577
  %1579 = vrot.lane.b32.xlu0 %v1319, 124
  %v1580 = vpop.permute.xlu0 %1579
  %v1584 = vadd.f32 %v1497, %v1576
  %v1585 = vadd.f32 %v1498, %v1578
  %v1586 = vadd.f32 %v1499, %v1580
  %1587 = vrot.lane.b32.xlu0 %v1209, 124
  %v1588 = vpop.permute.xlu0 %1587
  %1589 = vrot.lane.b32.xlu0 %v1210, 124
  %v1590 = vpop.permute.xlu0 %1589
  %1591 = vrot.lane.b32.xlu0 %v1211, 124
  %v1592 = vpop.permute.xlu0 %1591
  %v1596 = vadd.f32 %v1509, %v1588
  %v1597 = vadd.f32 %v1510, %v1590
  %v1598 = vadd.f32 %v1511, %v1592
  %v1599 = vadd.f32 %v1512, %v1552
  %v1600 = vadd.f32 %v1513, %v1554
  %v1601 = vadd.f32 %v1514, %v1556
  %v1602 = vmul.f32 %v1194, -0.4157348
  %v1603 = vmul.f32 %v1195, -0.4157348
  %v1604 = vmul.f32 %v1196, -0.4157348
  %1608 = vrot.lane.b32.xlu0 %v1602, 124
  %v1609 = vpop.permute.xlu0 %1608
  %1610 = vrot.lane.b32.xlu0 %v1603, 124
  %v1611 = vpop.permute.xlu0 %1610
  %1612 = vrot.lane.b32.xlu0 %v1604, 124
  %v1613 = vpop.permute.xlu0 %1612
  %v1617 = vadd.f32 %v1524, %v1609
  %v1618 = vadd.f32 %v1525, %v1611
  %v1619 = vadd.f32 %v1526, %v1613
  %1620 = vrot.lane.b32.xlu0 %v1380, 124
  %v1621 = vpop.permute.xlu0 %1620
  %1622 = vrot.lane.b32.xlu0 %v1381, 124
  %v1623 = vpop.permute.xlu0 %1622
  %1624 = vrot.lane.b32.xlu0 %v1382, 124
  %v1625 = vpop.permute.xlu0 %1624
  %v1629 = vadd.f32 %v1536, %v1621
  %v1630 = vadd.f32 %v1537, %v1623
  %v1631 = vadd.f32 %v1538, %v1625
  %1635 = vrot.lane.b32.xlu0 %v1200, 124
  %v1636 = vpop.permute.xlu0 %1635
  %1637 = vrot.lane.b32.xlu0 %v1201, 124
  %v1638 = vpop.permute.xlu0 %1637
  %1639 = vrot.lane.b32.xlu0 %v1202, 124
  %v1640 = vpop.permute.xlu0 %1639
  %v1644 = vadd.f32 %v1548, %v1636
  %v1645 = vadd.f32 %v1549, %v1638
  %v1646 = vadd.f32 %v1550, %v1640
  %1647 = vrot.lane.b32.xlu0 %v1197, 123
  %v1648 = vpop.permute.xlu0 %1647
  %1649 = vrot.lane.b32.xlu0 %v1198, 123
  %v1650 = vpop.permute.xlu0 %1649
  %1651 = vrot.lane.b32.xlu0 %v1199, 123
  %v1652 = vpop.permute.xlu0 %1651
  %v1656 = vadd.f32 %v1560, %v1648
  %v1657 = vadd.f32 %v1561, %v1650
  %v1658 = vadd.f32 %v1562, %v1652
  %1659 = vrot.lane.b32.xlu0 %v1335, 123
  %v1660 = vpop.permute.xlu0 %1659
  %1661 = vrot.lane.b32.xlu0 %v1336, 123
  %v1662 = vpop.permute.xlu0 %1661
  %1663 = vrot.lane.b32.xlu0 %v1337, 123
  %v1664 = vpop.permute.xlu0 %1663
  %v1668 = vadd.f32 %v1572, %v1660
  %v1669 = vadd.f32 %v1573, %v1662
  %v1670 = vadd.f32 %v1574, %v1664
  %1671 = vrot.lane.b32.xlu0 %v1380, 123
  %v1672 = vpop.permute.xlu0 %1671
  %1673 = vrot.lane.b32.xlu0 %v1381, 123
  %v1674 = vpop.permute.xlu0 %1673
  %1675 = vrot.lane.b32.xlu0 %v1382, 123
  %v1676 = vpop.permute.xlu0 %1675
  %v1680 = vadd.f32 %v1584, %v1672
  %v1681 = vadd.f32 %v1585, %v1674
  %v1682 = vadd.f32 %v1586, %v1676
  %1683 = vrot.lane.b32.xlu0 %v1200, 123
  %v1684 = vpop.permute.xlu0 %1683
  %1685 = vrot.lane.b32.xlu0 %v1201, 123
  %v1686 = vpop.permute.xlu0 %1685
  %1687 = vrot.lane.b32.xlu0 %v1202, 123
  %v1688 = vpop.permute.xlu0 %1687
  %v1692 = vadd.f32 %v1596, %v1684
  %v1693 = vadd.f32 %v1597, %v1686
  %v1694 = vadd.f32 %v1598, %v1688
  %1695 = vrot.lane.b32.xlu0 %v1281, 123
  %v1696 = vpop.permute.xlu0 %1695
  %1697 = vrot.lane.b32.xlu0 %v1282, 123
  %v1698 = vpop.permute.xlu0 %1697
  %1699 = vrot.lane.b32.xlu0 %v1283, 123
  %v1700 = vpop.permute.xlu0 %1699
  %v1704 = vadd.f32 %v1599, %v1696
  %v1705 = vadd.f32 %v1600, %v1698
  %v1706 = vadd.f32 %v1601, %v1700
  %1707 = vrot.lane.b32.xlu0 %v1263, 123
  %v1708 = vpop.permute.xlu0 %1707
  %1709 = vrot.lane.b32.xlu0 %v1264, 123
  %v1710 = vpop.permute.xlu0 %1709
  %1711 = vrot.lane.b32.xlu0 %v1265, 123
  %v1712 = vpop.permute.xlu0 %1711
  %v1716 = vadd.f32 %v1617, %v1708
  %v1717 = vadd.f32 %v1618, %v1710
  %v1718 = vadd.f32 %v1619, %v1712
  %1719 = vrot.lane.b32.xlu0 %v1203, 123
  %v1720 = vpop.permute.xlu0 %1719
  %1721 = vrot.lane.b32.xlu0 %v1204, 123
  %v1722 = vpop.permute.xlu0 %1721
  %1723 = vrot.lane.b32.xlu0 %v1205, 123
  %v1724 = vpop.permute.xlu0 %1723
  %v1728 = vadd.f32 %v1629, %v1720
  %v1729 = vadd.f32 %v1630, %v1722
  %v1730 = vadd.f32 %v1631, %v1724
  %1731 = vrot.lane.b32.xlu0 %v1602, 123
  %v1732 = vpop.permute.xlu0 %1731
  %1733 = vrot.lane.b32.xlu0 %v1603, 123
  %v1734 = vpop.permute.xlu0 %1733
  %1735 = vrot.lane.b32.xlu0 %v1604, 123
  %v1736 = vpop.permute.xlu0 %1735
  %v1740 = vadd.f32 %v1644, %v1732
  %v1741 = vadd.f32 %v1645, %v1734
  %v1742 = vadd.f32 %v1646, %v1736
  %1743 = vrot.lane.b32.xlu0 %v1197, 122
  %v1744 = vpop.permute.xlu0 %1743
  %1745 = vrot.lane.b32.xlu0 %v1198, 122
  %v1746 = vpop.permute.xlu0 %1745
  %1747 = vrot.lane.b32.xlu0 %v1199, 122
  %v1748 = vpop.permute.xlu0 %1747
  %v1752 = vadd.f32 %v1656, %v1744
  %v1753 = vadd.f32 %v1657, %v1746
  %v1754 = vadd.f32 %v1658, %v1748
  %1755 = vrot.lane.b32.xlu0 %v1602, 122
  %v1756 = vpop.permute.xlu0 %1755
  %1757 = vrot.lane.b32.xlu0 %v1603, 122
  %v1758 = vpop.permute.xlu0 %1757
  %1759 = vrot.lane.b32.xlu0 %v1604, 122
  %v1760 = vpop.permute.xlu0 %1759
  %v1764 = vadd.f32 %v1668, %v1756
  %v1765 = vadd.f32 %v1669, %v1758
  %v1766 = vadd.f32 %v1670, %v1760
  %1767 = vrot.lane.b32.xlu0 %v1212, 122
  %v1768 = vpop.permute.xlu0 %1767
  %1769 = vrot.lane.b32.xlu0 %v1213, 122
  %v1770 = vpop.permute.xlu0 %1769
  %1771 = vrot.lane.b32.xlu0 %v1214, 122
  %v1772 = vpop.permute.xlu0 %1771
  %v1776 = vadd.f32 %v1680, %v1768
  %v1777 = vadd.f32 %v1681, %v1770
  %v1778 = vadd.f32 %v1682, %v1772
  %1779 = vrot.lane.b32.xlu0 %v1215, 122
  %v1780 = vpop.permute.xlu0 %1779
  %1781 = vrot.lane.b32.xlu0 %v1216, 122
  %v1782 = vpop.permute.xlu0 %1781
  %1783 = vrot.lane.b32.xlu0 %v1217, 122
  %v1784 = vpop.permute.xlu0 %1783
  %v1788 = vadd.f32 %v1692, %v1780
  %v1789 = vadd.f32 %v1693, %v1782
  %v1790 = vadd.f32 %v1694, %v1784
  %1791 = vrot.lane.b32.xlu0 %v1281, 122
  %v1792 = vpop.permute.xlu0 %1791
  %1793 = vrot.lane.b32.xlu0 %v1282, 122
  %v1794 = vpop.permute.xlu0 %1793
  %1795 = vrot.lane.b32.xlu0 %v1283, 122
  %v1796 = vpop.permute.xlu0 %1795
  %v1800 = vadd.f32 %v1704, %v1792
  %v1801 = vadd.f32 %v1705, %v1794
  %v1802 = vadd.f32 %v1706, %v1796
  %1803 = vrot.lane.b32.xlu0 %v1200, 122
  %v1804 = vpop.permute.xlu0 %1803
  %1805 = vrot.lane.b32.xlu0 %v1201, 122
  %v1806 = vpop.permute.xlu0 %1805
  %1807 = vrot.lane.b32.xlu0 %v1202, 122
  %v1808 = vpop.permute.xlu0 %1807
  %v1812 = vadd.f32 %v1716, %v1804
  %v1813 = vadd.f32 %v1717, %v1806
  %v1814 = vadd.f32 %v1718, %v1808
  %1815 = vrot.lane.b32.xlu0 %v1317, 122
  %v1816 = vpop.permute.xlu0 %1815
  %1817 = vrot.lane.b32.xlu0 %v1318, 122
  %v1818 = vpop.permute.xlu0 %1817
  %1819 = vrot.lane.b32.xlu0 %v1319, 122
  %v1820 = vpop.permute.xlu0 %1819
  %v1824 = vadd.f32 %v1728, %v1816
  %v1825 = vadd.f32 %v1729, %v1818
  %v1826 = vadd.f32 %v1730, %v1820
  %1827 = vrot.lane.b32.xlu0 %v1209, 122
  %v1828 = vpop.permute.xlu0 %1827
  %1829 = vrot.lane.b32.xlu0 %v1210, 122
  %v1830 = vpop.permute.xlu0 %1829
  %1831 = vrot.lane.b32.xlu0 %v1211, 122
  %v1832 = vpop.permute.xlu0 %1831
  %v1836 = vadd.f32 %v1740, %v1828
  %v1837 = vadd.f32 %v1741, %v1830
  %v1838 = vadd.f32 %v1742, %v1832
  %1839 = vrot.lane.b32.xlu0 %v1197, 121
  %v1840 = vpop.permute.xlu0 %1839
  %1841 = vrot.lane.b32.xlu0 %v1198, 121
  %v1842 = vpop.permute.xlu0 %1841
  %1843 = vrot.lane.b32.xlu0 %v1199, 121
  %v1844 = vpop.permute.xlu0 %1843
  %v1848 = vadd.f32 %v1752, %v1840
  %v1849 = vadd.f32 %v1753, %v1842
  %v1850 = vadd.f32 %v1754, %v1844
  %1851 = vrot.lane.b32.xlu0 %v1299, 121
  %v1852 = vpop.permute.xlu0 %1851
  %1853 = vrot.lane.b32.xlu0 %v1300, 121
  %v1854 = vpop.permute.xlu0 %1853
  %1855 = vrot.lane.b32.xlu0 %v1301, 121
  %v1856 = vpop.permute.xlu0 %1855
  %v1860 = vadd.f32 %v1764, %v1852
  %v1861 = vadd.f32 %v1765, %v1854
  %v1862 = vadd.f32 %v1766, %v1856
  %1863 = vrot.lane.b32.xlu0 %v1203, 121
  %v1864 = vpop.permute.xlu0 %1863
  %1865 = vrot.lane.b32.xlu0 %v1204, 121
  %v1866 = vpop.permute.xlu0 %1865
  %1867 = vrot.lane.b32.xlu0 %v1205, 121
  %v1868 = vpop.permute.xlu0 %1867
  %v1872 = vadd.f32 %v1776, %v1864
  %v1873 = vadd.f32 %v1777, %v1866
  %v1874 = vadd.f32 %v1778, %v1868
  %1875 = vrot.lane.b32.xlu0 %v1602, 121
  %v1876 = vpop.permute.xlu0 %1875
  %1877 = vrot.lane.b32.xlu0 %v1603, 121
  %v1878 = vpop.permute.xlu0 %1877
  %1879 = vrot.lane.b32.xlu0 %v1604, 121
  %v1880 = vpop.permute.xlu0 %1879
  %v1884 = vadd.f32 %v1788, %v1876
  %v1885 = vadd.f32 %v1789, %v1878
  %v1886 = vadd.f32 %v1790, %v1880
  %v1887 = vadd.f32 %v1800, %v1840
  %v1888 = vadd.f32 %v1801, %v1842
  %v1889 = vadd.f32 %v1802, %v1844
  %1890 = vrot.lane.b32.xlu0 %v1335, 121
  %v1891 = vpop.permute.xlu0 %1890
  %1892 = vrot.lane.b32.xlu0 %v1336, 121
  %v1893 = vpop.permute.xlu0 %1892
  %1894 = vrot.lane.b32.xlu0 %v1337, 121
  %v1895 = vpop.permute.xlu0 %1894
  %v1899 = vadd.f32 %v1812, %v1891
  %v1900 = vadd.f32 %v1813, %v1893
  %v1901 = vadd.f32 %v1814, %v1895
  %1902 = vrot.lane.b32.xlu0 %v1212, 121
  %v1903 = vpop.permute.xlu0 %1902
  %1904 = vrot.lane.b32.xlu0 %v1213, 121
  %v1905 = vpop.permute.xlu0 %1904
  %1906 = vrot.lane.b32.xlu0 %v1214, 121
  %v1907 = vpop.permute.xlu0 %1906
  %v1911 = vadd.f32 %v1824, %v1903
  %v1912 = vadd.f32 %v1825, %v1905
  %v1913 = vadd.f32 %v1826, %v1907
  %1914 = vrot.lane.b32.xlu0 %v1263, 121
  %v1915 = vpop.permute.xlu0 %1914
  %1916 = vrot.lane.b32.xlu0 %v1264, 121
  %v1917 = vpop.permute.xlu0 %1916
  %1918 = vrot.lane.b32.xlu0 %v1265, 121
  %v1919 = vpop.permute.xlu0 %1918
  %v1923 = vadd.f32 %v1836, %v1915
  %v1924 = vadd.f32 %v1837, %v1917
  %v1925 = vadd.f32 %v1838, %v1919
  %s1926 = scalar_lea.vmem %s1, 24
  %1927 = vst.msk [vmem:[%s1926] sm:$0xff] %vm1161, %v1848
  %1928 = vst.msk [vmem:[%s1926 + $0x8] sm:$0xff] %vm1161, %v1849
  %1929 = vst.msk [vmem:[%s1926 + $0x10] sm:$0x7f] %vm1164, %v1850
  %s1930 = scalar_lea.vmem %s1, 96
  %1931 = vst.msk [vmem:[%s1930] sm:$0xff] %vm1161, %v1860
  %1932 = vst.msk [vmem:[%s1930 + $0x8] sm:$0xff] %vm1161, %v1861
  %1933 = vst.msk [vmem:[%s1930 + $0x10] sm:$0x7f] %vm1164, %v1862
  %s1934 = scalar_lea.vmem %s1, 192
  %1935 = vst.msk [vmem:[%s1934] sm:$0xff] %vm1161, %v1872
  %1936 = vst.msk [vmem:[%s1934 + $0x8] sm:$0xff] %vm1161, %v1873
  %1937 = vst.msk [vmem:[%s1934 + $0x10] sm:$0x7f] %vm1164, %v1874
  %s1938 = scalar_lea.vmem %s1, 312
  %1939 = vst.msk [vmem:[%s1938] sm:$0xff] %vm1161, %v1884
  %1940 = vst.msk [vmem:[%s1938 + $0x8] sm:$0xff] %vm1161, %v1885
  %1941 = vst.msk [vmem:[%s1938 + $0x10] sm:$0x7f] %vm1164, %v1886
  %s1942 = scalar_lea.vmem %s1, 456
  %1943 = vst.msk [vmem:[%s1942] sm:$0xff] %vm1161, %v1887
  %1944 = vst.msk [vmem:[%s1942 + $0x8] sm:$0xff] %vm1161, %v1888
  %1945 = vst.msk [vmem:[%s1942 + $0x10] sm:$0x7f] %vm1164, %v1889
  %s1946 = scalar_lea.vmem %s1, 624
  %1947 = vst.msk [vmem:[%s1946] sm:$0xff] %vm1161, %v1899
  %1948 = vst.msk [vmem:[%s1946 + $0x8] sm:$0xff] %vm1161, %v1900
  %1949 = vst.msk [vmem:[%s1946 + $0x10] sm:$0x7f] %vm1164, %v1901
  %s1950 = scalar_lea.vmem %s1, 816
  %1951 = vst.msk [vmem:[%s1950] sm:$0xff] %vm1161, %v1911
  %1952 = vst.msk [vmem:[%s1950 + $0x8] sm:$0xff] %vm1161, %v1912
  %1953 = vst.msk [vmem:[%s1950 + $0x10] sm:$0x7f] %vm1164, %v1913
  %s1954 = scalar_lea.vmem %s1, 1008
  %1955 = vst.msk [vmem:[%s1954] sm:$0xff] %vm1161, %v1923
  %1956 = vst.msk [vmem:[%s1954 + $0x8] sm:$0xff] %vm1161, %v1924
  %1957 = vst.msk [vmem:[%s1954 + $0x10] sm:$0x7f] %vm1164, %v1925
  %v1958 = vld [vmem:[%s405] sm:$0xff]
  %v1959 = vld [vmem:[%s405 + $0x8] sm:$0xff]
  %v1960 = vld [vmem:[%s405 + $0x10] sm:$0x7f]
  %v1961 = vmul.f32 %v1958, 0.35355338
  %v1962 = vmul.f32 %v1959, 0.35355338
  %v1963 = vmul.f32 %v1960, 0.35355338
  %v1964 = vmul.f32 %v1958, 0.49039263
  %v1965 = vmul.f32 %v1959, 0.49039263
  %v1966 = vmul.f32 %v1960, 0.49039263
  %v1967 = vmul.f32 %v1958, 0.46193975
  %v1968 = vmul.f32 %v1959, 0.46193975
  %v1969 = vmul.f32 %v1960, 0.46193975
  %v1970 = vmul.f32 %v1958, 0.4157348
  %v1971 = vmul.f32 %v1959, 0.4157348
  %v1972 = vmul.f32 %v1960, 0.4157348
  %v1973 = vmul.f32 %v1958, 0.27778512
  %v1974 = vmul.f32 %v1959, 0.27778512
  %v1975 = vmul.f32 %v1960, 0.27778512
  %v1976 = vmul.f32 %v1958, 0.19134171
  %v1977 = vmul.f32 %v1959, 0.19134171
  %v1978 = vmul.f32 %v1960, 0.19134171
  %v1979 = vmul.f32 %v1958, 0.09754516
  %v1980 = vmul.f32 %v1959, 0.09754516
  %v1981 = vmul.f32 %v1960, 0.09754516
  %1985 = vrot.lane.b32.xlu0 %v1961, 127
  %v1986 = vpop.permute.xlu0 %1985
  %1987 = vrot.lane.b32.xlu0 %v1962, 127
  %v1988 = vpop.permute.xlu0 %1987
  %1989 = vrot.lane.b32.xlu0 %v1963, 127
  %v1990 = vpop.permute.xlu0 %1989
  %v1994 = vadd.f32 %v1961, %v1986
  %v1995 = vadd.f32 %v1962, %v1988
  %v1996 = vadd.f32 %v1963, %v1990
  %2000 = vrot.lane.b32.xlu0 %v1970, 127
  %v2001 = vpop.permute.xlu0 %2000
  %2002 = vrot.lane.b32.xlu0 %v1971, 127
  %v2003 = vpop.permute.xlu0 %2002
  %2004 = vrot.lane.b32.xlu0 %v1972, 127
  %v2005 = vpop.permute.xlu0 %2004
  %v2009 = vadd.f32 %v1964, %v2001
  %v2010 = vadd.f32 %v1965, %v2003
  %v2011 = vadd.f32 %v1966, %v2005
  %2015 = vrot.lane.b32.xlu0 %v1976, 127
  %v2016 = vpop.permute.xlu0 %2015
  %2017 = vrot.lane.b32.xlu0 %v1977, 127
  %v2018 = vpop.permute.xlu0 %2017
  %2019 = vrot.lane.b32.xlu0 %v1978, 127
  %v2020 = vpop.permute.xlu0 %2019
  %v2024 = vadd.f32 %v1967, %v2016
  %v2025 = vadd.f32 %v1968, %v2018
  %v2026 = vadd.f32 %v1969, %v2020
  %v2027 = vmul.f32 %v1958, -0.09754516
  %v2028 = vmul.f32 %v1959, -0.09754516
  %v2029 = vmul.f32 %v1960, -0.09754516
  %2033 = vrot.lane.b32.xlu0 %v2027, 127
  %v2034 = vpop.permute.xlu0 %2033
  %2035 = vrot.lane.b32.xlu0 %v2028, 127
  %v2036 = vpop.permute.xlu0 %2035
  %2037 = vrot.lane.b32.xlu0 %v2029, 127
  %v2038 = vpop.permute.xlu0 %2037
  %v2042 = vadd.f32 %v1970, %v2034
  %v2043 = vadd.f32 %v1971, %v2036
  %v2044 = vadd.f32 %v1972, %v2038
  %v2045 = vmul.f32 %v1958, -0.35355338
  %v2046 = vmul.f32 %v1959, -0.35355338
  %v2047 = vmul.f32 %v1960, -0.35355338
  %2051 = vrot.lane.b32.xlu0 %v2045, 127
  %v2052 = vpop.permute.xlu0 %2051
  %2053 = vrot.lane.b32.xlu0 %v2046, 127
  %v2054 = vpop.permute.xlu0 %2053
  %2055 = vrot.lane.b32.xlu0 %v2047, 127
  %v2056 = vpop.permute.xlu0 %2055
  %v2060 = vadd.f32 %v1961, %v2052
  %v2061 = vadd.f32 %v1962, %v2054
  %v2062 = vadd.f32 %v1963, %v2056
  %v2063 = vmul.f32 %v1958, -0.49039263
  %v2064 = vmul.f32 %v1959, -0.49039263
  %v2065 = vmul.f32 %v1960, -0.49039263
  %2069 = vrot.lane.b32.xlu0 %v2063, 127
  %v2070 = vpop.permute.xlu0 %2069
  %2071 = vrot.lane.b32.xlu0 %v2064, 127
  %v2072 = vpop.permute.xlu0 %2071
  %2073 = vrot.lane.b32.xlu0 %v2065, 127
  %v2074 = vpop.permute.xlu0 %2073
  %v2078 = vadd.f32 %v1973, %v2070
  %v2079 = vadd.f32 %v1974, %v2072
  %v2080 = vadd.f32 %v1975, %v2074
  %v2081 = vmul.f32 %v1958, -0.46193975
  %v2082 = vmul.f32 %v1959, -0.46193975
  %v2083 = vmul.f32 %v1960, -0.46193975
  %2087 = vrot.lane.b32.xlu0 %v2081, 127
  %v2088 = vpop.permute.xlu0 %2087
  %2089 = vrot.lane.b32.xlu0 %v2082, 127
  %v2090 = vpop.permute.xlu0 %2089
  %2091 = vrot.lane.b32.xlu0 %v2083, 127
  %v2092 = vpop.permute.xlu0 %2091
  %v2096 = vadd.f32 %v1976, %v2088
  %v2097 = vadd.f32 %v1977, %v2090
  %v2098 = vadd.f32 %v1978, %v2092
  %v2099 = vmul.f32 %v1958, -0.27778512
  %v2100 = vmul.f32 %v1959, -0.27778512
  %v2101 = vmul.f32 %v1960, -0.27778512
  %2105 = vrot.lane.b32.xlu0 %v2099, 127
  %v2106 = vpop.permute.xlu0 %2105
  %2107 = vrot.lane.b32.xlu0 %v2100, 127
  %v2108 = vpop.permute.xlu0 %2107
  %2109 = vrot.lane.b32.xlu0 %v2101, 127
  %v2110 = vpop.permute.xlu0 %2109
  %v2114 = vadd.f32 %v1979, %v2106
  %v2115 = vadd.f32 %v1980, %v2108
  %v2116 = vadd.f32 %v1981, %v2110
  %2117 = vrot.lane.b32.xlu0 %v1961, 126
  %v2118 = vpop.permute.xlu0 %2117
  %2119 = vrot.lane.b32.xlu0 %v1962, 126
  %v2120 = vpop.permute.xlu0 %2119
  %2121 = vrot.lane.b32.xlu0 %v1963, 126
  %v2122 = vpop.permute.xlu0 %2121
  %v2126 = vadd.f32 %v1994, %v2118
  %v2127 = vadd.f32 %v1995, %v2120
  %v2128 = vadd.f32 %v1996, %v2122
  %2132 = vrot.lane.b32.xlu0 %v1973, 126
  %v2133 = vpop.permute.xlu0 %2132
  %2134 = vrot.lane.b32.xlu0 %v1974, 126
  %v2135 = vpop.permute.xlu0 %2134
  %2136 = vrot.lane.b32.xlu0 %v1975, 126
  %v2137 = vpop.permute.xlu0 %2136
  %v2141 = vadd.f32 %v2009, %v2133
  %v2142 = vadd.f32 %v2010, %v2135
  %v2143 = vadd.f32 %v2011, %v2137
  %v2144 = vmul.f32 %v1958, -0.19134171
  %v2145 = vmul.f32 %v1959, -0.19134171
  %v2146 = vmul.f32 %v1960, -0.19134171
  %2150 = vrot.lane.b32.xlu0 %v2144, 126
  %v2151 = vpop.permute.xlu0 %2150
  %2152 = vrot.lane.b32.xlu0 %v2145, 126
  %v2153 = vpop.permute.xlu0 %2152
  %2154 = vrot.lane.b32.xlu0 %v2146, 126
  %v2155 = vpop.permute.xlu0 %2154
  %v2159 = vadd.f32 %v2024, %v2151
  %v2160 = vadd.f32 %v2025, %v2153
  %v2161 = vadd.f32 %v2026, %v2155
  %2162 = vrot.lane.b32.xlu0 %v2063, 126
  %v2163 = vpop.permute.xlu0 %2162
  %2164 = vrot.lane.b32.xlu0 %v2064, 126
  %v2165 = vpop.permute.xlu0 %2164
  %2166 = vrot.lane.b32.xlu0 %v2065, 126
  %v2167 = vpop.permute.xlu0 %2166
  %v2171 = vadd.f32 %v2042, %v2163
  %v2172 = vadd.f32 %v2043, %v2165
  %v2173 = vadd.f32 %v2044, %v2167
  %2174 = vrot.lane.b32.xlu0 %v2045, 126
  %v2175 = vpop.permute.xlu0 %2174
  %2176 = vrot.lane.b32.xlu0 %v2046, 126
  %v2177 = vpop.permute.xlu0 %2176
  %2178 = vrot.lane.b32.xlu0 %v2047, 126
  %v2179 = vpop.permute.xlu0 %2178
  %v2183 = vadd.f32 %v2060, %v2175
  %v2184 = vadd.f32 %v2061, %v2177
  %v2185 = vadd.f32 %v2062, %v2179
  %2189 = vrot.lane.b32.xlu0 %v1979, 126
  %v2190 = vpop.permute.xlu0 %2189
  %2191 = vrot.lane.b32.xlu0 %v1980, 126
  %v2192 = vpop.permute.xlu0 %2191
  %2193 = vrot.lane.b32.xlu0 %v1981, 126
  %v2194 = vpop.permute.xlu0 %2193
  %v2198 = vadd.f32 %v2078, %v2190
  %v2199 = vadd.f32 %v2079, %v2192
  %v2200 = vadd.f32 %v2080, %v2194
  %2204 = vrot.lane.b32.xlu0 %v1967, 126
  %v2205 = vpop.permute.xlu0 %2204
  %2206 = vrot.lane.b32.xlu0 %v1968, 126
  %v2207 = vpop.permute.xlu0 %2206
  %2208 = vrot.lane.b32.xlu0 %v1969, 126
  %v2209 = vpop.permute.xlu0 %2208
  %v2213 = vadd.f32 %v2096, %v2205
  %v2214 = vadd.f32 %v2097, %v2207
  %v2215 = vadd.f32 %v2098, %v2209
  %2216 = vrot.lane.b32.xlu0 %v1970, 126
  %v2217 = vpop.permute.xlu0 %2216
  %2218 = vrot.lane.b32.xlu0 %v1971, 126
  %v2219 = vpop.permute.xlu0 %2218
  %2220 = vrot.lane.b32.xlu0 %v1972, 126
  %v2221 = vpop.permute.xlu0 %2220
  %v2225 = vadd.f32 %v2114, %v2217
  %v2226 = vadd.f32 %v2115, %v2219
  %v2227 = vadd.f32 %v2116, %v2221
  %2228 = vrot.lane.b32.xlu0 %v1961, 125
  %v2229 = vpop.permute.xlu0 %2228
  %2230 = vrot.lane.b32.xlu0 %v1962, 125
  %v2231 = vpop.permute.xlu0 %2230
  %2232 = vrot.lane.b32.xlu0 %v1963, 125
  %v2233 = vpop.permute.xlu0 %2232
  %v2237 = vadd.f32 %v2126, %v2229
  %v2238 = vadd.f32 %v2127, %v2231
  %v2239 = vadd.f32 %v2128, %v2233
  %2240 = vrot.lane.b32.xlu0 %v1979, 125
  %v2241 = vpop.permute.xlu0 %2240
  %2242 = vrot.lane.b32.xlu0 %v1980, 125
  %v2243 = vpop.permute.xlu0 %2242
  %2244 = vrot.lane.b32.xlu0 %v1981, 125
  %v2245 = vpop.permute.xlu0 %2244
  %v2249 = vadd.f32 %v2141, %v2241
  %v2250 = vadd.f32 %v2142, %v2243
  %v2251 = vadd.f32 %v2143, %v2245
  %2252 = vrot.lane.b32.xlu0 %v2081, 125
  %v2253 = vpop.permute.xlu0 %2252
  %2254 = vrot.lane.b32.xlu0 %v2082, 125
  %v2255 = vpop.permute.xlu0 %2254
  %2256 = vrot.lane.b32.xlu0 %v2083, 125
  %v2257 = vpop.permute.xlu0 %2256
  %v2261 = vadd.f32 %v2159, %v2253
  %v2262 = vadd.f32 %v2160, %v2255
  %v2263 = vadd.f32 %v2161, %v2257
  %2264 = vrot.lane.b32.xlu0 %v2099, 125
  %v2265 = vpop.permute.xlu0 %2264
  %2266 = vrot.lane.b32.xlu0 %v2100, 125
  %v2267 = vpop.permute.xlu0 %2266
  %2268 = vrot.lane.b32.xlu0 %v2101, 125
  %v2269 = vpop.permute.xlu0 %2268
  %v2273 = vadd.f32 %v2171, %v2265
  %v2274 = vadd.f32 %v2172, %v2267
  %v2275 = vadd.f32 %v2173, %v2269
  %v2276 = vadd.f32 %v2183, %v2229
  %v2277 = vadd.f32 %v2184, %v2231
  %v2278 = vadd.f32 %v2185, %v2233
  %2279 = vrot.lane.b32.xlu0 %v1970, 125
  %v2280 = vpop.permute.xlu0 %2279
  %2281 = vrot.lane.b32.xlu0 %v1971, 125
  %v2282 = vpop.permute.xlu0 %2281
  %2283 = vrot.lane.b32.xlu0 %v1972, 125
  %v2284 = vpop.permute.xlu0 %2283
  %v2288 = vadd.f32 %v2198, %v2280
  %v2289 = vadd.f32 %v2199, %v2282
  %v2290 = vadd.f32 %v2200, %v2284
  %2291 = vrot.lane.b32.xlu0 %v2144, 125
  %v2292 = vpop.permute.xlu0 %2291
  %2293 = vrot.lane.b32.xlu0 %v2145, 125
  %v2294 = vpop.permute.xlu0 %2293
  %2295 = vrot.lane.b32.xlu0 %v2146, 125
  %v2296 = vpop.permute.xlu0 %2295
  %v2300 = vadd.f32 %v2213, %v2292
  %v2301 = vadd.f32 %v2214, %v2294
  %v2302 = vadd.f32 %v2215, %v2296
  %2303 = vrot.lane.b32.xlu0 %v2063, 125
  %v2304 = vpop.permute.xlu0 %2303
  %2305 = vrot.lane.b32.xlu0 %v2064, 125
  %v2306 = vpop.permute.xlu0 %2305
  %2307 = vrot.lane.b32.xlu0 %v2065, 125
  %v2308 = vpop.permute.xlu0 %2307
  %v2312 = vadd.f32 %v2225, %v2304
  %v2313 = vadd.f32 %v2226, %v2306
  %v2314 = vadd.f32 %v2227, %v2308
  %2315 = vrot.lane.b32.xlu0 %v1961, 124
  %v2316 = vpop.permute.xlu0 %2315
  %2317 = vrot.lane.b32.xlu0 %v1962, 124
  %v2318 = vpop.permute.xlu0 %2317
  %2319 = vrot.lane.b32.xlu0 %v1963, 124
  %v2320 = vpop.permute.xlu0 %2319
  %v2324 = vadd.f32 %v2237, %v2316
  %v2325 = vadd.f32 %v2238, %v2318
  %v2326 = vadd.f32 %v2239, %v2320
  %2327 = vrot.lane.b32.xlu0 %v2027, 124
  %v2328 = vpop.permute.xlu0 %2327
  %2329 = vrot.lane.b32.xlu0 %v2028, 124
  %v2330 = vpop.permute.xlu0 %2329
  %2331 = vrot.lane.b32.xlu0 %v2029, 124
  %v2332 = vpop.permute.xlu0 %2331
  %v2336 = vadd.f32 %v2249, %v2328
  %v2337 = vadd.f32 %v2250, %v2330
  %v2338 = vadd.f32 %v2251, %v2332
  %2339 = vrot.lane.b32.xlu0 %v2081, 124
  %v2340 = vpop.permute.xlu0 %2339
  %2341 = vrot.lane.b32.xlu0 %v2082, 124
  %v2342 = vpop.permute.xlu0 %2341
  %2343 = vrot.lane.b32.xlu0 %v2083, 124
  %v2344 = vpop.permute.xlu0 %2343
  %v2348 = vadd.f32 %v2261, %v2340
  %v2349 = vadd.f32 %v2262, %v2342
  %v2350 = vadd.f32 %v2263, %v2344
  %2351 = vrot.lane.b32.xlu0 %v1973, 124
  %v2352 = vpop.permute.xlu0 %2351
  %2353 = vrot.lane.b32.xlu0 %v1974, 124
  %v2354 = vpop.permute.xlu0 %2353
  %2355 = vrot.lane.b32.xlu0 %v1975, 124
  %v2356 = vpop.permute.xlu0 %2355
  %v2360 = vadd.f32 %v2273, %v2352
  %v2361 = vadd.f32 %v2274, %v2354
  %v2362 = vadd.f32 %v2275, %v2356
  %v2363 = vadd.f32 %v2276, %v2316
  %v2364 = vadd.f32 %v2277, %v2318
  %v2365 = vadd.f32 %v2278, %v2320
  %v2366 = vmul.f32 %v1958, -0.4157348
  %v2367 = vmul.f32 %v1959, -0.4157348
  %v2368 = vmul.f32 %v1960, -0.4157348
  %2372 = vrot.lane.b32.xlu0 %v2366, 124
  %v2373 = vpop.permute.xlu0 %2372
  %2374 = vrot.lane.b32.xlu0 %v2367, 124
  %v2375 = vpop.permute.xlu0 %2374
  %2376 = vrot.lane.b32.xlu0 %v2368, 124
  %v2377 = vpop.permute.xlu0 %2376
  %v2381 = vadd.f32 %v2288, %v2373
  %v2382 = vadd.f32 %v2289, %v2375
  %v2383 = vadd.f32 %v2290, %v2377
  %2384 = vrot.lane.b32.xlu0 %v2144, 124
  %v2385 = vpop.permute.xlu0 %2384
  %2386 = vrot.lane.b32.xlu0 %v2145, 124
  %v2387 = vpop.permute.xlu0 %2386
  %2388 = vrot.lane.b32.xlu0 %v2146, 124
  %v2389 = vpop.permute.xlu0 %2388
  %v2393 = vadd.f32 %v2300, %v2385
  %v2394 = vadd.f32 %v2301, %v2387
  %v2395 = vadd.f32 %v2302, %v2389
  %2399 = vrot.lane.b32.xlu0 %v1964, 124
  %v2400 = vpop.permute.xlu0 %2399
  %2401 = vrot.lane.b32.xlu0 %v1965, 124
  %v2402 = vpop.permute.xlu0 %2401
  %2403 = vrot.lane.b32.xlu0 %v1966, 124
  %v2404 = vpop.permute.xlu0 %2403
  %v2408 = vadd.f32 %v2312, %v2400
  %v2409 = vadd.f32 %v2313, %v2402
  %v2410 = vadd.f32 %v2314, %v2404
  %2411 = vrot.lane.b32.xlu0 %v1961, 123
  %v2412 = vpop.permute.xlu0 %2411
  %2413 = vrot.lane.b32.xlu0 %v1962, 123
  %v2414 = vpop.permute.xlu0 %2413
  %2415 = vrot.lane.b32.xlu0 %v1963, 123
  %v2416 = vpop.permute.xlu0 %2415
  %v2420 = vadd.f32 %v2324, %v2412
  %v2421 = vadd.f32 %v2325, %v2414
  %v2422 = vadd.f32 %v2326, %v2416
  %2423 = vrot.lane.b32.xlu0 %v2099, 123
  %v2424 = vpop.permute.xlu0 %2423
  %2425 = vrot.lane.b32.xlu0 %v2100, 123
  %v2426 = vpop.permute.xlu0 %2425
  %2427 = vrot.lane.b32.xlu0 %v2101, 123
  %v2428 = vpop.permute.xlu0 %2427
  %v2432 = vadd.f32 %v2336, %v2424
  %v2433 = vadd.f32 %v2337, %v2426
  %v2434 = vadd.f32 %v2338, %v2428
  %2435 = vrot.lane.b32.xlu0 %v2144, 123
  %v2436 = vpop.permute.xlu0 %2435
  %2437 = vrot.lane.b32.xlu0 %v2145, 123
  %v2438 = vpop.permute.xlu0 %2437
  %2439 = vrot.lane.b32.xlu0 %v2146, 123
  %v2440 = vpop.permute.xlu0 %2439
  %v2444 = vadd.f32 %v2348, %v2436
  %v2445 = vadd.f32 %v2349, %v2438
  %v2446 = vadd.f32 %v2350, %v2440
  %2447 = vrot.lane.b32.xlu0 %v1964, 123
  %v2448 = vpop.permute.xlu0 %2447
  %2449 = vrot.lane.b32.xlu0 %v1965, 123
  %v2450 = vpop.permute.xlu0 %2449
  %2451 = vrot.lane.b32.xlu0 %v1966, 123
  %v2452 = vpop.permute.xlu0 %2451
  %v2456 = vadd.f32 %v2360, %v2448
  %v2457 = vadd.f32 %v2361, %v2450
  %v2458 = vadd.f32 %v2362, %v2452
  %2459 = vrot.lane.b32.xlu0 %v2045, 123
  %v2460 = vpop.permute.xlu0 %2459
  %2461 = vrot.lane.b32.xlu0 %v2046, 123
  %v2462 = vpop.permute.xlu0 %2461
  %2463 = vrot.lane.b32.xlu0 %v2047, 123
  %v2464 = vpop.permute.xlu0 %2463
  %v2468 = vadd.f32 %v2363, %v2460
  %v2469 = vadd.f32 %v2364, %v2462
  %v2470 = vadd.f32 %v2365, %v2464
  %2471 = vrot.lane.b32.xlu0 %v2027, 123
  %v2472 = vpop.permute.xlu0 %2471
  %2473 = vrot.lane.b32.xlu0 %v2028, 123
  %v2474 = vpop.permute.xlu0 %2473
  %2475 = vrot.lane.b32.xlu0 %v2029, 123
  %v2476 = vpop.permute.xlu0 %2475
  %v2480 = vadd.f32 %v2381, %v2472
  %v2481 = vadd.f32 %v2382, %v2474
  %v2482 = vadd.f32 %v2383, %v2476
  %2483 = vrot.lane.b32.xlu0 %v1967, 123
  %v2484 = vpop.permute.xlu0 %2483
  %2485 = vrot.lane.b32.xlu0 %v1968, 123
  %v2486 = vpop.permute.xlu0 %2485
  %2487 = vrot.lane.b32.xlu0 %v1969, 123
  %v2488 = vpop.permute.xlu0 %2487
  %v2492 = vadd.f32 %v2393, %v2484
  %v2493 = vadd.f32 %v2394, %v2486
  %v2494 = vadd.f32 %v2395, %v2488
  %2495 = vrot.lane.b32.xlu0 %v2366, 123
  %v2496 = vpop.permute.xlu0 %2495
  %2497 = vrot.lane.b32.xlu0 %v2367, 123
  %v2498 = vpop.permute.xlu0 %2497
  %2499 = vrot.lane.b32.xlu0 %v2368, 123
  %v2500 = vpop.permute.xlu0 %2499
  %v2504 = vadd.f32 %v2408, %v2496
  %v2505 = vadd.f32 %v2409, %v2498
  %v2506 = vadd.f32 %v2410, %v2500
  %2507 = vrot.lane.b32.xlu0 %v1961, 122
  %v2508 = vpop.permute.xlu0 %2507
  %2509 = vrot.lane.b32.xlu0 %v1962, 122
  %v2510 = vpop.permute.xlu0 %2509
  %2511 = vrot.lane.b32.xlu0 %v1963, 122
  %v2512 = vpop.permute.xlu0 %2511
  %v2516 = vadd.f32 %v2420, %v2508
  %v2517 = vadd.f32 %v2421, %v2510
  %v2518 = vadd.f32 %v2422, %v2512
  %2519 = vrot.lane.b32.xlu0 %v2366, 122
  %v2520 = vpop.permute.xlu0 %2519
  %2521 = vrot.lane.b32.xlu0 %v2367, 122
  %v2522 = vpop.permute.xlu0 %2521
  %2523 = vrot.lane.b32.xlu0 %v2368, 122
  %v2524 = vpop.permute.xlu0 %2523
  %v2528 = vadd.f32 %v2432, %v2520
  %v2529 = vadd.f32 %v2433, %v2522
  %v2530 = vadd.f32 %v2434, %v2524
  %2531 = vrot.lane.b32.xlu0 %v1976, 122
  %v2532 = vpop.permute.xlu0 %2531
  %2533 = vrot.lane.b32.xlu0 %v1977, 122
  %v2534 = vpop.permute.xlu0 %2533
  %2535 = vrot.lane.b32.xlu0 %v1978, 122
  %v2536 = vpop.permute.xlu0 %2535
  %v2540 = vadd.f32 %v2444, %v2532
  %v2541 = vadd.f32 %v2445, %v2534
  %v2542 = vadd.f32 %v2446, %v2536
  %2543 = vrot.lane.b32.xlu0 %v1979, 122
  %v2544 = vpop.permute.xlu0 %2543
  %2545 = vrot.lane.b32.xlu0 %v1980, 122
  %v2546 = vpop.permute.xlu0 %2545
  %2547 = vrot.lane.b32.xlu0 %v1981, 122
  %v2548 = vpop.permute.xlu0 %2547
  %v2552 = vadd.f32 %v2456, %v2544
  %v2553 = vadd.f32 %v2457, %v2546
  %v2554 = vadd.f32 %v2458, %v2548
  %2555 = vrot.lane.b32.xlu0 %v2045, 122
  %v2556 = vpop.permute.xlu0 %2555
  %2557 = vrot.lane.b32.xlu0 %v2046, 122
  %v2558 = vpop.permute.xlu0 %2557
  %2559 = vrot.lane.b32.xlu0 %v2047, 122
  %v2560 = vpop.permute.xlu0 %2559
  %v2564 = vadd.f32 %v2468, %v2556
  %v2565 = vadd.f32 %v2469, %v2558
  %v2566 = vadd.f32 %v2470, %v2560
  %2567 = vrot.lane.b32.xlu0 %v1964, 122
  %v2568 = vpop.permute.xlu0 %2567
  %2569 = vrot.lane.b32.xlu0 %v1965, 122
  %v2570 = vpop.permute.xlu0 %2569
  %2571 = vrot.lane.b32.xlu0 %v1966, 122
  %v2572 = vpop.permute.xlu0 %2571
  %v2576 = vadd.f32 %v2480, %v2568
  %v2577 = vadd.f32 %v2481, %v2570
  %v2578 = vadd.f32 %v2482, %v2572
  %2579 = vrot.lane.b32.xlu0 %v2081, 122
  %v2580 = vpop.permute.xlu0 %2579
  %2581 = vrot.lane.b32.xlu0 %v2082, 122
  %v2582 = vpop.permute.xlu0 %2581
  %2583 = vrot.lane.b32.xlu0 %v2083, 122
  %v2584 = vpop.permute.xlu0 %2583
  %v2588 = vadd.f32 %v2492, %v2580
  %v2589 = vadd.f32 %v2493, %v2582
  %v2590 = vadd.f32 %v2494, %v2584
  %2591 = vrot.lane.b32.xlu0 %v1973, 122
  %v2592 = vpop.permute.xlu0 %2591
  %2593 = vrot.lane.b32.xlu0 %v1974, 122
  %v2594 = vpop.permute.xlu0 %2593
  %2595 = vrot.lane.b32.xlu0 %v1975, 122
  %v2596 = vpop.permute.xlu0 %2595
  %v2600 = vadd.f32 %v2504, %v2592
  %v2601 = vadd.f32 %v2505, %v2594
  %v2602 = vadd.f32 %v2506, %v2596
  %2603 = vrot.lane.b32.xlu0 %v1961, 121
  %v2604 = vpop.permute.xlu0 %2603
  %2605 = vrot.lane.b32.xlu0 %v1962, 121
  %v2606 = vpop.permute.xlu0 %2605
  %2607 = vrot.lane.b32.xlu0 %v1963, 121
  %v2608 = vpop.permute.xlu0 %2607
  %v2612 = vadd.f32 %v2516, %v2604
  %v2613 = vadd.f32 %v2517, %v2606
  %v2614 = vadd.f32 %v2518, %v2608
  %2615 = vrot.lane.b32.xlu0 %v2063, 121
  %v2616 = vpop.permute.xlu0 %2615
  %2617 = vrot.lane.b32.xlu0 %v2064, 121
  %v2618 = vpop.permute.xlu0 %2617
  %2619 = vrot.lane.b32.xlu0 %v2065, 121
  %v2620 = vpop.permute.xlu0 %2619
  %v2624 = vadd.f32 %v2528, %v2616
  %v2625 = vadd.f32 %v2529, %v2618
  %v2626 = vadd.f32 %v2530, %v2620
  %2627 = vrot.lane.b32.xlu0 %v1967, 121
  %v2628 = vpop.permute.xlu0 %2627
  %2629 = vrot.lane.b32.xlu0 %v1968, 121
  %v2630 = vpop.permute.xlu0 %2629
  %2631 = vrot.lane.b32.xlu0 %v1969, 121
  %v2632 = vpop.permute.xlu0 %2631
  %v2636 = vadd.f32 %v2540, %v2628
  %v2637 = vadd.f32 %v2541, %v2630
  %v2638 = vadd.f32 %v2542, %v2632
  %2639 = vrot.lane.b32.xlu0 %v2366, 121
  %v2640 = vpop.permute.xlu0 %2639
  %2641 = vrot.lane.b32.xlu0 %v2367, 121
  %v2642 = vpop.permute.xlu0 %2641
  %2643 = vrot.lane.b32.xlu0 %v2368, 121
  %v2644 = vpop.permute.xlu0 %2643
  %v2648 = vadd.f32 %v2552, %v2640
  %v2649 = vadd.f32 %v2553, %v2642
  %v2650 = vadd.f32 %v2554, %v2644
  %v2651 = vadd.f32 %v2564, %v2604
  %v2652 = vadd.f32 %v2565, %v2606
  %v2653 = vadd.f32 %v2566, %v2608
  %2654 = vrot.lane.b32.xlu0 %v2099, 121
  %v2655 = vpop.permute.xlu0 %2654
  %2656 = vrot.lane.b32.xlu0 %v2100, 121
  %v2657 = vpop.permute.xlu0 %2656
  %2658 = vrot.lane.b32.xlu0 %v2101, 121
  %v2659 = vpop.permute.xlu0 %2658
  %v2663 = vadd.f32 %v2576, %v2655
  %v2664 = vadd.f32 %v2577, %v2657
  %v2665 = vadd.f32 %v2578, %v2659
  %2666 = vrot.lane.b32.xlu0 %v1976, 121
  %v2667 = vpop.permute.xlu0 %2666
  %2668 = vrot.lane.b32.xlu0 %v1977, 121
  %v2669 = vpop.permute.xlu0 %2668
  %2670 = vrot.lane.b32.xlu0 %v1978, 121
  %v2671 = vpop.permute.xlu0 %2670
  %v2675 = vadd.f32 %v2588, %v2667
  %v2676 = vadd.f32 %v2589, %v2669
  %v2677 = vadd.f32 %v2590, %v2671
  %2678 = vrot.lane.b32.xlu0 %v2027, 121
  %v2679 = vpop.permute.xlu0 %2678
  %2680 = vrot.lane.b32.xlu0 %v2028, 121
  %v2681 = vpop.permute.xlu0 %2680
  %2682 = vrot.lane.b32.xlu0 %v2029, 121
  %v2683 = vpop.permute.xlu0 %2682
  %v2687 = vadd.f32 %v2600, %v2679
  %v2688 = vadd.f32 %v2601, %v2681
  %v2689 = vadd.f32 %v2602, %v2683
  %s2690 = scalar_lea.vmem %s1, 72
  %2691 = vst.msk [vmem:[%s2690] sm:$0xff] %vm1161, %v2612
  %2692 = vst.msk [vmem:[%s2690 + $0x8] sm:$0xff] %vm1161, %v2613
  %2693 = vst.msk [vmem:[%s2690 + $0x10] sm:$0x7f] %vm1164, %v2614
  %s2694 = scalar_lea.vmem %s1, 168
  %2695 = vst.msk [vmem:[%s2694] sm:$0xff] %vm1161, %v2624
  %2696 = vst.msk [vmem:[%s2694 + $0x8] sm:$0xff] %vm1161, %v2625
  %2697 = vst.msk [vmem:[%s2694 + $0x10] sm:$0x7f] %vm1164, %v2626
  %s2698 = scalar_lea.vmem %s1, 288
  %2699 = vst.msk [vmem:[%s2698] sm:$0xff] %vm1161, %v2636
  %2700 = vst.msk [vmem:[%s2698 + $0x8] sm:$0xff] %vm1161, %v2637
  %2701 = vst.msk [vmem:[%s2698 + $0x10] sm:$0x7f] %vm1164, %v2638
  %s2702 = scalar_lea.vmem %s1, 432
  %2703 = vst.msk [vmem:[%s2702] sm:$0xff] %vm1161, %v2648
  %2704 = vst.msk [vmem:[%s2702 + $0x8] sm:$0xff] %vm1161, %v2649
  %2705 = vst.msk [vmem:[%s2702 + $0x10] sm:$0x7f] %vm1164, %v2650
  %s2706 = scalar_lea.vmem %s1, 600
  %2707 = vst.msk [vmem:[%s2706] sm:$0xff] %vm1161, %v2651
  %2708 = vst.msk [vmem:[%s2706 + $0x8] sm:$0xff] %vm1161, %v2652
  %2709 = vst.msk [vmem:[%s2706 + $0x10] sm:$0x7f] %vm1164, %v2653
  %s2710 = scalar_lea.vmem %s1, 792
  %2711 = vst.msk [vmem:[%s2710] sm:$0xff] %vm1161, %v2663
  %2712 = vst.msk [vmem:[%s2710 + $0x8] sm:$0xff] %vm1161, %v2664
  %2713 = vst.msk [vmem:[%s2710 + $0x10] sm:$0x7f] %vm1164, %v2665
  %s2714 = scalar_lea.vmem %s1, 984
  %2715 = vst.msk [vmem:[%s2714] sm:$0xff] %vm1161, %v2675
  %2716 = vst.msk [vmem:[%s2714 + $0x8] sm:$0xff] %vm1161, %v2676
  %2717 = vst.msk [vmem:[%s2714 + $0x10] sm:$0x7f] %vm1164, %v2677
  %s2718 = scalar_lea.vmem %s1, 1152
  %2719 = vst.msk [vmem:[%s2718] sm:$0xff] %vm1161, %v2687
  %2720 = vst.msk [vmem:[%s2718 + $0x8] sm:$0xff] %vm1161, %v2688
  %2721 = vst.msk [vmem:[%s2718 + $0x10] sm:$0x7f] %vm1164, %v2689
  %v2722 = vld [vmem:[%s409] sm:$0xff]
  %v2723 = vld [vmem:[%s409 + $0x8] sm:$0xff]
  %v2724 = vld [vmem:[%s409 + $0x10] sm:$0x7f]
  %v2725 = vmul.f32 %v2722, 0.35355338
  %v2726 = vmul.f32 %v2723, 0.35355338
  %v2727 = vmul.f32 %v2724, 0.35355338
  %v2728 = vmul.f32 %v2722, 0.49039263
  %v2729 = vmul.f32 %v2723, 0.49039263
  %v2730 = vmul.f32 %v2724, 0.49039263
  %v2731 = vmul.f32 %v2722, 0.46193975
  %v2732 = vmul.f32 %v2723, 0.46193975
  %v2733 = vmul.f32 %v2724, 0.46193975
  %v2734 = vmul.f32 %v2722, 0.4157348
  %v2735 = vmul.f32 %v2723, 0.4157348
  %v2736 = vmul.f32 %v2724, 0.4157348
  %v2737 = vmul.f32 %v2722, 0.27778512
  %v2738 = vmul.f32 %v2723, 0.27778512
  %v2739 = vmul.f32 %v2724, 0.27778512
  %v2740 = vmul.f32 %v2722, 0.19134171
  %v2741 = vmul.f32 %v2723, 0.19134171
  %v2742 = vmul.f32 %v2724, 0.19134171
  %v2743 = vmul.f32 %v2722, 0.09754516
  %v2744 = vmul.f32 %v2723, 0.09754516
  %v2745 = vmul.f32 %v2724, 0.09754516
  %2749 = vrot.lane.b32.xlu0 %v2725, 127
  %v2750 = vpop.permute.xlu0 %2749
  %2751 = vrot.lane.b32.xlu0 %v2726, 127
  %v2752 = vpop.permute.xlu0 %2751
  %2753 = vrot.lane.b32.xlu0 %v2727, 127
  %v2754 = vpop.permute.xlu0 %2753
  %v2758 = vadd.f32 %v2725, %v2750
  %v2759 = vadd.f32 %v2726, %v2752
  %v2760 = vadd.f32 %v2727, %v2754
  %2764 = vrot.lane.b32.xlu0 %v2734, 127
  %v2765 = vpop.permute.xlu0 %2764
  %2766 = vrot.lane.b32.xlu0 %v2735, 127
  %v2767 = vpop.permute.xlu0 %2766
  %2768 = vrot.lane.b32.xlu0 %v2736, 127
  %v2769 = vpop.permute.xlu0 %2768
  %v2773 = vadd.f32 %v2728, %v2765
  %v2774 = vadd.f32 %v2729, %v2767
  %v2775 = vadd.f32 %v2730, %v2769
  %2779 = vrot.lane.b32.xlu0 %v2740, 127
  %v2780 = vpop.permute.xlu0 %2779
  %2781 = vrot.lane.b32.xlu0 %v2741, 127
  %v2782 = vpop.permute.xlu0 %2781
  %2783 = vrot.lane.b32.xlu0 %v2742, 127
  %v2784 = vpop.permute.xlu0 %2783
  %v2788 = vadd.f32 %v2731, %v2780
  %v2789 = vadd.f32 %v2732, %v2782
  %v2790 = vadd.f32 %v2733, %v2784
  %v2791 = vmul.f32 %v2722, -0.09754516
  %v2792 = vmul.f32 %v2723, -0.09754516
  %v2793 = vmul.f32 %v2724, -0.09754516
  %2797 = vrot.lane.b32.xlu0 %v2791, 127
  %v2798 = vpop.permute.xlu0 %2797
  %2799 = vrot.lane.b32.xlu0 %v2792, 127
  %v2800 = vpop.permute.xlu0 %2799
  %2801 = vrot.lane.b32.xlu0 %v2793, 127
  %v2802 = vpop.permute.xlu0 %2801
  %v2806 = vadd.f32 %v2734, %v2798
  %v2807 = vadd.f32 %v2735, %v2800
  %v2808 = vadd.f32 %v2736, %v2802
  %v2809 = vmul.f32 %v2722, -0.35355338
  %v2810 = vmul.f32 %v2723, -0.35355338
  %v2811 = vmul.f32 %v2724, -0.35355338
  %2815 = vrot.lane.b32.xlu0 %v2809, 127
  %v2816 = vpop.permute.xlu0 %2815
  %2817 = vrot.lane.b32.xlu0 %v2810, 127
  %v2818 = vpop.permute.xlu0 %2817
  %2819 = vrot.lane.b32.xlu0 %v2811, 127
  %v2820 = vpop.permute.xlu0 %2819
  %v2824 = vadd.f32 %v2725, %v2816
  %v2825 = vadd.f32 %v2726, %v2818
  %v2826 = vadd.f32 %v2727, %v2820
  %v2827 = vmul.f32 %v2722, -0.49039263
  %v2828 = vmul.f32 %v2723, -0.49039263
  %v2829 = vmul.f32 %v2724, -0.49039263
  %2833 = vrot.lane.b32.xlu0 %v2827, 127
  %v2834 = vpop.permute.xlu0 %2833
  %2835 = vrot.lane.b32.xlu0 %v2828, 127
  %v2836 = vpop.permute.xlu0 %2835
  %2837 = vrot.lane.b32.xlu0 %v2829, 127
  %v2838 = vpop.permute.xlu0 %2837
  %v2842 = vadd.f32 %v2737, %v2834
  %v2843 = vadd.f32 %v2738, %v2836
  %v2844 = vadd.f32 %v2739, %v2838
  %v2845 = vmul.f32 %v2722, -0.46193975
  %v2846 = vmul.f32 %v2723, -0.46193975
  %v2847 = vmul.f32 %v2724, -0.46193975
  %2851 = vrot.lane.b32.xlu0 %v2845, 127
  %v2852 = vpop.permute.xlu0 %2851
  %2853 = vrot.lane.b32.xlu0 %v2846, 127
  %v2854 = vpop.permute.xlu0 %2853
  %2855 = vrot.lane.b32.xlu0 %v2847, 127
  %v2856 = vpop.permute.xlu0 %2855
  %v2860 = vadd.f32 %v2740, %v2852
  %v2861 = vadd.f32 %v2741, %v2854
  %v2862 = vadd.f32 %v2742, %v2856
  %v2863 = vmul.f32 %v2722, -0.27778512
  %v2864 = vmul.f32 %v2723, -0.27778512
  %v2865 = vmul.f32 %v2724, -0.27778512
  %2869 = vrot.lane.b32.xlu0 %v2863, 127
  %v2870 = vpop.permute.xlu0 %2869
  %2871 = vrot.lane.b32.xlu0 %v2864, 127
  %v2872 = vpop.permute.xlu0 %2871
  %2873 = vrot.lane.b32.xlu0 %v2865, 127
  %v2874 = vpop.permute.xlu0 %2873
  %v2878 = vadd.f32 %v2743, %v2870
  %v2879 = vadd.f32 %v2744, %v2872
  %v2880 = vadd.f32 %v2745, %v2874
  %2881 = vrot.lane.b32.xlu0 %v2725, 126
  %v2882 = vpop.permute.xlu0 %2881
  %2883 = vrot.lane.b32.xlu0 %v2726, 126
  %v2884 = vpop.permute.xlu0 %2883
  %2885 = vrot.lane.b32.xlu0 %v2727, 126
  %v2886 = vpop.permute.xlu0 %2885
  %v2890 = vadd.f32 %v2758, %v2882
  %v2891 = vadd.f32 %v2759, %v2884
  %v2892 = vadd.f32 %v2760, %v2886
  %2896 = vrot.lane.b32.xlu0 %v2737, 126
  %v2897 = vpop.permute.xlu0 %2896
  %2898 = vrot.lane.b32.xlu0 %v2738, 126
  %v2899 = vpop.permute.xlu0 %2898
  %2900 = vrot.lane.b32.xlu0 %v2739, 126
  %v2901 = vpop.permute.xlu0 %2900
  %v2905 = vadd.f32 %v2773, %v2897
  %v2906 = vadd.f32 %v2774, %v2899
  %v2907 = vadd.f32 %v2775, %v2901
  %v2908 = vmul.f32 %v2722, -0.19134171
  %v2909 = vmul.f32 %v2723, -0.19134171
  %v2910 = vmul.f32 %v2724, -0.19134171
  %2914 = vrot.lane.b32.xlu0 %v2908, 126
  %v2915 = vpop.permute.xlu0 %2914
  %2916 = vrot.lane.b32.xlu0 %v2909, 126
  %v2917 = vpop.permute.xlu0 %2916
  %2918 = vrot.lane.b32.xlu0 %v2910, 126
  %v2919 = vpop.permute.xlu0 %2918
  %v2923 = vadd.f32 %v2788, %v2915
  %v2924 = vadd.f32 %v2789, %v2917
  %v2925 = vadd.f32 %v2790, %v2919
  %2926 = vrot.lane.b32.xlu0 %v2827, 126
  %v2927 = vpop.permute.xlu0 %2926
  %2928 = vrot.lane.b32.xlu0 %v2828, 126
  %v2929 = vpop.permute.xlu0 %2928
  %2930 = vrot.lane.b32.xlu0 %v2829, 126
  %v2931 = vpop.permute.xlu0 %2930
  %v2935 = vadd.f32 %v2806, %v2927
  %v2936 = vadd.f32 %v2807, %v2929
  %v2937 = vadd.f32 %v2808, %v2931
  %2938 = vrot.lane.b32.xlu0 %v2809, 126
  %v2939 = vpop.permute.xlu0 %2938
  %2940 = vrot.lane.b32.xlu0 %v2810, 126
  %v2941 = vpop.permute.xlu0 %2940
  %2942 = vrot.lane.b32.xlu0 %v2811, 126
  %v2943 = vpop.permute.xlu0 %2942
  %v2947 = vadd.f32 %v2824, %v2939
  %v2948 = vadd.f32 %v2825, %v2941
  %v2949 = vadd.f32 %v2826, %v2943
  %2953 = vrot.lane.b32.xlu0 %v2743, 126
  %v2954 = vpop.permute.xlu0 %2953
  %2955 = vrot.lane.b32.xlu0 %v2744, 126
  %v2956 = vpop.permute.xlu0 %2955
  %2957 = vrot.lane.b32.xlu0 %v2745, 126
  %v2958 = vpop.permute.xlu0 %2957
  %v2962 = vadd.f32 %v2842, %v2954
  %v2963 = vadd.f32 %v2843, %v2956
  %v2964 = vadd.f32 %v2844, %v2958
  %2968 = vrot.lane.b32.xlu0 %v2731, 126
  %v2969 = vpop.permute.xlu0 %2968
  %2970 = vrot.lane.b32.xlu0 %v2732, 126
  %v2971 = vpop.permute.xlu0 %2970
  %2972 = vrot.lane.b32.xlu0 %v2733, 126
  %v2973 = vpop.permute.xlu0 %2972
  %v2977 = vadd.f32 %v2860, %v2969
  %v2978 = vadd.f32 %v2861, %v2971
  %v2979 = vadd.f32 %v2862, %v2973
  %2980 = vrot.lane.b32.xlu0 %v2734, 126
  %v2981 = vpop.permute.xlu0 %2980
  %2982 = vrot.lane.b32.xlu0 %v2735, 126
  %v2983 = vpop.permute.xlu0 %2982
  %2984 = vrot.lane.b32.xlu0 %v2736, 126
  %v2985 = vpop.permute.xlu0 %2984
  %v2989 = vadd.f32 %v2878, %v2981
  %v2990 = vadd.f32 %v2879, %v2983
  %v2991 = vadd.f32 %v2880, %v2985
  %2992 = vrot.lane.b32.xlu0 %v2725, 125
  %v2993 = vpop.permute.xlu0 %2992
  %2994 = vrot.lane.b32.xlu0 %v2726, 125
  %v2995 = vpop.permute.xlu0 %2994
  %2996 = vrot.lane.b32.xlu0 %v2727, 125
  %v2997 = vpop.permute.xlu0 %2996
  %v3001 = vadd.f32 %v2890, %v2993
  %v3002 = vadd.f32 %v2891, %v2995
  %v3003 = vadd.f32 %v2892, %v2997
  %3004 = vrot.lane.b32.xlu0 %v2743, 125
  %v3005 = vpop.permute.xlu0 %3004
  %3006 = vrot.lane.b32.xlu0 %v2744, 125
  %v3007 = vpop.permute.xlu0 %3006
  %3008 = vrot.lane.b32.xlu0 %v2745, 125
  %v3009 = vpop.permute.xlu0 %3008
  %v3013 = vadd.f32 %v2905, %v3005
  %v3014 = vadd.f32 %v2906, %v3007
  %v3015 = vadd.f32 %v2907, %v3009
  %3016 = vrot.lane.b32.xlu0 %v2845, 125
  %v3017 = vpop.permute.xlu0 %3016
  %3018 = vrot.lane.b32.xlu0 %v2846, 125
  %v3019 = vpop.permute.xlu0 %3018
  %3020 = vrot.lane.b32.xlu0 %v2847, 125
  %v3021 = vpop.permute.xlu0 %3020
  %v3025 = vadd.f32 %v2923, %v3017
  %v3026 = vadd.f32 %v2924, %v3019
  %v3027 = vadd.f32 %v2925, %v3021
  %3028 = vrot.lane.b32.xlu0 %v2863, 125
  %v3029 = vpop.permute.xlu0 %3028
  %3030 = vrot.lane.b32.xlu0 %v2864, 125
  %v3031 = vpop.permute.xlu0 %3030
  %3032 = vrot.lane.b32.xlu0 %v2865, 125
  %v3033 = vpop.permute.xlu0 %3032
  %v3037 = vadd.f32 %v2935, %v3029
  %v3038 = vadd.f32 %v2936, %v3031
  %v3039 = vadd.f32 %v2937, %v3033
  %v3040 = vadd.f32 %v2947, %v2993
  %v3041 = vadd.f32 %v2948, %v2995
  %v3042 = vadd.f32 %v2949, %v2997
  %3043 = vrot.lane.b32.xlu0 %v2734, 125
  %v3044 = vpop.permute.xlu0 %3043
  %3045 = vrot.lane.b32.xlu0 %v2735, 125
  %v3046 = vpop.permute.xlu0 %3045
  %3047 = vrot.lane.b32.xlu0 %v2736, 125
  %v3048 = vpop.permute.xlu0 %3047
  %v3052 = vadd.f32 %v2962, %v3044
  %v3053 = vadd.f32 %v2963, %v3046
  %v3054 = vadd.f32 %v2964, %v3048
  %3055 = vrot.lane.b32.xlu0 %v2908, 125
  %v3056 = vpop.permute.xlu0 %3055
  %3057 = vrot.lane.b32.xlu0 %v2909, 125
  %v3058 = vpop.permute.xlu0 %3057
  %3059 = vrot.lane.b32.xlu0 %v2910, 125
  %v3060 = vpop.permute.xlu0 %3059
  %v3064 = vadd.f32 %v2977, %v3056
  %v3065 = vadd.f32 %v2978, %v3058
  %v3066 = vadd.f32 %v2979, %v3060
  %3067 = vrot.lane.b32.xlu0 %v2827, 125
  %v3068 = vpop.permute.xlu0 %3067
  %3069 = vrot.lane.b32.xlu0 %v2828, 125
  %v3070 = vpop.permute.xlu0 %3069
  %3071 = vrot.lane.b32.xlu0 %v2829, 125
  %v3072 = vpop.permute.xlu0 %3071
  %v3076 = vadd.f32 %v2989, %v3068
  %v3077 = vadd.f32 %v2990, %v3070
  %v3078 = vadd.f32 %v2991, %v3072
  %3079 = vrot.lane.b32.xlu0 %v2725, 124
  %v3080 = vpop.permute.xlu0 %3079
  %3081 = vrot.lane.b32.xlu0 %v2726, 124
  %v3082 = vpop.permute.xlu0 %3081
  %3083 = vrot.lane.b32.xlu0 %v2727, 124
  %v3084 = vpop.permute.xlu0 %3083
  %v3088 = vadd.f32 %v3001, %v3080
  %v3089 = vadd.f32 %v3002, %v3082
  %v3090 = vadd.f32 %v3003, %v3084
  %3091 = vrot.lane.b32.xlu0 %v2791, 124
  %v3092 = vpop.permute.xlu0 %3091
  %3093 = vrot.lane.b32.xlu0 %v2792, 124
  %v3094 = vpop.permute.xlu0 %3093
  %3095 = vrot.lane.b32.xlu0 %v2793, 124
  %v3096 = vpop.permute.xlu0 %3095
  %v3100 = vadd.f32 %v3013, %v3092
  %v3101 = vadd.f32 %v3014, %v3094
  %v3102 = vadd.f32 %v3015, %v3096
  %3103 = vrot.lane.b32.xlu0 %v2845, 124
  %v3104 = vpop.permute.xlu0 %3103
  %3105 = vrot.lane.b32.xlu0 %v2846, 124
  %v3106 = vpop.permute.xlu0 %3105
  %3107 = vrot.lane.b32.xlu0 %v2847, 124
  %v3108 = vpop.permute.xlu0 %3107
  %v3112 = vadd.f32 %v3025, %v3104
  %v3113 = vadd.f32 %v3026, %v3106
  %v3114 = vadd.f32 %v3027, %v3108
  %3115 = vrot.lane.b32.xlu0 %v2737, 124
  %v3116 = vpop.permute.xlu0 %3115
  %3117 = vrot.lane.b32.xlu0 %v2738, 124
  %v3118 = vpop.permute.xlu0 %3117
  %3119 = vrot.lane.b32.xlu0 %v2739, 124
  %v3120 = vpop.permute.xlu0 %3119
  %v3124 = vadd.f32 %v3037, %v3116
  %v3125 = vadd.f32 %v3038, %v3118
  %v3126 = vadd.f32 %v3039, %v3120
  %v3127 = vadd.f32 %v3040, %v3080
  %v3128 = vadd.f32 %v3041, %v3082
  %v3129 = vadd.f32 %v3042, %v3084
  %v3130 = vmul.f32 %v2722, -0.4157348
  %v3131 = vmul.f32 %v2723, -0.4157348
  %v3132 = vmul.f32 %v2724, -0.4157348
  %3136 = vrot.lane.b32.xlu0 %v3130, 124
  %v3137 = vpop.permute.xlu0 %3136
  %3138 = vrot.lane.b32.xlu0 %v3131, 124
  %v3139 = vpop.permute.xlu0 %3138
  %3140 = vrot.lane.b32.xlu0 %v3132, 124
  %v3141 = vpop.permute.xlu0 %3140
  %v3145 = vadd.f32 %v3052, %v3137
  %v3146 = vadd.f32 %v3053, %v3139
  %v3147 = vadd.f32 %v3054, %v3141
  %3148 = vrot.lane.b32.xlu0 %v2908, 124
  %v3149 = vpop.permute.xlu0 %3148
  %3150 = vrot.lane.b32.xlu0 %v2909, 124
  %v3151 = vpop.permute.xlu0 %3150
  %3152 = vrot.lane.b32.xlu0 %v2910, 124
  %v3153 = vpop.permute.xlu0 %3152
  %v3157 = vadd.f32 %v3064, %v3149
  %v3158 = vadd.f32 %v3065, %v3151
  %v3159 = vadd.f32 %v3066, %v3153
  %3163 = vrot.lane.b32.xlu0 %v2728, 124
  %v3164 = vpop.permute.xlu0 %3163
  %3165 = vrot.lane.b32.xlu0 %v2729, 124
  %v3166 = vpop.permute.xlu0 %3165
  %3167 = vrot.lane.b32.xlu0 %v2730, 124
  %v3168 = vpop.permute.xlu0 %3167
  %v3172 = vadd.f32 %v3076, %v3164
  %v3173 = vadd.f32 %v3077, %v3166
  %v3174 = vadd.f32 %v3078, %v3168
  %3175 = vrot.lane.b32.xlu0 %v2725, 123
  %v3176 = vpop.permute.xlu0 %3175
  %3177 = vrot.lane.b32.xlu0 %v2726, 123
  %v3178 = vpop.permute.xlu0 %3177
  %3179 = vrot.lane.b32.xlu0 %v2727, 123
  %v3180 = vpop.permute.xlu0 %3179
  %v3184 = vadd.f32 %v3088, %v3176
  %v3185 = vadd.f32 %v3089, %v3178
  %v3186 = vadd.f32 %v3090, %v3180
  %3187 = vrot.lane.b32.xlu0 %v2863, 123
  %v3188 = vpop.permute.xlu0 %3187
  %3189 = vrot.lane.b32.xlu0 %v2864, 123
  %v3190 = vpop.permute.xlu0 %3189
  %3191 = vrot.lane.b32.xlu0 %v2865, 123
  %v3192 = vpop.permute.xlu0 %3191
  %v3196 = vadd.f32 %v3100, %v3188
  %v3197 = vadd.f32 %v3101, %v3190
  %v3198 = vadd.f32 %v3102, %v3192
  %3199 = vrot.lane.b32.xlu0 %v2908, 123
  %v3200 = vpop.permute.xlu0 %3199
  %3201 = vrot.lane.b32.xlu0 %v2909, 123
  %v3202 = vpop.permute.xlu0 %3201
  %3203 = vrot.lane.b32.xlu0 %v2910, 123
  %v3204 = vpop.permute.xlu0 %3203
  %v3208 = vadd.f32 %v3112, %v3200
  %v3209 = vadd.f32 %v3113, %v3202
  %v3210 = vadd.f32 %v3114, %v3204
  %3211 = vrot.lane.b32.xlu0 %v2728, 123
  %v3212 = vpop.permute.xlu0 %3211
  %3213 = vrot.lane.b32.xlu0 %v2729, 123
  %v3214 = vpop.permute.xlu0 %3213
  %3215 = vrot.lane.b32.xlu0 %v2730, 123
  %v3216 = vpop.permute.xlu0 %3215
  %v3220 = vadd.f32 %v3124, %v3212
  %v3221 = vadd.f32 %v3125, %v3214
  %v3222 = vadd.f32 %v3126, %v3216
  %3223 = vrot.lane.b32.xlu0 %v2809, 123
  %v3224 = vpop.permute.xlu0 %3223
  %3225 = vrot.lane.b32.xlu0 %v2810, 123
  %v3226 = vpop.permute.xlu0 %3225
  %3227 = vrot.lane.b32.xlu0 %v2811, 123
  %v3228 = vpop.permute.xlu0 %3227
  %v3232 = vadd.f32 %v3127, %v3224
  %v3233 = vadd.f32 %v3128, %v3226
  %v3234 = vadd.f32 %v3129, %v3228
  %3235 = vrot.lane.b32.xlu0 %v2791, 123
  %v3236 = vpop.permute.xlu0 %3235
  %3237 = vrot.lane.b32.xlu0 %v2792, 123
  %v3238 = vpop.permute.xlu0 %3237
  %3239 = vrot.lane.b32.xlu0 %v2793, 123
  %v3240 = vpop.permute.xlu0 %3239
  %v3244 = vadd.f32 %v3145, %v3236
  %v3245 = vadd.f32 %v3146, %v3238
  %v3246 = vadd.f32 %v3147, %v3240
  %3247 = vrot.lane.b32.xlu0 %v2731, 123
  %v3248 = vpop.permute.xlu0 %3247
  %3249 = vrot.lane.b32.xlu0 %v2732, 123
  %v3250 = vpop.permute.xlu0 %3249
  %3251 = vrot.lane.b32.xlu0 %v2733, 123
  %v3252 = vpop.permute.xlu0 %3251
  %v3256 = vadd.f32 %v3157, %v3248
  %v3257 = vadd.f32 %v3158, %v3250
  %v3258 = vadd.f32 %v3159, %v3252
  %3259 = vrot.lane.b32.xlu0 %v3130, 123
  %v3260 = vpop.permute.xlu0 %3259
  %3261 = vrot.lane.b32.xlu0 %v3131, 123
  %v3262 = vpop.permute.xlu0 %3261
  %3263 = vrot.lane.b32.xlu0 %v3132, 123
  %v3264 = vpop.permute.xlu0 %3263
  %v3268 = vadd.f32 %v3172, %v3260
  %v3269 = vadd.f32 %v3173, %v3262
  %v3270 = vadd.f32 %v3174, %v3264
  %3271 = vrot.lane.b32.xlu0 %v2725, 122
  %v3272 = vpop.permute.xlu0 %3271
  %3273 = vrot.lane.b32.xlu0 %v2726, 122
  %v3274 = vpop.permute.xlu0 %3273
  %3275 = vrot.lane.b32.xlu0 %v2727, 122
  %v3276 = vpop.permute.xlu0 %3275
  %v3280 = vadd.f32 %v3184, %v3272
  %v3281 = vadd.f32 %v3185, %v3274
  %v3282 = vadd.f32 %v3186, %v3276
  %3283 = vrot.lane.b32.xlu0 %v3130, 122
  %v3284 = vpop.permute.xlu0 %3283
  %3285 = vrot.lane.b32.xlu0 %v3131, 122
  %v3286 = vpop.permute.xlu0 %3285
  %3287 = vrot.lane.b32.xlu0 %v3132, 122
  %v3288 = vpop.permute.xlu0 %3287
  %v3292 = vadd.f32 %v3196, %v3284
  %v3293 = vadd.f32 %v3197, %v3286
  %v3294 = vadd.f32 %v3198, %v3288
  %3295 = vrot.lane.b32.xlu0 %v2740, 122
  %v3296 = vpop.permute.xlu0 %3295
  %3297 = vrot.lane.b32.xlu0 %v2741, 122
  %v3298 = vpop.permute.xlu0 %3297
  %3299 = vrot.lane.b32.xlu0 %v2742, 122
  %v3300 = vpop.permute.xlu0 %3299
  %v3304 = vadd.f32 %v3208, %v3296
  %v3305 = vadd.f32 %v3209, %v3298
  %v3306 = vadd.f32 %v3210, %v3300
  %3307 = vrot.lane.b32.xlu0 %v2743, 122
  %v3308 = vpop.permute.xlu0 %3307
  %3309 = vrot.lane.b32.xlu0 %v2744, 122
  %v3310 = vpop.permute.xlu0 %3309
  %3311 = vrot.lane.b32.xlu0 %v2745, 122
  %v3312 = vpop.permute.xlu0 %3311
  %v3316 = vadd.f32 %v3220, %v3308
  %v3317 = vadd.f32 %v3221, %v3310
  %v3318 = vadd.f32 %v3222, %v3312
  %3319 = vrot.lane.b32.xlu0 %v2809, 122
  %v3320 = vpop.permute.xlu0 %3319
  %3321 = vrot.lane.b32.xlu0 %v2810, 122
  %v3322 = vpop.permute.xlu0 %3321
  %3323 = vrot.lane.b32.xlu0 %v2811, 122
  %v3324 = vpop.permute.xlu0 %3323
  %v3328 = vadd.f32 %v3232, %v3320
  %v3329 = vadd.f32 %v3233, %v3322
  %v3330 = vadd.f32 %v3234, %v3324
  %3331 = vrot.lane.b32.xlu0 %v2728, 122
  %v3332 = vpop.permute.xlu0 %3331
  %3333 = vrot.lane.b32.xlu0 %v2729, 122
  %v3334 = vpop.permute.xlu0 %3333
  %3335 = vrot.lane.b32.xlu0 %v2730, 122
  %v3336 = vpop.permute.xlu0 %3335
  %v3340 = vadd.f32 %v3244, %v3332
  %v3341 = vadd.f32 %v3245, %v3334
  %v3342 = vadd.f32 %v3246, %v3336
  %3343 = vrot.lane.b32.xlu0 %v2845, 122
  %v3344 = vpop.permute.xlu0 %3343
  %3345 = vrot.lane.b32.xlu0 %v2846, 122
  %v3346 = vpop.permute.xlu0 %3345
  %3347 = vrot.lane.b32.xlu0 %v2847, 122
  %v3348 = vpop.permute.xlu0 %3347
  %v3352 = vadd.f32 %v3256, %v3344
  %v3353 = vadd.f32 %v3257, %v3346
  %v3354 = vadd.f32 %v3258, %v3348
  %3355 = vrot.lane.b32.xlu0 %v2737, 122
  %v3356 = vpop.permute.xlu0 %3355
  %3357 = vrot.lane.b32.xlu0 %v2738, 122
  %v3358 = vpop.permute.xlu0 %3357
  %3359 = vrot.lane.b32.xlu0 %v2739, 122
  %v3360 = vpop.permute.xlu0 %3359
  %v3364 = vadd.f32 %v3268, %v3356
  %v3365 = vadd.f32 %v3269, %v3358
  %v3366 = vadd.f32 %v3270, %v3360
  %3367 = vrot.lane.b32.xlu0 %v2725, 121
  %v3368 = vpop.permute.xlu0 %3367
  %3369 = vrot.lane.b32.xlu0 %v2726, 121
  %v3370 = vpop.permute.xlu0 %3369
  %3371 = vrot.lane.b32.xlu0 %v2727, 121
  %v3372 = vpop.permute.xlu0 %3371
  %v3376 = vadd.f32 %v3280, %v3368
  %v3377 = vadd.f32 %v3281, %v3370
  %v3378 = vadd.f32 %v3282, %v3372
  %3379 = vrot.lane.b32.xlu0 %v2827, 121
  %v3380 = vpop.permute.xlu0 %3379
  %3381 = vrot.lane.b32.xlu0 %v2828, 121
  %v3382 = vpop.permute.xlu0 %3381
  %3383 = vrot.lane.b32.xlu0 %v2829, 121
  %v3384 = vpop.permute.xlu0 %3383
  %v3388 = vadd.f32 %v3292, %v3380
  %v3389 = vadd.f32 %v3293, %v3382
  %v3390 = vadd.f32 %v3294, %v3384
  %3391 = vrot.lane.b32.xlu0 %v2731, 121
  %v3392 = vpop.permute.xlu0 %3391
  %3393 = vrot.lane.b32.xlu0 %v2732, 121
  %v3394 = vpop.permute.xlu0 %3393
  %3395 = vrot.lane.b32.xlu0 %v2733, 121
  %v3396 = vpop.permute.xlu0 %3395
  %v3400 = vadd.f32 %v3304, %v3392
  %v3401 = vadd.f32 %v3305, %v3394
  %v3402 = vadd.f32 %v3306, %v3396
  %3403 = vrot.lane.b32.xlu0 %v3130, 121
  %v3404 = vpop.permute.xlu0 %3403
  %3405 = vrot.lane.b32.xlu0 %v3131, 121
  %v3406 = vpop.permute.xlu0 %3405
  %3407 = vrot.lane.b32.xlu0 %v3132, 121
  %v3408 = vpop.permute.xlu0 %3407
  %v3412 = vadd.f32 %v3316, %v3404
  %v3413 = vadd.f32 %v3317, %v3406
  %v3414 = vadd.f32 %v3318, %v3408
  %v3415 = vadd.f32 %v3328, %v3368
  %v3416 = vadd.f32 %v3329, %v3370
  %v3417 = vadd.f32 %v3330, %v3372
  %3418 = vrot.lane.b32.xlu0 %v2863, 121
  %v3419 = vpop.permute.xlu0 %3418
  %3420 = vrot.lane.b32.xlu0 %v2864, 121
  %v3421 = vpop.permute.xlu0 %3420
  %3422 = vrot.lane.b32.xlu0 %v2865, 121
  %v3423 = vpop.permute.xlu0 %3422
  %v3427 = vadd.f32 %v3340, %v3419
  %v3428 = vadd.f32 %v3341, %v3421
  %v3429 = vadd.f32 %v3342, %v3423
  %3430 = vrot.lane.b32.xlu0 %v2740, 121
  %v3431 = vpop.permute.xlu0 %3430
  %3432 = vrot.lane.b32.xlu0 %v2741, 121
  %v3433 = vpop.permute.xlu0 %3432
  %3434 = vrot.lane.b32.xlu0 %v2742, 121
  %v3435 = vpop.permute.xlu0 %3434
  %v3439 = vadd.f32 %v3352, %v3431
  %v3440 = vadd.f32 %v3353, %v3433
  %v3441 = vadd.f32 %v3354, %v3435
  %3442 = vrot.lane.b32.xlu0 %v2791, 121
  %v3443 = vpop.permute.xlu0 %3442
  %3444 = vrot.lane.b32.xlu0 %v2792, 121
  %v3445 = vpop.permute.xlu0 %3444
  %3446 = vrot.lane.b32.xlu0 %v2793, 121
  %v3447 = vpop.permute.xlu0 %3446
  %v3451 = vadd.f32 %v3364, %v3443
  %v3452 = vadd.f32 %v3365, %v3445
  %v3453 = vadd.f32 %v3366, %v3447
  %s3454 = scalar_lea.vmem %s1, 144
  %3455 = vst.msk [vmem:[%s3454] sm:$0xff] %vm1161, %v3376
  %3456 = vst.msk [vmem:[%s3454 + $0x8] sm:$0xff] %vm1161, %v3377
  %3457 = vst.msk [vmem:[%s3454 + $0x10] sm:$0x7f] %vm1164, %v3378
  %s3458 = scalar_lea.vmem %s1, 264
  %3459 = vst.msk [vmem:[%s3458] sm:$0xff] %vm1161, %v3388
  %3460 = vst.msk [vmem:[%s3458 + $0x8] sm:$0xff] %vm1161, %v3389
  %3461 = vst.msk [vmem:[%s3458 + $0x10] sm:$0x7f] %vm1164, %v3390
  %s3462 = scalar_lea.vmem %s1, 408
  %3463 = vst.msk [vmem:[%s3462] sm:$0xff] %vm1161, %v3400
  %3464 = vst.msk [vmem:[%s3462 + $0x8] sm:$0xff] %vm1161, %v3401
  %3465 = vst.msk [vmem:[%s3462 + $0x10] sm:$0x7f] %vm1164, %v3402
  %s3466 = scalar_lea.vmem %s1, 576
  %3467 = vst.msk [vmem:[%s3466] sm:$0xff] %vm1161, %v3412
  %3468 = vst.msk [vmem:[%s3466 + $0x8] sm:$0xff] %vm1161, %v3413
  %3469 = vst.msk [vmem:[%s3466 + $0x10] sm:$0x7f] %vm1164, %v3414
  %s3470 = scalar_lea.vmem %s1, 768
  %3471 = vst.msk [vmem:[%s3470] sm:$0xff] %vm1161, %v3415
  %3472 = vst.msk [vmem:[%s3470 + $0x8] sm:$0xff] %vm1161, %v3416
  %3473 = vst.msk [vmem:[%s3470 + $0x10] sm:$0x7f] %vm1164, %v3417
  %s3474 = scalar_lea.vmem %s1, 960
  %3475 = vst.msk [vmem:[%s3474] sm:$0xff] %vm1161, %v3427
  %3476 = vst.msk [vmem:[%s3474 + $0x8] sm:$0xff] %vm1161, %v3428
  %3477 = vst.msk [vmem:[%s3474 + $0x10] sm:$0x7f] %vm1164, %v3429
  %s3478 = scalar_lea.vmem %s1, 1128
  %3479 = vst.msk [vmem:[%s3478] sm:$0xff] %vm1161, %v3439
  %3480 = vst.msk [vmem:[%s3478 + $0x8] sm:$0xff] %vm1161, %v3440
  %3481 = vst.msk [vmem:[%s3478 + $0x10] sm:$0x7f] %vm1164, %v3441
  %s3482 = scalar_lea.vmem %s1, 1272
  %3483 = vst.msk [vmem:[%s3482] sm:$0xff] %vm1161, %v3451
  %3484 = vst.msk [vmem:[%s3482 + $0x8] sm:$0xff] %vm1161, %v3452
  %3485 = vst.msk [vmem:[%s3482 + $0x10] sm:$0x7f] %vm1164, %v3453
  %v3486 = vld [vmem:[%s413] sm:$0xff]
  %v3487 = vld [vmem:[%s413 + $0x8] sm:$0xff]
  %v3488 = vld [vmem:[%s413 + $0x10] sm:$0x7f]
  %v3489 = vmul.f32 %v3486, 0.35355338
  %v3490 = vmul.f32 %v3487, 0.35355338
  %v3491 = vmul.f32 %v3488, 0.35355338
  %v3492 = vmul.f32 %v3486, 0.49039263
  %v3493 = vmul.f32 %v3487, 0.49039263
  %v3494 = vmul.f32 %v3488, 0.49039263
  %v3495 = vmul.f32 %v3486, 0.46193975
  %v3496 = vmul.f32 %v3487, 0.46193975
  %v3497 = vmul.f32 %v3488, 0.46193975
  %v3498 = vmul.f32 %v3486, 0.4157348
  %v3499 = vmul.f32 %v3487, 0.4157348
  %v3500 = vmul.f32 %v3488, 0.4157348
  %v3501 = vmul.f32 %v3486, 0.27778512
  %v3502 = vmul.f32 %v3487, 0.27778512
  %v3503 = vmul.f32 %v3488, 0.27778512
  %v3504 = vmul.f32 %v3486, 0.19134171
  %v3505 = vmul.f32 %v3487, 0.19134171
  %v3506 = vmul.f32 %v3488, 0.19134171
  %v3507 = vmul.f32 %v3486, 0.09754516
  %v3508 = vmul.f32 %v3487, 0.09754516
  %v3509 = vmul.f32 %v3488, 0.09754516
  %3513 = vrot.lane.b32.xlu0 %v3489, 127
  %v3514 = vpop.permute.xlu0 %3513
  %3515 = vrot.lane.b32.xlu0 %v3490, 127
  %v3516 = vpop.permute.xlu0 %3515
  %3517 = vrot.lane.b32.xlu0 %v3491, 127
  %v3518 = vpop.permute.xlu0 %3517
  %v3522 = vadd.f32 %v3489, %v3514
  %v3523 = vadd.f32 %v3490, %v3516
  %v3524 = vadd.f32 %v3491, %v3518
  %3528 = vrot.lane.b32.xlu0 %v3498, 127
  %v3529 = vpop.permute.xlu0 %3528
  %3530 = vrot.lane.b32.xlu0 %v3499, 127
  %v3531 = vpop.permute.xlu0 %3530
  %3532 = vrot.lane.b32.xlu0 %v3500, 127
  %v3533 = vpop.permute.xlu0 %3532
  %v3537 = vadd.f32 %v3492, %v3529
  %v3538 = vadd.f32 %v3493, %v3531
  %v3539 = vadd.f32 %v3494, %v3533
  %3543 = vrot.lane.b32.xlu0 %v3504, 127
  %v3544 = vpop.permute.xlu0 %3543
  %3545 = vrot.lane.b32.xlu0 %v3505, 127
  %v3546 = vpop.permute.xlu0 %3545
  %3547 = vrot.lane.b32.xlu0 %v3506, 127
  %v3548 = vpop.permute.xlu0 %3547
  %v3552 = vadd.f32 %v3495, %v3544
  %v3553 = vadd.f32 %v3496, %v3546
  %v3554 = vadd.f32 %v3497, %v3548
  %v3555 = vmul.f32 %v3486, -0.09754516
  %v3556 = vmul.f32 %v3487, -0.09754516
  %v3557 = vmul.f32 %v3488, -0.09754516
  %3561 = vrot.lane.b32.xlu0 %v3555, 127
  %v3562 = vpop.permute.xlu0 %3561
  %3563 = vrot.lane.b32.xlu0 %v3556, 127
  %v3564 = vpop.permute.xlu0 %3563
  %3565 = vrot.lane.b32.xlu0 %v3557, 127
  %v3566 = vpop.permute.xlu0 %3565
  %v3570 = vadd.f32 %v3498, %v3562
  %v3571 = vadd.f32 %v3499, %v3564
  %v3572 = vadd.f32 %v3500, %v3566
  %v3573 = vmul.f32 %v3486, -0.35355338
  %v3574 = vmul.f32 %v3487, -0.35355338
  %v3575 = vmul.f32 %v3488, -0.35355338
  %3579 = vrot.lane.b32.xlu0 %v3573, 127
  %v3580 = vpop.permute.xlu0 %3579
  %3581 = vrot.lane.b32.xlu0 %v3574, 127
  %v3582 = vpop.permute.xlu0 %3581
  %3583 = vrot.lane.b32.xlu0 %v3575, 127
  %v3584 = vpop.permute.xlu0 %3583
  %v3588 = vadd.f32 %v3489, %v3580
  %v3589 = vadd.f32 %v3490, %v3582
  %v3590 = vadd.f32 %v3491, %v3584
  %v3591 = vmul.f32 %v3486, -0.49039263
  %v3592 = vmul.f32 %v3487, -0.49039263
  %v3593 = vmul.f32 %v3488, -0.49039263
  %3597 = vrot.lane.b32.xlu0 %v3591, 127
  %v3598 = vpop.permute.xlu0 %3597
  %3599 = vrot.lane.b32.xlu0 %v3592, 127
  %v3600 = vpop.permute.xlu0 %3599
  %3601 = vrot.lane.b32.xlu0 %v3593, 127
  %v3602 = vpop.permute.xlu0 %3601
  %v3606 = vadd.f32 %v3501, %v3598
  %v3607 = vadd.f32 %v3502, %v3600
  %v3608 = vadd.f32 %v3503, %v3602
  %v3609 = vmul.f32 %v3486, -0.46193975
  %v3610 = vmul.f32 %v3487, -0.46193975
  %v3611 = vmul.f32 %v3488, -0.46193975
  %3615 = vrot.lane.b32.xlu0 %v3609, 127
  %v3616 = vpop.permute.xlu0 %3615
  %3617 = vrot.lane.b32.xlu0 %v3610, 127
  %v3618 = vpop.permute.xlu0 %3617
  %3619 = vrot.lane.b32.xlu0 %v3611, 127
  %v3620 = vpop.permute.xlu0 %3619
  %v3624 = vadd.f32 %v3504, %v3616
  %v3625 = vadd.f32 %v3505, %v3618
  %v3626 = vadd.f32 %v3506, %v3620
  %v3627 = vmul.f32 %v3486, -0.27778512
  %v3628 = vmul.f32 %v3487, -0.27778512
  %v3629 = vmul.f32 %v3488, -0.27778512
  %3633 = vrot.lane.b32.xlu0 %v3627, 127
  %v3634 = vpop.permute.xlu0 %3633
  %3635 = vrot.lane.b32.xlu0 %v3628, 127
  %v3636 = vpop.permute.xlu0 %3635
  %3637 = vrot.lane.b32.xlu0 %v3629, 127
  %v3638 = vpop.permute.xlu0 %3637
  %v3642 = vadd.f32 %v3507, %v3634
  %v3643 = vadd.f32 %v3508, %v3636
  %v3644 = vadd.f32 %v3509, %v3638
  %3645 = vrot.lane.b32.xlu0 %v3489, 126
  %v3646 = vpop.permute.xlu0 %3645
  %3647 = vrot.lane.b32.xlu0 %v3490, 126
  %v3648 = vpop.permute.xlu0 %3647
  %3649 = vrot.lane.b32.xlu0 %v3491, 126
  %v3650 = vpop.permute.xlu0 %3649
  %v3654 = vadd.f32 %v3522, %v3646
  %v3655 = vadd.f32 %v3523, %v3648
  %v3656 = vadd.f32 %v3524, %v3650
  %3660 = vrot.lane.b32.xlu0 %v3501, 126
  %v3661 = vpop.permute.xlu0 %3660
  %3662 = vrot.lane.b32.xlu0 %v3502, 126
  %v3663 = vpop.permute.xlu0 %3662
  %3664 = vrot.lane.b32.xlu0 %v3503, 126
  %v3665 = vpop.permute.xlu0 %3664
  %v3669 = vadd.f32 %v3537, %v3661
  %v3670 = vadd.f32 %v3538, %v3663
  %v3671 = vadd.f32 %v3539, %v3665
  %v3672 = vmul.f32 %v3486, -0.19134171
  %v3673 = vmul.f32 %v3487, -0.19134171
  %v3674 = vmul.f32 %v3488, -0.19134171
  %3678 = vrot.lane.b32.xlu0 %v3672, 126
  %v3679 = vpop.permute.xlu0 %3678
  %3680 = vrot.lane.b32.xlu0 %v3673, 126
  %v3681 = vpop.permute.xlu0 %3680
  %3682 = vrot.lane.b32.xlu0 %v3674, 126
  %v3683 = vpop.permute.xlu0 %3682
  %v3687 = vadd.f32 %v3552, %v3679
  %v3688 = vadd.f32 %v3553, %v3681
  %v3689 = vadd.f32 %v3554, %v3683
  %3690 = vrot.lane.b32.xlu0 %v3591, 126
  %v3691 = vpop.permute.xlu0 %3690
  %3692 = vrot.lane.b32.xlu0 %v3592, 126
  %v3693 = vpop.permute.xlu0 %3692
  %3694 = vrot.lane.b32.xlu0 %v3593, 126
  %v3695 = vpop.permute.xlu0 %3694
  %v3699 = vadd.f32 %v3570, %v3691
  %v3700 = vadd.f32 %v3571, %v3693
  %v3701 = vadd.f32 %v3572, %v3695
  %3702 = vrot.lane.b32.xlu0 %v3573, 126
  %v3703 = vpop.permute.xlu0 %3702
  %3704 = vrot.lane.b32.xlu0 %v3574, 126
  %v3705 = vpop.permute.xlu0 %3704
  %3706 = vrot.lane.b32.xlu0 %v3575, 126
  %v3707 = vpop.permute.xlu0 %3706
  %v3711 = vadd.f32 %v3588, %v3703
  %v3712 = vadd.f32 %v3589, %v3705
  %v3713 = vadd.f32 %v3590, %v3707
  %3717 = vrot.lane.b32.xlu0 %v3507, 126
  %v3718 = vpop.permute.xlu0 %3717
  %3719 = vrot.lane.b32.xlu0 %v3508, 126
  %v3720 = vpop.permute.xlu0 %3719
  %3721 = vrot.lane.b32.xlu0 %v3509, 126
  %v3722 = vpop.permute.xlu0 %3721
  %v3726 = vadd.f32 %v3606, %v3718
  %v3727 = vadd.f32 %v3607, %v3720
  %v3728 = vadd.f32 %v3608, %v3722
  %3732 = vrot.lane.b32.xlu0 %v3495, 126
  %v3733 = vpop.permute.xlu0 %3732
  %3734 = vrot.lane.b32.xlu0 %v3496, 126
  %v3735 = vpop.permute.xlu0 %3734
  %3736 = vrot.lane.b32.xlu0 %v3497, 126
  %v3737 = vpop.permute.xlu0 %3736
  %v3741 = vadd.f32 %v3624, %v3733
  %v3742 = vadd.f32 %v3625, %v3735
  %v3743 = vadd.f32 %v3626, %v3737
  %3744 = vrot.lane.b32.xlu0 %v3498, 126
  %v3745 = vpop.permute.xlu0 %3744
  %3746 = vrot.lane.b32.xlu0 %v3499, 126
  %v3747 = vpop.permute.xlu0 %3746
  %3748 = vrot.lane.b32.xlu0 %v3500, 126
  %v3749 = vpop.permute.xlu0 %3748
  %v3753 = vadd.f32 %v3642, %v3745
  %v3754 = vadd.f32 %v3643, %v3747
  %v3755 = vadd.f32 %v3644, %v3749
  %3756 = vrot.lane.b32.xlu0 %v3489, 125
  %v3757 = vpop.permute.xlu0 %3756
  %3758 = vrot.lane.b32.xlu0 %v3490, 125
  %v3759 = vpop.permute.xlu0 %3758
  %3760 = vrot.lane.b32.xlu0 %v3491, 125
  %v3761 = vpop.permute.xlu0 %3760
  %v3765 = vadd.f32 %v3654, %v3757
  %v3766 = vadd.f32 %v3655, %v3759
  %v3767 = vadd.f32 %v3656, %v3761
  %3768 = vrot.lane.b32.xlu0 %v3507, 125
  %v3769 = vpop.permute.xlu0 %3768
  %3770 = vrot.lane.b32.xlu0 %v3508, 125
  %v3771 = vpop.permute.xlu0 %3770
  %3772 = vrot.lane.b32.xlu0 %v3509, 125
  %v3773 = vpop.permute.xlu0 %3772
  %v3777 = vadd.f32 %v3669, %v3769
  %v3778 = vadd.f32 %v3670, %v3771
  %v3779 = vadd.f32 %v3671, %v3773
  %3780 = vrot.lane.b32.xlu0 %v3609, 125
  %v3781 = vpop.permute.xlu0 %3780
  %3782 = vrot.lane.b32.xlu0 %v3610, 125
  %v3783 = vpop.permute.xlu0 %3782
  %3784 = vrot.lane.b32.xlu0 %v3611, 125
  %v3785 = vpop.permute.xlu0 %3784
  %v3789 = vadd.f32 %v3687, %v3781
  %v3790 = vadd.f32 %v3688, %v3783
  %v3791 = vadd.f32 %v3689, %v3785
  %3792 = vrot.lane.b32.xlu0 %v3627, 125
  %v3793 = vpop.permute.xlu0 %3792
  %3794 = vrot.lane.b32.xlu0 %v3628, 125
  %v3795 = vpop.permute.xlu0 %3794
  %3796 = vrot.lane.b32.xlu0 %v3629, 125
  %v3797 = vpop.permute.xlu0 %3796
  %v3801 = vadd.f32 %v3699, %v3793
  %v3802 = vadd.f32 %v3700, %v3795
  %v3803 = vadd.f32 %v3701, %v3797
  %v3804 = vadd.f32 %v3711, %v3757
  %v3805 = vadd.f32 %v3712, %v3759
  %v3806 = vadd.f32 %v3713, %v3761
  %3807 = vrot.lane.b32.xlu0 %v3498, 125
  %v3808 = vpop.permute.xlu0 %3807
  %3809 = vrot.lane.b32.xlu0 %v3499, 125
  %v3810 = vpop.permute.xlu0 %3809
  %3811 = vrot.lane.b32.xlu0 %v3500, 125
  %v3812 = vpop.permute.xlu0 %3811
  %v3816 = vadd.f32 %v3726, %v3808
  %v3817 = vadd.f32 %v3727, %v3810
  %v3818 = vadd.f32 %v3728, %v3812
  %3819 = vrot.lane.b32.xlu0 %v3672, 125
  %v3820 = vpop.permute.xlu0 %3819
  %3821 = vrot.lane.b32.xlu0 %v3673, 125
  %v3822 = vpop.permute.xlu0 %3821
  %3823 = vrot.lane.b32.xlu0 %v3674, 125
  %v3824 = vpop.permute.xlu0 %3823
  %v3828 = vadd.f32 %v3741, %v3820
  %v3829 = vadd.f32 %v3742, %v3822
  %v3830 = vadd.f32 %v3743, %v3824
  %3831 = vrot.lane.b32.xlu0 %v3591, 125
  %v3832 = vpop.permute.xlu0 %3831
  %3833 = vrot.lane.b32.xlu0 %v3592, 125
  %v3834 = vpop.permute.xlu0 %3833
  %3835 = vrot.lane.b32.xlu0 %v3593, 125
  %v3836 = vpop.permute.xlu0 %3835
  %v3840 = vadd.f32 %v3753, %v3832
  %v3841 = vadd.f32 %v3754, %v3834
  %v3842 = vadd.f32 %v3755, %v3836
  %3843 = vrot.lane.b32.xlu0 %v3489, 124
  %v3844 = vpop.permute.xlu0 %3843
  %3845 = vrot.lane.b32.xlu0 %v3490, 124
  %v3846 = vpop.permute.xlu0 %3845
  %3847 = vrot.lane.b32.xlu0 %v3491, 124
  %v3848 = vpop.permute.xlu0 %3847
  %v3852 = vadd.f32 %v3765, %v3844
  %v3853 = vadd.f32 %v3766, %v3846
  %v3854 = vadd.f32 %v3767, %v3848
  %3855 = vrot.lane.b32.xlu0 %v3555, 124
  %v3856 = vpop.permute.xlu0 %3855
  %3857 = vrot.lane.b32.xlu0 %v3556, 124
  %v3858 = vpop.permute.xlu0 %3857
  %3859 = vrot.lane.b32.xlu0 %v3557, 124
  %v3860 = vpop.permute.xlu0 %3859
  %v3864 = vadd.f32 %v3777, %v3856
  %v3865 = vadd.f32 %v3778, %v3858
  %v3866 = vadd.f32 %v3779, %v3860
  %3867 = vrot.lane.b32.xlu0 %v3609, 124
  %v3868 = vpop.permute.xlu0 %3867
  %3869 = vrot.lane.b32.xlu0 %v3610, 124
  %v3870 = vpop.permute.xlu0 %3869
  %3871 = vrot.lane.b32.xlu0 %v3611, 124
  %v3872 = vpop.permute.xlu0 %3871
  %v3876 = vadd.f32 %v3789, %v3868
  %v3877 = vadd.f32 %v3790, %v3870
  %v3878 = vadd.f32 %v3791, %v3872
  %3879 = vrot.lane.b32.xlu0 %v3501, 124
  %v3880 = vpop.permute.xlu0 %3879
  %3881 = vrot.lane.b32.xlu0 %v3502, 124
  %v3882 = vpop.permute.xlu0 %3881
  %3883 = vrot.lane.b32.xlu0 %v3503, 124
  %v3884 = vpop.permute.xlu0 %3883
  %v3888 = vadd.f32 %v3801, %v3880
  %v3889 = vadd.f32 %v3802, %v3882
  %v3890 = vadd.f32 %v3803, %v3884
  %v3891 = vadd.f32 %v3804, %v3844
  %v3892 = vadd.f32 %v3805, %v3846
  %v3893 = vadd.f32 %v3806, %v3848
  %v3894 = vmul.f32 %v3486, -0.4157348
  %v3895 = vmul.f32 %v3487, -0.4157348
  %v3896 = vmul.f32 %v3488, -0.4157348
  %3900 = vrot.lane.b32.xlu0 %v3894, 124
  %v3901 = vpop.permute.xlu0 %3900
  %3902 = vrot.lane.b32.xlu0 %v3895, 124
  %v3903 = vpop.permute.xlu0 %3902
  %3904 = vrot.lane.b32.xlu0 %v3896, 124
  %v3905 = vpop.permute.xlu0 %3904
  %v3909 = vadd.f32 %v3816, %v3901
  %v3910 = vadd.f32 %v3817, %v3903
  %v3911 = vadd.f32 %v3818, %v3905
  %3912 = vrot.lane.b32.xlu0 %v3672, 124
  %v3913 = vpop.permute.xlu0 %3912
  %3914 = vrot.lane.b32.xlu0 %v3673, 124
  %v3915 = vpop.permute.xlu0 %3914
  %3916 = vrot.lane.b32.xlu0 %v3674, 124
  %v3917 = vpop.permute.xlu0 %3916
  %v3921 = vadd.f32 %v3828, %v3913
  %v3922 = vadd.f32 %v3829, %v3915
  %v3923 = vadd.f32 %v3830, %v3917
  %3927 = vrot.lane.b32.xlu0 %v3492, 124
  %v3928 = vpop.permute.xlu0 %3927
  %3929 = vrot.lane.b32.xlu0 %v3493, 124
  %v3930 = vpop.permute.xlu0 %3929
  %3931 = vrot.lane.b32.xlu0 %v3494, 124
  %v3932 = vpop.permute.xlu0 %3931
  %v3936 = vadd.f32 %v3840, %v3928
  %v3937 = vadd.f32 %v3841, %v3930
  %v3938 = vadd.f32 %v3842, %v3932
  %3939 = vrot.lane.b32.xlu0 %v3489, 123
  %v3940 = vpop.permute.xlu0 %3939
  %3941 = vrot.lane.b32.xlu0 %v3490, 123
  %v3942 = vpop.permute.xlu0 %3941
  %3943 = vrot.lane.b32.xlu0 %v3491, 123
  %v3944 = vpop.permute.xlu0 %3943
  %v3948 = vadd.f32 %v3852, %v3940
  %v3949 = vadd.f32 %v3853, %v3942
  %v3950 = vadd.f32 %v3854, %v3944
  %3951 = vrot.lane.b32.xlu0 %v3627, 123
  %v3952 = vpop.permute.xlu0 %3951
  %3953 = vrot.lane.b32.xlu0 %v3628, 123
  %v3954 = vpop.permute.xlu0 %3953
  %3955 = vrot.lane.b32.xlu0 %v3629, 123
  %v3956 = vpop.permute.xlu0 %3955
  %v3960 = vadd.f32 %v3864, %v3952
  %v3961 = vadd.f32 %v3865, %v3954
  %v3962 = vadd.f32 %v3866, %v3956
  %3963 = vrot.lane.b32.xlu0 %v3672, 123
  %v3964 = vpop.permute.xlu0 %3963
  %3965 = vrot.lane.b32.xlu0 %v3673, 123
  %v3966 = vpop.permute.xlu0 %3965
  %3967 = vrot.lane.b32.xlu0 %v3674, 123
  %v3968 = vpop.permute.xlu0 %3967
  %v3972 = vadd.f32 %v3876, %v3964
  %v3973 = vadd.f32 %v3877, %v3966
  %v3974 = vadd.f32 %v3878, %v3968
  %3975 = vrot.lane.b32.xlu0 %v3492, 123
  %v3976 = vpop.permute.xlu0 %3975
  %3977 = vrot.lane.b32.xlu0 %v3493, 123
  %v3978 = vpop.permute.xlu0 %3977
  %3979 = vrot.lane.b32.xlu0 %v3494, 123
  %v3980 = vpop.permute.xlu0 %3979
  %v3984 = vadd.f32 %v3888, %v3976
  %v3985 = vadd.f32 %v3889, %v3978
  %v3986 = vadd.f32 %v3890, %v3980
  %3987 = vrot.lane.b32.xlu0 %v3573, 123
  %v3988 = vpop.permute.xlu0 %3987
  %3989 = vrot.lane.b32.xlu0 %v3574, 123
  %v3990 = vpop.permute.xlu0 %3989
  %3991 = vrot.lane.b32.xlu0 %v3575, 123
  %v3992 = vpop.permute.xlu0 %3991
  %v3996 = vadd.f32 %v3891, %v3988
  %v3997 = vadd.f32 %v3892, %v3990
  %v3998 = vadd.f32 %v3893, %v3992
  %3999 = vrot.lane.b32.xlu0 %v3555, 123
  %v4000 = vpop.permute.xlu0 %3999
  %4001 = vrot.lane.b32.xlu0 %v3556, 123
  %v4002 = vpop.permute.xlu0 %4001
  %4003 = vrot.lane.b32.xlu0 %v3557, 123
  %v4004 = vpop.permute.xlu0 %4003
  %v4008 = vadd.f32 %v3909, %v4000
  %v4009 = vadd.f32 %v3910, %v4002
  %v4010 = vadd.f32 %v3911, %v4004
  %4011 = vrot.lane.b32.xlu0 %v3495, 123
  %v4012 = vpop.permute.xlu0 %4011
  %4013 = vrot.lane.b32.xlu0 %v3496, 123
  %v4014 = vpop.permute.xlu0 %4013
  %4015 = vrot.lane.b32.xlu0 %v3497, 123
  %v4016 = vpop.permute.xlu0 %4015
  %v4020 = vadd.f32 %v3921, %v4012
  %v4021 = vadd.f32 %v3922, %v4014
  %v4022 = vadd.f32 %v3923, %v4016
  %4023 = vrot.lane.b32.xlu0 %v3894, 123
  %v4024 = vpop.permute.xlu0 %4023
  %4025 = vrot.lane.b32.xlu0 %v3895, 123
  %v4026 = vpop.permute.xlu0 %4025
  %4027 = vrot.lane.b32.xlu0 %v3896, 123
  %v4028 = vpop.permute.xlu0 %4027
  %v4032 = vadd.f32 %v3936, %v4024
  %v4033 = vadd.f32 %v3937, %v4026
  %v4034 = vadd.f32 %v3938, %v4028
  %4035 = vrot.lane.b32.xlu0 %v3489, 122
  %v4036 = vpop.permute.xlu0 %4035
  %4037 = vrot.lane.b32.xlu0 %v3490, 122
  %v4038 = vpop.permute.xlu0 %4037
  %4039 = vrot.lane.b32.xlu0 %v3491, 122
  %v4040 = vpop.permute.xlu0 %4039
  %v4044 = vadd.f32 %v3948, %v4036
  %v4045 = vadd.f32 %v3949, %v4038
  %v4046 = vadd.f32 %v3950, %v4040
  %4047 = vrot.lane.b32.xlu0 %v3894, 122
  %v4048 = vpop.permute.xlu0 %4047
  %4049 = vrot.lane.b32.xlu0 %v3895, 122
  %v4050 = vpop.permute.xlu0 %4049
  %4051 = vrot.lane.b32.xlu0 %v3896, 122
  %v4052 = vpop.permute.xlu0 %4051
  %v4056 = vadd.f32 %v3960, %v4048
  %v4057 = vadd.f32 %v3961, %v4050
  %v4058 = vadd.f32 %v3962, %v4052
  %4059 = vrot.lane.b32.xlu0 %v3504, 122
  %v4060 = vpop.permute.xlu0 %4059
  %4061 = vrot.lane.b32.xlu0 %v3505, 122
  %v4062 = vpop.permute.xlu0 %4061
  %4063 = vrot.lane.b32.xlu0 %v3506, 122
  %v4064 = vpop.permute.xlu0 %4063
  %v4068 = vadd.f32 %v3972, %v4060
  %v4069 = vadd.f32 %v3973, %v4062
  %v4070 = vadd.f32 %v3974, %v4064
  %4071 = vrot.lane.b32.xlu0 %v3507, 122
  %v4072 = vpop.permute.xlu0 %4071
  %4073 = vrot.lane.b32.xlu0 %v3508, 122
  %v4074 = vpop.permute.xlu0 %4073
  %4075 = vrot.lane.b32.xlu0 %v3509, 122
  %v4076 = vpop.permute.xlu0 %4075
  %v4080 = vadd.f32 %v3984, %v4072
  %v4081 = vadd.f32 %v3985, %v4074
  %v4082 = vadd.f32 %v3986, %v4076
  %4083 = vrot.lane.b32.xlu0 %v3573, 122
  %v4084 = vpop.permute.xlu0 %4083
  %4085 = vrot.lane.b32.xlu0 %v3574, 122
  %v4086 = vpop.permute.xlu0 %4085
  %4087 = vrot.lane.b32.xlu0 %v3575, 122
  %v4088 = vpop.permute.xlu0 %4087
  %v4092 = vadd.f32 %v3996, %v4084
  %v4093 = vadd.f32 %v3997, %v4086
  %v4094 = vadd.f32 %v3998, %v4088
  %4095 = vrot.lane.b32.xlu0 %v3492, 122
  %v4096 = vpop.permute.xlu0 %4095
  %4097 = vrot.lane.b32.xlu0 %v3493, 122
  %v4098 = vpop.permute.xlu0 %4097
  %4099 = vrot.lane.b32.xlu0 %v3494, 122
  %v4100 = vpop.permute.xlu0 %4099
  %v4104 = vadd.f32 %v4008, %v4096
  %v4105 = vadd.f32 %v4009, %v4098
  %v4106 = vadd.f32 %v4010, %v4100
  %4107 = vrot.lane.b32.xlu0 %v3609, 122
  %v4108 = vpop.permute.xlu0 %4107
  %4109 = vrot.lane.b32.xlu0 %v3610, 122
  %v4110 = vpop.permute.xlu0 %4109
  %4111 = vrot.lane.b32.xlu0 %v3611, 122
  %v4112 = vpop.permute.xlu0 %4111
  %v4116 = vadd.f32 %v4020, %v4108
  %v4117 = vadd.f32 %v4021, %v4110
  %v4118 = vadd.f32 %v4022, %v4112
  %4119 = vrot.lane.b32.xlu0 %v3501, 122
  %v4120 = vpop.permute.xlu0 %4119
  %4121 = vrot.lane.b32.xlu0 %v3502, 122
  %v4122 = vpop.permute.xlu0 %4121
  %4123 = vrot.lane.b32.xlu0 %v3503, 122
  %v4124 = vpop.permute.xlu0 %4123
  %v4128 = vadd.f32 %v4032, %v4120
  %v4129 = vadd.f32 %v4033, %v4122
  %v4130 = vadd.f32 %v4034, %v4124
  %4131 = vrot.lane.b32.xlu0 %v3489, 121
  %v4132 = vpop.permute.xlu0 %4131
  %4133 = vrot.lane.b32.xlu0 %v3490, 121
  %v4134 = vpop.permute.xlu0 %4133
  %4135 = vrot.lane.b32.xlu0 %v3491, 121
  %v4136 = vpop.permute.xlu0 %4135
  %v4140 = vadd.f32 %v4044, %v4132
  %v4141 = vadd.f32 %v4045, %v4134
  %v4142 = vadd.f32 %v4046, %v4136
  %4143 = vrot.lane.b32.xlu0 %v3591, 121
  %v4144 = vpop.permute.xlu0 %4143
  %4145 = vrot.lane.b32.xlu0 %v3592, 121
  %v4146 = vpop.permute.xlu0 %4145
  %4147 = vrot.lane.b32.xlu0 %v3593, 121
  %v4148 = vpop.permute.xlu0 %4147
  %v4152 = vadd.f32 %v4056, %v4144
  %v4153 = vadd.f32 %v4057, %v4146
  %v4154 = vadd.f32 %v4058, %v4148
  %4155 = vrot.lane.b32.xlu0 %v3495, 121
  %v4156 = vpop.permute.xlu0 %4155
  %4157 = vrot.lane.b32.xlu0 %v3496, 121
  %v4158 = vpop.permute.xlu0 %4157
  %4159 = vrot.lane.b32.xlu0 %v3497, 121
  %v4160 = vpop.permute.xlu0 %4159
  %v4164 = vadd.f32 %v4068, %v4156
  %v4165 = vadd.f32 %v4069, %v4158
  %v4166 = vadd.f32 %v4070, %v4160
  %4167 = vrot.lane.b32.xlu0 %v3894, 121
  %v4168 = vpop.permute.xlu0 %4167
  %4169 = vrot.lane.b32.xlu0 %v3895, 121
  %v4170 = vpop.permute.xlu0 %4169
  %4171 = vrot.lane.b32.xlu0 %v3896, 121
  %v4172 = vpop.permute.xlu0 %4171
  %v4176 = vadd.f32 %v4080, %v4168
  %v4177 = vadd.f32 %v4081, %v4170
  %v4178 = vadd.f32 %v4082, %v4172
  %v4179 = vadd.f32 %v4092, %v4132
  %v4180 = vadd.f32 %v4093, %v4134
  %v4181 = vadd.f32 %v4094, %v4136
  %4182 = vrot.lane.b32.xlu0 %v3627, 121
  %v4183 = vpop.permute.xlu0 %4182
  %4184 = vrot.lane.b32.xlu0 %v3628, 121
  %v4185 = vpop.permute.xlu0 %4184
  %4186 = vrot.lane.b32.xlu0 %v3629, 121
  %v4187 = vpop.permute.xlu0 %4186
  %v4191 = vadd.f32 %v4104, %v4183
  %v4192 = vadd.f32 %v4105, %v4185
  %v4193 = vadd.f32 %v4106, %v4187
  %4194 = vrot.lane.b32.xlu0 %v3504, 121
  %v4195 = vpop.permute.xlu0 %4194
  %4196 = vrot.lane.b32.xlu0 %v3505, 121
  %v4197 = vpop.permute.xlu0 %4196
  %4198 = vrot.lane.b32.xlu0 %v3506, 121
  %v4199 = vpop.permute.xlu0 %4198
  %v4203 = vadd.f32 %v4116, %v4195
  %v4204 = vadd.f32 %v4117, %v4197
  %v4205 = vadd.f32 %v4118, %v4199
  %4206 = vrot.lane.b32.xlu0 %v3555, 121
  %v4207 = vpop.permute.xlu0 %4206
  %4208 = vrot.lane.b32.xlu0 %v3556, 121
  %v4209 = vpop.permute.xlu0 %4208
  %4210 = vrot.lane.b32.xlu0 %v3557, 121
  %v4211 = vpop.permute.xlu0 %4210
  %v4215 = vadd.f32 %v4128, %v4207
  %v4216 = vadd.f32 %v4129, %v4209
  %v4217 = vadd.f32 %v4130, %v4211
  %s4218 = scalar_lea.vmem %s1, 240
  %4219 = vst.msk [vmem:[%s4218] sm:$0xff] %vm1161, %v4140
  %4220 = vst.msk [vmem:[%s4218 + $0x8] sm:$0xff] %vm1161, %v4141
  %4221 = vst.msk [vmem:[%s4218 + $0x10] sm:$0x7f] %vm1164, %v4142
  %s4222 = scalar_lea.vmem %s1, 384
  %4223 = vst.msk [vmem:[%s4222] sm:$0xff] %vm1161, %v4152
  %4224 = vst.msk [vmem:[%s4222 + $0x8] sm:$0xff] %vm1161, %v4153
  %4225 = vst.msk [vmem:[%s4222 + $0x10] sm:$0x7f] %vm1164, %v4154
  %s4226 = scalar_lea.vmem %s1, 552
  %4227 = vst.msk [vmem:[%s4226] sm:$0xff] %vm1161, %v4164
  %4228 = vst.msk [vmem:[%s4226 + $0x8] sm:$0xff] %vm1161, %v4165
  %4229 = vst.msk [vmem:[%s4226 + $0x10] sm:$0x7f] %vm1164, %v4166
  %s4230 = scalar_lea.vmem %s1, 744
  %4231 = vst.msk [vmem:[%s4230] sm:$0xff] %vm1161, %v4176
  %4232 = vst.msk [vmem:[%s4230 + $0x8] sm:$0xff] %vm1161, %v4177
  %4233 = vst.msk [vmem:[%s4230 + $0x10] sm:$0x7f] %vm1164, %v4178
  %s4234 = scalar_lea.vmem %s1, 936
  %4235 = vst.msk [vmem:[%s4234] sm:$0xff] %vm1161, %v4179
  %4236 = vst.msk [vmem:[%s4234 + $0x8] sm:$0xff] %vm1161, %v4180
  %4237 = vst.msk [vmem:[%s4234 + $0x10] sm:$0x7f] %vm1164, %v4181
  %s4238 = scalar_lea.vmem %s1, 1104
  %4239 = vst.msk [vmem:[%s4238] sm:$0xff] %vm1161, %v4191
  %4240 = vst.msk [vmem:[%s4238 + $0x8] sm:$0xff] %vm1161, %v4192
  %4241 = vst.msk [vmem:[%s4238 + $0x10] sm:$0x7f] %vm1164, %v4193
  %s4242 = scalar_lea.vmem %s1, 1248
  %4243 = vst.msk [vmem:[%s4242] sm:$0xff] %vm1161, %v4203
  %4244 = vst.msk [vmem:[%s4242 + $0x8] sm:$0xff] %vm1161, %v4204
  %4245 = vst.msk [vmem:[%s4242 + $0x10] sm:$0x7f] %vm1164, %v4205
  %s4246 = scalar_lea.vmem %s1, 1368
  %4247 = vst.msk [vmem:[%s4246] sm:$0xff] %vm1161, %v4215
  %4248 = vst.msk [vmem:[%s4246 + $0x8] sm:$0xff] %vm1161, %v4216
  %4249 = vst.msk [vmem:[%s4246 + $0x10] sm:$0x7f] %vm1164, %v4217
  %v4250 = vld [vmem:[%s417] sm:$0xff]
  %v4251 = vld [vmem:[%s417 + $0x8] sm:$0xff]
  %v4252 = vld [vmem:[%s417 + $0x10] sm:$0x7f]
  %v4253 = vmul.f32 %v4250, 0.35355338
  %v4254 = vmul.f32 %v4251, 0.35355338
  %v4255 = vmul.f32 %v4252, 0.35355338
  %v4256 = vmul.f32 %v4250, 0.49039263
  %v4257 = vmul.f32 %v4251, 0.49039263
  %v4258 = vmul.f32 %v4252, 0.49039263
  %v4259 = vmul.f32 %v4250, 0.46193975
  %v4260 = vmul.f32 %v4251, 0.46193975
  %v4261 = vmul.f32 %v4252, 0.46193975
  %v4262 = vmul.f32 %v4250, 0.4157348
  %v4263 = vmul.f32 %v4251, 0.4157348
  %v4264 = vmul.f32 %v4252, 0.4157348
  %v4265 = vmul.f32 %v4250, 0.27778512
  %v4266 = vmul.f32 %v4251, 0.27778512
  %v4267 = vmul.f32 %v4252, 0.27778512
  %v4268 = vmul.f32 %v4250, 0.19134171
  %v4269 = vmul.f32 %v4251, 0.19134171
  %v4270 = vmul.f32 %v4252, 0.19134171
  %v4271 = vmul.f32 %v4250, 0.09754516
  %v4272 = vmul.f32 %v4251, 0.09754516
  %v4273 = vmul.f32 %v4252, 0.09754516
  %4277 = vrot.lane.b32.xlu0 %v4253, 127
  %v4278 = vpop.permute.xlu0 %4277
  %4279 = vrot.lane.b32.xlu0 %v4254, 127
  %v4280 = vpop.permute.xlu0 %4279
  %4281 = vrot.lane.b32.xlu0 %v4255, 127
  %v4282 = vpop.permute.xlu0 %4281
  %v4286 = vadd.f32 %v4253, %v4278
  %v4287 = vadd.f32 %v4254, %v4280
  %v4288 = vadd.f32 %v4255, %v4282
  %4292 = vrot.lane.b32.xlu0 %v4262, 127
  %v4293 = vpop.permute.xlu0 %4292
  %4294 = vrot.lane.b32.xlu0 %v4263, 127
  %v4295 = vpop.permute.xlu0 %4294
  %4296 = vrot.lane.b32.xlu0 %v4264, 127
  %v4297 = vpop.permute.xlu0 %4296
  %v4301 = vadd.f32 %v4256, %v4293
  %v4302 = vadd.f32 %v4257, %v4295
  %v4303 = vadd.f32 %v4258, %v4297
  %4307 = vrot.lane.b32.xlu0 %v4268, 127
  %v4308 = vpop.permute.xlu0 %4307
  %4309 = vrot.lane.b32.xlu0 %v4269, 127
  %v4310 = vpop.permute.xlu0 %4309
  %4311 = vrot.lane.b32.xlu0 %v4270, 127
  %v4312 = vpop.permute.xlu0 %4311
  %v4316 = vadd.f32 %v4259, %v4308
  %v4317 = vadd.f32 %v4260, %v4310
  %v4318 = vadd.f32 %v4261, %v4312
  %v4319 = vmul.f32 %v4250, -0.09754516
  %v4320 = vmul.f32 %v4251, -0.09754516
  %v4321 = vmul.f32 %v4252, -0.09754516
  %4325 = vrot.lane.b32.xlu0 %v4319, 127
  %v4326 = vpop.permute.xlu0 %4325
  %4327 = vrot.lane.b32.xlu0 %v4320, 127
  %v4328 = vpop.permute.xlu0 %4327
  %4329 = vrot.lane.b32.xlu0 %v4321, 127
  %v4330 = vpop.permute.xlu0 %4329
  %v4334 = vadd.f32 %v4262, %v4326
  %v4335 = vadd.f32 %v4263, %v4328
  %v4336 = vadd.f32 %v4264, %v4330
  %v4337 = vmul.f32 %v4250, -0.35355338
  %v4338 = vmul.f32 %v4251, -0.35355338
  %v4339 = vmul.f32 %v4252, -0.35355338
  %4343 = vrot.lane.b32.xlu0 %v4337, 127
  %v4344 = vpop.permute.xlu0 %4343
  %4345 = vrot.lane.b32.xlu0 %v4338, 127
  %v4346 = vpop.permute.xlu0 %4345
  %4347 = vrot.lane.b32.xlu0 %v4339, 127
  %v4348 = vpop.permute.xlu0 %4347
  %v4352 = vadd.f32 %v4253, %v4344
  %v4353 = vadd.f32 %v4254, %v4346
  %v4354 = vadd.f32 %v4255, %v4348
  %v4355 = vmul.f32 %v4250, -0.49039263
  %v4356 = vmul.f32 %v4251, -0.49039263
  %v4357 = vmul.f32 %v4252, -0.49039263
  %4361 = vrot.lane.b32.xlu0 %v4355, 127
  %v4362 = vpop.permute.xlu0 %4361
  %4363 = vrot.lane.b32.xlu0 %v4356, 127
  %v4364 = vpop.permute.xlu0 %4363
  %4365 = vrot.lane.b32.xlu0 %v4357, 127
  %v4366 = vpop.permute.xlu0 %4365
  %v4370 = vadd.f32 %v4265, %v4362
  %v4371 = vadd.f32 %v4266, %v4364
  %v4372 = vadd.f32 %v4267, %v4366
  %v4373 = vmul.f32 %v4250, -0.46193975
  %v4374 = vmul.f32 %v4251, -0.46193975
  %v4375 = vmul.f32 %v4252, -0.46193975
  %4379 = vrot.lane.b32.xlu0 %v4373, 127
  %v4380 = vpop.permute.xlu0 %4379
  %4381 = vrot.lane.b32.xlu0 %v4374, 127
  %v4382 = vpop.permute.xlu0 %4381
  %4383 = vrot.lane.b32.xlu0 %v4375, 127
  %v4384 = vpop.permute.xlu0 %4383
  %v4388 = vadd.f32 %v4268, %v4380
  %v4389 = vadd.f32 %v4269, %v4382
  %v4390 = vadd.f32 %v4270, %v4384
  %v4391 = vmul.f32 %v4250, -0.27778512
  %v4392 = vmul.f32 %v4251, -0.27778512
  %v4393 = vmul.f32 %v4252, -0.27778512
  %4397 = vrot.lane.b32.xlu0 %v4391, 127
  %v4398 = vpop.permute.xlu0 %4397
  %4399 = vrot.lane.b32.xlu0 %v4392, 127
  %v4400 = vpop.permute.xlu0 %4399
  %4401 = vrot.lane.b32.xlu0 %v4393, 127
  %v4402 = vpop.permute.xlu0 %4401
  %v4406 = vadd.f32 %v4271, %v4398
  %v4407 = vadd.f32 %v4272, %v4400
  %v4408 = vadd.f32 %v4273, %v4402
  %4409 = vrot.lane.b32.xlu0 %v4253, 126
  %v4410 = vpop.permute.xlu0 %4409
  %4411 = vrot.lane.b32.xlu0 %v4254, 126
  %v4412 = vpop.permute.xlu0 %4411
  %4413 = vrot.lane.b32.xlu0 %v4255, 126
  %v4414 = vpop.permute.xlu0 %4413
  %v4418 = vadd.f32 %v4286, %v4410
  %v4419 = vadd.f32 %v4287, %v4412
  %v4420 = vadd.f32 %v4288, %v4414
  %4424 = vrot.lane.b32.xlu0 %v4265, 126
  %v4425 = vpop.permute.xlu0 %4424
  %4426 = vrot.lane.b32.xlu0 %v4266, 126
  %v4427 = vpop.permute.xlu0 %4426
  %4428 = vrot.lane.b32.xlu0 %v4267, 126
  %v4429 = vpop.permute.xlu0 %4428
  %v4433 = vadd.f32 %v4301, %v4425
  %v4434 = vadd.f32 %v4302, %v4427
  %v4435 = vadd.f32 %v4303, %v4429
  %v4436 = vmul.f32 %v4250, -0.19134171
  %v4437 = vmul.f32 %v4251, -0.19134171
  %v4438 = vmul.f32 %v4252, -0.19134171
  %4442 = vrot.lane.b32.xlu0 %v4436, 126
  %v4443 = vpop.permute.xlu0 %4442
  %4444 = vrot.lane.b32.xlu0 %v4437, 126
  %v4445 = vpop.permute.xlu0 %4444
  %4446 = vrot.lane.b32.xlu0 %v4438, 126
  %v4447 = vpop.permute.xlu0 %4446
  %v4451 = vadd.f32 %v4316, %v4443
  %v4452 = vadd.f32 %v4317, %v4445
  %v4453 = vadd.f32 %v4318, %v4447
  %4454 = vrot.lane.b32.xlu0 %v4355, 126
  %v4455 = vpop.permute.xlu0 %4454
  %4456 = vrot.lane.b32.xlu0 %v4356, 126
  %v4457 = vpop.permute.xlu0 %4456
  %4458 = vrot.lane.b32.xlu0 %v4357, 126
  %v4459 = vpop.permute.xlu0 %4458
  %v4463 = vadd.f32 %v4334, %v4455
  %v4464 = vadd.f32 %v4335, %v4457
  %v4465 = vadd.f32 %v4336, %v4459
  %4466 = vrot.lane.b32.xlu0 %v4337, 126
  %v4467 = vpop.permute.xlu0 %4466
  %4468 = vrot.lane.b32.xlu0 %v4338, 126
  %v4469 = vpop.permute.xlu0 %4468
  %4470 = vrot.lane.b32.xlu0 %v4339, 126
  %v4471 = vpop.permute.xlu0 %4470
  %v4475 = vadd.f32 %v4352, %v4467
  %v4476 = vadd.f32 %v4353, %v4469
  %v4477 = vadd.f32 %v4354, %v4471
  %4481 = vrot.lane.b32.xlu0 %v4271, 126
  %v4482 = vpop.permute.xlu0 %4481
  %4483 = vrot.lane.b32.xlu0 %v4272, 126
  %v4484 = vpop.permute.xlu0 %4483
  %4485 = vrot.lane.b32.xlu0 %v4273, 126
  %v4486 = vpop.permute.xlu0 %4485
  %v4490 = vadd.f32 %v4370, %v4482
  %v4491 = vadd.f32 %v4371, %v4484
  %v4492 = vadd.f32 %v4372, %v4486
  %4496 = vrot.lane.b32.xlu0 %v4259, 126
  %v4497 = vpop.permute.xlu0 %4496
  %4498 = vrot.lane.b32.xlu0 %v4260, 126
  %v4499 = vpop.permute.xlu0 %4498
  %4500 = vrot.lane.b32.xlu0 %v4261, 126
  %v4501 = vpop.permute.xlu0 %4500
  %v4505 = vadd.f32 %v4388, %v4497
  %v4506 = vadd.f32 %v4389, %v4499
  %v4507 = vadd.f32 %v4390, %v4501
  %4508 = vrot.lane.b32.xlu0 %v4262, 126
  %v4509 = vpop.permute.xlu0 %4508
  %4510 = vrot.lane.b32.xlu0 %v4263, 126
  %v4511 = vpop.permute.xlu0 %4510
  %4512 = vrot.lane.b32.xlu0 %v4264, 126
  %v4513 = vpop.permute.xlu0 %4512
  %v4517 = vadd.f32 %v4406, %v4509
  %v4518 = vadd.f32 %v4407, %v4511
  %v4519 = vadd.f32 %v4408, %v4513
  %4520 = vrot.lane.b32.xlu0 %v4253, 125
  %v4521 = vpop.permute.xlu0 %4520
  %4522 = vrot.lane.b32.xlu0 %v4254, 125
  %v4523 = vpop.permute.xlu0 %4522
  %4524 = vrot.lane.b32.xlu0 %v4255, 125
  %v4525 = vpop.permute.xlu0 %4524
  %v4529 = vadd.f32 %v4418, %v4521
  %v4530 = vadd.f32 %v4419, %v4523
  %v4531 = vadd.f32 %v4420, %v4525
  %4532 = vrot.lane.b32.xlu0 %v4271, 125
  %v4533 = vpop.permute.xlu0 %4532
  %4534 = vrot.lane.b32.xlu0 %v4272, 125
  %v4535 = vpop.permute.xlu0 %4534
  %4536 = vrot.lane.b32.xlu0 %v4273, 125
  %v4537 = vpop.permute.xlu0 %4536
  %v4541 = vadd.f32 %v4433, %v4533
  %v4542 = vadd.f32 %v4434, %v4535
  %v4543 = vadd.f32 %v4435, %v4537
  %4544 = vrot.lane.b32.xlu0 %v4373, 125
  %v4545 = vpop.permute.xlu0 %4544
  %4546 = vrot.lane.b32.xlu0 %v4374, 125
  %v4547 = vpop.permute.xlu0 %4546
  %4548 = vrot.lane.b32.xlu0 %v4375, 125
  %v4549 = vpop.permute.xlu0 %4548
  %v4553 = vadd.f32 %v4451, %v4545
  %v4554 = vadd.f32 %v4452, %v4547
  %v4555 = vadd.f32 %v4453, %v4549
  %4556 = vrot.lane.b32.xlu0 %v4391, 125
  %v4557 = vpop.permute.xlu0 %4556
  %4558 = vrot.lane.b32.xlu0 %v4392, 125
  %v4559 = vpop.permute.xlu0 %4558
  %4560 = vrot.lane.b32.xlu0 %v4393, 125
  %v4561 = vpop.permute.xlu0 %4560
  %v4565 = vadd.f32 %v4463, %v4557
  %v4566 = vadd.f32 %v4464, %v4559
  %v4567 = vadd.f32 %v4465, %v4561
  %v4568 = vadd.f32 %v4475, %v4521
  %v4569 = vadd.f32 %v4476, %v4523
  %v4570 = vadd.f32 %v4477, %v4525
  %4571 = vrot.lane.b32.xlu0 %v4262, 125
  %v4572 = vpop.permute.xlu0 %4571
  %4573 = vrot.lane.b32.xlu0 %v4263, 125
  %v4574 = vpop.permute.xlu0 %4573
  %4575 = vrot.lane.b32.xlu0 %v4264, 125
  %v4576 = vpop.permute.xlu0 %4575
  %v4580 = vadd.f32 %v4490, %v4572
  %v4581 = vadd.f32 %v4491, %v4574
  %v4582 = vadd.f32 %v4492, %v4576
  %4583 = vrot.lane.b32.xlu0 %v4436, 125
  %v4584 = vpop.permute.xlu0 %4583
  %4585 = vrot.lane.b32.xlu0 %v4437, 125
  %v4586 = vpop.permute.xlu0 %4585
  %4587 = vrot.lane.b32.xlu0 %v4438, 125
  %v4588 = vpop.permute.xlu0 %4587
  %v4592 = vadd.f32 %v4505, %v4584
  %v4593 = vadd.f32 %v4506, %v4586
  %v4594 = vadd.f32 %v4507, %v4588
  %4595 = vrot.lane.b32.xlu0 %v4355, 125
  %v4596 = vpop.permute.xlu0 %4595
  %4597 = vrot.lane.b32.xlu0 %v4356, 125
  %v4598 = vpop.permute.xlu0 %4597
  %4599 = vrot.lane.b32.xlu0 %v4357, 125
  %v4600 = vpop.permute.xlu0 %4599
  %v4604 = vadd.f32 %v4517, %v4596
  %v4605 = vadd.f32 %v4518, %v4598
  %v4606 = vadd.f32 %v4519, %v4600
  %4607 = vrot.lane.b32.xlu0 %v4253, 124
  %v4608 = vpop.permute.xlu0 %4607
  %4609 = vrot.lane.b32.xlu0 %v4254, 124
  %v4610 = vpop.permute.xlu0 %4609
  %4611 = vrot.lane.b32.xlu0 %v4255, 124
  %v4612 = vpop.permute.xlu0 %4611
  %v4616 = vadd.f32 %v4529, %v4608
  %v4617 = vadd.f32 %v4530, %v4610
  %v4618 = vadd.f32 %v4531, %v4612
  %4619 = vrot.lane.b32.xlu0 %v4319, 124
  %v4620 = vpop.permute.xlu0 %4619
  %4621 = vrot.lane.b32.xlu0 %v4320, 124
  %v4622 = vpop.permute.xlu0 %4621
  %4623 = vrot.lane.b32.xlu0 %v4321, 124
  %v4624 = vpop.permute.xlu0 %4623
  %v4628 = vadd.f32 %v4541, %v4620
  %v4629 = vadd.f32 %v4542, %v4622
  %v4630 = vadd.f32 %v4543, %v4624
  %4631 = vrot.lane.b32.xlu0 %v4373, 124
  %v4632 = vpop.permute.xlu0 %4631
  %4633 = vrot.lane.b32.xlu0 %v4374, 124
  %v4634 = vpop.permute.xlu0 %4633
  %4635 = vrot.lane.b32.xlu0 %v4375, 124
  %v4636 = vpop.permute.xlu0 %4635
  %v4640 = vadd.f32 %v4553, %v4632
  %v4641 = vadd.f32 %v4554, %v4634
  %v4642 = vadd.f32 %v4555, %v4636
  %4643 = vrot.lane.b32.xlu0 %v4265, 124
  %v4644 = vpop.permute.xlu0 %4643
  %4645 = vrot.lane.b32.xlu0 %v4266, 124
  %v4646 = vpop.permute.xlu0 %4645
  %4647 = vrot.lane.b32.xlu0 %v4267, 124
  %v4648 = vpop.permute.xlu0 %4647
  %v4652 = vadd.f32 %v4565, %v4644
  %v4653 = vadd.f32 %v4566, %v4646
  %v4654 = vadd.f32 %v4567, %v4648
  %v4655 = vadd.f32 %v4568, %v4608
  %v4656 = vadd.f32 %v4569, %v4610
  %v4657 = vadd.f32 %v4570, %v4612
  %v4658 = vmul.f32 %v4250, -0.4157348
  %v4659 = vmul.f32 %v4251, -0.4157348
  %v4660 = vmul.f32 %v4252, -0.4157348
  %4664 = vrot.lane.b32.xlu0 %v4658, 124
  %v4665 = vpop.permute.xlu0 %4664
  %4666 = vrot.lane.b32.xlu0 %v4659, 124
  %v4667 = vpop.permute.xlu0 %4666
  %4668 = vrot.lane.b32.xlu0 %v4660, 124
  %v4669 = vpop.permute.xlu0 %4668
  %v4673 = vadd.f32 %v4580, %v4665
  %v4674 = vadd.f32 %v4581, %v4667
  %v4675 = vadd.f32 %v4582, %v4669
  %4676 = vrot.lane.b32.xlu0 %v4436, 124
  %v4677 = vpop.permute.xlu0 %4676
  %4678 = vrot.lane.b32.xlu0 %v4437, 124
  %v4679 = vpop.permute.xlu0 %4678
  %4680 = vrot.lane.b32.xlu0 %v4438, 124
  %v4681 = vpop.permute.xlu0 %4680
  %v4685 = vadd.f32 %v4592, %v4677
  %v4686 = vadd.f32 %v4593, %v4679
  %v4687 = vadd.f32 %v4594, %v4681
  %4691 = vrot.lane.b32.xlu0 %v4256, 124
  %v4692 = vpop.permute.xlu0 %4691
  %4693 = vrot.lane.b32.xlu0 %v4257, 124
  %v4694 = vpop.permute.xlu0 %4693
  %4695 = vrot.lane.b32.xlu0 %v4258, 124
  %v4696 = vpop.permute.xlu0 %4695
  %v4700 = vadd.f32 %v4604, %v4692
  %v4701 = vadd.f32 %v4605, %v4694
  %v4702 = vadd.f32 %v4606, %v4696
  %4703 = vrot.lane.b32.xlu0 %v4253, 123
  %v4704 = vpop.permute.xlu0 %4703
  %4705 = vrot.lane.b32.xlu0 %v4254, 123
  %v4706 = vpop.permute.xlu0 %4705
  %4707 = vrot.lane.b32.xlu0 %v4255, 123
  %v4708 = vpop.permute.xlu0 %4707
  %v4712 = vadd.f32 %v4616, %v4704
  %v4713 = vadd.f32 %v4617, %v4706
  %v4714 = vadd.f32 %v4618, %v4708
  %4715 = vrot.lane.b32.xlu0 %v4391, 123
  %v4716 = vpop.permute.xlu0 %4715
  %4717 = vrot.lane.b32.xlu0 %v4392, 123
  %v4718 = vpop.permute.xlu0 %4717
  %4719 = vrot.lane.b32.xlu0 %v4393, 123
  %v4720 = vpop.permute.xlu0 %4719
  %v4724 = vadd.f32 %v4628, %v4716
  %v4725 = vadd.f32 %v4629, %v4718
  %v4726 = vadd.f32 %v4630, %v4720
  %4727 = vrot.lane.b32.xlu0 %v4436, 123
  %v4728 = vpop.permute.xlu0 %4727
  %4729 = vrot.lane.b32.xlu0 %v4437, 123
  %v4730 = vpop.permute.xlu0 %4729
  %4731 = vrot.lane.b32.xlu0 %v4438, 123
  %v4732 = vpop.permute.xlu0 %4731
  %v4736 = vadd.f32 %v4640, %v4728
  %v4737 = vadd.f32 %v4641, %v4730
  %v4738 = vadd.f32 %v4642, %v4732
  %4739 = vrot.lane.b32.xlu0 %v4256, 123
  %v4740 = vpop.permute.xlu0 %4739
  %4741 = vrot.lane.b32.xlu0 %v4257, 123
  %v4742 = vpop.permute.xlu0 %4741
  %4743 = vrot.lane.b32.xlu0 %v4258, 123
  %v4744 = vpop.permute.xlu0 %4743
  %v4748 = vadd.f32 %v4652, %v4740
  %v4749 = vadd.f32 %v4653, %v4742
  %v4750 = vadd.f32 %v4654, %v4744
  %4751 = vrot.lane.b32.xlu0 %v4337, 123
  %v4752 = vpop.permute.xlu0 %4751
  %4753 = vrot.lane.b32.xlu0 %v4338, 123
  %v4754 = vpop.permute.xlu0 %4753
  %4755 = vrot.lane.b32.xlu0 %v4339, 123
  %v4756 = vpop.permute.xlu0 %4755
  %v4760 = vadd.f32 %v4655, %v4752
  %v4761 = vadd.f32 %v4656, %v4754
  %v4762 = vadd.f32 %v4657, %v4756
  %4763 = vrot.lane.b32.xlu0 %v4319, 123
  %v4764 = vpop.permute.xlu0 %4763
  %4765 = vrot.lane.b32.xlu0 %v4320, 123
  %v4766 = vpop.permute.xlu0 %4765
  %4767 = vrot.lane.b32.xlu0 %v4321, 123
  %v4768 = vpop.permute.xlu0 %4767
  %v4772 = vadd.f32 %v4673, %v4764
  %v4773 = vadd.f32 %v4674, %v4766
  %v4774 = vadd.f32 %v4675, %v4768
  %4775 = vrot.lane.b32.xlu0 %v4259, 123
  %v4776 = vpop.permute.xlu0 %4775
  %4777 = vrot.lane.b32.xlu0 %v4260, 123
  %v4778 = vpop.permute.xlu0 %4777
  %4779 = vrot.lane.b32.xlu0 %v4261, 123
  %v4780 = vpop.permute.xlu0 %4779
  %v4784 = vadd.f32 %v4685, %v4776
  %v4785 = vadd.f32 %v4686, %v4778
  %v4786 = vadd.f32 %v4687, %v4780
  %4787 = vrot.lane.b32.xlu0 %v4658, 123
  %v4788 = vpop.permute.xlu0 %4787
  %4789 = vrot.lane.b32.xlu0 %v4659, 123
  %v4790 = vpop.permute.xlu0 %4789
  %4791 = vrot.lane.b32.xlu0 %v4660, 123
  %v4792 = vpop.permute.xlu0 %4791
  %v4796 = vadd.f32 %v4700, %v4788
  %v4797 = vadd.f32 %v4701, %v4790
  %v4798 = vadd.f32 %v4702, %v4792
  %4799 = vrot.lane.b32.xlu0 %v4253, 122
  %v4800 = vpop.permute.xlu0 %4799
  %4801 = vrot.lane.b32.xlu0 %v4254, 122
  %v4802 = vpop.permute.xlu0 %4801
  %4803 = vrot.lane.b32.xlu0 %v4255, 122
  %v4804 = vpop.permute.xlu0 %4803
  %v4808 = vadd.f32 %v4712, %v4800
  %v4809 = vadd.f32 %v4713, %v4802
  %v4810 = vadd.f32 %v4714, %v4804
  %4811 = vrot.lane.b32.xlu0 %v4658, 122
  %v4812 = vpop.permute.xlu0 %4811
  %4813 = vrot.lane.b32.xlu0 %v4659, 122
  %v4814 = vpop.permute.xlu0 %4813
  %4815 = vrot.lane.b32.xlu0 %v4660, 122
  %v4816 = vpop.permute.xlu0 %4815
  %v4820 = vadd.f32 %v4724, %v4812
  %v4821 = vadd.f32 %v4725, %v4814
  %v4822 = vadd.f32 %v4726, %v4816
  %4823 = vrot.lane.b32.xlu0 %v4268, 122
  %v4824 = vpop.permute.xlu0 %4823
  %4825 = vrot.lane.b32.xlu0 %v4269, 122
  %v4826 = vpop.permute.xlu0 %4825
  %4827 = vrot.lane.b32.xlu0 %v4270, 122
  %v4828 = vpop.permute.xlu0 %4827
  %v4832 = vadd.f32 %v4736, %v4824
  %v4833 = vadd.f32 %v4737, %v4826
  %v4834 = vadd.f32 %v4738, %v4828
  %4835 = vrot.lane.b32.xlu0 %v4271, 122
  %v4836 = vpop.permute.xlu0 %4835
  %4837 = vrot.lane.b32.xlu0 %v4272, 122
  %v4838 = vpop.permute.xlu0 %4837
  %4839 = vrot.lane.b32.xlu0 %v4273, 122
  %v4840 = vpop.permute.xlu0 %4839
  %v4844 = vadd.f32 %v4748, %v4836
  %v4845 = vadd.f32 %v4749, %v4838
  %v4846 = vadd.f32 %v4750, %v4840
  %4847 = vrot.lane.b32.xlu0 %v4337, 122
  %v4848 = vpop.permute.xlu0 %4847
  %4849 = vrot.lane.b32.xlu0 %v4338, 122
  %v4850 = vpop.permute.xlu0 %4849
  %4851 = vrot.lane.b32.xlu0 %v4339, 122
  %v4852 = vpop.permute.xlu0 %4851
  %v4856 = vadd.f32 %v4760, %v4848
  %v4857 = vadd.f32 %v4761, %v4850
  %v4858 = vadd.f32 %v4762, %v4852
  %4859 = vrot.lane.b32.xlu0 %v4256, 122
  %v4860 = vpop.permute.xlu0 %4859
  %4861 = vrot.lane.b32.xlu0 %v4257, 122
  %v4862 = vpop.permute.xlu0 %4861
  %4863 = vrot.lane.b32.xlu0 %v4258, 122
  %v4864 = vpop.permute.xlu0 %4863
  %v4868 = vadd.f32 %v4772, %v4860
  %v4869 = vadd.f32 %v4773, %v4862
  %v4870 = vadd.f32 %v4774, %v4864
  %4871 = vrot.lane.b32.xlu0 %v4373, 122
  %v4872 = vpop.permute.xlu0 %4871
  %4873 = vrot.lane.b32.xlu0 %v4374, 122
  %v4874 = vpop.permute.xlu0 %4873
  %4875 = vrot.lane.b32.xlu0 %v4375, 122
  %v4876 = vpop.permute.xlu0 %4875
  %v4880 = vadd.f32 %v4784, %v4872
  %v4881 = vadd.f32 %v4785, %v4874
  %v4882 = vadd.f32 %v4786, %v4876
  %4883 = vrot.lane.b32.xlu0 %v4265, 122
  %v4884 = vpop.permute.xlu0 %4883
  %4885 = vrot.lane.b32.xlu0 %v4266, 122
  %v4886 = vpop.permute.xlu0 %4885
  %4887 = vrot.lane.b32.xlu0 %v4267, 122
  %v4888 = vpop.permute.xlu0 %4887
  %v4892 = vadd.f32 %v4796, %v4884
  %v4893 = vadd.f32 %v4797, %v4886
  %v4894 = vadd.f32 %v4798, %v4888
  %4895 = vrot.lane.b32.xlu0 %v4253, 121
  %v4896 = vpop.permute.xlu0 %4895
  %4897 = vrot.lane.b32.xlu0 %v4254, 121
  %v4898 = vpop.permute.xlu0 %4897
  %4899 = vrot.lane.b32.xlu0 %v4255, 121
  %v4900 = vpop.permute.xlu0 %4899
  %v4904 = vadd.f32 %v4808, %v4896
  %v4905 = vadd.f32 %v4809, %v4898
  %v4906 = vadd.f32 %v4810, %v4900
  %4907 = vrot.lane.b32.xlu0 %v4355, 121
  %v4908 = vpop.permute.xlu0 %4907
  %4909 = vrot.lane.b32.xlu0 %v4356, 121
  %v4910 = vpop.permute.xlu0 %4909
  %4911 = vrot.lane.b32.xlu0 %v4357, 121
  %v4912 = vpop.permute.xlu0 %4911
  %v4916 = vadd.f32 %v4820, %v4908
  %v4917 = vadd.f32 %v4821, %v4910
  %v4918 = vadd.f32 %v4822, %v4912
  %4919 = vrot.lane.b32.xlu0 %v4259, 121
  %v4920 = vpop.permute.xlu0 %4919
  %4921 = vrot.lane.b32.xlu0 %v4260, 121
  %v4922 = vpop.permute.xlu0 %4921
  %4923 = vrot.lane.b32.xlu0 %v4261, 121
  %v4924 = vpop.permute.xlu0 %4923
  %v4928 = vadd.f32 %v4832, %v4920
  %v4929 = vadd.f32 %v4833, %v4922
  %v4930 = vadd.f32 %v4834, %v4924
  %4931 = vrot.lane.b32.xlu0 %v4658, 121
  %v4932 = vpop.permute.xlu0 %4931
  %4933 = vrot.lane.b32.xlu0 %v4659, 121
  %v4934 = vpop.permute.xlu0 %4933
  %4935 = vrot.lane.b32.xlu0 %v4660, 121
  %v4936 = vpop.permute.xlu0 %4935
  %v4940 = vadd.f32 %v4844, %v4932
  %v4941 = vadd.f32 %v4845, %v4934
  %v4942 = vadd.f32 %v4846, %v4936
  %v4943 = vadd.f32 %v4856, %v4896
  %v4944 = vadd.f32 %v4857, %v4898
  %v4945 = vadd.f32 %v4858, %v4900
  %4946 = vrot.lane.b32.xlu0 %v4391, 121
  %v4947 = vpop.permute.xlu0 %4946
  %4948 = vrot.lane.b32.xlu0 %v4392, 121
  %v4949 = vpop.permute.xlu0 %4948
  %4950 = vrot.lane.b32.xlu0 %v4393, 121
  %v4951 = vpop.permute.xlu0 %4950
  %v4955 = vadd.f32 %v4868, %v4947
  %v4956 = vadd.f32 %v4869, %v4949
  %v4957 = vadd.f32 %v4870, %v4951
  %4958 = vrot.lane.b32.xlu0 %v4268, 121
  %v4959 = vpop.permute.xlu0 %4958
  %4960 = vrot.lane.b32.xlu0 %v4269, 121
  %v4961 = vpop.permute.xlu0 %4960
  %4962 = vrot.lane.b32.xlu0 %v4270, 121
  %v4963 = vpop.permute.xlu0 %4962
  %v4967 = vadd.f32 %v4880, %v4959
  %v4968 = vadd.f32 %v4881, %v4961
  %v4969 = vadd.f32 %v4882, %v4963
  %4970 = vrot.lane.b32.xlu0 %v4319, 121
  %v4971 = vpop.permute.xlu0 %4970
  %4972 = vrot.lane.b32.xlu0 %v4320, 121
  %v4973 = vpop.permute.xlu0 %4972
  %4974 = vrot.lane.b32.xlu0 %v4321, 121
  %v4975 = vpop.permute.xlu0 %4974
  %v4979 = vadd.f32 %v4892, %v4971
  %v4980 = vadd.f32 %v4893, %v4973
  %v4981 = vadd.f32 %v4894, %v4975
  %s4982 = scalar_lea.vmem %s1, 360
  %4983 = vst.msk [vmem:[%s4982] sm:$0xff] %vm1161, %v4904
  %4984 = vst.msk [vmem:[%s4982 + $0x8] sm:$0xff] %vm1161, %v4905
  %4985 = vst.msk [vmem:[%s4982 + $0x10] sm:$0x7f] %vm1164, %v4906
  %s4986 = scalar_lea.vmem %s1, 528
  %4987 = vst.msk [vmem:[%s4986] sm:$0xff] %vm1161, %v4916
  %4988 = vst.msk [vmem:[%s4986 + $0x8] sm:$0xff] %vm1161, %v4917
  %4989 = vst.msk [vmem:[%s4986 + $0x10] sm:$0x7f] %vm1164, %v4918
  %s4990 = scalar_lea.vmem %s1, 720
  %4991 = vst.msk [vmem:[%s4990] sm:$0xff] %vm1161, %v4928
  %4992 = vst.msk [vmem:[%s4990 + $0x8] sm:$0xff] %vm1161, %v4929
  %4993 = vst.msk [vmem:[%s4990 + $0x10] sm:$0x7f] %vm1164, %v4930
  %s4994 = scalar_lea.vmem %s1, 912
  %4995 = vst.msk [vmem:[%s4994] sm:$0xff] %vm1161, %v4940
  %4996 = vst.msk [vmem:[%s4994 + $0x8] sm:$0xff] %vm1161, %v4941
  %4997 = vst.msk [vmem:[%s4994 + $0x10] sm:$0x7f] %vm1164, %v4942
  %s4998 = scalar_lea.vmem %s1, 1080
  %4999 = vst.msk [vmem:[%s4998] sm:$0xff] %vm1161, %v4943
  %5000 = vst.msk [vmem:[%s4998 + $0x8] sm:$0xff] %vm1161, %v4944
  %5001 = vst.msk [vmem:[%s4998 + $0x10] sm:$0x7f] %vm1164, %v4945
  %s5002 = scalar_lea.vmem %s1, 1224
  %5003 = vst.msk [vmem:[%s5002] sm:$0xff] %vm1161, %v4955
  %5004 = vst.msk [vmem:[%s5002 + $0x8] sm:$0xff] %vm1161, %v4956
  %5005 = vst.msk [vmem:[%s5002 + $0x10] sm:$0x7f] %vm1164, %v4957
  %s5006 = scalar_lea.vmem %s1, 1344
  %5007 = vst.msk [vmem:[%s5006] sm:$0xff] %vm1161, %v4967
  %5008 = vst.msk [vmem:[%s5006 + $0x8] sm:$0xff] %vm1161, %v4968
  %5009 = vst.msk [vmem:[%s5006 + $0x10] sm:$0x7f] %vm1164, %v4969
  %s5010 = scalar_lea.vmem %s1, 1440
  %5011 = vst.msk [vmem:[%s5010] sm:$0xff] %vm1161, %v4979
  %5012 = vst.msk [vmem:[%s5010 + $0x8] sm:$0xff] %vm1161, %v4980
  %5013 = vst.msk [vmem:[%s5010 + $0x10] sm:$0x7f] %vm1164, %v4981
  %v5014 = vld [vmem:[%s421] sm:$0xff]
  %v5015 = vld [vmem:[%s421 + $0x8] sm:$0xff]
  %v5016 = vld [vmem:[%s421 + $0x10] sm:$0x7f]
  %v5017 = vmul.f32 %v5014, 0.35355338
  %v5018 = vmul.f32 %v5015, 0.35355338
  %v5019 = vmul.f32 %v5016, 0.35355338
  %v5020 = vmul.f32 %v5014, 0.49039263
  %v5021 = vmul.f32 %v5015, 0.49039263
  %v5022 = vmul.f32 %v5016, 0.49039263
  %v5023 = vmul.f32 %v5014, 0.46193975
  %v5024 = vmul.f32 %v5015, 0.46193975
  %v5025 = vmul.f32 %v5016, 0.46193975
  %v5026 = vmul.f32 %v5014, 0.4157348
  %v5027 = vmul.f32 %v5015, 0.4157348
  %v5028 = vmul.f32 %v5016, 0.4157348
  %v5029 = vmul.f32 %v5014, 0.27778512
  %v5030 = vmul.f32 %v5015, 0.27778512
  %v5031 = vmul.f32 %v5016, 0.27778512
  %v5032 = vmul.f32 %v5014, 0.19134171
  %v5033 = vmul.f32 %v5015, 0.19134171
  %v5034 = vmul.f32 %v5016, 0.19134171
  %v5035 = vmul.f32 %v5014, 0.09754516
  %v5036 = vmul.f32 %v5015, 0.09754516
  %v5037 = vmul.f32 %v5016, 0.09754516
  %5041 = vrot.lane.b32.xlu0 %v5017, 127
  %v5042 = vpop.permute.xlu0 %5041
  %5043 = vrot.lane.b32.xlu0 %v5018, 127
  %v5044 = vpop.permute.xlu0 %5043
  %5045 = vrot.lane.b32.xlu0 %v5019, 127
  %v5046 = vpop.permute.xlu0 %5045
  %v5050 = vadd.f32 %v5017, %v5042
  %v5051 = vadd.f32 %v5018, %v5044
  %v5052 = vadd.f32 %v5019, %v5046
  %5056 = vrot.lane.b32.xlu0 %v5026, 127
  %v5057 = vpop.permute.xlu0 %5056
  %5058 = vrot.lane.b32.xlu0 %v5027, 127
  %v5059 = vpop.permute.xlu0 %5058
  %5060 = vrot.lane.b32.xlu0 %v5028, 127
  %v5061 = vpop.permute.xlu0 %5060
  %v5065 = vadd.f32 %v5020, %v5057
  %v5066 = vadd.f32 %v5021, %v5059
  %v5067 = vadd.f32 %v5022, %v5061
  %5071 = vrot.lane.b32.xlu0 %v5032, 127
  %v5072 = vpop.permute.xlu0 %5071
  %5073 = vrot.lane.b32.xlu0 %v5033, 127
  %v5074 = vpop.permute.xlu0 %5073
  %5075 = vrot.lane.b32.xlu0 %v5034, 127
  %v5076 = vpop.permute.xlu0 %5075
  %v5080 = vadd.f32 %v5023, %v5072
  %v5081 = vadd.f32 %v5024, %v5074
  %v5082 = vadd.f32 %v5025, %v5076
  %v5083 = vmul.f32 %v5014, -0.09754516
  %v5084 = vmul.f32 %v5015, -0.09754516
  %v5085 = vmul.f32 %v5016, -0.09754516
  %5089 = vrot.lane.b32.xlu0 %v5083, 127
  %v5090 = vpop.permute.xlu0 %5089
  %5091 = vrot.lane.b32.xlu0 %v5084, 127
  %v5092 = vpop.permute.xlu0 %5091
  %5093 = vrot.lane.b32.xlu0 %v5085, 127
  %v5094 = vpop.permute.xlu0 %5093
  %v5098 = vadd.f32 %v5026, %v5090
  %v5099 = vadd.f32 %v5027, %v5092
  %v5100 = vadd.f32 %v5028, %v5094
  %v5101 = vmul.f32 %v5014, -0.35355338
  %v5102 = vmul.f32 %v5015, -0.35355338
  %v5103 = vmul.f32 %v5016, -0.35355338
  %5107 = vrot.lane.b32.xlu0 %v5101, 127
  %v5108 = vpop.permute.xlu0 %5107
  %5109 = vrot.lane.b32.xlu0 %v5102, 127
  %v5110 = vpop.permute.xlu0 %5109
  %5111 = vrot.lane.b32.xlu0 %v5103, 127
  %v5112 = vpop.permute.xlu0 %5111
  %v5116 = vadd.f32 %v5017, %v5108
  %v5117 = vadd.f32 %v5018, %v5110
  %v5118 = vadd.f32 %v5019, %v5112
  %v5119 = vmul.f32 %v5014, -0.49039263
  %v5120 = vmul.f32 %v5015, -0.49039263
  %v5121 = vmul.f32 %v5016, -0.49039263
  %5125 = vrot.lane.b32.xlu0 %v5119, 127
  %v5126 = vpop.permute.xlu0 %5125
  %5127 = vrot.lane.b32.xlu0 %v5120, 127
  %v5128 = vpop.permute.xlu0 %5127
  %5129 = vrot.lane.b32.xlu0 %v5121, 127
  %v5130 = vpop.permute.xlu0 %5129
  %v5134 = vadd.f32 %v5029, %v5126
  %v5135 = vadd.f32 %v5030, %v5128
  %v5136 = vadd.f32 %v5031, %v5130
  %v5137 = vmul.f32 %v5014, -0.46193975
  %v5138 = vmul.f32 %v5015, -0.46193975
  %v5139 = vmul.f32 %v5016, -0.46193975
  %5143 = vrot.lane.b32.xlu0 %v5137, 127
  %v5144 = vpop.permute.xlu0 %5143
  %5145 = vrot.lane.b32.xlu0 %v5138, 127
  %v5146 = vpop.permute.xlu0 %5145
  %5147 = vrot.lane.b32.xlu0 %v5139, 127
  %v5148 = vpop.permute.xlu0 %5147
  %v5152 = vadd.f32 %v5032, %v5144
  %v5153 = vadd.f32 %v5033, %v5146
  %v5154 = vadd.f32 %v5034, %v5148
  %v5155 = vmul.f32 %v5014, -0.27778512
  %v5156 = vmul.f32 %v5015, -0.27778512
  %v5157 = vmul.f32 %v5016, -0.27778512
  %5161 = vrot.lane.b32.xlu0 %v5155, 127
  %v5162 = vpop.permute.xlu0 %5161
  %5163 = vrot.lane.b32.xlu0 %v5156, 127
  %v5164 = vpop.permute.xlu0 %5163
  %5165 = vrot.lane.b32.xlu0 %v5157, 127
  %v5166 = vpop.permute.xlu0 %5165
  %v5170 = vadd.f32 %v5035, %v5162
  %v5171 = vadd.f32 %v5036, %v5164
  %v5172 = vadd.f32 %v5037, %v5166
  %5173 = vrot.lane.b32.xlu0 %v5017, 126
  %v5174 = vpop.permute.xlu0 %5173
  %5175 = vrot.lane.b32.xlu0 %v5018, 126
  %v5176 = vpop.permute.xlu0 %5175
  %5177 = vrot.lane.b32.xlu0 %v5019, 126
  %v5178 = vpop.permute.xlu0 %5177
  %v5182 = vadd.f32 %v5050, %v5174
  %v5183 = vadd.f32 %v5051, %v5176
  %v5184 = vadd.f32 %v5052, %v5178
  %5188 = vrot.lane.b32.xlu0 %v5029, 126
  %v5189 = vpop.permute.xlu0 %5188
  %5190 = vrot.lane.b32.xlu0 %v5030, 126
  %v5191 = vpop.permute.xlu0 %5190
  %5192 = vrot.lane.b32.xlu0 %v5031, 126
  %v5193 = vpop.permute.xlu0 %5192
  %v5197 = vadd.f32 %v5065, %v5189
  %v5198 = vadd.f32 %v5066, %v5191
  %v5199 = vadd.f32 %v5067, %v5193
  %v5200 = vmul.f32 %v5014, -0.19134171
  %v5201 = vmul.f32 %v5015, -0.19134171
  %v5202 = vmul.f32 %v5016, -0.19134171
  %5206 = vrot.lane.b32.xlu0 %v5200, 126
  %v5207 = vpop.permute.xlu0 %5206
  %5208 = vrot.lane.b32.xlu0 %v5201, 126
  %v5209 = vpop.permute.xlu0 %5208
  %5210 = vrot.lane.b32.xlu0 %v5202, 126
  %v5211 = vpop.permute.xlu0 %5210
  %v5215 = vadd.f32 %v5080, %v5207
  %v5216 = vadd.f32 %v5081, %v5209
  %v5217 = vadd.f32 %v5082, %v5211
  %5218 = vrot.lane.b32.xlu0 %v5119, 126
  %v5219 = vpop.permute.xlu0 %5218
  %5220 = vrot.lane.b32.xlu0 %v5120, 126
  %v5221 = vpop.permute.xlu0 %5220
  %5222 = vrot.lane.b32.xlu0 %v5121, 126
  %v5223 = vpop.permute.xlu0 %5222
  %v5227 = vadd.f32 %v5098, %v5219
  %v5228 = vadd.f32 %v5099, %v5221
  %v5229 = vadd.f32 %v5100, %v5223
  %5230 = vrot.lane.b32.xlu0 %v5101, 126
  %v5231 = vpop.permute.xlu0 %5230
  %5232 = vrot.lane.b32.xlu0 %v5102, 126
  %v5233 = vpop.permute.xlu0 %5232
  %5234 = vrot.lane.b32.xlu0 %v5103, 126
  %v5235 = vpop.permute.xlu0 %5234
  %v5239 = vadd.f32 %v5116, %v5231
  %v5240 = vadd.f32 %v5117, %v5233
  %v5241 = vadd.f32 %v5118, %v5235
  %5245 = vrot.lane.b32.xlu0 %v5035, 126
  %v5246 = vpop.permute.xlu0 %5245
  %5247 = vrot.lane.b32.xlu0 %v5036, 126
  %v5248 = vpop.permute.xlu0 %5247
  %5249 = vrot.lane.b32.xlu0 %v5037, 126
  %v5250 = vpop.permute.xlu0 %5249
  %v5254 = vadd.f32 %v5134, %v5246
  %v5255 = vadd.f32 %v5135, %v5248
  %v5256 = vadd.f32 %v5136, %v5250
  %5260 = vrot.lane.b32.xlu0 %v5023, 126
  %v5261 = vpop.permute.xlu0 %5260
  %5262 = vrot.lane.b32.xlu0 %v5024, 126
  %v5263 = vpop.permute.xlu0 %5262
  %5264 = vrot.lane.b32.xlu0 %v5025, 126
  %v5265 = vpop.permute.xlu0 %5264
  %v5269 = vadd.f32 %v5152, %v5261
  %v5270 = vadd.f32 %v5153, %v5263
  %v5271 = vadd.f32 %v5154, %v5265
  %5272 = vrot.lane.b32.xlu0 %v5026, 126
  %v5273 = vpop.permute.xlu0 %5272
  %5274 = vrot.lane.b32.xlu0 %v5027, 126
  %v5275 = vpop.permute.xlu0 %5274
  %5276 = vrot.lane.b32.xlu0 %v5028, 126
  %v5277 = vpop.permute.xlu0 %5276
  %v5281 = vadd.f32 %v5170, %v5273
  %v5282 = vadd.f32 %v5171, %v5275
  %v5283 = vadd.f32 %v5172, %v5277
  %5284 = vrot.lane.b32.xlu0 %v5017, 125
  %v5285 = vpop.permute.xlu0 %5284
  %5286 = vrot.lane.b32.xlu0 %v5018, 125
  %v5287 = vpop.permute.xlu0 %5286
  %5288 = vrot.lane.b32.xlu0 %v5019, 125
  %v5289 = vpop.permute.xlu0 %5288
  %v5293 = vadd.f32 %v5182, %v5285
  %v5294 = vadd.f32 %v5183, %v5287
  %v5295 = vadd.f32 %v5184, %v5289
  %5296 = vrot.lane.b32.xlu0 %v5035, 125
  %v5297 = vpop.permute.xlu0 %5296
  %5298 = vrot.lane.b32.xlu0 %v5036, 125
  %v5299 = vpop.permute.xlu0 %5298
  %5300 = vrot.lane.b32.xlu0 %v5037, 125
  %v5301 = vpop.permute.xlu0 %5300
  %v5305 = vadd.f32 %v5197, %v5297
  %v5306 = vadd.f32 %v5198, %v5299
  %v5307 = vadd.f32 %v5199, %v5301
  %5308 = vrot.lane.b32.xlu0 %v5137, 125
  %v5309 = vpop.permute.xlu0 %5308
  %5310 = vrot.lane.b32.xlu0 %v5138, 125
  %v5311 = vpop.permute.xlu0 %5310
  %5312 = vrot.lane.b32.xlu0 %v5139, 125
  %v5313 = vpop.permute.xlu0 %5312
  %v5317 = vadd.f32 %v5215, %v5309
  %v5318 = vadd.f32 %v5216, %v5311
  %v5319 = vadd.f32 %v5217, %v5313
  %5320 = vrot.lane.b32.xlu0 %v5155, 125
  %v5321 = vpop.permute.xlu0 %5320
  %5322 = vrot.lane.b32.xlu0 %v5156, 125
  %v5323 = vpop.permute.xlu0 %5322
  %5324 = vrot.lane.b32.xlu0 %v5157, 125
  %v5325 = vpop.permute.xlu0 %5324
  %v5329 = vadd.f32 %v5227, %v5321
  %v5330 = vadd.f32 %v5228, %v5323
  %v5331 = vadd.f32 %v5229, %v5325
  %v5332 = vadd.f32 %v5239, %v5285
  %v5333 = vadd.f32 %v5240, %v5287
  %v5334 = vadd.f32 %v5241, %v5289
  %5335 = vrot.lane.b32.xlu0 %v5026, 125
  %v5336 = vpop.permute.xlu0 %5335
  %5337 = vrot.lane.b32.xlu0 %v5027, 125
  %v5338 = vpop.permute.xlu0 %5337
  %5339 = vrot.lane.b32.xlu0 %v5028, 125
  %v5340 = vpop.permute.xlu0 %5339
  %v5344 = vadd.f32 %v5254, %v5336
  %v5345 = vadd.f32 %v5255, %v5338
  %v5346 = vadd.f32 %v5256, %v5340
  %5347 = vrot.lane.b32.xlu0 %v5200, 125
  %v5348 = vpop.permute.xlu0 %5347
  %5349 = vrot.lane.b32.xlu0 %v5201, 125
  %v5350 = vpop.permute.xlu0 %5349
  %5351 = vrot.lane.b32.xlu0 %v5202, 125
  %v5352 = vpop.permute.xlu0 %5351
  %v5356 = vadd.f32 %v5269, %v5348
  %v5357 = vadd.f32 %v5270, %v5350
  %v5358 = vadd.f32 %v5271, %v5352
  %5359 = vrot.lane.b32.xlu0 %v5119, 125
  %v5360 = vpop.permute.xlu0 %5359
  %5361 = vrot.lane.b32.xlu0 %v5120, 125
  %v5362 = vpop.permute.xlu0 %5361
  %5363 = vrot.lane.b32.xlu0 %v5121, 125
  %v5364 = vpop.permute.xlu0 %5363
  %v5368 = vadd.f32 %v5281, %v5360
  %v5369 = vadd.f32 %v5282, %v5362
  %v5370 = vadd.f32 %v5283, %v5364
  %5371 = vrot.lane.b32.xlu0 %v5017, 124
  %v5372 = vpop.permute.xlu0 %5371
  %5373 = vrot.lane.b32.xlu0 %v5018, 124
  %v5374 = vpop.permute.xlu0 %5373
  %5375 = vrot.lane.b32.xlu0 %v5019, 124
  %v5376 = vpop.permute.xlu0 %5375
  %v5380 = vadd.f32 %v5293, %v5372
  %v5381 = vadd.f32 %v5294, %v5374
  %v5382 = vadd.f32 %v5295, %v5376
  %5383 = vrot.lane.b32.xlu0 %v5083, 124
  %v5384 = vpop.permute.xlu0 %5383
  %5385 = vrot.lane.b32.xlu0 %v5084, 124
  %v5386 = vpop.permute.xlu0 %5385
  %5387 = vrot.lane.b32.xlu0 %v5085, 124
  %v5388 = vpop.permute.xlu0 %5387
  %v5392 = vadd.f32 %v5305, %v5384
  %v5393 = vadd.f32 %v5306, %v5386
  %v5394 = vadd.f32 %v5307, %v5388
  %5395 = vrot.lane.b32.xlu0 %v5137, 124
  %v5396 = vpop.permute.xlu0 %5395
  %5397 = vrot.lane.b32.xlu0 %v5138, 124
  %v5398 = vpop.permute.xlu0 %5397
  %5399 = vrot.lane.b32.xlu0 %v5139, 124
  %v5400 = vpop.permute.xlu0 %5399
  %v5404 = vadd.f32 %v5317, %v5396
  %v5405 = vadd.f32 %v5318, %v5398
  %v5406 = vadd.f32 %v5319, %v5400
  %5407 = vrot.lane.b32.xlu0 %v5029, 124
  %v5408 = vpop.permute.xlu0 %5407
  %5409 = vrot.lane.b32.xlu0 %v5030, 124
  %v5410 = vpop.permute.xlu0 %5409
  %5411 = vrot.lane.b32.xlu0 %v5031, 124
  %v5412 = vpop.permute.xlu0 %5411
  %v5416 = vadd.f32 %v5329, %v5408
  %v5417 = vadd.f32 %v5330, %v5410
  %v5418 = vadd.f32 %v5331, %v5412
  %v5419 = vadd.f32 %v5332, %v5372
  %v5420 = vadd.f32 %v5333, %v5374
  %v5421 = vadd.f32 %v5334, %v5376
  %v5422 = vmul.f32 %v5014, -0.4157348
  %v5423 = vmul.f32 %v5015, -0.4157348
  %v5424 = vmul.f32 %v5016, -0.4157348
  %5428 = vrot.lane.b32.xlu0 %v5422, 124
  %v5429 = vpop.permute.xlu0 %5428
  %5430 = vrot.lane.b32.xlu0 %v5423, 124
  %v5431 = vpop.permute.xlu0 %5430
  %5432 = vrot.lane.b32.xlu0 %v5424, 124
  %v5433 = vpop.permute.xlu0 %5432
  %v5437 = vadd.f32 %v5344, %v5429
  %v5438 = vadd.f32 %v5345, %v5431
  %v5439 = vadd.f32 %v5346, %v5433
  %5440 = vrot.lane.b32.xlu0 %v5200, 124
  %v5441 = vpop.permute.xlu0 %5440
  %5442 = vrot.lane.b32.xlu0 %v5201, 124
  %v5443 = vpop.permute.xlu0 %5442
  %5444 = vrot.lane.b32.xlu0 %v5202, 124
  %v5445 = vpop.permute.xlu0 %5444
  %v5449 = vadd.f32 %v5356, %v5441
  %v5450 = vadd.f32 %v5357, %v5443
  %v5451 = vadd.f32 %v5358, %v5445
  %5455 = vrot.lane.b32.xlu0 %v5020, 124
  %v5456 = vpop.permute.xlu0 %5455
  %5457 = vrot.lane.b32.xlu0 %v5021, 124
  %v5458 = vpop.permute.xlu0 %5457
  %5459 = vrot.lane.b32.xlu0 %v5022, 124
  %v5460 = vpop.permute.xlu0 %5459
  %v5464 = vadd.f32 %v5368, %v5456
  %v5465 = vadd.f32 %v5369, %v5458
  %v5466 = vadd.f32 %v5370, %v5460
  %5467 = vrot.lane.b32.xlu0 %v5017, 123
  %v5468 = vpop.permute.xlu0 %5467
  %5469 = vrot.lane.b32.xlu0 %v5018, 123
  %v5470 = vpop.permute.xlu0 %5469
  %5471 = vrot.lane.b32.xlu0 %v5019, 123
  %v5472 = vpop.permute.xlu0 %5471
  %v5476 = vadd.f32 %v5380, %v5468
  %v5477 = vadd.f32 %v5381, %v5470
  %v5478 = vadd.f32 %v5382, %v5472
  %5479 = vrot.lane.b32.xlu0 %v5155, 123
  %v5480 = vpop.permute.xlu0 %5479
  %5481 = vrot.lane.b32.xlu0 %v5156, 123
  %v5482 = vpop.permute.xlu0 %5481
  %5483 = vrot.lane.b32.xlu0 %v5157, 123
  %v5484 = vpop.permute.xlu0 %5483
  %v5488 = vadd.f32 %v5392, %v5480
  %v5489 = vadd.f32 %v5393, %v5482
  %v5490 = vadd.f32 %v5394, %v5484
  %5491 = vrot.lane.b32.xlu0 %v5200, 123
  %v5492 = vpop.permute.xlu0 %5491
  %5493 = vrot.lane.b32.xlu0 %v5201, 123
  %v5494 = vpop.permute.xlu0 %5493
  %5495 = vrot.lane.b32.xlu0 %v5202, 123
  %v5496 = vpop.permute.xlu0 %5495
  %v5500 = vadd.f32 %v5404, %v5492
  %v5501 = vadd.f32 %v5405, %v5494
  %v5502 = vadd.f32 %v5406, %v5496
  %5503 = vrot.lane.b32.xlu0 %v5020, 123
  %v5504 = vpop.permute.xlu0 %5503
  %5505 = vrot.lane.b32.xlu0 %v5021, 123
  %v5506 = vpop.permute.xlu0 %5505
  %5507 = vrot.lane.b32.xlu0 %v5022, 123
  %v5508 = vpop.permute.xlu0 %5507
  %v5512 = vadd.f32 %v5416, %v5504
  %v5513 = vadd.f32 %v5417, %v5506
  %v5514 = vadd.f32 %v5418, %v5508
  %5515 = vrot.lane.b32.xlu0 %v5101, 123
  %v5516 = vpop.permute.xlu0 %5515
  %5517 = vrot.lane.b32.xlu0 %v5102, 123
  %v5518 = vpop.permute.xlu0 %5517
  %5519 = vrot.lane.b32.xlu0 %v5103, 123
  %v5520 = vpop.permute.xlu0 %5519
  %v5524 = vadd.f32 %v5419, %v5516
  %v5525 = vadd.f32 %v5420, %v5518
  %v5526 = vadd.f32 %v5421, %v5520
  %5527 = vrot.lane.b32.xlu0 %v5083, 123
  %v5528 = vpop.permute.xlu0 %5527
  %5529 = vrot.lane.b32.xlu0 %v5084, 123
  %v5530 = vpop.permute.xlu0 %5529
  %5531 = vrot.lane.b32.xlu0 %v5085, 123
  %v5532 = vpop.permute.xlu0 %5531
  %v5536 = vadd.f32 %v5437, %v5528
  %v5537 = vadd.f32 %v5438, %v5530
  %v5538 = vadd.f32 %v5439, %v5532
  %5539 = vrot.lane.b32.xlu0 %v5023, 123
  %v5540 = vpop.permute.xlu0 %5539
  %5541 = vrot.lane.b32.xlu0 %v5024, 123
  %v5542 = vpop.permute.xlu0 %5541
  %5543 = vrot.lane.b32.xlu0 %v5025, 123
  %v5544 = vpop.permute.xlu0 %5543
  %v5548 = vadd.f32 %v5449, %v5540
  %v5549 = vadd.f32 %v5450, %v5542
  %v5550 = vadd.f32 %v5451, %v5544
  %5551 = vrot.lane.b32.xlu0 %v5422, 123
  %v5552 = vpop.permute.xlu0 %5551
  %5553 = vrot.lane.b32.xlu0 %v5423, 123
  %v5554 = vpop.permute.xlu0 %5553
  %5555 = vrot.lane.b32.xlu0 %v5424, 123
  %v5556 = vpop.permute.xlu0 %5555
  %v5560 = vadd.f32 %v5464, %v5552
  %v5561 = vadd.f32 %v5465, %v5554
  %v5562 = vadd.f32 %v5466, %v5556
  %5563 = vrot.lane.b32.xlu0 %v5017, 122
  %v5564 = vpop.permute.xlu0 %5563
  %5565 = vrot.lane.b32.xlu0 %v5018, 122
  %v5566 = vpop.permute.xlu0 %5565
  %5567 = vrot.lane.b32.xlu0 %v5019, 122
  %v5568 = vpop.permute.xlu0 %5567
  %v5572 = vadd.f32 %v5476, %v5564
  %v5573 = vadd.f32 %v5477, %v5566
  %v5574 = vadd.f32 %v5478, %v5568
  %5575 = vrot.lane.b32.xlu0 %v5422, 122
  %v5576 = vpop.permute.xlu0 %5575
  %5577 = vrot.lane.b32.xlu0 %v5423, 122
  %v5578 = vpop.permute.xlu0 %5577
  %5579 = vrot.lane.b32.xlu0 %v5424, 122
  %v5580 = vpop.permute.xlu0 %5579
  %v5584 = vadd.f32 %v5488, %v5576
  %v5585 = vadd.f32 %v5489, %v5578
  %v5586 = vadd.f32 %v5490, %v5580
  %5587 = vrot.lane.b32.xlu0 %v5032, 122
  %v5588 = vpop.permute.xlu0 %5587
  %5589 = vrot.lane.b32.xlu0 %v5033, 122
  %v5590 = vpop.permute.xlu0 %5589
  %5591 = vrot.lane.b32.xlu0 %v5034, 122
  %v5592 = vpop.permute.xlu0 %5591
  %v5596 = vadd.f32 %v5500, %v5588
  %v5597 = vadd.f32 %v5501, %v5590
  %v5598 = vadd.f32 %v5502, %v5592
  %5599 = vrot.lane.b32.xlu0 %v5035, 122
  %v5600 = vpop.permute.xlu0 %5599
  %5601 = vrot.lane.b32.xlu0 %v5036, 122
  %v5602 = vpop.permute.xlu0 %5601
  %5603 = vrot.lane.b32.xlu0 %v5037, 122
  %v5604 = vpop.permute.xlu0 %5603
  %v5608 = vadd.f32 %v5512, %v5600
  %v5609 = vadd.f32 %v5513, %v5602
  %v5610 = vadd.f32 %v5514, %v5604
  %5611 = vrot.lane.b32.xlu0 %v5101, 122
  %v5612 = vpop.permute.xlu0 %5611
  %5613 = vrot.lane.b32.xlu0 %v5102, 122
  %v5614 = vpop.permute.xlu0 %5613
  %5615 = vrot.lane.b32.xlu0 %v5103, 122
  %v5616 = vpop.permute.xlu0 %5615
  %v5620 = vadd.f32 %v5524, %v5612
  %v5621 = vadd.f32 %v5525, %v5614
  %v5622 = vadd.f32 %v5526, %v5616
  %5623 = vrot.lane.b32.xlu0 %v5020, 122
  %v5624 = vpop.permute.xlu0 %5623
  %5625 = vrot.lane.b32.xlu0 %v5021, 122
  %v5626 = vpop.permute.xlu0 %5625
  %5627 = vrot.lane.b32.xlu0 %v5022, 122
  %v5628 = vpop.permute.xlu0 %5627
  %v5632 = vadd.f32 %v5536, %v5624
  %v5633 = vadd.f32 %v5537, %v5626
  %v5634 = vadd.f32 %v5538, %v5628
  %5635 = vrot.lane.b32.xlu0 %v5137, 122
  %v5636 = vpop.permute.xlu0 %5635
  %5637 = vrot.lane.b32.xlu0 %v5138, 122
  %v5638 = vpop.permute.xlu0 %5637
  %5639 = vrot.lane.b32.xlu0 %v5139, 122
  %v5640 = vpop.permute.xlu0 %5639
  %v5644 = vadd.f32 %v5548, %v5636
  %v5645 = vadd.f32 %v5549, %v5638
  %v5646 = vadd.f32 %v5550, %v5640
  %5647 = vrot.lane.b32.xlu0 %v5029, 122
  %v5648 = vpop.permute.xlu0 %5647
  %5649 = vrot.lane.b32.xlu0 %v5030, 122
  %v5650 = vpop.permute.xlu0 %5649
  %5651 = vrot.lane.b32.xlu0 %v5031, 122
  %v5652 = vpop.permute.xlu0 %5651
  %v5656 = vadd.f32 %v5560, %v5648
  %v5657 = vadd.f32 %v5561, %v5650
  %v5658 = vadd.f32 %v5562, %v5652
  %5659 = vrot.lane.b32.xlu0 %v5017, 121
  %v5660 = vpop.permute.xlu0 %5659
  %5661 = vrot.lane.b32.xlu0 %v5018, 121
  %v5662 = vpop.permute.xlu0 %5661
  %5663 = vrot.lane.b32.xlu0 %v5019, 121
  %v5664 = vpop.permute.xlu0 %5663
  %v5668 = vadd.f32 %v5572, %v5660
  %v5669 = vadd.f32 %v5573, %v5662
  %v5670 = vadd.f32 %v5574, %v5664
  %5671 = vrot.lane.b32.xlu0 %v5119, 121
  %v5672 = vpop.permute.xlu0 %5671
  %5673 = vrot.lane.b32.xlu0 %v5120, 121
  %v5674 = vpop.permute.xlu0 %5673
  %5675 = vrot.lane.b32.xlu0 %v5121, 121
  %v5676 = vpop.permute.xlu0 %5675
  %v5680 = vadd.f32 %v5584, %v5672
  %v5681 = vadd.f32 %v5585, %v5674
  %v5682 = vadd.f32 %v5586, %v5676
  %5683 = vrot.lane.b32.xlu0 %v5023, 121
  %v5684 = vpop.permute.xlu0 %5683
  %5685 = vrot.lane.b32.xlu0 %v5024, 121
  %v5686 = vpop.permute.xlu0 %5685
  %5687 = vrot.lane.b32.xlu0 %v5025, 121
  %v5688 = vpop.permute.xlu0 %5687
  %v5692 = vadd.f32 %v5596, %v5684
  %v5693 = vadd.f32 %v5597, %v5686
  %v5694 = vadd.f32 %v5598, %v5688
  %5695 = vrot.lane.b32.xlu0 %v5422, 121
  %v5696 = vpop.permute.xlu0 %5695
  %5697 = vrot.lane.b32.xlu0 %v5423, 121
  %v5698 = vpop.permute.xlu0 %5697
  %5699 = vrot.lane.b32.xlu0 %v5424, 121
  %v5700 = vpop.permute.xlu0 %5699
  %v5704 = vadd.f32 %v5608, %v5696
  %v5705 = vadd.f32 %v5609, %v5698
  %v5706 = vadd.f32 %v5610, %v5700
  %v5707 = vadd.f32 %v5620, %v5660
  %v5708 = vadd.f32 %v5621, %v5662
  %v5709 = vadd.f32 %v5622, %v5664
  %5710 = vrot.lane.b32.xlu0 %v5155, 121
  %v5711 = vpop.permute.xlu0 %5710
  %5712 = vrot.lane.b32.xlu0 %v5156, 121
  %v5713 = vpop.permute.xlu0 %5712
  %5714 = vrot.lane.b32.xlu0 %v5157, 121
  %v5715 = vpop.permute.xlu0 %5714
  %v5719 = vadd.f32 %v5632, %v5711
  %v5720 = vadd.f32 %v5633, %v5713
  %v5721 = vadd.f32 %v5634, %v5715
  %5722 = vrot.lane.b32.xlu0 %v5032, 121
  %v5723 = vpop.permute.xlu0 %5722
  %5724 = vrot.lane.b32.xlu0 %v5033, 121
  %v5725 = vpop.permute.xlu0 %5724
  %5726 = vrot.lane.b32.xlu0 %v5034, 121
  %v5727 = vpop.permute.xlu0 %5726
  %v5731 = vadd.f32 %v5644, %v5723
  %v5732 = vadd.f32 %v5645, %v5725
  %v5733 = vadd.f32 %v5646, %v5727
  %5734 = vrot.lane.b32.xlu0 %v5083, 121
  %v5735 = vpop.permute.xlu0 %5734
  %5736 = vrot.lane.b32.xlu0 %v5084, 121
  %v5737 = vpop.permute.xlu0 %5736
  %5738 = vrot.lane.b32.xlu0 %v5085, 121
  %v5739 = vpop.permute.xlu0 %5738
  %v5743 = vadd.f32 %v5656, %v5735
  %v5744 = vadd.f32 %v5657, %v5737
  %v5745 = vadd.f32 %v5658, %v5739
  %s5746 = scalar_lea.vmem %s1, 504
  %5747 = vst.msk [vmem:[%s5746] sm:$0xff] %vm1161, %v5668
  %5748 = vst.msk [vmem:[%s5746 + $0x8] sm:$0xff] %vm1161, %v5669
  %5749 = vst.msk [vmem:[%s5746 + $0x10] sm:$0x7f] %vm1164, %v5670
  %s5750 = scalar_lea.vmem %s1, 696
  %5751 = vst.msk [vmem:[%s5750] sm:$0xff] %vm1161, %v5680
  %5752 = vst.msk [vmem:[%s5750 + $0x8] sm:$0xff] %vm1161, %v5681
  %5753 = vst.msk [vmem:[%s5750 + $0x10] sm:$0x7f] %vm1164, %v5682
  %s5754 = scalar_lea.vmem %s1, 888
  %5755 = vst.msk [vmem:[%s5754] sm:$0xff] %vm1161, %v5692
  %5756 = vst.msk [vmem:[%s5754 + $0x8] sm:$0xff] %vm1161, %v5693
  %5757 = vst.msk [vmem:[%s5754 + $0x10] sm:$0x7f] %vm1164, %v5694
  %s5758 = scalar_lea.vmem %s1, 1056
  %5759 = vst.msk [vmem:[%s5758] sm:$0xff] %vm1161, %v5704
  %5760 = vst.msk [vmem:[%s5758 + $0x8] sm:$0xff] %vm1161, %v5705
  %5761 = vst.msk [vmem:[%s5758 + $0x10] sm:$0x7f] %vm1164, %v5706
  %s5762 = scalar_lea.vmem %s1, 1200
  %5763 = vst.msk [vmem:[%s5762] sm:$0xff] %vm1161, %v5707
  %5764 = vst.msk [vmem:[%s5762 + $0x8] sm:$0xff] %vm1161, %v5708
  %5765 = vst.msk [vmem:[%s5762 + $0x10] sm:$0x7f] %vm1164, %v5709
  %s5766 = scalar_lea.vmem %s1, 1320
  %5767 = vst.msk [vmem:[%s5766] sm:$0xff] %vm1161, %v5719
  %5768 = vst.msk [vmem:[%s5766 + $0x8] sm:$0xff] %vm1161, %v5720
  %5769 = vst.msk [vmem:[%s5766 + $0x10] sm:$0x7f] %vm1164, %v5721
  %s5770 = scalar_lea.vmem %s1, 1416
  %5771 = vst.msk [vmem:[%s5770] sm:$0xff] %vm1161, %v5731
  %5772 = vst.msk [vmem:[%s5770 + $0x8] sm:$0xff] %vm1161, %v5732
  %5773 = vst.msk [vmem:[%s5770 + $0x10] sm:$0x7f] %vm1164, %v5733
  %s5774 = scalar_lea.vmem %s1, 1488
  %5775 = vst.msk [vmem:[%s5774] sm:$0xff] %vm1161, %v5743
  %5776 = vst.msk [vmem:[%s5774 + $0x8] sm:$0xff] %vm1161, %v5744
  %5777 = vst.msk [vmem:[%s5774 + $0x10] sm:$0x7f] %vm1164, %v5745
  %v5778 = vld [vmem:[%s425] sm:$0xff]
  %v5779 = vld [vmem:[%s425 + $0x8] sm:$0xff]
  %v5780 = vld [vmem:[%s425 + $0x10] sm:$0x7f]
  %v5781 = vmul.f32 %v5778, 0.35355338
  %v5782 = vmul.f32 %v5779, 0.35355338
  %v5783 = vmul.f32 %v5780, 0.35355338
  %v5784 = vmul.f32 %v5778, 0.49039263
  %v5785 = vmul.f32 %v5779, 0.49039263
  %v5786 = vmul.f32 %v5780, 0.49039263
  %v5787 = vmul.f32 %v5778, 0.46193975
  %v5788 = vmul.f32 %v5779, 0.46193975
  %v5789 = vmul.f32 %v5780, 0.46193975
  %v5790 = vmul.f32 %v5778, 0.4157348
  %v5791 = vmul.f32 %v5779, 0.4157348
  %v5792 = vmul.f32 %v5780, 0.4157348
  %v5793 = vmul.f32 %v5778, 0.27778512
  %v5794 = vmul.f32 %v5779, 0.27778512
  %v5795 = vmul.f32 %v5780, 0.27778512
  %v5796 = vmul.f32 %v5778, 0.19134171
  %v5797 = vmul.f32 %v5779, 0.19134171
  %v5798 = vmul.f32 %v5780, 0.19134171
  %v5799 = vmul.f32 %v5778, 0.09754516
  %v5800 = vmul.f32 %v5779, 0.09754516
  %v5801 = vmul.f32 %v5780, 0.09754516
  %5805 = vrot.lane.b32.xlu0 %v5781, 127
  %v5806 = vpop.permute.xlu0 %5805
  %5807 = vrot.lane.b32.xlu0 %v5782, 127
  %v5808 = vpop.permute.xlu0 %5807
  %5809 = vrot.lane.b32.xlu0 %v5783, 127
  %v5810 = vpop.permute.xlu0 %5809
  %v5814 = vadd.f32 %v5781, %v5806
  %v5815 = vadd.f32 %v5782, %v5808
  %v5816 = vadd.f32 %v5783, %v5810
  %5820 = vrot.lane.b32.xlu0 %v5790, 127
  %v5821 = vpop.permute.xlu0 %5820
  %5822 = vrot.lane.b32.xlu0 %v5791, 127
  %v5823 = vpop.permute.xlu0 %5822
  %5824 = vrot.lane.b32.xlu0 %v5792, 127
  %v5825 = vpop.permute.xlu0 %5824
  %v5829 = vadd.f32 %v5784, %v5821
  %v5830 = vadd.f32 %v5785, %v5823
  %v5831 = vadd.f32 %v5786, %v5825
  %5835 = vrot.lane.b32.xlu0 %v5796, 127
  %v5836 = vpop.permute.xlu0 %5835
  %5837 = vrot.lane.b32.xlu0 %v5797, 127
  %v5838 = vpop.permute.xlu0 %5837
  %5839 = vrot.lane.b32.xlu0 %v5798, 127
  %v5840 = vpop.permute.xlu0 %5839
  %v5844 = vadd.f32 %v5787, %v5836
  %v5845 = vadd.f32 %v5788, %v5838
  %v5846 = vadd.f32 %v5789, %v5840
  %v5847 = vmul.f32 %v5778, -0.09754516
  %v5848 = vmul.f32 %v5779, -0.09754516
  %v5849 = vmul.f32 %v5780, -0.09754516
  %5853 = vrot.lane.b32.xlu0 %v5847, 127
  %v5854 = vpop.permute.xlu0 %5853
  %5855 = vrot.lane.b32.xlu0 %v5848, 127
  %v5856 = vpop.permute.xlu0 %5855
  %5857 = vrot.lane.b32.xlu0 %v5849, 127
  %v5858 = vpop.permute.xlu0 %5857
  %v5862 = vadd.f32 %v5790, %v5854
  %v5863 = vadd.f32 %v5791, %v5856
  %v5864 = vadd.f32 %v5792, %v5858
  %v5865 = vmul.f32 %v5778, -0.35355338
  %v5866 = vmul.f32 %v5779, -0.35355338
  %v5867 = vmul.f32 %v5780, -0.35355338
  %5871 = vrot.lane.b32.xlu0 %v5865, 127
  %v5872 = vpop.permute.xlu0 %5871
  %5873 = vrot.lane.b32.xlu0 %v5866, 127
  %v5874 = vpop.permute.xlu0 %5873
  %5875 = vrot.lane.b32.xlu0 %v5867, 127
  %v5876 = vpop.permute.xlu0 %5875
  %v5880 = vadd.f32 %v5781, %v5872
  %v5881 = vadd.f32 %v5782, %v5874
  %v5882 = vadd.f32 %v5783, %v5876
  %v5883 = vmul.f32 %v5778, -0.49039263
  %v5884 = vmul.f32 %v5779, -0.49039263
  %v5885 = vmul.f32 %v5780, -0.49039263
  %5889 = vrot.lane.b32.xlu0 %v5883, 127
  %v5890 = vpop.permute.xlu0 %5889
  %5891 = vrot.lane.b32.xlu0 %v5884, 127
  %v5892 = vpop.permute.xlu0 %5891
  %5893 = vrot.lane.b32.xlu0 %v5885, 127
  %v5894 = vpop.permute.xlu0 %5893
  %v5898 = vadd.f32 %v5793, %v5890
  %v5899 = vadd.f32 %v5794, %v5892
  %v5900 = vadd.f32 %v5795, %v5894
  %v5901 = vmul.f32 %v5778, -0.46193975
  %v5902 = vmul.f32 %v5779, -0.46193975
  %v5903 = vmul.f32 %v5780, -0.46193975
  %5907 = vrot.lane.b32.xlu0 %v5901, 127
  %v5908 = vpop.permute.xlu0 %5907
  %5909 = vrot.lane.b32.xlu0 %v5902, 127
  %v5910 = vpop.permute.xlu0 %5909
  %5911 = vrot.lane.b32.xlu0 %v5903, 127
  %v5912 = vpop.permute.xlu0 %5911
  %v5916 = vadd.f32 %v5796, %v5908
  %v5917 = vadd.f32 %v5797, %v5910
  %v5918 = vadd.f32 %v5798, %v5912
  %v5919 = vmul.f32 %v5778, -0.27778512
  %v5920 = vmul.f32 %v5779, -0.27778512
  %v5921 = vmul.f32 %v5780, -0.27778512
  %5925 = vrot.lane.b32.xlu0 %v5919, 127
  %v5926 = vpop.permute.xlu0 %5925
  %5927 = vrot.lane.b32.xlu0 %v5920, 127
  %v5928 = vpop.permute.xlu0 %5927
  %5929 = vrot.lane.b32.xlu0 %v5921, 127
  %v5930 = vpop.permute.xlu0 %5929
  %v5934 = vadd.f32 %v5799, %v5926
  %v5935 = vadd.f32 %v5800, %v5928
  %v5936 = vadd.f32 %v5801, %v5930
  %5937 = vrot.lane.b32.xlu0 %v5781, 126
  %v5938 = vpop.permute.xlu0 %5937
  %5939 = vrot.lane.b32.xlu0 %v5782, 126
  %v5940 = vpop.permute.xlu0 %5939
  %5941 = vrot.lane.b32.xlu0 %v5783, 126
  %v5942 = vpop.permute.xlu0 %5941
  %v5946 = vadd.f32 %v5814, %v5938
  %v5947 = vadd.f32 %v5815, %v5940
  %v5948 = vadd.f32 %v5816, %v5942
  %5952 = vrot.lane.b32.xlu0 %v5793, 126
  %v5953 = vpop.permute.xlu0 %5952
  %5954 = vrot.lane.b32.xlu0 %v5794, 126
  %v5955 = vpop.permute.xlu0 %5954
  %5956 = vrot.lane.b32.xlu0 %v5795, 126
  %v5957 = vpop.permute.xlu0 %5956
  %v5961 = vadd.f32 %v5829, %v5953
  %v5962 = vadd.f32 %v5830, %v5955
  %v5963 = vadd.f32 %v5831, %v5957
  %v5964 = vmul.f32 %v5778, -0.19134171
  %v5965 = vmul.f32 %v5779, -0.19134171
  %v5966 = vmul.f32 %v5780, -0.19134171
  %5970 = vrot.lane.b32.xlu0 %v5964, 126
  %v5971 = vpop.permute.xlu0 %5970
  %5972 = vrot.lane.b32.xlu0 %v5965, 126
  %v5973 = vpop.permute.xlu0 %5972
  %5974 = vrot.lane.b32.xlu0 %v5966, 126
  %v5975 = vpop.permute.xlu0 %5974
  %v5979 = vadd.f32 %v5844, %v5971
  %v5980 = vadd.f32 %v5845, %v5973
  %v5981 = vadd.f32 %v5846, %v5975
  %5982 = vrot.lane.b32.xlu0 %v5883, 126
  %v5983 = vpop.permute.xlu0 %5982
  %5984 = vrot.lane.b32.xlu0 %v5884, 126
  %v5985 = vpop.permute.xlu0 %5984
  %5986 = vrot.lane.b32.xlu0 %v5885, 126
  %v5987 = vpop.permute.xlu0 %5986
  %v5991 = vadd.f32 %v5862, %v5983
  %v5992 = vadd.f32 %v5863, %v5985
  %v5993 = vadd.f32 %v5864, %v5987
  %5994 = vrot.lane.b32.xlu0 %v5865, 126
  %v5995 = vpop.permute.xlu0 %5994
  %5996 = vrot.lane.b32.xlu0 %v5866, 126
  %v5997 = vpop.permute.xlu0 %5996
  %5998 = vrot.lane.b32.xlu0 %v5867, 126
  %v5999 = vpop.permute.xlu0 %5998
  %v6003 = vadd.f32 %v5880, %v5995
  %v6004 = vadd.f32 %v5881, %v5997
  %v6005 = vadd.f32 %v5882, %v5999
  %6009 = vrot.lane.b32.xlu0 %v5799, 126
  %v6010 = vpop.permute.xlu0 %6009
  %6011 = vrot.lane.b32.xlu0 %v5800, 126
  %v6012 = vpop.permute.xlu0 %6011
  %6013 = vrot.lane.b32.xlu0 %v5801, 126
  %v6014 = vpop.permute.xlu0 %6013
  %v6018 = vadd.f32 %v5898, %v6010
  %v6019 = vadd.f32 %v5899, %v6012
  %v6020 = vadd.f32 %v5900, %v6014
  %6024 = vrot.lane.b32.xlu0 %v5787, 126
  %v6025 = vpop.permute.xlu0 %6024
  %6026 = vrot.lane.b32.xlu0 %v5788, 126
  %v6027 = vpop.permute.xlu0 %6026
  %6028 = vrot.lane.b32.xlu0 %v5789, 126
  %v6029 = vpop.permute.xlu0 %6028
  %v6033 = vadd.f32 %v5916, %v6025
  %v6034 = vadd.f32 %v5917, %v6027
  %v6035 = vadd.f32 %v5918, %v6029
  %6036 = vrot.lane.b32.xlu0 %v5790, 126
  %v6037 = vpop.permute.xlu0 %6036
  %6038 = vrot.lane.b32.xlu0 %v5791, 126
  %v6039 = vpop.permute.xlu0 %6038
  %6040 = vrot.lane.b32.xlu0 %v5792, 126
  %v6041 = vpop.permute.xlu0 %6040
  %v6045 = vadd.f32 %v5934, %v6037
  %v6046 = vadd.f32 %v5935, %v6039
  %v6047 = vadd.f32 %v5936, %v6041
  %6048 = vrot.lane.b32.xlu0 %v5781, 125
  %v6049 = vpop.permute.xlu0 %6048
  %6050 = vrot.lane.b32.xlu0 %v5782, 125
  %v6051 = vpop.permute.xlu0 %6050
  %6052 = vrot.lane.b32.xlu0 %v5783, 125
  %v6053 = vpop.permute.xlu0 %6052
  %v6057 = vadd.f32 %v5946, %v6049
  %v6058 = vadd.f32 %v5947, %v6051
  %v6059 = vadd.f32 %v5948, %v6053
  %6060 = vrot.lane.b32.xlu0 %v5799, 125
  %v6061 = vpop.permute.xlu0 %6060
  %6062 = vrot.lane.b32.xlu0 %v5800, 125
  %v6063 = vpop.permute.xlu0 %6062
  %6064 = vrot.lane.b32.xlu0 %v5801, 125
  %v6065 = vpop.permute.xlu0 %6064
  %v6069 = vadd.f32 %v5961, %v6061
  %v6070 = vadd.f32 %v5962, %v6063
  %v6071 = vadd.f32 %v5963, %v6065
  %6072 = vrot.lane.b32.xlu0 %v5901, 125
  %v6073 = vpop.permute.xlu0 %6072
  %6074 = vrot.lane.b32.xlu0 %v5902, 125
  %v6075 = vpop.permute.xlu0 %6074
  %6076 = vrot.lane.b32.xlu0 %v5903, 125
  %v6077 = vpop.permute.xlu0 %6076
  %v6081 = vadd.f32 %v5979, %v6073
  %v6082 = vadd.f32 %v5980, %v6075
  %v6083 = vadd.f32 %v5981, %v6077
  %6084 = vrot.lane.b32.xlu0 %v5919, 125
  %v6085 = vpop.permute.xlu0 %6084
  %6086 = vrot.lane.b32.xlu0 %v5920, 125
  %v6087 = vpop.permute.xlu0 %6086
  %6088 = vrot.lane.b32.xlu0 %v5921, 125
  %v6089 = vpop.permute.xlu0 %6088
  %v6093 = vadd.f32 %v5991, %v6085
  %v6094 = vadd.f32 %v5992, %v6087
  %v6095 = vadd.f32 %v5993, %v6089
  %v6096 = vadd.f32 %v6003, %v6049
  %v6097 = vadd.f32 %v6004, %v6051
  %v6098 = vadd.f32 %v6005, %v6053
  %6099 = vrot.lane.b32.xlu0 %v5790, 125
  %v6100 = vpop.permute.xlu0 %6099
  %6101 = vrot.lane.b32.xlu0 %v5791, 125
  %v6102 = vpop.permute.xlu0 %6101
  %6103 = vrot.lane.b32.xlu0 %v5792, 125
  %v6104 = vpop.permute.xlu0 %6103
  %v6108 = vadd.f32 %v6018, %v6100
  %v6109 = vadd.f32 %v6019, %v6102
  %v6110 = vadd.f32 %v6020, %v6104
  %6111 = vrot.lane.b32.xlu0 %v5964, 125
  %v6112 = vpop.permute.xlu0 %6111
  %6113 = vrot.lane.b32.xlu0 %v5965, 125
  %v6114 = vpop.permute.xlu0 %6113
  %6115 = vrot.lane.b32.xlu0 %v5966, 125
  %v6116 = vpop.permute.xlu0 %6115
  %v6120 = vadd.f32 %v6033, %v6112
  %v6121 = vadd.f32 %v6034, %v6114
  %v6122 = vadd.f32 %v6035, %v6116
  %6123 = vrot.lane.b32.xlu0 %v5883, 125
  %v6124 = vpop.permute.xlu0 %6123
  %6125 = vrot.lane.b32.xlu0 %v5884, 125
  %v6126 = vpop.permute.xlu0 %6125
  %6127 = vrot.lane.b32.xlu0 %v5885, 125
  %v6128 = vpop.permute.xlu0 %6127
  %v6132 = vadd.f32 %v6045, %v6124
  %v6133 = vadd.f32 %v6046, %v6126
  %v6134 = vadd.f32 %v6047, %v6128
  %6135 = vrot.lane.b32.xlu0 %v5781, 124
  %v6136 = vpop.permute.xlu0 %6135
  %6137 = vrot.lane.b32.xlu0 %v5782, 124
  %v6138 = vpop.permute.xlu0 %6137
  %6139 = vrot.lane.b32.xlu0 %v5783, 124
  %v6140 = vpop.permute.xlu0 %6139
  %v6144 = vadd.f32 %v6057, %v6136
  %v6145 = vadd.f32 %v6058, %v6138
  %v6146 = vadd.f32 %v6059, %v6140
  %6147 = vrot.lane.b32.xlu0 %v5847, 124
  %v6148 = vpop.permute.xlu0 %6147
  %6149 = vrot.lane.b32.xlu0 %v5848, 124
  %v6150 = vpop.permute.xlu0 %6149
  %6151 = vrot.lane.b32.xlu0 %v5849, 124
  %v6152 = vpop.permute.xlu0 %6151
  %v6156 = vadd.f32 %v6069, %v6148
  %v6157 = vadd.f32 %v6070, %v6150
  %v6158 = vadd.f32 %v6071, %v6152
  %6159 = vrot.lane.b32.xlu0 %v5901, 124
  %v6160 = vpop.permute.xlu0 %6159
  %6161 = vrot.lane.b32.xlu0 %v5902, 124
  %v6162 = vpop.permute.xlu0 %6161
  %6163 = vrot.lane.b32.xlu0 %v5903, 124
  %v6164 = vpop.permute.xlu0 %6163
  %v6168 = vadd.f32 %v6081, %v6160
  %v6169 = vadd.f32 %v6082, %v6162
  %v6170 = vadd.f32 %v6083, %v6164
  %6171 = vrot.lane.b32.xlu0 %v5793, 124
  %v6172 = vpop.permute.xlu0 %6171
  %6173 = vrot.lane.b32.xlu0 %v5794, 124
  %v6174 = vpop.permute.xlu0 %6173
  %6175 = vrot.lane.b32.xlu0 %v5795, 124
  %v6176 = vpop.permute.xlu0 %6175
  %v6180 = vadd.f32 %v6093, %v6172
  %v6181 = vadd.f32 %v6094, %v6174
  %v6182 = vadd.f32 %v6095, %v6176
  %v6183 = vadd.f32 %v6096, %v6136
  %v6184 = vadd.f32 %v6097, %v6138
  %v6185 = vadd.f32 %v6098, %v6140
  %v6186 = vmul.f32 %v5778, -0.4157348
  %v6187 = vmul.f32 %v5779, -0.4157348
  %v6188 = vmul.f32 %v5780, -0.4157348
  %6192 = vrot.lane.b32.xlu0 %v6186, 124
  %v6193 = vpop.permute.xlu0 %6192
  %6194 = vrot.lane.b32.xlu0 %v6187, 124
  %v6195 = vpop.permute.xlu0 %6194
  %6196 = vrot.lane.b32.xlu0 %v6188, 124
  %v6197 = vpop.permute.xlu0 %6196
  %v6201 = vadd.f32 %v6108, %v6193
  %v6202 = vadd.f32 %v6109, %v6195
  %v6203 = vadd.f32 %v6110, %v6197
  %6204 = vrot.lane.b32.xlu0 %v5964, 124
  %v6205 = vpop.permute.xlu0 %6204
  %6206 = vrot.lane.b32.xlu0 %v5965, 124
  %v6207 = vpop.permute.xlu0 %6206
  %6208 = vrot.lane.b32.xlu0 %v5966, 124
  %v6209 = vpop.permute.xlu0 %6208
  %v6213 = vadd.f32 %v6120, %v6205
  %v6214 = vadd.f32 %v6121, %v6207
  %v6215 = vadd.f32 %v6122, %v6209
  %6219 = vrot.lane.b32.xlu0 %v5784, 124
  %v6220 = vpop.permute.xlu0 %6219
  %6221 = vrot.lane.b32.xlu0 %v5785, 124
  %v6222 = vpop.permute.xlu0 %6221
  %6223 = vrot.lane.b32.xlu0 %v5786, 124
  %v6224 = vpop.permute.xlu0 %6223
  %v6228 = vadd.f32 %v6132, %v6220
  %v6229 = vadd.f32 %v6133, %v6222
  %v6230 = vadd.f32 %v6134, %v6224
  %6231 = vrot.lane.b32.xlu0 %v5781, 123
  %v6232 = vpop.permute.xlu0 %6231
  %6233 = vrot.lane.b32.xlu0 %v5782, 123
  %v6234 = vpop.permute.xlu0 %6233
  %6235 = vrot.lane.b32.xlu0 %v5783, 123
  %v6236 = vpop.permute.xlu0 %6235
  %v6240 = vadd.f32 %v6144, %v6232
  %v6241 = vadd.f32 %v6145, %v6234
  %v6242 = vadd.f32 %v6146, %v6236
  %6243 = vrot.lane.b32.xlu0 %v5919, 123
  %v6244 = vpop.permute.xlu0 %6243
  %6245 = vrot.lane.b32.xlu0 %v5920, 123
  %v6246 = vpop.permute.xlu0 %6245
  %6247 = vrot.lane.b32.xlu0 %v5921, 123
  %v6248 = vpop.permute.xlu0 %6247
  %v6252 = vadd.f32 %v6156, %v6244
  %v6253 = vadd.f32 %v6157, %v6246
  %v6254 = vadd.f32 %v6158, %v6248
  %6255 = vrot.lane.b32.xlu0 %v5964, 123
  %v6256 = vpop.permute.xlu0 %6255
  %6257 = vrot.lane.b32.xlu0 %v5965, 123
  %v6258 = vpop.permute.xlu0 %6257
  %6259 = vrot.lane.b32.xlu0 %v5966, 123
  %v6260 = vpop.permute.xlu0 %6259
  %v6264 = vadd.f32 %v6168, %v6256
  %v6265 = vadd.f32 %v6169, %v6258
  %v6266 = vadd.f32 %v6170, %v6260
  %6267 = vrot.lane.b32.xlu0 %v5784, 123
  %v6268 = vpop.permute.xlu0 %6267
  %6269 = vrot.lane.b32.xlu0 %v5785, 123
  %v6270 = vpop.permute.xlu0 %6269
  %6271 = vrot.lane.b32.xlu0 %v5786, 123
  %v6272 = vpop.permute.xlu0 %6271
  %v6276 = vadd.f32 %v6180, %v6268
  %v6277 = vadd.f32 %v6181, %v6270
  %v6278 = vadd.f32 %v6182, %v6272
  %6279 = vrot.lane.b32.xlu0 %v5865, 123
  %v6280 = vpop.permute.xlu0 %6279
  %6281 = vrot.lane.b32.xlu0 %v5866, 123
  %v6282 = vpop.permute.xlu0 %6281
  %6283 = vrot.lane.b32.xlu0 %v5867, 123
  %v6284 = vpop.permute.xlu0 %6283
  %v6288 = vadd.f32 %v6183, %v6280
  %v6289 = vadd.f32 %v6184, %v6282
  %v6290 = vadd.f32 %v6185, %v6284
  %6291 = vrot.lane.b32.xlu0 %v5847, 123
  %v6292 = vpop.permute.xlu0 %6291
  %6293 = vrot.lane.b32.xlu0 %v5848, 123
  %v6294 = vpop.permute.xlu0 %6293
  %6295 = vrot.lane.b32.xlu0 %v5849, 123
  %v6296 = vpop.permute.xlu0 %6295
  %v6300 = vadd.f32 %v6201, %v6292
  %v6301 = vadd.f32 %v6202, %v6294
  %v6302 = vadd.f32 %v6203, %v6296
  %6303 = vrot.lane.b32.xlu0 %v5787, 123
  %v6304 = vpop.permute.xlu0 %6303
  %6305 = vrot.lane.b32.xlu0 %v5788, 123
  %v6306 = vpop.permute.xlu0 %6305
  %6307 = vrot.lane.b32.xlu0 %v5789, 123
  %v6308 = vpop.permute.xlu0 %6307
  %v6312 = vadd.f32 %v6213, %v6304
  %v6313 = vadd.f32 %v6214, %v6306
  %v6314 = vadd.f32 %v6215, %v6308
  %6315 = vrot.lane.b32.xlu0 %v6186, 123
  %v6316 = vpop.permute.xlu0 %6315
  %6317 = vrot.lane.b32.xlu0 %v6187, 123
  %v6318 = vpop.permute.xlu0 %6317
  %6319 = vrot.lane.b32.xlu0 %v6188, 123
  %v6320 = vpop.permute.xlu0 %6319
  %v6324 = vadd.f32 %v6228, %v6316
  %v6325 = vadd.f32 %v6229, %v6318
  %v6326 = vadd.f32 %v6230, %v6320
  %6327 = vrot.lane.b32.xlu0 %v5781, 122
  %v6328 = vpop.permute.xlu0 %6327
  %6329 = vrot.lane.b32.xlu0 %v5782, 122
  %v6330 = vpop.permute.xlu0 %6329
  %6331 = vrot.lane.b32.xlu0 %v5783, 122
  %v6332 = vpop.permute.xlu0 %6331
  %v6336 = vadd.f32 %v6240, %v6328
  %v6337 = vadd.f32 %v6241, %v6330
  %v6338 = vadd.f32 %v6242, %v6332
  %6339 = vrot.lane.b32.xlu0 %v6186, 122
  %v6340 = vpop.permute.xlu0 %6339
  %6341 = vrot.lane.b32.xlu0 %v6187, 122
  %v6342 = vpop.permute.xlu0 %6341
  %6343 = vrot.lane.b32.xlu0 %v6188, 122
  %v6344 = vpop.permute.xlu0 %6343
  %v6348 = vadd.f32 %v6252, %v6340
  %v6349 = vadd.f32 %v6253, %v6342
  %v6350 = vadd.f32 %v6254, %v6344
  %6351 = vrot.lane.b32.xlu0 %v5796, 122
  %v6352 = vpop.permute.xlu0 %6351
  %6353 = vrot.lane.b32.xlu0 %v5797, 122
  %v6354 = vpop.permute.xlu0 %6353
  %6355 = vrot.lane.b32.xlu0 %v5798, 122
  %v6356 = vpop.permute.xlu0 %6355
  %v6360 = vadd.f32 %v6264, %v6352
  %v6361 = vadd.f32 %v6265, %v6354
  %v6362 = vadd.f32 %v6266, %v6356
  %6363 = vrot.lane.b32.xlu0 %v5799, 122
  %v6364 = vpop.permute.xlu0 %6363
  %6365 = vrot.lane.b32.xlu0 %v5800, 122
  %v6366 = vpop.permute.xlu0 %6365
  %6367 = vrot.lane.b32.xlu0 %v5801, 122
  %v6368 = vpop.permute.xlu0 %6367
  %v6372 = vadd.f32 %v6276, %v6364
  %v6373 = vadd.f32 %v6277, %v6366
  %v6374 = vadd.f32 %v6278, %v6368
  %6375 = vrot.lane.b32.xlu0 %v5865, 122
  %v6376 = vpop.permute.xlu0 %6375
  %6377 = vrot.lane.b32.xlu0 %v5866, 122
  %v6378 = vpop.permute.xlu0 %6377
  %6379 = vrot.lane.b32.xlu0 %v5867, 122
  %v6380 = vpop.permute.xlu0 %6379
  %v6384 = vadd.f32 %v6288, %v6376
  %v6385 = vadd.f32 %v6289, %v6378
  %v6386 = vadd.f32 %v6290, %v6380
  %6387 = vrot.lane.b32.xlu0 %v5784, 122
  %v6388 = vpop.permute.xlu0 %6387
  %6389 = vrot.lane.b32.xlu0 %v5785, 122
  %v6390 = vpop.permute.xlu0 %6389
  %6391 = vrot.lane.b32.xlu0 %v5786, 122
  %v6392 = vpop.permute.xlu0 %6391
  %v6396 = vadd.f32 %v6300, %v6388
  %v6397 = vadd.f32 %v6301, %v6390
  %v6398 = vadd.f32 %v6302, %v6392
  %6399 = vrot.lane.b32.xlu0 %v5901, 122
  %v6400 = vpop.permute.xlu0 %6399
  %6401 = vrot.lane.b32.xlu0 %v5902, 122
  %v6402 = vpop.permute.xlu0 %6401
  %6403 = vrot.lane.b32.xlu0 %v5903, 122
  %v6404 = vpop.permute.xlu0 %6403
  %v6408 = vadd.f32 %v6312, %v6400
  %v6409 = vadd.f32 %v6313, %v6402
  %v6410 = vadd.f32 %v6314, %v6404
  %6411 = vrot.lane.b32.xlu0 %v5793, 122
  %v6412 = vpop.permute.xlu0 %6411
  %6413 = vrot.lane.b32.xlu0 %v5794, 122
  %v6414 = vpop.permute.xlu0 %6413
  %6415 = vrot.lane.b32.xlu0 %v5795, 122
  %v6416 = vpop.permute.xlu0 %6415
  %v6420 = vadd.f32 %v6324, %v6412
  %v6421 = vadd.f32 %v6325, %v6414
  %v6422 = vadd.f32 %v6326, %v6416
  %6423 = vrot.lane.b32.xlu0 %v5781, 121
  %v6424 = vpop.permute.xlu0 %6423
  %6425 = vrot.lane.b32.xlu0 %v5782, 121
  %v6426 = vpop.permute.xlu0 %6425
  %6427 = vrot.lane.b32.xlu0 %v5783, 121
  %v6428 = vpop.permute.xlu0 %6427
  %v6432 = vadd.f32 %v6336, %v6424
  %v6433 = vadd.f32 %v6337, %v6426
  %v6434 = vadd.f32 %v6338, %v6428
  %6435 = vrot.lane.b32.xlu0 %v5883, 121
  %v6436 = vpop.permute.xlu0 %6435
  %6437 = vrot.lane.b32.xlu0 %v5884, 121
  %v6438 = vpop.permute.xlu0 %6437
  %6439 = vrot.lane.b32.xlu0 %v5885, 121
  %v6440 = vpop.permute.xlu0 %6439
  %v6444 = vadd.f32 %v6348, %v6436
  %v6445 = vadd.f32 %v6349, %v6438
  %v6446 = vadd.f32 %v6350, %v6440
  %6447 = vrot.lane.b32.xlu0 %v5787, 121
  %v6448 = vpop.permute.xlu0 %6447
  %6449 = vrot.lane.b32.xlu0 %v5788, 121
  %v6450 = vpop.permute.xlu0 %6449
  %6451 = vrot.lane.b32.xlu0 %v5789, 121
  %v6452 = vpop.permute.xlu0 %6451
  %v6456 = vadd.f32 %v6360, %v6448
  %v6457 = vadd.f32 %v6361, %v6450
  %v6458 = vadd.f32 %v6362, %v6452
  %6459 = vrot.lane.b32.xlu0 %v6186, 121
  %v6460 = vpop.permute.xlu0 %6459
  %6461 = vrot.lane.b32.xlu0 %v6187, 121
  %v6462 = vpop.permute.xlu0 %6461
  %6463 = vrot.lane.b32.xlu0 %v6188, 121
  %v6464 = vpop.permute.xlu0 %6463
  %v6468 = vadd.f32 %v6372, %v6460
  %v6469 = vadd.f32 %v6373, %v6462
  %v6470 = vadd.f32 %v6374, %v6464
  %v6471 = vadd.f32 %v6384, %v6424
  %v6472 = vadd.f32 %v6385, %v6426
  %v6473 = vadd.f32 %v6386, %v6428
  %6474 = vrot.lane.b32.xlu0 %v5919, 121
  %v6475 = vpop.permute.xlu0 %6474
  %6476 = vrot.lane.b32.xlu0 %v5920, 121
  %v6477 = vpop.permute.xlu0 %6476
  %6478 = vrot.lane.b32.xlu0 %v5921, 121
  %v6479 = vpop.permute.xlu0 %6478
  %v6483 = vadd.f32 %v6396, %v6475
  %v6484 = vadd.f32 %v6397, %v6477
  %v6485 = vadd.f32 %v6398, %v6479
  %6486 = vrot.lane.b32.xlu0 %v5796, 121
  %v6487 = vpop.permute.xlu0 %6486
  %6488 = vrot.lane.b32.xlu0 %v5797, 121
  %v6489 = vpop.permute.xlu0 %6488
  %6490 = vrot.lane.b32.xlu0 %v5798, 121
  %v6491 = vpop.permute.xlu0 %6490
  %v6495 = vadd.f32 %v6408, %v6487
  %v6496 = vadd.f32 %v6409, %v6489
  %v6497 = vadd.f32 %v6410, %v6491
  %6498 = vrot.lane.b32.xlu0 %v5847, 121
  %v6499 = vpop.permute.xlu0 %6498
  %6500 = vrot.lane.b32.xlu0 %v5848, 121
  %v6501 = vpop.permute.xlu0 %6500
  %6502 = vrot.lane.b32.xlu0 %v5849, 121
  %v6503 = vpop.permute.xlu0 %6502
  %v6507 = vadd.f32 %v6420, %v6499
  %v6508 = vadd.f32 %v6421, %v6501
  %v6509 = vadd.f32 %v6422, %v6503
  %s6510 = scalar_lea.vmem %s1, 672
  %6511 = vst.msk [vmem:[%s6510] sm:$0xff] %vm1161, %v6432
  %6512 = vst.msk [vmem:[%s6510 + $0x8] sm:$0xff] %vm1161, %v6433
  %6513 = vst.msk [vmem:[%s6510 + $0x10] sm:$0x7f] %vm1164, %v6434
  %s6514 = scalar_lea.vmem %s1, 864
  %6515 = vst.msk [vmem:[%s6514] sm:$0xff] %vm1161, %v6444
  %6516 = vst.msk [vmem:[%s6514 + $0x8] sm:$0xff] %vm1161, %v6445
  %6517 = vst.msk [vmem:[%s6514 + $0x10] sm:$0x7f] %vm1164, %v6446
  %s6518 = scalar_lea.vmem %s1, 1032
  %6519 = vst.msk [vmem:[%s6518] sm:$0xff] %vm1161, %v6456
  %6520 = vst.msk [vmem:[%s6518 + $0x8] sm:$0xff] %vm1161, %v6457
  %6521 = vst.msk [vmem:[%s6518 + $0x10] sm:$0x7f] %vm1164, %v6458
  %s6522 = scalar_lea.vmem %s1, 1176
  %6523 = vst.msk [vmem:[%s6522] sm:$0xff] %vm1161, %v6468
  %6524 = vst.msk [vmem:[%s6522 + $0x8] sm:$0xff] %vm1161, %v6469
  %6525 = vst.msk [vmem:[%s6522 + $0x10] sm:$0x7f] %vm1164, %v6470
  %s6526 = scalar_lea.vmem %s1, 1296
  %6527 = vst.msk [vmem:[%s6526] sm:$0xff] %vm1161, %v6471
  %6528 = vst.msk [vmem:[%s6526 + $0x8] sm:$0xff] %vm1161, %v6472
  %6529 = vst.msk [vmem:[%s6526 + $0x10] sm:$0x7f] %vm1164, %v6473
  %s6530 = scalar_lea.vmem %s1, 1392
  %6531 = vst.msk [vmem:[%s6530] sm:$0xff] %vm1161, %v6483
  %6532 = vst.msk [vmem:[%s6530 + $0x8] sm:$0xff] %vm1161, %v6484
  %6533 = vst.msk [vmem:[%s6530 + $0x10] sm:$0x7f] %vm1164, %v6485
  %s6534 = scalar_lea.vmem %s1, 1464
  %6535 = vst.msk [vmem:[%s6534] sm:$0xff] %vm1161, %v6495
  %6536 = vst.msk [vmem:[%s6534 + $0x8] sm:$0xff] %vm1161, %v6496
  %6537 = vst.msk [vmem:[%s6534 + $0x10] sm:$0x7f] %vm1164, %v6497
  %s6538 = scalar_lea.vmem %s1, 1512
  %6539 = vst.msk [vmem:[%s6538] sm:$0xff] %vm1161, %v6507
  %6540 = vst.msk [vmem:[%s6538 + $0x8] sm:$0xff] %vm1161, %v6508
  %6541 = vst.msk [vmem:[%s6538 + $0x10] sm:$0x7f] %vm1164, %v6509
  // Predicated region
  $region6: #{_dct_conv_forward_impl.1} parent=0 // pred_check
    _
  $region7: #{_dct_conv_forward_impl.1} parent=0 // pred_check_branch
    %6543 = sbr.rel (0) target = $region9
  $region8: #{_dct_conv_forward_impl.1} parent=0 // pred_region
    _
  $region9: #{_dct_conv_forward_impl.1} parent=0 // pred_fallthru
    _
  // Predicated region
  $region10: #{_dct_conv_forward_impl.1} parent=0 // pred_check
    _
  $region11: #{_dct_conv_forward_impl.1} parent=0 // pred_check_branch
    %6545 = sbr.rel (0) target = $region13
  $region12: #{_dct_conv_forward_impl.1} parent=0 // pred_region
    _
  $region13: #{_dct_conv_forward_impl.1} parent=0 // pred_fallthru
    _

</llo_original>
